<compile_context>
chip_gen: v7x
topology: tpu7x:2x2x1
jax: 0.10.0
libtpu: 0.0.40
codegen_flags: <defaults>
</compile_context>

<pallas_src>
import functools

import jax
import jax.numpy as jnp
from jax import lax
from jax.experimental import pallas as pl
from jax.experimental.pallas import tpu as pltpu


# ---------------------------------------------------------------------------
# Fused bidirectional LSTM layer kernel (one grid step per direction).
#
# refs (with_head=False):
#   x_ref   : (n_parts, seq, B, Dp)   time-major input (parts = prev-layer dirs)
#   wih_ref : (1, n_parts*Dp, 4H)     this direction's input->gate weights
#   whh_ref : (1, H, 4H)              this direction's hidden->gate weights
#   b_ref   : (1, 1, 4H)              combined bias (b_ih + b_hh)
#   y_ref   : (1, seq, B, H)          this direction's per-timestep hidden
#   xw_sc   : VMEM (seq, B, 4H) f32   hoisted input projection
#   h_sc,c_sc: VMEM (B, H) f32
# with_head=True additionally:
#   wh_ref  : (1, H, out)             linear-head columns for this direction
#   bh_ref  : (1, 1, out)             head bias (fwd dir only, zeros for bwd)
#   head_ref: (1, B, out)             partial logits for this direction
# Gate order follows PyTorch: i, f, g, o.
# ---------------------------------------------------------------------------
def bilstm_layer_kernel(*refs, seq, n_parts, d_part, hidden, with_head):
    if with_head:
        (x_ref, wih_ref, whh_ref, b_ref, wh_ref, bh_ref,
         y_ref, head_ref, xw_sc, h_sc, c_sc) = refs
    else:
        (x_ref, wih_ref, whh_ref, b_ref, y_ref, xw_sc, h_sc, c_sc) = refs

    d = pl.program_id(0)          # 0 = forward, 1 = backward (time reversed)
    H = hidden
    B = h_sc.shape[0]

    # Hoisted loads / broadcast (kept live across both loops).
    wih = wih_ref[0]                                      # (n_parts*Dp, 4H)
    whh = whh_ref[0]                                      # (H, 4H)
    bias = jnp.broadcast_to(b_ref[0], (B, 4 * H))         # (B, 4H)

    # ---- 1) input projection hoisted out of the recurrence ---------------
    # xw[t] = sum_p x[p, t] @ wih[p*Dp:(p+1)*Dp] + bias.  Per-t dots are
    # independent, so the MXU streams them; only h @ whh stays serial.
    def proj_step(t, carry):
        g = jnp.dot(x_ref[0, t], wih[0:d_part, :],
                    preferred_element_type=jnp.float32)
        for p in range(1, n_parts):
            g = g + jnp.dot(x_ref[p, t], wih[p * d_part:(p + 1) * d_part, :],
                            preferred_element_type=jnp.float32)
        xw_sc[t] = g + bias
        return carry

    lax.fori_loop(0, seq, proj_step, 0, unroll=True)

    # ---- 2) serial recurrence --------------------------------------------
    h_sc[...] = jnp.zeros_like(h_sc)   # h0 = 0
    c_sc[...] = jnp.zeros_like(c_sc)   # c0 = 0

    def step(t, carry):
        # forward walks time 0..seq-1, backward walks seq-1..0
        time = jnp.where(d == 0, t, seq - 1 - t)
        gates = xw_sc[time] + jnp.dot(h_sc[...], whh,
                                      preferred_element_type=jnp.float32)
        # NOTE: with H=32 each gate is a 32-lane sub-slice of one 128-lane
        # vreg (rotate/mask cost); for H >= 128 these become full-tile slices.
        i_g = jax.nn.sigmoid(gates[:, 0 * H:1 * H])
        f_g = jax.nn.sigmoid(gates[:, 1 * H:2 * H])
        g_g = jnp.tanh(gates[:, 2 * H:3 * H])
        o_g = jax.nn.sigmoid(gates[:, 3 * H:4 * H])
        c = f_g * c_sc[...] + i_g * g_g
        h = o_g * jnp.tanh(c)
        c_sc[...] = c
        h_sc[...] = h
        y_ref[0, time] = h
        return carry

    lax.fori_loop(0, seq, step, 0, unroll=True)

    # ---- 3) fused linear head (last layer only) ---------------------------
    if with_head:
        # output[:, -1] uses time index seq-1 for both directions.
        h_last = y_ref[0, seq - 1]                         # (B, H)
        head_ref[0] = (jnp.dot(h_last, wh_ref[0],
                               preferred_element_type=jnp.float32)
                       + bh_ref[0])


def bilstm_layer(x_parts, wih, whh, b, head_w=None, head_b=None, *, hidden):
    """x_parts: (n_parts, seq, B, Dp) f32 -> (2, seq, B, H) f32
    (plus (2, B, out) partial logits when head_w/head_b are given)."""
    n_parts, seq, batch, d_part = x_parts.shape
    assert wih.shape[1] == n_parts * d_part
    with_head = head_w is not None

    kernel = functools.partial(
        bilstm_layer_kernel, seq=seq, n_parts=n_parts, d_part=d_part,
        hidden=hidden, with_head=with_head)

    in_specs = [
        pl.BlockSpec((n_parts, seq, batch, d_part), lambda d: (0, 0, 0, 0)),
        pl.BlockSpec((1, n_parts * d_part, 4 * hidden), lambda d: (d, 0, 0)),
        pl.BlockSpec((1, hidden, 4 * hidden), lambda d: (d, 0, 0)),
        pl.BlockSpec((1, 1, 4 * hidden), lambda d: (d, 0, 0)),
    ]
    out_shapes = [jax.ShapeDtypeStruct((2, seq, batch, hidden), jnp.float32)]
    out_specs = [pl.BlockSpec((1, seq, batch, hidden), lambda d: (d, 0, 0, 0))]
    args = [x_parts, wih, whh, b]

    if with_head:
        out_dim = head_w.shape[-1]
        in_specs += [
            pl.BlockSpec((1, hidden, out_dim), lambda d: (d, 0, 0)),
            pl.BlockSpec((1, 1, out_dim), lambda d: (d, 0, 0)),
        ]
        out_shapes.append(jax.ShapeDtypeStruct((2, batch, out_dim), jnp.float32))
        out_specs.append(pl.BlockSpec((1, batch, out_dim), lambda d: (d, 0, 0)))
        args += [head_w, head_b]

    scratch_shapes = [
        pltpu.VMEM((seq, batch, 4 * hidden), jnp.float32),
        pltpu.VMEM((batch, hidden), jnp.float32),
        pltpu.VMEM((batch, hidden), jnp.float32),
    ]

    return pl.pallas_call(
        kernel,
        out_shape=tuple(out_shapes) if with_head else out_shapes[0],
        grid=(2,),
        in_specs=in_specs,
        out_specs=tuple(out_specs) if with_head else out_specs[0],
        scratch_shapes=scratch_shapes,
        compiler_params=pltpu.CompilerParams(
            dimension_semantics=("parallel",)),   # fwd/bwd on separate TCs (v7x)
    )(*args)


# ---------------------------------------------------------------------------
# Full Sentiment forward pass.
# ---------------------------------------------------------------------------
def sentiment_forward(tokens, params, num_layers, hidden_size):
    # Embedding gather directly in time-major layout: (B, seq) -> (seq, B, E).
    emb = jnp.take(params["embedding"], tokens.T, axis=0)
    x_parts = emb[None].astype(jnp.float32)        # (1, seq, B, E)

    logits = None
    for layer in range(num_layers):
        p = params["lstm"][layer]
        if layer == num_layers - 1:
            _y, partial = bilstm_layer(
                x_parts, p["wih"], p["whh"], p["b"],
                params["head_w"], params["head_b"], hidden=hidden_size)
            # bias is folded into the forward-direction partial inside the kernel
            logits = partial[0] + partial[1]
        else:
            x_parts = bilstm_layer(
                x_parts, p["wih"], p["whh"], p["b"], hidden=hidden_size)
    return logits


# ---------------------------------------------------------------------------
# Deterministic parameter construction (PyTorch-like init, pre-packed once).
# ---------------------------------------------------------------------------
def init_params(key, input_size, embedding_size, hidden_size, output_size,
                num_layers):
    keys = iter(jax.random.split(key, 8 * num_layers + 8))
    k = 1.0 / jnp.sqrt(hidden_size)

    def unif(shape, bound):
        return jax.random.uniform(next(keys), shape, jnp.float32, -bound, bound)

    params = {
        "embedding": jax.random.normal(
            next(keys), (input_size, embedding_size), jnp.float32),
        "lstm": [],
    }
    for layer in range(num_layers):
        in_dim = embedding_size if layer == 0 else 2 * hidden_size
        wih_d, whh_d, b_d = [], [], []
        for _ in range(2):                               # fwd, bwd
            w_ih = unif((4 * hidden_size, in_dim), k)    # PyTorch shapes
            w_hh = unif((4 * hidden_size, hidden_size), k)
            b_ih = unif((4 * hidden_size,), k)
            b_hh = unif((4 * hidden_size,), k)
            wih_d.append(jnp.transpose(w_ih))            # (in_dim, 4H)
            whh_d.append(jnp.transpose(w_hh))            # (H, 4H)
            b_d.append((b_ih + b_hh)[None, :])           # (1, 4H)
        params["lstm"].append({
            "wih": jnp.stack(wih_d),                     # (2, in_dim, 4H)
            "whh": jnp.stack(whh_d),                     # (2, H, 4H)
            "b":   jnp.stack(b_d),                       # (2, 1, 4H)
        })

    kl = 1.0 / jnp.sqrt(2 * hidden_size)
    w_lin = unif((output_size, 2 * hidden_size), kl)     # PyTorch Linear weight
    b_lin = unif((output_size,), kl)
    # Per-direction head slices, transposed to (H, out); bias only on dir 0.
    params["head_w"] = jnp.stack([w_lin[:, :hidden_size].T,
                                  w_lin[:, hidden_size:].T])        # (2, H, out)
    params["head_b"] = jnp.stack([b_lin[None, :],
                                  jnp.zeros_like(b_lin)[None, :]])  # (2, 1, out)
    return params


if __name__ == "__main__":
    INPUT_SIZE = 50        # vocab
    EMBEDDING_SIZE = 16
    HIDDEN_SIZE = 32
    OUTPUT_SIZE = 2
    NUM_LAYERS = 2
    BATCH = 2
    SEQ = 8

    key = jax.random.PRNGKey(0)
    k_param, k_tok = jax.random.split(key)
    params = init_params(k_param, INPUT_SIZE, EMBEDDING_SIZE, HIDDEN_SIZE,
                         OUTPUT_SIZE, NUM_LAYERS)
    tokens = jax.random.randint(k_tok, (BATCH, SEQ), 0, INPUT_SIZE, jnp.int32)

    fwd = jax.jit(functools.partial(sentiment_forward, num_layers=NUM_LAYERS,
                                    hidden_size=HIDDEN_SIZE))
    out = jax.block_until_ready(fwd(tokens, params))
    assert out.shape == (BATCH, OUTPUT_SIZE)
    print("KERNEL_OK")
</pallas_src>

<mosaic_0001>
module attributes {stable_mosaic.version = 11 : i64} {
  func.func @bilstm_layer_kernel(%arg0: i32, %arg1: memref<1x8x2x16xf32, #tpu.memory_space<vmem>>, %arg2: memref<1x16x128xf32, #tpu.memory_space<vmem>>, %arg3: memref<1x32x128xf32, #tpu.memory_space<vmem>>, %arg4: memref<1x1x128xf32, #tpu.memory_space<vmem>>, %arg5: memref<1x8x2x32xf32, #tpu.memory_space<vmem>>, %arg6: memref<8x2x128xf32, #tpu.memory_space<vmem>>, %arg7: memref<2x32xf32, #tpu.memory_space<vmem>>, %arg8: memref<2x32xf32, #tpu.memory_space<vmem>>) attributes {dimension_semantics = [#tpu.dimension_semantics<parallel>], iteration_bounds = array<i64: 2>, scalar_prefetch = 0 : i64, scratch_operands = 3 : i64, tpu.core_type = #tpu.core_type<tc>, window_params = [{pipeline_mode = #tpu.pipeline_mode<synchronous>, transform_indices = @transform_0, window_bounds = array<i64: 1, 8, 2, 16>}, {transform_indices = @transform_1, window_bounds = array<i64: 1, 16, 128>}, {transform_indices = @transform_2, window_bounds = array<i64: 1, 32, 128>}, {transform_indices = @transform_3, window_bounds = array<i64: 1, 1, 128>}, {transform_indices = @transform_4, window_bounds = array<i64: 1, 8, 2, 32>}]} {
    %c0 = arith.constant 0 : index
    %c0_0 = arith.constant 0 : index
    %c0_1 = arith.constant 0 : index
    %0 = vector.load %arg2[%c0, %c0_0, %c0_1] : memref<1x16x128xf32, #tpu.memory_space<vmem>>, vector<1x16x128xf32>
    %1 = vector.shape_cast %0 : vector<1x16x128xf32> to vector<16x128xf32>
    %c0_2 = arith.constant 0 : index
    %c0_3 = arith.constant 0 : index
    %c0_4 = arith.constant 0 : index
    %2 = vector.load %arg3[%c0_2, %c0_3, %c0_4] : memref<1x32x128xf32, #tpu.memory_space<vmem>>, vector<1x32x128xf32>
    %3 = vector.shape_cast %2 : vector<1x32x128xf32> to vector<32x128xf32>
    %c0_5 = arith.constant 0 : index
    %c0_6 = arith.constant 0 : index
    %c0_7 = arith.constant 0 : index
    %4 = vector.load %arg4[%c0_5, %c0_6, %c0_7] : memref<1x1x128xf32, #tpu.memory_space<vmem>>, vector<1x1x128xf32>
    %5 = vector.shape_cast %4 : vector<1x1x128xf32> to vector<1x128xf32>
    %6 = vector.shape_cast %5 : vector<1x128xf32> to vector<1x128xf32>
    %7 = vector.broadcast %6 : vector<1x128xf32> to vector<2x128xf32>
    %c0_i32 = arith.constant 0 : i32
    %c0_8 = arith.constant 0 : index
    %8 = arith.index_cast %c0_i32 : i32 to index
    %c0_9 = arith.constant 0 : index
    %c0_10 = arith.constant 0 : index
    %9 = vector.load %arg1[%c0_8, %8, %c0_9, %c0_10] : memref<1x8x2x16xf32, #tpu.memory_space<vmem>>, vector<1x1x2x16xf32>
    %10 = vector.shape_cast %9 : vector<1x1x2x16xf32> to vector<2x16xf32>
    %cst = arith.constant dense<0.000000e+00> : vector<2x128xf32>
    %11 = tpu.matmul %10, %1, %cst {dimension_numbers = #tpu.dot_dimension_numbers<[1], [0], [0], [1], [0, 0, 1, 1], [], []>} : vector<2x16xf32>, vector<16x128xf32>, vector<2x128xf32> -> vector<2x128xf32>
    %12 = arith.addf %11, %7 : vector<2x128xf32>
    %13 = arith.index_cast %c0_i32 : i32 to index
    %c0_11 = arith.constant 0 : index
    %c0_12 = arith.constant 0 : index
    %14 = vector.load %arg6[%13, %c0_11, %c0_12] : memref<8x2x128xf32, #tpu.memory_space<vmem>>, vector<1x2x128xf32>
    %15 = vector.shape_cast %14 : vector<1x2x128xf32> to vector<2x128xf32>
    %16 = vector.shape_cast %12 : vector<2x128xf32> to vector<1x2x128xf32>
    tpu.vector_store %arg6[%13, %c0_11, %c0_12], %16 {strides = array<i32>} : memref<8x2x128xf32, #tpu.memory_space<vmem>>, vector<1x2x128xf32>,
    %c1_i32 = arith.constant 1 : i32
    %c0_13 = arith.constant 0 : index
    %17 = arith.index_cast %c1_i32 : i32 to index
    %c0_14 = arith.constant 0 : index
    %c0_15 = arith.constant 0 : index
    %18 = vector.load %arg1[%c0_13, %17, %c0_14, %c0_15] : memref<1x8x2x16xf32, #tpu.memory_space<vmem>>, vector<1x1x2x16xf32>
    %19 = vector.shape_cast %18 : vector<1x1x2x16xf32> to vector<2x16xf32>
    %cst_16 = arith.constant dense<0.000000e+00> : vector<2x128xf32>
    %20 = tpu.matmul %19, %1, %cst_16 {dimension_numbers = #tpu.dot_dimension_numbers<[1], [0], [0], [1], [0, 0, 1, 1], [], []>} : vector<2x16xf32>, vector<16x128xf32>, vector<2x128xf32> -> vector<2x128xf32>
    %21 = arith.addf %20, %7 : vector<2x128xf32>
    %22 = arith.index_cast %c1_i32 : i32 to index
    %c0_17 = arith.constant 0 : index
    %c0_18 = arith.constant 0 : index
    %23 = vector.load %arg6[%22, %c0_17, %c0_18] : memref<8x2x128xf32, #tpu.memory_space<vmem>>, vector<1x2x128xf32>
    %24 = vector.shape_cast %23 : vector<1x2x128xf32> to vector<2x128xf32>
    %25 = vector.shape_cast %21 : vector<2x128xf32> to vector<1x2x128xf32>
    tpu.vector_store %arg6[%22, %c0_17, %c0_18], %25 {strides = array<i32>} : memref<8x2x128xf32, #tpu.memory_space<vmem>>, vector<1x2x128xf32>,
    %c2_i32 = arith.constant 2 : i32
    %c0_19 = arith.constant 0 : index
    %26 = arith.index_cast %c2_i32 : i32 to index
    %c0_20 = arith.constant 0 : index
    %c0_21 = arith.constant 0 : index
    %27 = vector.load %arg1[%c0_19, %26, %c0_20, %c0_21] : memref<1x8x2x16xf32, #tpu.memory_space<vmem>>, vector<1x1x2x16xf32>
    %28 = vector.shape_cast %27 : vector<1x1x2x16xf32> to vector<2x16xf32>
    %cst_22 = arith.constant dense<0.000000e+00> : vector<2x128xf32>
    %29 = tpu.matmul %28, %1, %cst_22 {dimension_numbers = #tpu.dot_dimension_numbers<[1], [0], [0], [1], [0, 0, 1, 1], [], []>} : vector<2x16xf32>, vector<16x128xf32>, vector<2x128xf32> -> vector<2x128xf32>
    %30 = arith.addf %29, %7 : vector<2x128xf32>
    %31 = arith.index_cast %c2_i32 : i32 to index
    %c0_23 = arith.constant 0 : index
    %c0_24 = arith.constant 0 : index
    %32 = vector.load %arg6[%31, %c0_23, %c0_24] : memref<8x2x128xf32, #tpu.memory_space<vmem>>, vector<1x2x128xf32>
    %33 = vector.shape_cast %32 : vector<1x2x128xf32> to vector<2x128xf32>
    %34 = vector.shape_cast %30 : vector<2x128xf32> to vector<1x2x128xf32>
    tpu.vector_store %arg6[%31, %c0_23, %c0_24], %34 {strides = array<i32>} : memref<8x2x128xf32, #tpu.memory_space<vmem>>, vector<1x2x128xf32>,
    %c3_i32 = arith.constant 3 : i32
    %c0_25 = arith.constant 0 : index
    %35 = arith.index_cast %c3_i32 : i32 to index
    %c0_26 = arith.constant 0 : index
    %c0_27 = arith.constant 0 : index
    %36 = vector.load %arg1[%c0_25, %35, %c0_26, %c0_27] : memref<1x8x2x16xf32, #tpu.memory_space<vmem>>, vector<1x1x2x16xf32>
    %37 = vector.shape_cast %36 : vector<1x1x2x16xf32> to vector<2x16xf32>
    %cst_28 = arith.constant dense<0.000000e+00> : vector<2x128xf32>
    %38 = tpu.matmul %37, %1, %cst_28 {dimension_numbers = #tpu.dot_dimension_numbers<[1], [0], [0], [1], [0, 0, 1, 1], [], []>} : vector<2x16xf32>, vector<16x128xf32>, vector<2x128xf32> -> vector<2x128xf32>
    %39 = arith.addf %38, %7 : vector<2x128xf32>
    %40 = arith.index_cast %c3_i32 : i32 to index
    %c0_29 = arith.constant 0 : index
    %c0_30 = arith.constant 0 : index
    %41 = vector.load %arg6[%40, %c0_29, %c0_30] : memref<8x2x128xf32, #tpu.memory_space<vmem>>, vector<1x2x128xf32>
    %42 = vector.shape_cast %41 : vector<1x2x128xf32> to vector<2x128xf32>
    %43 = vector.shape_cast %39 : vector<2x128xf32> to vector<1x2x128xf32>
    tpu.vector_store %arg6[%40, %c0_29, %c0_30], %43 {strides = array<i32>} : memref<8x2x128xf32, #tpu.memory_space<vmem>>, vector<1x2x128xf32>,
    %c4_i32 = arith.constant 4 : i32
    %c0_31 = arith.constant 0 : index
    %44 = arith.index_cast %c4_i32 : i32 to index
    %c0_32 = arith.constant 0 : index
    %c0_33 = arith.constant 0 : index
    %45 = vector.load %arg1[%c0_31, %44, %c0_32, %c0_33] : memref<1x8x2x16xf32, #tpu.memory_space<vmem>>, vector<1x1x2x16xf32>
    %46 = vector.shape_cast %45 : vector<1x1x2x16xf32> to vector<2x16xf32>
    %cst_34 = arith.constant dense<0.000000e+00> : vector<2x128xf32>
    %47 = tpu.matmul %46, %1, %cst_34 {dimension_numbers = #tpu.dot_dimension_numbers<[1], [0], [0], [1], [0, 0, 1, 1], [], []>} : vector<2x16xf32>, vector<16x128xf32>, vector<2x128xf32> -> vector<2x128xf32>
    %48 = arith.addf %47, %7 : vector<2x128xf32>
    %49 = arith.index_cast %c4_i32 : i32 to index
    %c0_35 = arith.constant 0 : index
    %c0_36 = arith.constant 0 : index
    %50 = vector.load %arg6[%49, %c0_35, %c0_36] : memref<8x2x128xf32, #tpu.memory_space<vmem>>, vector<1x2x128xf32>
    %51 = vector.shape_cast %50 : vector<1x2x128xf32> to vector<2x128xf32>
    %52 = vector.shape_cast %48 : vector<2x128xf32> to vector<1x2x128xf32>
    tpu.vector_store %arg6[%49, %c0_35, %c0_36], %52 {strides = array<i32>} : memref<8x2x128xf32, #tpu.memory_space<vmem>>, vector<1x2x128xf32>,
    %c5_i32 = arith.constant 5 : i32
    %c0_37 = arith.constant 0 : index
    %53 = arith.index_cast %c5_i32 : i32 to index
    %c0_38 = arith.constant 0 : index
    %c0_39 = arith.constant 0 : index
    %54 = vector.load %arg1[%c0_37, %53, %c0_38, %c0_39] : memref<1x8x2x16xf32, #tpu.memory_space<vmem>>, vector<1x1x2x16xf32>
    %55 = vector.shape_cast %54 : vector<1x1x2x16xf32> to vector<2x16xf32>
    %cst_40 = arith.constant dense<0.000000e+00> : vector<2x128xf32>
    %56 = tpu.matmul %55, %1, %cst_40 {dimension_numbers = #tpu.dot_dimension_numbers<[1], [0], [0], [1], [0, 0, 1, 1], [], []>} : vector<2x16xf32>, vector<16x128xf32>, vector<2x128xf32> -> vector<2x128xf32>
    %57 = arith.addf %56, %7 : vector<2x128xf32>
    %58 = arith.index_cast %c5_i32 : i32 to index
    %c0_41 = arith.constant 0 : index
    %c0_42 = arith.constant 0 : index
    %59 = vector.load %arg6[%58, %c0_41, %c0_42] : memref<8x2x128xf32, #tpu.memory_space<vmem>>, vector<1x2x128xf32>
    %60 = vector.shape_cast %59 : vector<1x2x128xf32> to vector<2x128xf32>
    %61 = vector.shape_cast %57 : vector<2x128xf32> to vector<1x2x128xf32>
    tpu.vector_store %arg6[%58, %c0_41, %c0_42], %61 {strides = array<i32>} : memref<8x2x128xf32, #tpu.memory_space<vmem>>, vector<1x2x128xf32>,
    %c6_i32 = arith.constant 6 : i32
    %c0_43 = arith.constant 0 : index
    %62 = arith.index_cast %c6_i32 : i32 to index
    %c0_44 = arith.constant 0 : index
    %c0_45 = arith.constant 0 : index
    %63 = vector.load %arg1[%c0_43, %62, %c0_44, %c0_45] : memref<1x8x2x16xf32, #tpu.memory_space<vmem>>, vector<1x1x2x16xf32>
    %64 = vector.shape_cast %63 : vector<1x1x2x16xf32> to vector<2x16xf32>
    %cst_46 = arith.constant dense<0.000000e+00> : vector<2x128xf32>
    %65 = tpu.matmul %64, %1, %cst_46 {dimension_numbers = #tpu.dot_dimension_numbers<[1], [0], [0], [1], [0, 0, 1, 1], [], []>} : vector<2x16xf32>, vector<16x128xf32>, vector<2x128xf32> -> vector<2x128xf32>
    %66 = arith.addf %65, %7 : vector<2x128xf32>
    %67 = arith.index_cast %c6_i32 : i32 to index
    %c0_47 = arith.constant 0 : index
    %c0_48 = arith.constant 0 : index
    %68 = vector.load %arg6[%67, %c0_47, %c0_48] : memref<8x2x128xf32, #tpu.memory_space<vmem>>, vector<1x2x128xf32>
    %69 = vector.shape_cast %68 : vector<1x2x128xf32> to vector<2x128xf32>
    %70 = vector.shape_cast %66 : vector<2x128xf32> to vector<1x2x128xf32>
    tpu.vector_store %arg6[%67, %c0_47, %c0_48], %70 {strides = array<i32>} : memref<8x2x128xf32, #tpu.memory_space<vmem>>, vector<1x2x128xf32>,
    %c7_i32 = arith.constant 7 : i32
    %c0_49 = arith.constant 0 : index
    %71 = arith.index_cast %c7_i32 : i32 to index
    %c0_50 = arith.constant 0 : index
    %c0_51 = arith.constant 0 : index
    %72 = vector.load %arg1[%c0_49, %71, %c0_50, %c0_51] : memref<1x8x2x16xf32, #tpu.memory_space<vmem>>, vector<1x1x2x16xf32>
    %73 = vector.shape_cast %72 : vector<1x1x2x16xf32> to vector<2x16xf32>
    %cst_52 = arith.constant dense<0.000000e+00> : vector<2x128xf32>
    %74 = tpu.matmul %73, %1, %cst_52 {dimension_numbers = #tpu.dot_dimension_numbers<[1], [0], [0], [1], [0, 0, 1, 1], [], []>} : vector<2x16xf32>, vector<16x128xf32>, vector<2x128xf32> -> vector<2x128xf32>
    %75 = arith.addf %74, %7 : vector<2x128xf32>
    %76 = arith.index_cast %c7_i32 : i32 to index
    %c0_53 = arith.constant 0 : index
    %c0_54 = arith.constant 0 : index
    %77 = vector.load %arg6[%76, %c0_53, %c0_54] : memref<8x2x128xf32, #tpu.memory_space<vmem>>, vector<1x2x128xf32>
    %78 = vector.shape_cast %77 : vector<1x2x128xf32> to vector<2x128xf32>
    %79 = vector.shape_cast %75 : vector<2x128xf32> to vector<1x2x128xf32>
    tpu.vector_store %arg6[%76, %c0_53, %c0_54], %79 {strides = array<i32>} : memref<8x2x128xf32, #tpu.memory_space<vmem>>, vector<1x2x128xf32>,
    %c8_i32 = arith.constant 8 : i32
    %cst_55 = arith.constant 0.000000e+00 : f32
    %80 = vector.broadcast %cst_55 : f32 to vector<2x32xf32>
    %c0_56 = arith.constant 0 : index
    %c0_57 = arith.constant 0 : index
    %81 = vector.load %arg7[%c0_56, %c0_57] : memref<2x32xf32, #tpu.memory_space<vmem>>, vector<2x32xf32>
    tpu.vector_store %arg7[%c0_56, %c0_57], %80 {strides = array<i32>} : memref<2x32xf32, #tpu.memory_space<vmem>>, vector<2x32xf32>,
    %cst_58 = arith.constant 0.000000e+00 : f32
    %82 = vector.broadcast %cst_58 : f32 to vector<2x32xf32>
    %c0_59 = arith.constant 0 : index
    %c0_60 = arith.constant 0 : index
    %83 = vector.load %arg8[%c0_59, %c0_60] : memref<2x32xf32, #tpu.memory_space<vmem>>, vector<2x32xf32>
    tpu.vector_store %arg8[%c0_59, %c0_60], %82 {strides = array<i32>} : memref<2x32xf32, #tpu.memory_space<vmem>>, vector<2x32xf32>,
    %c0_i32_61 = arith.constant 0 : i32
    %c0_i32_62 = arith.constant 0 : i32
    %84 = arith.cmpi eq, %arg0, %c0_i32_62 : i32
    %c7_i32_63 = arith.constant 7 : i32
    %85 = arith.subi %c7_i32_63, %c0_i32_61 : i32
    %86 = arith.select %84, %c0_i32_61, %85 : i32
    %87 = arith.index_cast %86 : i32 to index
    %c0_64 = arith.constant 0 : index
    %c0_65 = arith.constant 0 : index
    %88 = vector.load %arg6[%87, %c0_64, %c0_65] : memref<8x2x128xf32, #tpu.memory_space<vmem>>, vector<1x2x128xf32>
    %89 = vector.shape_cast %88 : vector<1x2x128xf32> to vector<2x128xf32>
    %c0_66 = arith.constant 0 : index
    %c0_67 = arith.constant 0 : index
    %90 = vector.load %arg7[%c0_66, %c0_67] : memref<2x32xf32, #tpu.memory_space<vmem>>, vector<2x32xf32>
    %cst_68 = arith.constant dense<0.000000e+00> : vector<2x128xf32>
    %91 = tpu.matmul %90, %3, %cst_68 {dimension_numbers = #tpu.dot_dimension_numbers<[1], [0], [0], [1], [0, 0, 1, 1], [], []>} : vector<2x32xf32>, vector<32x128xf32>, vector<2x128xf32> -> vector<2x128xf32>
    %92 = arith.addf %89, %91 : vector<2x128xf32>
    %93 = vector.extract_strided_slice %92 {offsets = [0, 0], sizes = [2, 32], strides = [1, 1]} : vector<2x128xf32> to vector<2x32xf32>
    %94 = arith.negf %93 : vector<2x32xf32>
    %95 = math.exp %94 : vector<2x32xf32>
    %cst_69 = arith.constant 1.000000e+00 : f32
    %96 = vector.broadcast %cst_69 : f32 to vector<2x32xf32>
    %97 = arith.addf %96, %95 : vector<2x32xf32>
    %98 = arith.divf %96, %97 : vector<2x32xf32>
    %99 = vector.extract_strided_slice %92 {offsets = [0, 32], sizes = [2, 32], strides = [1, 1]} : vector<2x128xf32> to vector<2x32xf32>
    %100 = arith.negf %99 : vector<2x32xf32>
    %101 = math.exp %100 : vector<2x32xf32>
    %cst_70 = arith.constant 1.000000e+00 : f32
    %102 = vector.broadcast %cst_70 : f32 to vector<2x32xf32>
    %103 = arith.addf %102, %101 : vector<2x32xf32>
    %104 = arith.divf %102, %103 : vector<2x32xf32>
    %105 = vector.extract_strided_slice %92 {offsets = [0, 64], sizes = [2, 32], strides = [1, 1]} : vector<2x128xf32> to vector<2x32xf32>
    %106 = math.tanh %105 : vector<2x32xf32>
    %107 = vector.extract_strided_slice %92 {offsets = [0, 96], sizes = [2, 32], strides = [1, 1]} : vector<2x128xf32> to vector<2x32xf32>
    %108 = arith.negf %107 : vector<2x32xf32>
    %109 = math.exp %108 : vector<2x32xf32>
    %cst_71 = arith.constant 1.000000e+00 : f32
    %110 = vector.broadcast %cst_71 : f32 to vector<2x32xf32>
    %111 = arith.addf %110, %109 : vector<2x32xf32>
    %112 = arith.divf %110, %111 : vector<2x32xf32>
    %c0_72 = arith.constant 0 : index
    %c0_73 = arith.constant 0 : index
    %113 = vector.load %arg8[%c0_72, %c0_73] : memref<2x32xf32, #tpu.memory_space<vmem>>, vector<2x32xf32>
    %114 = arith.mulf %104, %113 : vector<2x32xf32>
    %115 = arith.mulf %98, %106 : vector<2x32xf32>
    %116 = arith.addf %114, %115 : vector<2x32xf32>
    %117 = math.tanh %116 : vector<2x32xf32>
    %118 = arith.mulf %112, %117 : vector<2x32xf32>
    %c0_74 = arith.constant 0 : index
    %c0_75 = arith.constant 0 : index
    %119 = vector.load %arg8[%c0_74, %c0_75] : memref<2x32xf32, #tpu.memory_space<vmem>>, vector<2x32xf32>
    tpu.vector_store %arg8[%c0_74, %c0_75], %116 {strides = array<i32>} : memref<2x32xf32, #tpu.memory_space<vmem>>, vector<2x32xf32>,
    %c0_76 = arith.constant 0 : index
    %c0_77 = arith.constant 0 : index
    %120 = vector.load %arg7[%c0_76, %c0_77] : memref<2x32xf32, #tpu.memory_space<vmem>>, vector<2x32xf32>
    tpu.vector_store %arg7[%c0_76, %c0_77], %118 {strides = array<i32>} : memref<2x32xf32, #tpu.memory_space<vmem>>, vector<2x32xf32>,
    %c0_78 = arith.constant 0 : index
    %121 = arith.index_cast %86 : i32 to index
    %c0_79 = arith.constant 0 : index
    %c0_80 = arith.constant 0 : index
    %122 = vector.load %arg5[%c0_78, %121, %c0_79, %c0_80] : memref<1x8x2x32xf32, #tpu.memory_space<vmem>>, vector<1x1x2x32xf32>
    %123 = vector.shape_cast %122 : vector<1x1x2x32xf32> to vector<2x32xf32>
    %124 = vector.shape_cast %118 : vector<2x32xf32> to vector<1x1x2x32xf32>
    tpu.vector_store %arg5[%c0_78, %121, %c0_79, %c0_80], %124 {strides = array<i32>} : memref<1x8x2x32xf32, #tpu.memory_space<vmem>>, vector<1x1x2x32xf32>,
    %c1_i32_81 = arith.constant 1 : i32
    %c0_i32_82 = arith.constant 0 : i32
    %125 = arith.cmpi eq, %arg0, %c0_i32_82 : i32
    %c7_i32_83 = arith.constant 7 : i32
    %126 = arith.subi %c7_i32_83, %c1_i32_81 : i32
    %127 = arith.select %125, %c1_i32_81, %126 : i32
    %128 = arith.index_cast %127 : i32 to index
    %c0_84 = arith.constant 0 : index
    %c0_85 = arith.constant 0 : index
    %129 = vector.load %arg6[%128, %c0_84, %c0_85] : memref<8x2x128xf32, #tpu.memory_space<vmem>>, vector<1x2x128xf32>
    %130 = vector.shape_cast %129 : vector<1x2x128xf32> to vector<2x128xf32>
    %c0_86 = arith.constant 0 : index
    %c0_87 = arith.constant 0 : index
    %131 = vector.load %arg7[%c0_86, %c0_87] : memref<2x32xf32, #tpu.memory_space<vmem>>, vector<2x32xf32>
    %cst_88 = arith.constant dense<0.000000e+00> : vector<2x128xf32>
    %132 = tpu.matmul %131, %3, %cst_88 {dimension_numbers = #tpu.dot_dimension_numbers<[1], [0], [0], [1], [0, 0, 1, 1], [], []>} : vector<2x32xf32>, vector<32x128xf32>, vector<2x128xf32> -> vector<2x128xf32>
    %133 = arith.addf %130, %132 : vector<2x128xf32>
    %134 = vector.extract_strided_slice %133 {offsets = [0, 0], sizes = [2, 32], strides = [1, 1]} : vector<2x128xf32> to vector<2x32xf32>
    %135 = arith.negf %134 : vector<2x32xf32>
    %136 = math.exp %135 : vector<2x32xf32>
    %cst_89 = arith.constant 1.000000e+00 : f32
    %137 = vector.broadcast %cst_89 : f32 to vector<2x32xf32>
    %138 = arith.addf %137, %136 : vector<2x32xf32>
    %139 = arith.divf %137, %138 : vector<2x32xf32>
    %140 = vector.extract_strided_slice %133 {offsets = [0, 32], sizes = [2, 32], strides = [1, 1]} : vector<2x128xf32> to vector<2x32xf32>
    %141 = arith.negf %140 : vector<2x32xf32>
    %142 = math.exp %141 : vector<2x32xf32>
    %cst_90 = arith.constant 1.000000e+00 : f32
    %143 = vector.broadcast %cst_90 : f32 to vector<2x32xf32>
    %144 = arith.addf %143, %142 : vector<2x32xf32>
    %145 = arith.divf %143, %144 : vector<2x32xf32>
    %146 = vector.extract_strided_slice %133 {offsets = [0, 64], sizes = [2, 32], strides = [1, 1]} : vector<2x128xf32> to vector<2x32xf32>
    %147 = math.tanh %146 : vector<2x32xf32>
    %148 = vector.extract_strided_slice %133 {offsets = [0, 96], sizes = [2, 32], strides = [1, 1]} : vector<2x128xf32> to vector<2x32xf32>
    %149 = arith.negf %148 : vector<2x32xf32>
    %150 = math.exp %149 : vector<2x32xf32>
    %cst_91 = arith.constant 1.000000e+00 : f32
    %151 = vector.broadcast %cst_91 : f32 to vector<2x32xf32>
    %152 = arith.addf %151, %150 : vector<2x32xf32>
    %153 = arith.divf %151, %152 : vector<2x32xf32>
    %c0_92 = arith.constant 0 : index
    %c0_93 = arith.constant 0 : index
    %154 = vector.load %arg8[%c0_92, %c0_93] : memref<2x32xf32, #tpu.memory_space<vmem>>, vector<2x32xf32>
    %155 = arith.mulf %145, %154 : vector<2x32xf32>
    %156 = arith.mulf %139, %147 : vector<2x32xf32>
    %157 = arith.addf %155, %156 : vector<2x32xf32>
    %158 = math.tanh %157 : vector<2x32xf32>
    %159 = arith.mulf %153, %158 : vector<2x32xf32>
    %c0_94 = arith.constant 0 : index
    %c0_95 = arith.constant 0 : index
    %160 = vector.load %arg8[%c0_94, %c0_95] : memref<2x32xf32, #tpu.memory_space<vmem>>, vector<2x32xf32>
    tpu.vector_store %arg8[%c0_94, %c0_95], %157 {strides = array<i32>} : memref<2x32xf32, #tpu.memory_space<vmem>>, vector<2x32xf32>,
    %c0_96 = arith.constant 0 : index
    %c0_97 = arith.constant 0 : index
    %161 = vector.load %arg7[%c0_96, %c0_97] : memref<2x32xf32, #tpu.memory_space<vmem>>, vector<2x32xf32>
    tpu.vector_store %arg7[%c0_96, %c0_97], %159 {strides = array<i32>} : memref<2x32xf32, #tpu.memory_space<vmem>>, vector<2x32xf32>,
    %c0_98 = arith.constant 0 : index
    %162 = arith.index_cast %127 : i32 to index
    %c0_99 = arith.constant 0 : index
    %c0_100 = arith.constant 0 : index
    %163 = vector.load %arg5[%c0_98, %162, %c0_99, %c0_100] : memref<1x8x2x32xf32, #tpu.memory_space<vmem>>, vector<1x1x2x32xf32>
    %164 = vector.shape_cast %163 : vector<1x1x2x32xf32> to vector<2x32xf32>
    %165 = vector.shape_cast %159 : vector<2x32xf32> to vector<1x1x2x32xf32>
    tpu.vector_store %arg5[%c0_98, %162, %c0_99, %c0_100], %165 {strides = array<i32>} : memref<1x8x2x32xf32, #tpu.memory_space<vmem>>, vector<1x1x2x32xf32>,
    %c2_i32_101 = arith.constant 2 : i32
    %c0_i32_102 = arith.constant 0 : i32
    %166 = arith.cmpi eq, %arg0, %c0_i32_102 : i32
    %c7_i32_103 = arith.constant 7 : i32
    %167 = arith.subi %c7_i32_103, %c2_i32_101 : i32
    %168 = arith.select %166, %c2_i32_101, %167 : i32
    %169 = arith.index_cast %168 : i32 to index
    %c0_104 = arith.constant 0 : index
    %c0_105 = arith.constant 0 : index
    %170 = vector.load %arg6[%169, %c0_104, %c0_105] : memref<8x2x128xf32, #tpu.memory_space<vmem>>, vector<1x2x128xf32>
    %171 = vector.shape_cast %170 : vector<1x2x128xf32> to vector<2x128xf32>
    %c0_106 = arith.constant 0 : index
    %c0_107 = arith.constant 0 : index
    %172 = vector.load %arg7[%c0_106, %c0_107] : memref<2x32xf32, #tpu.memory_space<vmem>>, vector<2x32xf32>
    %cst_108 = arith.constant dense<0.000000e+00> : vector<2x128xf32>
    %173 = tpu.matmul %172, %3, %cst_108 {dimension_numbers = #tpu.dot_dimension_numbers<[1], [0], [0], [1], [0, 0, 1, 1], [], []>} : vector<2x32xf32>, vector<32x128xf32>, vector<2x128xf32> -> vector<2x128xf32>
    %174 = arith.addf %171, %173 : vector<2x128xf32>
    %175 = vector.extract_strided_slice %174 {offsets = [0, 0], sizes = [2, 32], strides = [1, 1]} : vector<2x128xf32> to vector<2x32xf32>
    %176 = arith.negf %175 : vector<2x32xf32>
    %177 = math.exp %176 : vector<2x32xf32>
    %cst_109 = arith.constant 1.000000e+00 : f32
    %178 = vector.broadcast %cst_109 : f32 to vector<2x32xf32>
    %179 = arith.addf %178, %177 : vector<2x32xf32>
    %180 = arith.divf %178, %179 : vector<2x32xf32>
    %181 = vector.extract_strided_slice %174 {offsets = [0, 32], sizes = [2, 32], strides = [1, 1]} : vector<2x128xf32> to vector<2x32xf32>
    %182 = arith.negf %181 : vector<2x32xf32>
    %183 = math.exp %182 : vector<2x32xf32>
    %cst_110 = arith.constant 1.000000e+00 : f32
    %184 = vector.broadcast %cst_110 : f32 to vector<2x32xf32>
    %185 = arith.addf %184, %183 : vector<2x32xf32>
    %186 = arith.divf %184, %185 : vector<2x32xf32>
    %187 = vector.extract_strided_slice %174 {offsets = [0, 64], sizes = [2, 32], strides = [1, 1]} : vector<2x128xf32> to vector<2x32xf32>
    %188 = math.tanh %187 : vector<2x32xf32>
    %189 = vector.extract_strided_slice %174 {offsets = [0, 96], sizes = [2, 32], strides = [1, 1]} : vector<2x128xf32> to vector<2x32xf32>
    %190 = arith.negf %189 : vector<2x32xf32>
    %191 = math.exp %190 : vector<2x32xf32>
    %cst_111 = arith.constant 1.000000e+00 : f32
    %192 = vector.broadcast %cst_111 : f32 to vector<2x32xf32>
    %193 = arith.addf %192, %191 : vector<2x32xf32>
    %194 = arith.divf %192, %193 : vector<2x32xf32>
    %c0_112 = arith.constant 0 : index
    %c0_113 = arith.constant 0 : index
    %195 = vector.load %arg8[%c0_112, %c0_113] : memref<2x32xf32, #tpu.memory_space<vmem>>, vector<2x32xf32>
    %196 = arith.mulf %186, %195 : vector<2x32xf32>
    %197 = arith.mulf %180, %188 : vector<2x32xf32>
    %198 = arith.addf %196, %197 : vector<2x32xf32>
    %199 = math.tanh %198 : vector<2x32xf32>
    %200 = arith.mulf %194, %199 : vector<2x32xf32>
    %c0_114 = arith.constant 0 : index
    %c0_115 = arith.constant 0 : index
    %201 = vector.load %arg8[%c0_114, %c0_115] : memref<2x32xf32, #tpu.memory_space<vmem>>, vector<2x32xf32>
    tpu.vector_store %arg8[%c0_114, %c0_115], %198 {strides = array<i32>} : memref<2x32xf32, #tpu.memory_space<vmem>>, vector<2x32xf32>,
    %c0_116 = arith.constant 0 : index
    %c0_117 = arith.constant 0 : index
    %202 = vector.load %arg7[%c0_116, %c0_117] : memref<2x32xf32, #tpu.memory_space<vmem>>, vector<2x32xf32>
    tpu.vector_store %arg7[%c0_116, %c0_117], %200 {strides = array<i32>} : memref<2x32xf32, #tpu.memory_space<vmem>>, vector<2x32xf32>,
    %c0_118 = arith.constant 0 : index
    %203 = arith.index_cast %168 : i32 to index
    %c0_119 = arith.constant 0 : index
    %c0_120 = arith.constant 0 : index
    %204 = vector.load %arg5[%c0_118, %203, %c0_119, %c0_120] : memref<1x8x2x32xf32, #tpu.memory_space<vmem>>, vector<1x1x2x32xf32>
    %205 = vector.shape_cast %204 : vector<1x1x2x32xf32> to vector<2x32xf32>
    %206 = vector.shape_cast %200 : vector<2x32xf32> to vector<1x1x2x32xf32>
    tpu.vector_store %arg5[%c0_118, %203, %c0_119, %c0_120], %206 {strides = array<i32>} : memref<1x8x2x32xf32, #tpu.memory_space<vmem>>, vector<1x1x2x32xf32>,
    %c3_i32_121 = arith.constant 3 : i32
    %c0_i32_122 = arith.constant 0 : i32
    %207 = arith.cmpi eq, %arg0, %c0_i32_122 : i32
    %c7_i32_123 = arith.constant 7 : i32
    %208 = arith.subi %c7_i32_123, %c3_i32_121 : i32
    %209 = arith.select %207, %c3_i32_121, %208 : i32
    %210 = arith.index_cast %209 : i32 to index
    %c0_124 = arith.constant 0 : index
    %c0_125 = arith.constant 0 : index
    %211 = vector.load %arg6[%210, %c0_124, %c0_125] : memref<8x2x128xf32, #tpu.memory_space<vmem>>, vector<1x2x128xf32>
    %212 = vector.shape_cast %211 : vector<1x2x128xf32> to vector<2x128xf32>
    %c0_126 = arith.constant 0 : index
    %c0_127 = arith.constant 0 : index
    %213 = vector.load %arg7[%c0_126, %c0_127] : memref<2x32xf32, #tpu.memory_space<vmem>>, vector<2x32xf32>
    %cst_128 = arith.constant dense<0.000000e+00> : vector<2x128xf32>
    %214 = tpu.matmul %213, %3, %cst_128 {dimension_numbers = #tpu.dot_dimension_numbers<[1], [0], [0], [1], [0, 0, 1, 1], [], []>} : vector<2x32xf32>, vector<32x128xf32>, vector<2x128xf32> -> vector<2x128xf32>
    %215 = arith.addf %212, %214 : vector<2x128xf32>
    %216 = vector.extract_strided_slice %215 {offsets = [0, 0], sizes = [2, 32], strides = [1, 1]} : vector<2x128xf32> to vector<2x32xf32>
    %217 = arith.negf %216 : vector<2x32xf32>
    %218 = math.exp %217 : vector<2x32xf32>
    %cst_129 = arith.constant 1.000000e+00 : f32
    %219 = vector.broadcast %cst_129 : f32 to vector<2x32xf32>
    %220 = arith.addf %219, %218 : vector<2x32xf32>
    %221 = arith.divf %219, %220 : vector<2x32xf32>
    %222 = vector.extract_strided_slice %215 {offsets = [0, 32], sizes = [2, 32], strides = [1, 1]} : vector<2x128xf32> to vector<2x32xf32>
    %223 = arith.negf %222 : vector<2x32xf32>
    %224 = math.exp %223 : vector<2x32xf32>
    %cst_130 = arith.constant 1.000000e+00 : f32
    %225 = vector.broadcast %cst_130 : f32 to vector<2x32xf32>
    %226 = arith.addf %225, %224 : vector<2x32xf32>
    %227 = arith.divf %225, %226 : vector<2x32xf32>
    %228 = vector.extract_strided_slice %215 {offsets = [0, 64], sizes = [2, 32], strides = [1, 1]} : vector<2x128xf32> to vector<2x32xf32>
    %229 = math.tanh %228 : vector<2x32xf32>
    %230 = vector.extract_strided_slice %215 {offsets = [0, 96], sizes = [2, 32], strides = [1, 1]} : vector<2x128xf32> to vector<2x32xf32>
    %231 = arith.negf %230 : vector<2x32xf32>
    %232 = math.exp %231 : vector<2x32xf32>
    %cst_131 = arith.constant 1.000000e+00 : f32
    %233 = vector.broadcast %cst_131 : f32 to vector<2x32xf32>
    %234 = arith.addf %233, %232 : vector<2x32xf32>
    %235 = arith.divf %233, %234 : vector<2x32xf32>
    %c0_132 = arith.constant 0 : index
    %c0_133 = arith.constant 0 : index
    %236 = vector.load %arg8[%c0_132, %c0_133] : memref<2x32xf32, #tpu.memory_space<vmem>>, vector<2x32xf32>
    %237 = arith.mulf %227, %236 : vector<2x32xf32>
    %238 = arith.mulf %221, %229 : vector<2x32xf32>
    %239 = arith.addf %237, %238 : vector<2x32xf32>
    %240 = math.tanh %239 : vector<2x32xf32>
    %241 = arith.mulf %235, %240 : vector<2x32xf32>
    %c0_134 = arith.constant 0 : index
    %c0_135 = arith.constant 0 : index
    %242 = vector.load %arg8[%c0_134, %c0_135] : memref<2x32xf32, #tpu.memory_space<vmem>>, vector<2x32xf32>
    tpu.vector_store %arg8[%c0_134, %c0_135], %239 {strides = array<i32>} : memref<2x32xf32, #tpu.memory_space<vmem>>, vector<2x32xf32>,
    %c0_136 = arith.constant 0 : index
    %c0_137 = arith.constant 0 : index
    %243 = vector.load %arg7[%c0_136, %c0_137] : memref<2x32xf32, #tpu.memory_space<vmem>>, vector<2x32xf32>
    tpu.vector_store %arg7[%c0_136, %c0_137], %241 {strides = array<i32>} : memref<2x32xf32, #tpu.memory_space<vmem>>, vector<2x32xf32>,
    %c0_138 = arith.constant 0 : index
    %244 = arith.index_cast %209 : i32 to index
    %c0_139 = arith.constant 0 : index
    %c0_140 = arith.constant 0 : index
    %245 = vector.load %arg5[%c0_138, %244, %c0_139, %c0_140] : memref<1x8x2x32xf32, #tpu.memory_space<vmem>>, vector<1x1x2x32xf32>
    %246 = vector.shape_cast %245 : vector<1x1x2x32xf32> to vector<2x32xf32>
    %247 = vector.shape_cast %241 : vector<2x32xf32> to vector<1x1x2x32xf32>
    tpu.vector_store %arg5[%c0_138, %244, %c0_139, %c0_140], %247 {strides = array<i32>} : memref<1x8x2x32xf32, #tpu.memory_space<vmem>>, vector<1x1x2x32xf32>,
    %c4_i32_141 = arith.constant 4 : i32
    %c0_i32_142 = arith.constant 0 : i32
    %248 = arith.cmpi eq, %arg0, %c0_i32_142 : i32
    %c7_i32_143 = arith.constant 7 : i32
    %249 = arith.subi %c7_i32_143, %c4_i32_141 : i32
    %250 = arith.select %248, %c4_i32_141, %249 : i32
    %251 = arith.index_cast %250 : i32 to index
    %c0_144 = arith.constant 0 : index
    %c0_145 = arith.constant 0 : index
    %252 = vector.load %arg6[%251, %c0_144, %c0_145] : memref<8x2x128xf32, #tpu.memory_space<vmem>>, vector<1x2x128xf32>
    %253 = vector.shape_cast %252 : vector<1x2x128xf32> to vector<2x128xf32>
    %c0_146 = arith.constant 0 : index
    %c0_147 = arith.constant 0 : index
    %254 = vector.load %arg7[%c0_146, %c0_147] : memref<2x32xf32, #tpu.memory_space<vmem>>, vector<2x32xf32>
    %cst_148 = arith.constant dense<0.000000e+00> : vector<2x128xf32>
    %255 = tpu.matmul %254, %3, %cst_148 {dimension_numbers = #tpu.dot_dimension_numbers<[1], [0], [0], [1], [0, 0, 1, 1], [], []>} : vector<2x32xf32>, vector<32x128xf32>, vector<2x128xf32> -> vector<2x128xf32>
    %256 = arith.addf %253, %255 : vector<2x128xf32>
    %257 = vector.extract_strided_slice %256 {offsets = [0, 0], sizes = [2, 32], strides = [1, 1]} : vector<2x128xf32> to vector<2x32xf32>
    %258 = arith.negf %257 : vector<2x32xf32>
    %259 = math.exp %258 : vector<2x32xf32>
    %cst_149 = arith.constant 1.000000e+00 : f32
    %260 = vector.broadcast %cst_149 : f32 to vector<2x32xf32>
    %261 = arith.addf %260, %259 : vector<2x32xf32>
    %262 = arith.divf %260, %261 : vector<2x32xf32>
    %263 = vector.extract_strided_slice %256 {offsets = [0, 32], sizes = [2, 32], strides = [1, 1]} : vector<2x128xf32> to vector<2x32xf32>
    %264 = arith.negf %263 : vector<2x32xf32>
    %265 = math.exp %264 : vector<2x32xf32>
    %cst_150 = arith.constant 1.000000e+00 : f32
    %266 = vector.broadcast %cst_150 : f32 to vector<2x32xf32>
    %267 = arith.addf %266, %265 : vector<2x32xf32>
    %268 = arith.divf %266, %267 : vector<2x32xf32>
    %269 = vector.extract_strided_slice %256 {offsets = [0, 64], sizes = [2, 32], strides = [1, 1]} : vector<2x128xf32> to vector<2x32xf32>
    %270 = math.tanh %269 : vector<2x32xf32>
    %271 = vector.extract_strided_slice %256 {offsets = [0, 96], sizes = [2, 32], strides = [1, 1]} : vector<2x128xf32> to vector<2x32xf32>
    %272 = arith.negf %271 : vector<2x32xf32>
    %273 = math.exp %272 : vector<2x32xf32>
    %cst_151 = arith.constant 1.000000e+00 : f32
    %274 = vector.broadcast %cst_151 : f32 to vector<2x32xf32>
    %275 = arith.addf %274, %273 : vector<2x32xf32>
    %276 = arith.divf %274, %275 : vector<2x32xf32>
    %c0_152 = arith.constant 0 : index
    %c0_153 = arith.constant 0 : index
    %277 = vector.load %arg8[%c0_152, %c0_153] : memref<2x32xf32, #tpu.memory_space<vmem>>, vector<2x32xf32>
    %278 = arith.mulf %268, %277 : vector<2x32xf32>
    %279 = arith.mulf %262, %270 : vector<2x32xf32>
    %280 = arith.addf %278, %279 : vector<2x32xf32>
    %281 = math.tanh %280 : vector<2x32xf32>
    %282 = arith.mulf %276, %281 : vector<2x32xf32>
    %c0_154 = arith.constant 0 : index
    %c0_155 = arith.constant 0 : index
    %283 = vector.load %arg8[%c0_154, %c0_155] : memref<2x32xf32, #tpu.memory_space<vmem>>, vector<2x32xf32>
    tpu.vector_store %arg8[%c0_154, %c0_155], %280 {strides = array<i32>} : memref<2x32xf32, #tpu.memory_space<vmem>>, vector<2x32xf32>,
    %c0_156 = arith.constant 0 : index
    %c0_157 = arith.constant 0 : index
    %284 = vector.load %arg7[%c0_156, %c0_157] : memref<2x32xf32, #tpu.memory_space<vmem>>, vector<2x32xf32>
    tpu.vector_store %arg7[%c0_156, %c0_157], %282 {strides = array<i32>} : memref<2x32xf32, #tpu.memory_space<vmem>>, vector<2x32xf32>,
    %c0_158 = arith.constant 0 : index
    %285 = arith.index_cast %250 : i32 to index
    %c0_159 = arith.constant 0 : index
    %c0_160 = arith.constant 0 : index
    %286 = vector.load %arg5[%c0_158, %285, %c0_159, %c0_160] : memref<1x8x2x32xf32, #tpu.memory_space<vmem>>, vector<1x1x2x32xf32>
    %287 = vector.shape_cast %286 : vector<1x1x2x32xf32> to vector<2x32xf32>
    %288 = vector.shape_cast %282 : vector<2x32xf32> to vector<1x1x2x32xf32>
    tpu.vector_store %arg5[%c0_158, %285, %c0_159, %c0_160], %288 {strides = array<i32>} : memref<1x8x2x32xf32, #tpu.memory_space<vmem>>, vector<1x1x2x32xf32>,
    %c5_i32_161 = arith.constant 5 : i32
    %c0_i32_162 = arith.constant 0 : i32
    %289 = arith.cmpi eq, %arg0, %c0_i32_162 : i32
    %c7_i32_163 = arith.constant 7 : i32
    %290 = arith.subi %c7_i32_163, %c5_i32_161 : i32
    %291 = arith.select %289, %c5_i32_161, %290 : i32
    %292 = arith.index_cast %291 : i32 to index
    %c0_164 = arith.constant 0 : index
    %c0_165 = arith.constant 0 : index
    %293 = vector.load %arg6[%292, %c0_164, %c0_165] : memref<8x2x128xf32, #tpu.memory_space<vmem>>, vector<1x2x128xf32>
    %294 = vector.shape_cast %293 : vector<1x2x128xf32> to vector<2x128xf32>
    %c0_166 = arith.constant 0 : index
    %c0_167 = arith.constant 0 : index
    %295 = vector.load %arg7[%c0_166, %c0_167] : memref<2x32xf32, #tpu.memory_space<vmem>>, vector<2x32xf32>
    %cst_168 = arith.constant dense<0.000000e+00> : vector<2x128xf32>
    %296 = tpu.matmul %295, %3, %cst_168 {dimension_numbers = #tpu.dot_dimension_numbers<[1], [0], [0], [1], [0, 0, 1, 1], [], []>} : vector<2x32xf32>, vector<32x128xf32>, vector<2x128xf32> -> vector<2x128xf32>
    %297 = arith.addf %294, %296 : vector<2x128xf32>
    %298 = vector.extract_strided_slice %297 {offsets = [0, 0], sizes = [2, 32], strides = [1, 1]} : vector<2x128xf32> to vector<2x32xf32>
    %299 = arith.negf %298 : vector<2x32xf32>
    %300 = math.exp %299 : vector<2x32xf32>
    %cst_169 = arith.constant 1.000000e+00 : f32
    %301 = vector.broadcast %cst_169 : f32 to vector<2x32xf32>
    %302 = arith.addf %301, %300 : vector<2x32xf32>
    %303 = arith.divf %301, %302 : vector<2x32xf32>
    %304 = vector.extract_strided_slice %297 {offsets = [0, 32], sizes = [2, 32], strides = [1, 1]} : vector<2x128xf32> to vector<2x32xf32>
    %305 = arith.negf %304 : vector<2x32xf32>
    %306 = math.exp %305 : vector<2x32xf32>
    %cst_170 = arith.constant 1.000000e+00 : f32
    %307 = vector.broadcast %cst_170 : f32 to vector<2x32xf32>
    %308 = arith.addf %307, %306 : vector<2x32xf32>
    %309 = arith.divf %307, %308 : vector<2x32xf32>
    %310 = vector.extract_strided_slice %297 {offsets = [0, 64], sizes = [2, 32], strides = [1, 1]} : vector<2x128xf32> to vector<2x32xf32>
    %311 = math.tanh %310 : vector<2x32xf32>
    %312 = vector.extract_strided_slice %297 {offsets = [0, 96], sizes = [2, 32], strides = [1, 1]} : vector<2x128xf32> to vector<2x32xf32>
    %313 = arith.negf %312 : vector<2x32xf32>
    %314 = math.exp %313 : vector<2x32xf32>
    %cst_171 = arith.constant 1.000000e+00 : f32
    %315 = vector.broadcast %cst_171 : f32 to vector<2x32xf32>
    %316 = arith.addf %315, %314 : vector<2x32xf32>
    %317 = arith.divf %315, %316 : vector<2x32xf32>
    %c0_172 = arith.constant 0 : index
    %c0_173 = arith.constant 0 : index
    %318 = vector.load %arg8[%c0_172, %c0_173] : memref<2x32xf32, #tpu.memory_space<vmem>>, vector<2x32xf32>
    %319 = arith.mulf %309, %318 : vector<2x32xf32>
    %320 = arith.mulf %303, %311 : vector<2x32xf32>
    %321 = arith.addf %319, %320 : vector<2x32xf32>
    %322 = math.tanh %321 : vector<2x32xf32>
    %323 = arith.mulf %317, %322 : vector<2x32xf32>
    %c0_174 = arith.constant 0 : index
    %c0_175 = arith.constant 0 : index
    %324 = vector.load %arg8[%c0_174, %c0_175] : memref<2x32xf32, #tpu.memory_space<vmem>>, vector<2x32xf32>
    tpu.vector_store %arg8[%c0_174, %c0_175], %321 {strides = array<i32>} : memref<2x32xf32, #tpu.memory_space<vmem>>, vector<2x32xf32>,
    %c0_176 = arith.constant 0 : index
    %c0_177 = arith.constant 0 : index
    %325 = vector.load %arg7[%c0_176, %c0_177] : memref<2x32xf32, #tpu.memory_space<vmem>>, vector<2x32xf32>
    tpu.vector_store %arg7[%c0_176, %c0_177], %323 {strides = array<i32>} : memref<2x32xf32, #tpu.memory_space<vmem>>, vector<2x32xf32>,
    %c0_178 = arith.constant 0 : index
    %326 = arith.index_cast %291 : i32 to index
    %c0_179 = arith.constant 0 : index
    %c0_180 = arith.constant 0 : index
    %327 = vector.load %arg5[%c0_178, %326, %c0_179, %c0_180] : memref<1x8x2x32xf32, #tpu.memory_space<vmem>>, vector<1x1x2x32xf32>
    %328 = vector.shape_cast %327 : vector<1x1x2x32xf32> to vector<2x32xf32>
    %329 = vector.shape_cast %323 : vector<2x32xf32> to vector<1x1x2x32xf32>
    tpu.vector_store %arg5[%c0_178, %326, %c0_179, %c0_180], %329 {strides = array<i32>} : memref<1x8x2x32xf32, #tpu.memory_space<vmem>>, vector<1x1x2x32xf32>,
    %c6_i32_181 = arith.constant 6 : i32
    %c0_i32_182 = arith.constant 0 : i32
    %330 = arith.cmpi eq, %arg0, %c0_i32_182 : i32
    %c7_i32_183 = arith.constant 7 : i32
    %331 = arith.subi %c7_i32_183, %c6_i32_181 : i32
    %332 = arith.select %330, %c6_i32_181, %331 : i32
    %333 = arith.index_cast %332 : i32 to index
    %c0_184 = arith.constant 0 : index
    %c0_185 = arith.constant 0 : index
    %334 = vector.load %arg6[%333, %c0_184, %c0_185] : memref<8x2x128xf32, #tpu.memory_space<vmem>>, vector<1x2x128xf32>
    %335 = vector.shape_cast %334 : vector<1x2x128xf32> to vector<2x128xf32>
    %c0_186 = arith.constant 0 : index
    %c0_187 = arith.constant 0 : index
    %336 = vector.load %arg7[%c0_186, %c0_187] : memref<2x32xf32, #tpu.memory_space<vmem>>, vector<2x32xf32>
    %cst_188 = arith.constant dense<0.000000e+00> : vector<2x128xf32>
    %337 = tpu.matmul %336, %3, %cst_188 {dimension_numbers = #tpu.dot_dimension_numbers<[1], [0], [0], [1], [0, 0, 1, 1], [], []>} : vector<2x32xf32>, vector<32x128xf32>, vector<2x128xf32> -> vector<2x128xf32>
    %338 = arith.addf %335, %337 : vector<2x128xf32>
    %339 = vector.extract_strided_slice %338 {offsets = [0, 0], sizes = [2, 32], strides = [1, 1]} : vector<2x128xf32> to vector<2x32xf32>
    %340 = arith.negf %339 : vector<2x32xf32>
    %341 = math.exp %340 : vector<2x32xf32>
    %cst_189 = arith.constant 1.000000e+00 : f32
    %342 = vector.broadcast %cst_189 : f32 to vector<2x32xf32>
    %343 = arith.addf %342, %341 : vector<2x32xf32>
    %344 = arith.divf %342, %343 : vector<2x32xf32>
    %345 = vector.extract_strided_slice %338 {offsets = [0, 32], sizes = [2, 32], strides = [1, 1]} : vector<2x128xf32> to vector<2x32xf32>
    %346 = arith.negf %345 : vector<2x32xf32>
    %347 = math.exp %346 : vector<2x32xf32>
    %cst_190 = arith.constant 1.000000e+00 : f32
    %348 = vector.broadcast %cst_190 : f32 to vector<2x32xf32>
    %349 = arith.addf %348, %347 : vector<2x32xf32>
    %350 = arith.divf %348, %349 : vector<2x32xf32>
    %351 = vector.extract_strided_slice %338 {offsets = [0, 64], sizes = [2, 32], strides = [1, 1]} : vector<2x128xf32> to vector<2x32xf32>
    %352 = math.tanh %351 : vector<2x32xf32>
    %353 = vector.extract_strided_slice %338 {offsets = [0, 96], sizes = [2, 32], strides = [1, 1]} : vector<2x128xf32> to vector<2x32xf32>
    %354 = arith.negf %353 : vector<2x32xf32>
    %355 = math.exp %354 : vector<2x32xf32>
    %cst_191 = arith.constant 1.000000e+00 : f32
    %356 = vector.broadcast %cst_191 : f32 to vector<2x32xf32>
    %357 = arith.addf %356, %355 : vector<2x32xf32>
    %358 = arith.divf %356, %357 : vector<2x32xf32>
    %c0_192 = arith.constant 0 : index
    %c0_193 = arith.constant 0 : index
    %359 = vector.load %arg8[%c0_192, %c0_193] : memref<2x32xf32, #tpu.memory_space<vmem>>, vector<2x32xf32>
    %360 = arith.mulf %350, %359 : vector<2x32xf32>
    %361 = arith.mulf %344, %352 : vector<2x32xf32>
    %362 = arith.addf %360, %361 : vector<2x32xf32>
    %363 = math.tanh %362 : vector<2x32xf32>
    %364 = arith.mulf %358, %363 : vector<2x32xf32>
    %c0_194 = arith.constant 0 : index
    %c0_195 = arith.constant 0 : index
    %365 = vector.load %arg8[%c0_194, %c0_195] : memref<2x32xf32, #tpu.memory_space<vmem>>, vector<2x32xf32>
    tpu.vector_store %arg8[%c0_194, %c0_195], %362 {strides = array<i32>} : memref<2x32xf32, #tpu.memory_space<vmem>>, vector<2x32xf32>,
    %c0_196 = arith.constant 0 : index
    %c0_197 = arith.constant 0 : index
    %366 = vector.load %arg7[%c0_196, %c0_197] : memref<2x32xf32, #tpu.memory_space<vmem>>, vector<2x32xf32>
    tpu.vector_store %arg7[%c0_196, %c0_197], %364 {strides = array<i32>} : memref<2x32xf32, #tpu.memory_space<vmem>>, vector<2x32xf32>,
    %c0_198 = arith.constant 0 : index
    %367 = arith.index_cast %332 : i32 to index
    %c0_199 = arith.constant 0 : index
    %c0_200 = arith.constant 0 : index
    %368 = vector.load %arg5[%c0_198, %367, %c0_199, %c0_200] : memref<1x8x2x32xf32, #tpu.memory_space<vmem>>, vector<1x1x2x32xf32>
    %369 = vector.shape_cast %368 : vector<1x1x2x32xf32> to vector<2x32xf32>
    %370 = vector.shape_cast %364 : vector<2x32xf32> to vector<1x1x2x32xf32>
    tpu.vector_store %arg5[%c0_198, %367, %c0_199, %c0_200], %370 {strides = array<i32>} : memref<1x8x2x32xf32, #tpu.memory_space<vmem>>, vector<1x1x2x32xf32>,
    %c7_i32_201 = arith.constant 7 : i32
    %c0_i32_202 = arith.constant 0 : i32
    %371 = arith.cmpi eq, %arg0, %c0_i32_202 : i32
    %c7_i32_203 = arith.constant 7 : i32
    %372 = arith.subi %c7_i32_203, %c7_i32_201 : i32
    %373 = arith.select %371, %c7_i32_201, %372 : i32
    %374 = arith.index_cast %373 : i32 to index
    %c0_204 = arith.constant 0 : index
    %c0_205 = arith.constant 0 : index
    %375 = vector.load %arg6[%374, %c0_204, %c0_205] : memref<8x2x128xf32, #tpu.memory_space<vmem>>, vector<1x2x128xf32>
    %376 = vector.shape_cast %375 : vector<1x2x128xf32> to vector<2x128xf32>
    %c0_206 = arith.constant 0 : index
    %c0_207 = arith.constant 0 : index
    %377 = vector.load %arg7[%c0_206, %c0_207] : memref<2x32xf32, #tpu.memory_space<vmem>>, vector<2x32xf32>
    %cst_208 = arith.constant dense<0.000000e+00> : vector<2x128xf32>
    %378 = tpu.matmul %377, %3, %cst_208 {dimension_numbers = #tpu.dot_dimension_numbers<[1], [0], [0], [1], [0, 0, 1, 1], [], []>} : vector<2x32xf32>, vector<32x128xf32>, vector<2x128xf32> -> vector<2x128xf32>
    %379 = arith.addf %376, %378 : vector<2x128xf32>
    %380 = vector.extract_strided_slice %379 {offsets = [0, 0], sizes = [2, 32], strides = [1, 1]} : vector<2x128xf32> to vector<2x32xf32>
    %381 = arith.negf %380 : vector<2x32xf32>
    %382 = math.exp %381 : vector<2x32xf32>
    %cst_209 = arith.constant 1.000000e+00 : f32
    %383 = vector.broadcast %cst_209 : f32 to vector<2x32xf32>
    %384 = arith.addf %383, %382 : vector<2x32xf32>
    %385 = arith.divf %383, %384 : vector<2x32xf32>
    %386 = vector.extract_strided_slice %379 {offsets = [0, 32], sizes = [2, 32], strides = [1, 1]} : vector<2x128xf32> to vector<2x32xf32>
    %387 = arith.negf %386 : vector<2x32xf32>
    %388 = math.exp %387 : vector<2x32xf32>
    %cst_210 = arith.constant 1.000000e+00 : f32
    %389 = vector.broadcast %cst_210 : f32 to vector<2x32xf32>
    %390 = arith.addf %389, %388 : vector<2x32xf32>
    %391 = arith.divf %389, %390 : vector<2x32xf32>
    %392 = vector.extract_strided_slice %379 {offsets = [0, 64], sizes = [2, 32], strides = [1, 1]} : vector<2x128xf32> to vector<2x32xf32>
    %393 = math.tanh %392 : vector<2x32xf32>
    %394 = vector.extract_strided_slice %379 {offsets = [0, 96], sizes = [2, 32], strides = [1, 1]} : vector<2x128xf32> to vector<2x32xf32>
    %395 = arith.negf %394 : vector<2x32xf32>
    %396 = math.exp %395 : vector<2x32xf32>
    %cst_211 = arith.constant 1.000000e+00 : f32
    %397 = vector.broadcast %cst_211 : f32 to vector<2x32xf32>
    %398 = arith.addf %397, %396 : vector<2x32xf32>
    %399 = arith.divf %397, %398 : vector<2x32xf32>
    %c0_212 = arith.constant 0 : index
    %c0_213 = arith.constant 0 : index
    %400 = vector.load %arg8[%c0_212, %c0_213] : memref<2x32xf32, #tpu.memory_space<vmem>>, vector<2x32xf32>
    %401 = arith.mulf %391, %400 : vector<2x32xf32>
    %402 = arith.mulf %385, %393 : vector<2x32xf32>
    %403 = arith.addf %401, %402 : vector<2x32xf32>
    %404 = math.tanh %403 : vector<2x32xf32>
    %405 = arith.mulf %399, %404 : vector<2x32xf32>
    %c0_214 = arith.constant 0 : index
    %c0_215 = arith.constant 0 : index
    %406 = vector.load %arg8[%c0_214, %c0_215] : memref<2x32xf32, #tpu.memory_space<vmem>>, vector<2x32xf32>
    tpu.vector_store %arg8[%c0_214, %c0_215], %403 {strides = array<i32>} : memref<2x32xf32, #tpu.memory_space<vmem>>, vector<2x32xf32>,
    %c0_216 = arith.constant 0 : index
    %c0_217 = arith.constant 0 : index
    %407 = vector.load %arg7[%c0_216, %c0_217] : memref<2x32xf32, #tpu.memory_space<vmem>>, vector<2x32xf32>
    tpu.vector_store %arg7[%c0_216, %c0_217], %405 {strides = array<i32>} : memref<2x32xf32, #tpu.memory_space<vmem>>, vector<2x32xf32>,
    %c0_218 = arith.constant 0 : index
    %408 = arith.index_cast %373 : i32 to index
    %c0_219 = arith.constant 0 : index
    %c0_220 = arith.constant 0 : index
    %409 = vector.load %arg5[%c0_218, %408, %c0_219, %c0_220] : memref<1x8x2x32xf32, #tpu.memory_space<vmem>>, vector<1x1x2x32xf32>
    %410 = vector.shape_cast %409 : vector<1x1x2x32xf32> to vector<2x32xf32>
    %411 = vector.shape_cast %405 : vector<2x32xf32> to vector<1x1x2x32xf32>
    tpu.vector_store %arg5[%c0_218, %408, %c0_219, %c0_220], %411 {strides = array<i32>} : memref<1x8x2x32xf32, #tpu.memory_space<vmem>>, vector<1x1x2x32xf32>,
    %c8_i32_221 = arith.constant 8 : i32
    return
  }
  func.func @transform_0(%arg0: i32) -> (i32, i32, i32, i32) {
    %c0_i32 = arith.constant 0 : i32
    %c0_i32_0 = arith.constant 0 : i32
    %c0_i32_1 = arith.constant 0 : i32
    %c0_i32_2 = arith.constant 0 : i32
    %c0_i32_3 = arith.constant 0 : i32
    return %c0_i32, %c0_i32_0, %c0_i32_1, %c0_i32_2 : i32, i32, i32, i32
  }
  func.func @transform_1(%arg0: i32) -> (i32, i32, i32) {
    %c0_i32 = arith.constant 0 : i32
    %c0_i32_0 = arith.constant 0 : i32
    %c0_i32_1 = arith.constant 0 : i32
    return %arg0, %c0_i32, %c0_i32_0 : i32, i32, i32
  }
  func.func @transform_2(%arg0: i32) -> (i32, i32, i32) {
    %c0_i32 = arith.constant 0 : i32
    %c0_i32_0 = arith.constant 0 : i32
    %c0_i32_1 = arith.constant 0 : i32
    return %arg0, %c0_i32, %c0_i32_0 : i32, i32, i32
  }
  func.func @transform_3(%arg0: i32) -> (i32, i32, i32) {
    %c0_i32 = arith.constant 0 : i32
    %c0_i32_0 = arith.constant 0 : i32
    %c0_i32_1 = arith.constant 0 : i32
    return %arg0, %c0_i32, %c0_i32_0 : i32, i32, i32
  }
  func.func @transform_4(%arg0: i32) -> (i32, i32, i32, i32) {
    %c0_i32 = arith.constant 0 : i32
    %c0_i32_0 = arith.constant 0 : i32
    %c0_i32_1 = arith.constant 0 : i32
    %c0_i32_2 = arith.constant 0 : i32
    return %arg0, %c0_i32, %c0_i32_0, %c0_i32_1 : i32, i32, i32, i32
  }
}

module attributes {stable_mosaic.version = 11 : i64} {
  func.func @bilstm_layer_kernel(%arg0: i32, %arg1: memref<2x8x2x32xf32, #tpu.memory_space<vmem>>, %arg2: memref<1x64x128xf32, #tpu.memory_space<vmem>>, %arg3: memref<1x32x128xf32, #tpu.memory_space<vmem>>, %arg4: memref<1x1x128xf32, #tpu.memory_space<vmem>>, %arg5: memref<1x32x2xf32, #tpu.memory_space<vmem>>, %arg6: memref<1x1x2xf32, #tpu.memory_space<vmem>>, %arg7: memref<1x8x2x32xf32, #tpu.memory_space<vmem>>, %arg8: memref<1x2x2xf32, #tpu.memory_space<vmem>>, %arg9: memref<8x2x128xf32, #tpu.memory_space<vmem>>, %arg10: memref<2x32xf32, #tpu.memory_space<vmem>>, %arg11: memref<2x32xf32, #tpu.memory_space<vmem>>) attributes {dimension_semantics = [#tpu.dimension_semantics<parallel>], iteration_bounds = array<i64: 2>, scalar_prefetch = 0 : i64, scratch_operands = 3 : i64, tpu.core_type = #tpu.core_type<tc>, window_params = [{pipeline_mode = #tpu.pipeline_mode<synchronous>, transform_indices = @transform_0, window_bounds = array<i64: 2, 8, 2, 32>}, {transform_indices = @transform_1, window_bounds = array<i64: 1, 64, 128>}, {transform_indices = @transform_2, window_bounds = array<i64: 1, 32, 128>}, {transform_indices = @transform_3, window_bounds = array<i64: 1, 1, 128>}, {transform_indices = @transform_4, window_bounds = array<i64: 1, 32, 2>}, {transform_indices = @transform_5, window_bounds = array<i64: 1, 1, 2>}, {transform_indices = @transform_6, window_bounds = array<i64: 1, 8, 2, 32>}, {transform_indices = @transform_7, window_bounds = array<i64: 1, 2, 2>}]} {
    %c0 = arith.constant 0 : index
    %c0_0 = arith.constant 0 : index
    %c0_1 = arith.constant 0 : index
    %0 = vector.load %arg2[%c0, %c0_0, %c0_1] : memref<1x64x128xf32, #tpu.memory_space<vmem>>, vector<1x64x128xf32>
    %1 = vector.shape_cast %0 : vector<1x64x128xf32> to vector<64x128xf32>
    %c0_2 = arith.constant 0 : index
    %c0_3 = arith.constant 0 : index
    %c0_4 = arith.constant 0 : index
    %2 = vector.load %arg3[%c0_2, %c0_3, %c0_4] : memref<1x32x128xf32, #tpu.memory_space<vmem>>, vector<1x32x128xf32>
    %3 = vector.shape_cast %2 : vector<1x32x128xf32> to vector<32x128xf32>
    %c0_5 = arith.constant 0 : index
    %c0_6 = arith.constant 0 : index
    %c0_7 = arith.constant 0 : index
    %4 = vector.load %arg4[%c0_5, %c0_6, %c0_7] : memref<1x1x128xf32, #tpu.memory_space<vmem>>, vector<1x1x128xf32>
    %5 = vector.shape_cast %4 : vector<1x1x128xf32> to vector<1x128xf32>
    %6 = vector.shape_cast %5 : vector<1x128xf32> to vector<1x128xf32>
    %7 = vector.broadcast %6 : vector<1x128xf32> to vector<2x128xf32>
    %c0_i32 = arith.constant 0 : i32
    %c0_8 = arith.constant 0 : index
    %8 = arith.index_cast %c0_i32 : i32 to index
    %c0_9 = arith.constant 0 : index
    %c0_10 = arith.constant 0 : index
    %9 = vector.load %arg1[%c0_8, %8, %c0_9, %c0_10] : memref<2x8x2x32xf32, #tpu.memory_space<vmem>>, vector<1x1x2x32xf32>
    %10 = vector.shape_cast %9 : vector<1x1x2x32xf32> to vector<2x32xf32>
    %11 = vector.extract_strided_slice %1 {offsets = [0, 0], sizes = [32, 128], strides = [1, 1]} : vector<64x128xf32> to vector<32x128xf32>
    %cst = arith.constant dense<0.000000e+00> : vector<2x128xf32>
    %12 = tpu.matmul %10, %11, %cst {dimension_numbers = #tpu.dot_dimension_numbers<[1], [0], [0], [1], [0, 0, 1, 1], [], []>} : vector<2x32xf32>, vector<32x128xf32>, vector<2x128xf32> -> vector<2x128xf32>
    %c1 = arith.constant 1 : index
    %13 = arith.index_cast %c0_i32 : i32 to index
    %c0_11 = arith.constant 0 : index
    %c0_12 = arith.constant 0 : index
    %14 = vector.load %arg1[%c1, %13, %c0_11, %c0_12] : memref<2x8x2x32xf32, #tpu.memory_space<vmem>>, vector<1x1x2x32xf32>
    %15 = vector.shape_cast %14 : vector<1x1x2x32xf32> to vector<2x32xf32>
    %16 = vector.extract_strided_slice %1 {offsets = [32, 0], sizes = [32, 128], strides = [1, 1]} : vector<64x128xf32> to vector<32x128xf32>
    %cst_13 = arith.constant dense<0.000000e+00> : vector<2x128xf32>
    %17 = tpu.matmul %15, %16, %cst_13 {dimension_numbers = #tpu.dot_dimension_numbers<[1], [0], [0], [1], [0, 0, 1, 1], [], []>} : vector<2x32xf32>, vector<32x128xf32>, vector<2x128xf32> -> vector<2x128xf32>
    %18 = arith.addf %12, %17 : vector<2x128xf32>
    %19 = arith.addf %18, %7 : vector<2x128xf32>
    %20 = arith.index_cast %c0_i32 : i32 to index
    %c0_14 = arith.constant 0 : index
    %c0_15 = arith.constant 0 : index
    %21 = vector.load %arg9[%20, %c0_14, %c0_15] : memref<8x2x128xf32, #tpu.memory_space<vmem>>, vector<1x2x128xf32>
    %22 = vector.shape_cast %21 : vector<1x2x128xf32> to vector<2x128xf32>
    %23 = vector.shape_cast %19 : vector<2x128xf32> to vector<1x2x128xf32>
    tpu.vector_store %arg9[%20, %c0_14, %c0_15], %23 {strides = array<i32>} : memref<8x2x128xf32, #tpu.memory_space<vmem>>, vector<1x2x128xf32>,
    %c1_i32 = arith.constant 1 : i32
    %c0_16 = arith.constant 0 : index
    %24 = arith.index_cast %c1_i32 : i32 to index
    %c0_17 = arith.constant 0 : index
    %c0_18 = arith.constant 0 : index
    %25 = vector.load %arg1[%c0_16, %24, %c0_17, %c0_18] : memref<2x8x2x32xf32, #tpu.memory_space<vmem>>, vector<1x1x2x32xf32>
    %26 = vector.shape_cast %25 : vector<1x1x2x32xf32> to vector<2x32xf32>
    %27 = vector.extract_strided_slice %1 {offsets = [0, 0], sizes = [32, 128], strides = [1, 1]} : vector<64x128xf32> to vector<32x128xf32>
    %cst_19 = arith.constant dense<0.000000e+00> : vector<2x128xf32>
    %28 = tpu.matmul %26, %27, %cst_19 {dimension_numbers = #tpu.dot_dimension_numbers<[1], [0], [0], [1], [0, 0, 1, 1], [], []>} : vector<2x32xf32>, vector<32x128xf32>, vector<2x128xf32> -> vector<2x128xf32>
    %c1_20 = arith.constant 1 : index
    %29 = arith.index_cast %c1_i32 : i32 to index
    %c0_21 = arith.constant 0 : index
    %c0_22 = arith.constant 0 : index
    %30 = vector.load %arg1[%c1_20, %29, %c0_21, %c0_22] : memref<2x8x2x32xf32, #tpu.memory_space<vmem>>, vector<1x1x2x32xf32>
    %31 = vector.shape_cast %30 : vector<1x1x2x32xf32> to vector<2x32xf32>
    %32 = vector.extract_strided_slice %1 {offsets = [32, 0], sizes = [32, 128], strides = [1, 1]} : vector<64x128xf32> to vector<32x128xf32>
    %cst_23 = arith.constant dense<0.000000e+00> : vector<2x128xf32>
    %33 = tpu.matmul %31, %32, %cst_23 {dimension_numbers = #tpu.dot_dimension_numbers<[1], [0], [0], [1], [0, 0, 1, 1], [], []>} : vector<2x32xf32>, vector<32x128xf32>, vector<2x128xf32> -> vector<2x128xf32>
    %34 = arith.addf %28, %33 : vector<2x128xf32>
    %35 = arith.addf %34, %7 : vector<2x128xf32>
    %36 = arith.index_cast %c1_i32 : i32 to index
    %c0_24 = arith.constant 0 : index
    %c0_25 = arith.constant 0 : index
    %37 = vector.load %arg9[%36, %c0_24, %c0_25] : memref<8x2x128xf32, #tpu.memory_space<vmem>>, vector<1x2x128xf32>
    %38 = vector.shape_cast %37 : vector<1x2x128xf32> to vector<2x128xf32>
    %39 = vector.shape_cast %35 : vector<2x128xf32> to vector<1x2x128xf32>
    tpu.vector_store %arg9[%36, %c0_24, %c0_25], %39 {strides = array<i32>} : memref<8x2x128xf32, #tpu.memory_space<vmem>>, vector<1x2x128xf32>,
    %c2_i32 = arith.constant 2 : i32
    %c0_26 = arith.constant 0 : index
    %40 = arith.index_cast %c2_i32 : i32 to index
    %c0_27 = arith.constant 0 : index
    %c0_28 = arith.constant 0 : index
    %41 = vector.load %arg1[%c0_26, %40, %c0_27, %c0_28] : memref<2x8x2x32xf32, #tpu.memory_space<vmem>>, vector<1x1x2x32xf32>
    %42 = vector.shape_cast %41 : vector<1x1x2x32xf32> to vector<2x32xf32>
    %43 = vector.extract_strided_slice %1 {offsets = [0, 0], sizes = [32, 128], strides = [1, 1]} : vector<64x128xf32> to vector<32x128xf32>
    %cst_29 = arith.constant dense<0.000000e+00> : vector<2x128xf32>
    %44 = tpu.matmul %42, %43, %cst_29 {dimension_numbers = #tpu.dot_dimension_numbers<[1], [0], [0], [1], [0, 0, 1, 1], [], []>} : vector<2x32xf32>, vector<32x128xf32>, vector<2x128xf32> -> vector<2x128xf32>
    %c1_30 = arith.constant 1 : index
    %45 = arith.index_cast %c2_i32 : i32 to index
    %c0_31 = arith.constant 0 : index
    %c0_32 = arith.constant 0 : index
    %46 = vector.load %arg1[%c1_30, %45, %c0_31, %c0_32] : memref<2x8x2x32xf32, #tpu.memory_space<vmem>>, vector<1x1x2x32xf32>
    %47 = vector.shape_cast %46 : vector<1x1x2x32xf32> to vector<2x32xf32>
    %48 = vector.extract_strided_slice %1 {offsets = [32, 0], sizes = [32, 128], strides = [1, 1]} : vector<64x128xf32> to vector<32x128xf32>
    %cst_33 = arith.constant dense<0.000000e+00> : vector<2x128xf32>
    %49 = tpu.matmul %47, %48, %cst_33 {dimension_numbers = #tpu.dot_dimension_numbers<[1], [0], [0], [1], [0, 0, 1, 1], [], []>} : vector<2x32xf32>, vector<32x128xf32>, vector<2x128xf32> -> vector<2x128xf32>
    %50 = arith.addf %44, %49 : vector<2x128xf32>
    %51 = arith.addf %50, %7 : vector<2x128xf32>
    %52 = arith.index_cast %c2_i32 : i32 to index
    %c0_34 = arith.constant 0 : index
    %c0_35 = arith.constant 0 : index
    %53 = vector.load %arg9[%52, %c0_34, %c0_35] : memref<8x2x128xf32, #tpu.memory_space<vmem>>, vector<1x2x128xf32>
    %54 = vector.shape_cast %53 : vector<1x2x128xf32> to vector<2x128xf32>
    %55 = vector.shape_cast %51 : vector<2x128xf32> to vector<1x2x128xf32>
    tpu.vector_store %arg9[%52, %c0_34, %c0_35], %55 {strides = array<i32>} : memref<8x2x128xf32, #tpu.memory_space<vmem>>, vector<1x2x128xf32>,
    %c3_i32 = arith.constant 3 : i32
    %c0_36 = arith.constant 0 : index
    %56 = arith.index_cast %c3_i32 : i32 to index
    %c0_37 = arith.constant 0 : index
    %c0_38 = arith.constant 0 : index
    %57 = vector.load %arg1[%c0_36, %56, %c0_37, %c0_38] : memref<2x8x2x32xf32, #tpu.memory_space<vmem>>, vector<1x1x2x32xf32>
    %58 = vector.shape_cast %57 : vector<1x1x2x32xf32> to vector<2x32xf32>
    %59 = vector.extract_strided_slice %1 {offsets = [0, 0], sizes = [32, 128], strides = [1, 1]} : vector<64x128xf32> to vector<32x128xf32>
    %cst_39 = arith.constant dense<0.000000e+00> : vector<2x128xf32>
    %60 = tpu.matmul %58, %59, %cst_39 {dimension_numbers = #tpu.dot_dimension_numbers<[1], [0], [0], [1], [0, 0, 1, 1], [], []>} : vector<2x32xf32>, vector<32x128xf32>, vector<2x128xf32> -> vector<2x128xf32>
    %c1_40 = arith.constant 1 : index
    %61 = arith.index_cast %c3_i32 : i32 to index
    %c0_41 = arith.constant 0 : index
    %c0_42 = arith.constant 0 : index
    %62 = vector.load %arg1[%c1_40, %61, %c0_41, %c0_42] : memref<2x8x2x32xf32, #tpu.memory_space<vmem>>, vector<1x1x2x32xf32>
    %63 = vector.shape_cast %62 : vector<1x1x2x32xf32> to vector<2x32xf32>
    %64 = vector.extract_strided_slice %1 {offsets = [32, 0], sizes = [32, 128], strides = [1, 1]} : vector<64x128xf32> to vector<32x128xf32>
    %cst_43 = arith.constant dense<0.000000e+00> : vector<2x128xf32>
    %65 = tpu.matmul %63, %64, %cst_43 {dimension_numbers = #tpu.dot_dimension_numbers<[1], [0], [0], [1], [0, 0, 1, 1], [], []>} : vector<2x32xf32>, vector<32x128xf32>, vector<2x128xf32> -> vector<2x128xf32>
    %66 = arith.addf %60, %65 : vector<2x128xf32>
    %67 = arith.addf %66, %7 : vector<2x128xf32>
    %68 = arith.index_cast %c3_i32 : i32 to index
    %c0_44 = arith.constant 0 : index
    %c0_45 = arith.constant 0 : index
    %69 = vector.load %arg9[%68, %c0_44, %c0_45] : memref<8x2x128xf32, #tpu.memory_space<vmem>>, vector<1x2x128xf32>
    %70 = vector.shape_cast %69 : vector<1x2x128xf32> to vector<2x128xf32>
    %71 = vector.shape_cast %67 : vector<2x128xf32> to vector<1x2x128xf32>
    tpu.vector_store %arg9[%68, %c0_44, %c0_45], %71 {strides = array<i32>} : memref<8x2x128xf32, #tpu.memory_space<vmem>>, vector<1x2x128xf32>,
    %c4_i32 = arith.constant 4 : i32
    %c0_46 = arith.constant 0 : index
    %72 = arith.index_cast %c4_i32 : i32 to index
    %c0_47 = arith.constant 0 : index
    %c0_48 = arith.constant 0 : index
    %73 = vector.load %arg1[%c0_46, %72, %c0_47, %c0_48] : memref<2x8x2x32xf32, #tpu.memory_space<vmem>>, vector<1x1x2x32xf32>
    %74 = vector.shape_cast %73 : vector<1x1x2x32xf32> to vector<2x32xf32>
    %75 = vector.extract_strided_slice %1 {offsets = [0, 0], sizes = [32, 128], strides = [1, 1]} : vector<64x128xf32> to vector<32x128xf32>
    %cst_49 = arith.constant dense<0.000000e+00> : vector<2x128xf32>
    %76 = tpu.matmul %74, %75, %cst_49 {dimension_numbers = #tpu.dot_dimension_numbers<[1], [0], [0], [1], [0, 0, 1, 1], [], []>} : vector<2x32xf32>, vector<32x128xf32>, vector<2x128xf32> -> vector<2x128xf32>
    %c1_50 = arith.constant 1 : index
    %77 = arith.index_cast %c4_i32 : i32 to index
    %c0_51 = arith.constant 0 : index
    %c0_52 = arith.constant 0 : index
    %78 = vector.load %arg1[%c1_50, %77, %c0_51, %c0_52] : memref<2x8x2x32xf32, #tpu.memory_space<vmem>>, vector<1x1x2x32xf32>
    %79 = vector.shape_cast %78 : vector<1x1x2x32xf32> to vector<2x32xf32>
    %80 = vector.extract_strided_slice %1 {offsets = [32, 0], sizes = [32, 128], strides = [1, 1]} : vector<64x128xf32> to vector<32x128xf32>
    %cst_53 = arith.constant dense<0.000000e+00> : vector<2x128xf32>
    %81 = tpu.matmul %79, %80, %cst_53 {dimension_numbers = #tpu.dot_dimension_numbers<[1], [0], [0], [1], [0, 0, 1, 1], [], []>} : vector<2x32xf32>, vector<32x128xf32>, vector<2x128xf32> -> vector<2x128xf32>
    %82 = arith.addf %76, %81 : vector<2x128xf32>
    %83 = arith.addf %82, %7 : vector<2x128xf32>
    %84 = arith.index_cast %c4_i32 : i32 to index
    %c0_54 = arith.constant 0 : index
    %c0_55 = arith.constant 0 : index
    %85 = vector.load %arg9[%84, %c0_54, %c0_55] : memref<8x2x128xf32, #tpu.memory_space<vmem>>, vector<1x2x128xf32>
    %86 = vector.shape_cast %85 : vector<1x2x128xf32> to vector<2x128xf32>
    %87 = vector.shape_cast %83 : vector<2x128xf32> to vector<1x2x128xf32>
    tpu.vector_store %arg9[%84, %c0_54, %c0_55], %87 {strides = array<i32>} : memref<8x2x128xf32, #tpu.memory_space<vmem>>, vector<1x2x128xf32>,
    %c5_i32 = arith.constant 5 : i32
    %c0_56 = arith.constant 0 : index
    %88 = arith.index_cast %c5_i32 : i32 to index
    %c0_57 = arith.constant 0 : index
    %c0_58 = arith.constant 0 : index
    %89 = vector.load %arg1[%c0_56, %88, %c0_57, %c0_58] : memref<2x8x2x32xf32, #tpu.memory_space<vmem>>, vector<1x1x2x32xf32>
    %90 = vector.shape_cast %89 : vector<1x1x2x32xf32> to vector<2x32xf32>
    %91 = vector.extract_strided_slice %1 {offsets = [0, 0], sizes = [32, 128], strides = [1, 1]} : vector<64x128xf32> to vector<32x128xf32>
    %cst_59 = arith.constant dense<0.000000e+00> : vector<2x128xf32>
    %92 = tpu.matmul %90, %91, %cst_59 {dimension_numbers = #tpu.dot_dimension_numbers<[1], [0], [0], [1], [0, 0, 1, 1], [], []>} : vector<2x32xf32>, vector<32x128xf32>, vector<2x128xf32> -> vector<2x128xf32>
    %c1_60 = arith.constant 1 : index
    %93 = arith.index_cast %c5_i32 : i32 to index
    %c0_61 = arith.constant 0 : index
    %c0_62 = arith.constant 0 : index
    %94 = vector.load %arg1[%c1_60, %93, %c0_61, %c0_62] : memref<2x8x2x32xf32, #tpu.memory_space<vmem>>, vector<1x1x2x32xf32>
    %95 = vector.shape_cast %94 : vector<1x1x2x32xf32> to vector<2x32xf32>
    %96 = vector.extract_strided_slice %1 {offsets = [32, 0], sizes = [32, 128], strides = [1, 1]} : vector<64x128xf32> to vector<32x128xf32>
    %cst_63 = arith.constant dense<0.000000e+00> : vector<2x128xf32>
    %97 = tpu.matmul %95, %96, %cst_63 {dimension_numbers = #tpu.dot_dimension_numbers<[1], [0], [0], [1], [0, 0, 1, 1], [], []>} : vector<2x32xf32>, vector<32x128xf32>, vector<2x128xf32> -> vector<2x128xf32>
    %98 = arith.addf %92, %97 : vector<2x128xf32>
    %99 = arith.addf %98, %7 : vector<2x128xf32>
    %100 = arith.index_cast %c5_i32 : i32 to index
    %c0_64 = arith.constant 0 : index
    %c0_65 = arith.constant 0 : index
    %101 = vector.load %arg9[%100, %c0_64, %c0_65] : memref<8x2x128xf32, #tpu.memory_space<vmem>>, vector<1x2x128xf32>
    %102 = vector.shape_cast %101 : vector<1x2x128xf32> to vector<2x128xf32>
    %103 = vector.shape_cast %99 : vector<2x128xf32> to vector<1x2x128xf32>
    tpu.vector_store %arg9[%100, %c0_64, %c0_65], %103 {strides = array<i32>} : memref<8x2x128xf32, #tpu.memory_space<vmem>>, vector<1x2x128xf32>,
    %c6_i32 = arith.constant 6 : i32
    %c0_66 = arith.constant 0 : index
    %104 = arith.index_cast %c6_i32 : i32 to index
    %c0_67 = arith.constant 0 : index
    %c0_68 = arith.constant 0 : index
    %105 = vector.load %arg1[%c0_66, %104, %c0_67, %c0_68] : memref<2x8x2x32xf32, #tpu.memory_space<vmem>>, vector<1x1x2x32xf32>
    %106 = vector.shape_cast %105 : vector<1x1x2x32xf32> to vector<2x32xf32>
    %107 = vector.extract_strided_slice %1 {offsets = [0, 0], sizes = [32, 128], strides = [1, 1]} : vector<64x128xf32> to vector<32x128xf32>
    %cst_69 = arith.constant dense<0.000000e+00> : vector<2x128xf32>
    %108 = tpu.matmul %106, %107, %cst_69 {dimension_numbers = #tpu.dot_dimension_numbers<[1], [0], [0], [1], [0, 0, 1, 1], [], []>} : vector<2x32xf32>, vector<32x128xf32>, vector<2x128xf32> -> vector<2x128xf32>
    %c1_70 = arith.constant 1 : index
    %109 = arith.index_cast %c6_i32 : i32 to index
    %c0_71 = arith.constant 0 : index
    %c0_72 = arith.constant 0 : index
    %110 = vector.load %arg1[%c1_70, %109, %c0_71, %c0_72] : memref<2x8x2x32xf32, #tpu.memory_space<vmem>>, vector<1x1x2x32xf32>
    %111 = vector.shape_cast %110 : vector<1x1x2x32xf32> to vector<2x32xf32>
    %112 = vector.extract_strided_slice %1 {offsets = [32, 0], sizes = [32, 128], strides = [1, 1]} : vector<64x128xf32> to vector<32x128xf32>
    %cst_73 = arith.constant dense<0.000000e+00> : vector<2x128xf32>
    %113 = tpu.matmul %111, %112, %cst_73 {dimension_numbers = #tpu.dot_dimension_numbers<[1], [0], [0], [1], [0, 0, 1, 1], [], []>} : vector<2x32xf32>, vector<32x128xf32>, vector<2x128xf32> -> vector<2x128xf32>
    %114 = arith.addf %108, %113 : vector<2x128xf32>
    %115 = arith.addf %114, %7 : vector<2x128xf32>
    %116 = arith.index_cast %c6_i32 : i32 to index
    %c0_74 = arith.constant 0 : index
    %c0_75 = arith.constant 0 : index
    %117 = vector.load %arg9[%116, %c0_74, %c0_75] : memref<8x2x128xf32, #tpu.memory_space<vmem>>, vector<1x2x128xf32>
    %118 = vector.shape_cast %117 : vector<1x2x128xf32> to vector<2x128xf32>
    %119 = vector.shape_cast %115 : vector<2x128xf32> to vector<1x2x128xf32>
    tpu.vector_store %arg9[%116, %c0_74, %c0_75], %119 {strides = array<i32>} : memref<8x2x128xf32, #tpu.memory_space<vmem>>, vector<1x2x128xf32>,
    %c7_i32 = arith.constant 7 : i32
    %c0_76 = arith.constant 0 : index
    %120 = arith.index_cast %c7_i32 : i32 to index
    %c0_77 = arith.constant 0 : index
    %c0_78 = arith.constant 0 : index
    %121 = vector.load %arg1[%c0_76, %120, %c0_77, %c0_78] : memref<2x8x2x32xf32, #tpu.memory_space<vmem>>, vector<1x1x2x32xf32>
    %122 = vector.shape_cast %121 : vector<1x1x2x32xf32> to vector<2x32xf32>
    %123 = vector.extract_strided_slice %1 {offsets = [0, 0], sizes = [32, 128], strides = [1, 1]} : vector<64x128xf32> to vector<32x128xf32>
    %cst_79 = arith.constant dense<0.000000e+00> : vector<2x128xf32>
    %124 = tpu.matmul %122, %123, %cst_79 {dimension_numbers = #tpu.dot_dimension_numbers<[1], [0], [0], [1], [0, 0, 1, 1], [], []>} : vector<2x32xf32>, vector<32x128xf32>, vector<2x128xf32> -> vector<2x128xf32>
    %c1_80 = arith.constant 1 : index
    %125 = arith.index_cast %c7_i32 : i32 to index
    %c0_81 = arith.constant 0 : index
    %c0_82 = arith.constant 0 : index
    %126 = vector.load %arg1[%c1_80, %125, %c0_81, %c0_82] : memref<2x8x2x32xf32, #tpu.memory_space<vmem>>, vector<1x1x2x32xf32>
    %127 = vector.shape_cast %126 : vector<1x1x2x32xf32> to vector<2x32xf32>
    %128 = vector.extract_strided_slice %1 {offsets = [32, 0], sizes = [32, 128], strides = [1, 1]} : vector<64x128xf32> to vector<32x128xf32>
    %cst_83 = arith.constant dense<0.000000e+00> : vector<2x128xf32>
    %129 = tpu.matmul %127, %128, %cst_83 {dimension_numbers = #tpu.dot_dimension_numbers<[1], [0], [0], [1], [0, 0, 1, 1], [], []>} : vector<2x32xf32>, vector<32x128xf32>, vector<2x128xf32> -> vector<2x128xf32>
    %130 = arith.addf %124, %129 : vector<2x128xf32>
    %131 = arith.addf %130, %7 : vector<2x128xf32>
    %132 = arith.index_cast %c7_i32 : i32 to index
    %c0_84 = arith.constant 0 : index
    %c0_85 = arith.constant 0 : index
    %133 = vector.load %arg9[%132, %c0_84, %c0_85] : memref<8x2x128xf32, #tpu.memory_space<vmem>>, vector<1x2x128xf32>
    %134 = vector.shape_cast %133 : vector<1x2x128xf32> to vector<2x128xf32>
    %135 = vector.shape_cast %131 : vector<2x128xf32> to vector<1x2x128xf32>
    tpu.vector_store %arg9[%132, %c0_84, %c0_85], %135 {strides = array<i32>} : memref<8x2x128xf32, #tpu.memory_space<vmem>>, vector<1x2x128xf32>,
    %c8_i32 = arith.constant 8 : i32
    %cst_86 = arith.constant 0.000000e+00 : f32
    %136 = vector.broadcast %cst_86 : f32 to vector<2x32xf32>
    %c0_87 = arith.constant 0 : index
    %c0_88 = arith.constant 0 : index
    %137 = vector.load %arg10[%c0_87, %c0_88] : memref<2x32xf32, #tpu.memory_space<vmem>>, vector<2x32xf32>
    tpu.vector_store %arg10[%c0_87, %c0_88], %136 {strides = array<i32>} : memref<2x32xf32, #tpu.memory_space<vmem>>, vector<2x32xf32>,
    %cst_89 = arith.constant 0.000000e+00 : f32
    %138 = vector.broadcast %cst_89 : f32 to vector<2x32xf32>
    %c0_90 = arith.constant 0 : index
    %c0_91 = arith.constant 0 : index
    %139 = vector.load %arg11[%c0_90, %c0_91] : memref<2x32xf32, #tpu.memory_space<vmem>>, vector<2x32xf32>
    tpu.vector_store %arg11[%c0_90, %c0_91], %138 {strides = array<i32>} : memref<2x32xf32, #tpu.memory_space<vmem>>, vector<2x32xf32>,
    %c0_i32_92 = arith.constant 0 : i32
    %c0_i32_93 = arith.constant 0 : i32
    %140 = arith.cmpi eq, %arg0, %c0_i32_93 : i32
    %c7_i32_94 = arith.constant 7 : i32
    %141 = arith.subi %c7_i32_94, %c0_i32_92 : i32
    %142 = arith.select %140, %c0_i32_92, %141 : i32
    %143 = arith.index_cast %142 : i32 to index
    %c0_95 = arith.constant 0 : index
    %c0_96 = arith.constant 0 : index
    %144 = vector.load %arg9[%143, %c0_95, %c0_96] : memref<8x2x128xf32, #tpu.memory_space<vmem>>, vector<1x2x128xf32>
    %145 = vector.shape_cast %144 : vector<1x2x128xf32> to vector<2x128xf32>
    %c0_97 = arith.constant 0 : index
    %c0_98 = arith.constant 0 : index
    %146 = vector.load %arg10[%c0_97, %c0_98] : memref<2x32xf32, #tpu.memory_space<vmem>>, vector<2x32xf32>
    %cst_99 = arith.constant dense<0.000000e+00> : vector<2x128xf32>
    %147 = tpu.matmul %146, %3, %cst_99 {dimension_numbers = #tpu.dot_dimension_numbers<[1], [0], [0], [1], [0, 0, 1, 1], [], []>} : vector<2x32xf32>, vector<32x128xf32>, vector<2x128xf32> -> vector<2x128xf32>
    %148 = arith.addf %145, %147 : vector<2x128xf32>
    %149 = vector.extract_strided_slice %148 {offsets = [0, 0], sizes = [2, 32], strides = [1, 1]} : vector<2x128xf32> to vector<2x32xf32>
    %150 = arith.negf %149 : vector<2x32xf32>
    %151 = math.exp %150 : vector<2x32xf32>
    %cst_100 = arith.constant 1.000000e+00 : f32
    %152 = vector.broadcast %cst_100 : f32 to vector<2x32xf32>
    %153 = arith.addf %152, %151 : vector<2x32xf32>
    %154 = arith.divf %152, %153 : vector<2x32xf32>
    %155 = vector.extract_strided_slice %148 {offsets = [0, 32], sizes = [2, 32], strides = [1, 1]} : vector<2x128xf32> to vector<2x32xf32>
    %156 = arith.negf %155 : vector<2x32xf32>
    %157 = math.exp %156 : vector<2x32xf32>
    %cst_101 = arith.constant 1.000000e+00 : f32
    %158 = vector.broadcast %cst_101 : f32 to vector<2x32xf32>
    %159 = arith.addf %158, %157 : vector<2x32xf32>
    %160 = arith.divf %158, %159 : vector<2x32xf32>
    %161 = vector.extract_strided_slice %148 {offsets = [0, 64], sizes = [2, 32], strides = [1, 1]} : vector<2x128xf32> to vector<2x32xf32>
    %162 = math.tanh %161 : vector<2x32xf32>
    %163 = vector.extract_strided_slice %148 {offsets = [0, 96], sizes = [2, 32], strides = [1, 1]} : vector<2x128xf32> to vector<2x32xf32>
    %164 = arith.negf %163 : vector<2x32xf32>
    %165 = math.exp %164 : vector<2x32xf32>
    %cst_102 = arith.constant 1.000000e+00 : f32
    %166 = vector.broadcast %cst_102 : f32 to vector<2x32xf32>
    %167 = arith.addf %166, %165 : vector<2x32xf32>
    %168 = arith.divf %166, %167 : vector<2x32xf32>
    %c0_103 = arith.constant 0 : index
    %c0_104 = arith.constant 0 : index
    %169 = vector.load %arg11[%c0_103, %c0_104] : memref<2x32xf32, #tpu.memory_space<vmem>>, vector<2x32xf32>
    %170 = arith.mulf %160, %169 : vector<2x32xf32>
    %171 = arith.mulf %154, %162 : vector<2x32xf32>
    %172 = arith.addf %170, %171 : vector<2x32xf32>
    %173 = math.tanh %172 : vector<2x32xf32>
    %174 = arith.mulf %168, %173 : vector<2x32xf32>
    %c0_105 = arith.constant 0 : index
    %c0_106 = arith.constant 0 : index
    %175 = vector.load %arg11[%c0_105, %c0_106] : memref<2x32xf32, #tpu.memory_space<vmem>>, vector<2x32xf32>
    tpu.vector_store %arg11[%c0_105, %c0_106], %172 {strides = array<i32>} : memref<2x32xf32, #tpu.memory_space<vmem>>, vector<2x32xf32>,
    %c0_107 = arith.constant 0 : index
    %c0_108 = arith.constant 0 : index
    %176 = vector.load %arg10[%c0_107, %c0_108] : memref<2x32xf32, #tpu.memory_space<vmem>>, vector<2x32xf32>
    tpu.vector_store %arg10[%c0_107, %c0_108], %174 {strides = array<i32>} : memref<2x32xf32, #tpu.memory_space<vmem>>, vector<2x32xf32>,
    %c0_109 = arith.constant 0 : index
    %177 = arith.index_cast %142 : i32 to index
    %c0_110 = arith.constant 0 : index
    %c0_111 = arith.constant 0 : index
    %178 = vector.load %arg7[%c0_109, %177, %c0_110, %c0_111] : memref<1x8x2x32xf32, #tpu.memory_space<vmem>>, vector<1x1x2x32xf32>
    %179 = vector.shape_cast %178 : vector<1x1x2x32xf32> to vector<2x32xf32>
    %180 = vector.shape_cast %174 : vector<2x32xf32> to vector<1x1x2x32xf32>
    tpu.vector_store %arg7[%c0_109, %177, %c0_110, %c0_111], %180 {strides = array<i32>} : memref<1x8x2x32xf32, #tpu.memory_space<vmem>>, vector<1x1x2x32xf32>,
    %c1_i32_112 = arith.constant 1 : i32
    %c0_i32_113 = arith.constant 0 : i32
    %181 = arith.cmpi eq, %arg0, %c0_i32_113 : i32
    %c7_i32_114 = arith.constant 7 : i32
    %182 = arith.subi %c7_i32_114, %c1_i32_112 : i32
    %183 = arith.select %181, %c1_i32_112, %182 : i32
    %184 = arith.index_cast %183 : i32 to index
    %c0_115 = arith.constant 0 : index
    %c0_116 = arith.constant 0 : index
    %185 = vector.load %arg9[%184, %c0_115, %c0_116] : memref<8x2x128xf32, #tpu.memory_space<vmem>>, vector<1x2x128xf32>
    %186 = vector.shape_cast %185 : vector<1x2x128xf32> to vector<2x128xf32>
    %c0_117 = arith.constant 0 : index
    %c0_118 = arith.constant 0 : index
    %187 = vector.load %arg10[%c0_117, %c0_118] : memref<2x32xf32, #tpu.memory_space<vmem>>, vector<2x32xf32>
    %cst_119 = arith.constant dense<0.000000e+00> : vector<2x128xf32>
    %188 = tpu.matmul %187, %3, %cst_119 {dimension_numbers = #tpu.dot_dimension_numbers<[1], [0], [0], [1], [0, 0, 1, 1], [], []>} : vector<2x32xf32>, vector<32x128xf32>, vector<2x128xf32> -> vector<2x128xf32>
    %189 = arith.addf %186, %188 : vector<2x128xf32>
    %190 = vector.extract_strided_slice %189 {offsets = [0, 0], sizes = [2, 32], strides = [1, 1]} : vector<2x128xf32> to vector<2x32xf32>
    %191 = arith.negf %190 : vector<2x32xf32>
    %192 = math.exp %191 : vector<2x32xf32>
    %cst_120 = arith.constant 1.000000e+00 : f32
    %193 = vector.broadcast %cst_120 : f32 to vector<2x32xf32>
    %194 = arith.addf %193, %192 : vector<2x32xf32>
    %195 = arith.divf %193, %194 : vector<2x32xf32>
    %196 = vector.extract_strided_slice %189 {offsets = [0, 32], sizes = [2, 32], strides = [1, 1]} : vector<2x128xf32> to vector<2x32xf32>
    %197 = arith.negf %196 : vector<2x32xf32>
    %198 = math.exp %197 : vector<2x32xf32>
    %cst_121 = arith.constant 1.000000e+00 : f32
    %199 = vector.broadcast %cst_121 : f32 to vector<2x32xf32>
    %200 = arith.addf %199, %198 : vector<2x32xf32>
    %201 = arith.divf %199, %200 : vector<2x32xf32>
    %202 = vector.extract_strided_slice %189 {offsets = [0, 64], sizes = [2, 32], strides = [1, 1]} : vector<2x128xf32> to vector<2x32xf32>
    %203 = math.tanh %202 : vector<2x32xf32>
    %204 = vector.extract_strided_slice %189 {offsets = [0, 96], sizes = [2, 32], strides = [1, 1]} : vector<2x128xf32> to vector<2x32xf32>
    %205 = arith.negf %204 : vector<2x32xf32>
    %206 = math.exp %205 : vector<2x32xf32>
    %cst_122 = arith.constant 1.000000e+00 : f32
    %207 = vector.broadcast %cst_122 : f32 to vector<2x32xf32>
    %208 = arith.addf %207, %206 : vector<2x32xf32>
    %209 = arith.divf %207, %208 : vector<2x32xf32>
    %c0_123 = arith.constant 0 : index
    %c0_124 = arith.constant 0 : index
    %210 = vector.load %arg11[%c0_123, %c0_124] : memref<2x32xf32, #tpu.memory_space<vmem>>, vector<2x32xf32>
    %211 = arith.mulf %201, %210 : vector<2x32xf32>
    %212 = arith.mulf %195, %203 : vector<2x32xf32>
    %213 = arith.addf %211, %212 : vector<2x32xf32>
    %214 = math.tanh %213 : vector<2x32xf32>
    %215 = arith.mulf %209, %214 : vector<2x32xf32>
    %c0_125 = arith.constant 0 : index
    %c0_126 = arith.constant 0 : index
    %216 = vector.load %arg11[%c0_125, %c0_126] : memref<2x32xf32, #tpu.memory_space<vmem>>, vector<2x32xf32>
    tpu.vector_store %arg11[%c0_125, %c0_126], %213 {strides = array<i32>} : memref<2x32xf32, #tpu.memory_space<vmem>>, vector<2x32xf32>,
    %c0_127 = arith.constant 0 : index
    %c0_128 = arith.constant 0 : index
    %217 = vector.load %arg10[%c0_127, %c0_128] : memref<2x32xf32, #tpu.memory_space<vmem>>, vector<2x32xf32>
    tpu.vector_store %arg10[%c0_127, %c0_128], %215 {strides = array<i32>} : memref<2x32xf32, #tpu.memory_space<vmem>>, vector<2x32xf32>,
    %c0_129 = arith.constant 0 : index
    %218 = arith.index_cast %183 : i32 to index
    %c0_130 = arith.constant 0 : index
    %c0_131 = arith.constant 0 : index
    %219 = vector.load %arg7[%c0_129, %218, %c0_130, %c0_131] : memref<1x8x2x32xf32, #tpu.memory_space<vmem>>, vector<1x1x2x32xf32>
    %220 = vector.shape_cast %219 : vector<1x1x2x32xf32> to vector<2x32xf32>
    %221 = vector.shape_cast %215 : vector<2x32xf32> to vector<1x1x2x32xf32>
    tpu.vector_store %arg7[%c0_129, %218, %c0_130, %c0_131], %221 {strides = array<i32>} : memref<1x8x2x32xf32, #tpu.memory_space<vmem>>, vector<1x1x2x32xf32>,
    %c2_i32_132 = arith.constant 2 : i32
    %c0_i32_133 = arith.constant 0 : i32
    %222 = arith.cmpi eq, %arg0, %c0_i32_133 : i32
    %c7_i32_134 = arith.constant 7 : i32
    %223 = arith.subi %c7_i32_134, %c2_i32_132 : i32
    %224 = arith.select %222, %c2_i32_132, %223 : i32
    %225 = arith.index_cast %224 : i32 to index
    %c0_135 = arith.constant 0 : index
    %c0_136 = arith.constant 0 : index
    %226 = vector.load %arg9[%225, %c0_135, %c0_136] : memref<8x2x128xf32, #tpu.memory_space<vmem>>, vector<1x2x128xf32>
    %227 = vector.shape_cast %226 : vector<1x2x128xf32> to vector<2x128xf32>
    %c0_137 = arith.constant 0 : index
    %c0_138 = arith.constant 0 : index
    %228 = vector.load %arg10[%c0_137, %c0_138] : memref<2x32xf32, #tpu.memory_space<vmem>>, vector<2x32xf32>
    %cst_139 = arith.constant dense<0.000000e+00> : vector<2x128xf32>
    %229 = tpu.matmul %228, %3, %cst_139 {dimension_numbers = #tpu.dot_dimension_numbers<[1], [0], [0], [1], [0, 0, 1, 1], [], []>} : vector<2x32xf32>, vector<32x128xf32>, vector<2x128xf32> -> vector<2x128xf32>
    %230 = arith.addf %227, %229 : vector<2x128xf32>
    %231 = vector.extract_strided_slice %230 {offsets = [0, 0], sizes = [2, 32], strides = [1, 1]} : vector<2x128xf32> to vector<2x32xf32>
    %232 = arith.negf %231 : vector<2x32xf32>
    %233 = math.exp %232 : vector<2x32xf32>
    %cst_140 = arith.constant 1.000000e+00 : f32
    %234 = vector.broadcast %cst_140 : f32 to vector<2x32xf32>
    %235 = arith.addf %234, %233 : vector<2x32xf32>
    %236 = arith.divf %234, %235 : vector<2x32xf32>
    %237 = vector.extract_strided_slice %230 {offsets = [0, 32], sizes = [2, 32], strides = [1, 1]} : vector<2x128xf32> to vector<2x32xf32>
    %238 = arith.negf %237 : vector<2x32xf32>
    %239 = math.exp %238 : vector<2x32xf32>
    %cst_141 = arith.constant 1.000000e+00 : f32
    %240 = vector.broadcast %cst_141 : f32 to vector<2x32xf32>
    %241 = arith.addf %240, %239 : vector<2x32xf32>
    %242 = arith.divf %240, %241 : vector<2x32xf32>
    %243 = vector.extract_strided_slice %230 {offsets = [0, 64], sizes = [2, 32], strides = [1, 1]} : vector<2x128xf32> to vector<2x32xf32>
    %244 = math.tanh %243 : vector<2x32xf32>
    %245 = vector.extract_strided_slice %230 {offsets = [0, 96], sizes = [2, 32], strides = [1, 1]} : vector<2x128xf32> to vector<2x32xf32>
    %246 = arith.negf %245 : vector<2x32xf32>
    %247 = math.exp %246 : vector<2x32xf32>
    %cst_142 = arith.constant 1.000000e+00 : f32
    %248 = vector.broadcast %cst_142 : f32 to vector<2x32xf32>
    %249 = arith.addf %248, %247 : vector<2x32xf32>
    %250 = arith.divf %248, %249 : vector<2x32xf32>
    %c0_143 = arith.constant 0 : index
    %c0_144 = arith.constant 0 : index
    %251 = vector.load %arg11[%c0_143, %c0_144] : memref<2x32xf32, #tpu.memory_space<vmem>>, vector<2x32xf32>
    %252 = arith.mulf %242, %251 : vector<2x32xf32>
    %253 = arith.mulf %236, %244 : vector<2x32xf32>
    %254 = arith.addf %252, %253 : vector<2x32xf32>
    %255 = math.tanh %254 : vector<2x32xf32>
    %256 = arith.mulf %250, %255 : vector<2x32xf32>
    %c0_145 = arith.constant 0 : index
    %c0_146 = arith.constant 0 : index
    %257 = vector.load %arg11[%c0_145, %c0_146] : memref<2x32xf32, #tpu.memory_space<vmem>>, vector<2x32xf32>
    tpu.vector_store %arg11[%c0_145, %c0_146], %254 {strides = array<i32>} : memref<2x32xf32, #tpu.memory_space<vmem>>, vector<2x32xf32>,
    %c0_147 = arith.constant 0 : index
    %c0_148 = arith.constant 0 : index
    %258 = vector.load %arg10[%c0_147, %c0_148] : memref<2x32xf32, #tpu.memory_space<vmem>>, vector<2x32xf32>
    tpu.vector_store %arg10[%c0_147, %c0_148], %256 {strides = array<i32>} : memref<2x32xf32, #tpu.memory_space<vmem>>, vector<2x32xf32>,
    %c0_149 = arith.constant 0 : index
    %259 = arith.index_cast %224 : i32 to index
    %c0_150 = arith.constant 0 : index
    %c0_151 = arith.constant 0 : index
    %260 = vector.load %arg7[%c0_149, %259, %c0_150, %c0_151] : memref<1x8x2x32xf32, #tpu.memory_space<vmem>>, vector<1x1x2x32xf32>
    %261 = vector.shape_cast %260 : vector<1x1x2x32xf32> to vector<2x32xf32>
    %262 = vector.shape_cast %256 : vector<2x32xf32> to vector<1x1x2x32xf32>
    tpu.vector_store %arg7[%c0_149, %259, %c0_150, %c0_151], %262 {strides = array<i32>} : memref<1x8x2x32xf32, #tpu.memory_space<vmem>>, vector<1x1x2x32xf32>,
    %c3_i32_152 = arith.constant 3 : i32
    %c0_i32_153 = arith.constant 0 : i32
    %263 = arith.cmpi eq, %arg0, %c0_i32_153 : i32
    %c7_i32_154 = arith.constant 7 : i32
    %264 = arith.subi %c7_i32_154, %c3_i32_152 : i32
    %265 = arith.select %263, %c3_i32_152, %264 : i32
    %266 = arith.index_cast %265 : i32 to index
    %c0_155 = arith.constant 0 : index
    %c0_156 = arith.constant 0 : index
    %267 = vector.load %arg9[%266, %c0_155, %c0_156] : memref<8x2x128xf32, #tpu.memory_space<vmem>>, vector<1x2x128xf32>
    %268 = vector.shape_cast %267 : vector<1x2x128xf32> to vector<2x128xf32>
    %c0_157 = arith.constant 0 : index
    %c0_158 = arith.constant 0 : index
    %269 = vector.load %arg10[%c0_157, %c0_158] : memref<2x32xf32, #tpu.memory_space<vmem>>, vector<2x32xf32>
    %cst_159 = arith.constant dense<0.000000e+00> : vector<2x128xf32>
    %270 = tpu.matmul %269, %3, %cst_159 {dimension_numbers = #tpu.dot_dimension_numbers<[1], [0], [0], [1], [0, 0, 1, 1], [], []>} : vector<2x32xf32>, vector<32x128xf32>, vector<2x128xf32> -> vector<2x128xf32>
    %271 = arith.addf %268, %270 : vector<2x128xf32>
    %272 = vector.extract_strided_slice %271 {offsets = [0, 0], sizes = [2, 32], strides = [1, 1]} : vector<2x128xf32> to vector<2x32xf32>
    %273 = arith.negf %272 : vector<2x32xf32>
    %274 = math.exp %273 : vector<2x32xf32>
    %cst_160 = arith.constant 1.000000e+00 : f32
    %275 = vector.broadcast %cst_160 : f32 to vector<2x32xf32>
    %276 = arith.addf %275, %274 : vector<2x32xf32>
    %277 = arith.divf %275, %276 : vector<2x32xf32>
    %278 = vector.extract_strided_slice %271 {offsets = [0, 32], sizes = [2, 32], strides = [1, 1]} : vector<2x128xf32> to vector<2x32xf32>
    %279 = arith.negf %278 : vector<2x32xf32>
    %280 = math.exp %279 : vector<2x32xf32>
    %cst_161 = arith.constant 1.000000e+00 : f32
    %281 = vector.broadcast %cst_161 : f32 to vector<2x32xf32>
    %282 = arith.addf %281, %280 : vector<2x32xf32>
    %283 = arith.divf %281, %282 : vector<2x32xf32>
    %284 = vector.extract_strided_slice %271 {offsets = [0, 64], sizes = [2, 32], strides = [1, 1]} : vector<2x128xf32> to vector<2x32xf32>
    %285 = math.tanh %284 : vector<2x32xf32>
    %286 = vector.extract_strided_slice %271 {offsets = [0, 96], sizes = [2, 32], strides = [1, 1]} : vector<2x128xf32> to vector<2x32xf32>
    %287 = arith.negf %286 : vector<2x32xf32>
    %288 = math.exp %287 : vector<2x32xf32>
    %cst_162 = arith.constant 1.000000e+00 : f32
    %289 = vector.broadcast %cst_162 : f32 to vector<2x32xf32>
    %290 = arith.addf %289, %288 : vector<2x32xf32>
    %291 = arith.divf %289, %290 : vector<2x32xf32>
    %c0_163 = arith.constant 0 : index
    %c0_164 = arith.constant 0 : index
    %292 = vector.load %arg11[%c0_163, %c0_164] : memref<2x32xf32, #tpu.memory_space<vmem>>, vector<2x32xf32>
    %293 = arith.mulf %283, %292 : vector<2x32xf32>
    %294 = arith.mulf %277, %285 : vector<2x32xf32>
    %295 = arith.addf %293, %294 : vector<2x32xf32>
    %296 = math.tanh %295 : vector<2x32xf32>
    %297 = arith.mulf %291, %296 : vector<2x32xf32>
    %c0_165 = arith.constant 0 : index
    %c0_166 = arith.constant 0 : index
    %298 = vector.load %arg11[%c0_165, %c0_166] : memref<2x32xf32, #tpu.memory_space<vmem>>, vector<2x32xf32>
    tpu.vector_store %arg11[%c0_165, %c0_166], %295 {strides = array<i32>} : memref<2x32xf32, #tpu.memory_space<vmem>>, vector<2x32xf32>,
    %c0_167 = arith.constant 0 : index
    %c0_168 = arith.constant 0 : index
    %299 = vector.load %arg10[%c0_167, %c0_168] : memref<2x32xf32, #tpu.memory_space<vmem>>, vector<2x32xf32>
    tpu.vector_store %arg10[%c0_167, %c0_168], %297 {strides = array<i32>} : memref<2x32xf32, #tpu.memory_space<vmem>>, vector<2x32xf32>,
    %c0_169 = arith.constant 0 : index
    %300 = arith.index_cast %265 : i32 to index
    %c0_170 = arith.constant 0 : index
    %c0_171 = arith.constant 0 : index
    %301 = vector.load %arg7[%c0_169, %300, %c0_170, %c0_171] : memref<1x8x2x32xf32, #tpu.memory_space<vmem>>, vector<1x1x2x32xf32>
    %302 = vector.shape_cast %301 : vector<1x1x2x32xf32> to vector<2x32xf32>
    %303 = vector.shape_cast %297 : vector<2x32xf32> to vector<1x1x2x32xf32>
    tpu.vector_store %arg7[%c0_169, %300, %c0_170, %c0_171], %303 {strides = array<i32>} : memref<1x8x2x32xf32, #tpu.memory_space<vmem>>, vector<1x1x2x32xf32>,
    %c4_i32_172 = arith.constant 4 : i32
    %c0_i32_173 = arith.constant 0 : i32
    %304 = arith.cmpi eq, %arg0, %c0_i32_173 : i32
    %c7_i32_174 = arith.constant 7 : i32
    %305 = arith.subi %c7_i32_174, %c4_i32_172 : i32
    %306 = arith.select %304, %c4_i32_172, %305 : i32
    %307 = arith.index_cast %306 : i32 to index
    %c0_175 = arith.constant 0 : index
    %c0_176 = arith.constant 0 : index
    %308 = vector.load %arg9[%307, %c0_175, %c0_176] : memref<8x2x128xf32, #tpu.memory_space<vmem>>, vector<1x2x128xf32>
    %309 = vector.shape_cast %308 : vector<1x2x128xf32> to vector<2x128xf32>
    %c0_177 = arith.constant 0 : index
    %c0_178 = arith.constant 0 : index
    %310 = vector.load %arg10[%c0_177, %c0_178] : memref<2x32xf32, #tpu.memory_space<vmem>>, vector<2x32xf32>
    %cst_179 = arith.constant dense<0.000000e+00> : vector<2x128xf32>
    %311 = tpu.matmul %310, %3, %cst_179 {dimension_numbers = #tpu.dot_dimension_numbers<[1], [0], [0], [1], [0, 0, 1, 1], [], []>} : vector<2x32xf32>, vector<32x128xf32>, vector<2x128xf32> -> vector<2x128xf32>
    %312 = arith.addf %309, %311 : vector<2x128xf32>
    %313 = vector.extract_strided_slice %312 {offsets = [0, 0], sizes = [2, 32], strides = [1, 1]} : vector<2x128xf32> to vector<2x32xf32>
    %314 = arith.negf %313 : vector<2x32xf32>
    %315 = math.exp %314 : vector<2x32xf32>
    %cst_180 = arith.constant 1.000000e+00 : f32
    %316 = vector.broadcast %cst_180 : f32 to vector<2x32xf32>
    %317 = arith.addf %316, %315 : vector<2x32xf32>
    %318 = arith.divf %316, %317 : vector<2x32xf32>
    %319 = vector.extract_strided_slice %312 {offsets = [0, 32], sizes = [2, 32], strides = [1, 1]} : vector<2x128xf32> to vector<2x32xf32>
    %320 = arith.negf %319 : vector<2x32xf32>
    %321 = math.exp %320 : vector<2x32xf32>
    %cst_181 = arith.constant 1.000000e+00 : f32
    %322 = vector.broadcast %cst_181 : f32 to vector<2x32xf32>
    %323 = arith.addf %322, %321 : vector<2x32xf32>
    %324 = arith.divf %322, %323 : vector<2x32xf32>
    %325 = vector.extract_strided_slice %312 {offsets = [0, 64], sizes = [2, 32], strides = [1, 1]} : vector<2x128xf32> to vector<2x32xf32>
    %326 = math.tanh %325 : vector<2x32xf32>
    %327 = vector.extract_strided_slice %312 {offsets = [0, 96], sizes = [2, 32], strides = [1, 1]} : vector<2x128xf32> to vector<2x32xf32>
    %328 = arith.negf %327 : vector<2x32xf32>
    %329 = math.exp %328 : vector<2x32xf32>
    %cst_182 = arith.constant 1.000000e+00 : f32
    %330 = vector.broadcast %cst_182 : f32 to vector<2x32xf32>
    %331 = arith.addf %330, %329 : vector<2x32xf32>
    %332 = arith.divf %330, %331 : vector<2x32xf32>
    %c0_183 = arith.constant 0 : index
    %c0_184 = arith.constant 0 : index
    %333 = vector.load %arg11[%c0_183, %c0_184] : memref<2x32xf32, #tpu.memory_space<vmem>>, vector<2x32xf32>
    %334 = arith.mulf %324, %333 : vector<2x32xf32>
    %335 = arith.mulf %318, %326 : vector<2x32xf32>
    %336 = arith.addf %334, %335 : vector<2x32xf32>
    %337 = math.tanh %336 : vector<2x32xf32>
    %338 = arith.mulf %332, %337 : vector<2x32xf32>
    %c0_185 = arith.constant 0 : index
    %c0_186 = arith.constant 0 : index
    %339 = vector.load %arg11[%c0_185, %c0_186] : memref<2x32xf32, #tpu.memory_space<vmem>>, vector<2x32xf32>
    tpu.vector_store %arg11[%c0_185, %c0_186], %336 {strides = array<i32>} : memref<2x32xf32, #tpu.memory_space<vmem>>, vector<2x32xf32>,
    %c0_187 = arith.constant 0 : index
    %c0_188 = arith.constant 0 : index
    %340 = vector.load %arg10[%c0_187, %c0_188] : memref<2x32xf32, #tpu.memory_space<vmem>>, vector<2x32xf32>
    tpu.vector_store %arg10[%c0_187, %c0_188], %338 {strides = array<i32>} : memref<2x32xf32, #tpu.memory_space<vmem>>, vector<2x32xf32>,
    %c0_189 = arith.constant 0 : index
    %341 = arith.index_cast %306 : i32 to index
    %c0_190 = arith.constant 0 : index
    %c0_191 = arith.constant 0 : index
    %342 = vector.load %arg7[%c0_189, %341, %c0_190, %c0_191] : memref<1x8x2x32xf32, #tpu.memory_space<vmem>>, vector<1x1x2x32xf32>
    %343 = vector.shape_cast %342 : vector<1x1x2x32xf32> to vector<2x32xf32>
    %344 = vector.shape_cast %338 : vector<2x32xf32> to vector<1x1x2x32xf32>
    tpu.vector_store %arg7[%c0_189, %341, %c0_190, %c0_191], %344 {strides = array<i32>} : memref<1x8x2x32xf32, #tpu.memory_space<vmem>>, vector<1x1x2x32xf32>,
    %c5_i32_192 = arith.constant 5 : i32
    %c0_i32_193 = arith.constant 0 : i32
    %345 = arith.cmpi eq, %arg0, %c0_i32_193 : i32
    %c7_i32_194 = arith.constant 7 : i32
    %346 = arith.subi %c7_i32_194, %c5_i32_192 : i32
    %347 = arith.select %345, %c5_i32_192, %346 : i32
    %348 = arith.index_cast %347 : i32 to index
    %c0_195 = arith.constant 0 : index
    %c0_196 = arith.constant 0 : index
    %349 = vector.load %arg9[%348, %c0_195, %c0_196] : memref<8x2x128xf32, #tpu.memory_space<vmem>>, vector<1x2x128xf32>
    %350 = vector.shape_cast %349 : vector<1x2x128xf32> to vector<2x128xf32>
    %c0_197 = arith.constant 0 : index
    %c0_198 = arith.constant 0 : index
    %351 = vector.load %arg10[%c0_197, %c0_198] : memref<2x32xf32, #tpu.memory_space<vmem>>, vector<2x32xf32>
    %cst_199 = arith.constant dense<0.000000e+00> : vector<2x128xf32>
    %352 = tpu.matmul %351, %3, %cst_199 {dimension_numbers = #tpu.dot_dimension_numbers<[1], [0], [0], [1], [0, 0, 1, 1], [], []>} : vector<2x32xf32>, vector<32x128xf32>, vector<2x128xf32> -> vector<2x128xf32>
    %353 = arith.addf %350, %352 : vector<2x128xf32>
    %354 = vector.extract_strided_slice %353 {offsets = [0, 0], sizes = [2, 32], strides = [1, 1]} : vector<2x128xf32> to vector<2x32xf32>
    %355 = arith.negf %354 : vector<2x32xf32>
    %356 = math.exp %355 : vector<2x32xf32>
    %cst_200 = arith.constant 1.000000e+00 : f32
    %357 = vector.broadcast %cst_200 : f32 to vector<2x32xf32>
    %358 = arith.addf %357, %356 : vector<2x32xf32>
    %359 = arith.divf %357, %358 : vector<2x32xf32>
    %360 = vector.extract_strided_slice %353 {offsets = [0, 32], sizes = [2, 32], strides = [1, 1]} : vector<2x128xf32> to vector<2x32xf32>
    %361 = arith.negf %360 : vector<2x32xf32>
    %362 = math.exp %361 : vector<2x32xf32>
    %cst_201 = arith.constant 1.000000e+00 : f32
    %363 = vector.broadcast %cst_201 : f32 to vector<2x32xf32>
    %364 = arith.addf %363, %362 : vector<2x32xf32>
    %365 = arith.divf %363, %364 : vector<2x32xf32>
    %366 = vector.extract_strided_slice %353 {offsets = [0, 64], sizes = [2, 32], strides = [1, 1]} : vector<2x128xf32> to vector<2x32xf32>
    %367 = math.tanh %366 : vector<2x32xf32>
    %368 = vector.extract_strided_slice %353 {offsets = [0, 96], sizes = [2, 32], strides = [1, 1]} : vector<2x128xf32> to vector<2x32xf32>
    %369 = arith.negf %368 : vector<2x32xf32>
    %370 = math.exp %369 : vector<2x32xf32>
    %cst_202 = arith.constant 1.000000e+00 : f32
    %371 = vector.broadcast %cst_202 : f32 to vector<2x32xf32>
    %372 = arith.addf %371, %370 : vector<2x32xf32>
    %373 = arith.divf %371, %372 : vector<2x32xf32>
    %c0_203 = arith.constant 0 : index
    %c0_204 = arith.constant 0 : index
    %374 = vector.load %arg11[%c0_203, %c0_204] : memref<2x32xf32, #tpu.memory_space<vmem>>, vector<2x32xf32>
    %375 = arith.mulf %365, %374 : vector<2x32xf32>
    %376 = arith.mulf %359, %367 : vector<2x32xf32>
    %377 = arith.addf %375, %376 : vector<2x32xf32>
    %378 = math.tanh %377 : vector<2x32xf32>
    %379 = arith.mulf %373, %378 : vector<2x32xf32>
    %c0_205 = arith.constant 0 : index
    %c0_206 = arith.constant 0 : index
    %380 = vector.load %arg11[%c0_205, %c0_206] : memref<2x32xf32, #tpu.memory_space<vmem>>, vector<2x32xf32>
    tpu.vector_store %arg11[%c0_205, %c0_206], %377 {strides = array<i32>} : memref<2x32xf32, #tpu.memory_space<vmem>>, vector<2x32xf32>,
    %c0_207 = arith.constant 0 : index
    %c0_208 = arith.constant 0 : index
    %381 = vector.load %arg10[%c0_207, %c0_208] : memref<2x32xf32, #tpu.memory_space<vmem>>, vector<2x32xf32>
    tpu.vector_store %arg10[%c0_207, %c0_208], %379 {strides = array<i32>} : memref<2x32xf32, #tpu.memory_space<vmem>>, vector<2x32xf32>,
    %c0_209 = arith.constant 0 : index
    %382 = arith.index_cast %347 : i32 to index
    %c0_210 = arith.constant 0 : index
    %c0_211 = arith.constant 0 : index
    %383 = vector.load %arg7[%c0_209, %382, %c0_210, %c0_211] : memref<1x8x2x32xf32, #tpu.memory_space<vmem>>, vector<1x1x2x32xf32>
    %384 = vector.shape_cast %383 : vector<1x1x2x32xf32> to vector<2x32xf32>
    %385 = vector.shape_cast %379 : vector<2x32xf32> to vector<1x1x2x32xf32>
    tpu.vector_store %arg7[%c0_209, %382, %c0_210, %c0_211], %385 {strides = array<i32>} : memref<1x8x2x32xf32, #tpu.memory_space<vmem>>, vector<1x1x2x32xf32>,
    %c6_i32_212 = arith.constant 6 : i32
    %c0_i32_213 = arith.constant 0 : i32
    %386 = arith.cmpi eq, %arg0, %c0_i32_213 : i32
    %c7_i32_214 = arith.constant 7 : i32
    %387 = arith.subi %c7_i32_214, %c6_i32_212 : i32
    %388 = arith.select %386, %c6_i32_212, %387 : i32
    %389 = arith.index_cast %388 : i32 to index
    %c0_215 = arith.constant 0 : index
    %c0_216 = arith.constant 0 : index
    %390 = vector.load %arg9[%389, %c0_215, %c0_216] : memref<8x2x128xf32, #tpu.memory_space<vmem>>, vector<1x2x128xf32>
    %391 = vector.shape_cast %390 : vector<1x2x128xf32> to vector<2x128xf32>
    %c0_217 = arith.constant 0 : index
    %c0_218 = arith.constant 0 : index
    %392 = vector.load %arg10[%c0_217, %c0_218] : memref<2x32xf32, #tpu.memory_space<vmem>>, vector<2x32xf32>
    %cst_219 = arith.constant dense<0.000000e+00> : vector<2x128xf32>
    %393 = tpu.matmul %392, %3, %cst_219 {dimension_numbers = #tpu.dot_dimension_numbers<[1], [0], [0], [1], [0, 0, 1, 1], [], []>} : vector<2x32xf32>, vector<32x128xf32>, vector<2x128xf32> -> vector<2x128xf32>
    %394 = arith.addf %391, %393 : vector<2x128xf32>
    %395 = vector.extract_strided_slice %394 {offsets = [0, 0], sizes = [2, 32], strides = [1, 1]} : vector<2x128xf32> to vector<2x32xf32>
    %396 = arith.negf %395 : vector<2x32xf32>
    %397 = math.exp %396 : vector<2x32xf32>
    %cst_220 = arith.constant 1.000000e+00 : f32
    %398 = vector.broadcast %cst_220 : f32 to vector<2x32xf32>
    %399 = arith.addf %398, %397 : vector<2x32xf32>
    %400 = arith.divf %398, %399 : vector<2x32xf32>
    %401 = vector.extract_strided_slice %394 {offsets = [0, 32], sizes = [2, 32], strides = [1, 1]} : vector<2x128xf32> to vector<2x32xf32>
    %402 = arith.negf %401 : vector<2x32xf32>
    %403 = math.exp %402 : vector<2x32xf32>
    %cst_221 = arith.constant 1.000000e+00 : f32
    %404 = vector.broadcast %cst_221 : f32 to vector<2x32xf32>
    %405 = arith.addf %404, %403 : vector<2x32xf32>
    %406 = arith.divf %404, %405 : vector<2x32xf32>
    %407 = vector.extract_strided_slice %394 {offsets = [0, 64], sizes = [2, 32], strides = [1, 1]} : vector<2x128xf32> to vector<2x32xf32>
    %408 = math.tanh %407 : vector<2x32xf32>
    %409 = vector.extract_strided_slice %394 {offsets = [0, 96], sizes = [2, 32], strides = [1, 1]} : vector<2x128xf32> to vector<2x32xf32>
    %410 = arith.negf %409 : vector<2x32xf32>
    %411 = math.exp %410 : vector<2x32xf32>
    %cst_222 = arith.constant 1.000000e+00 : f32
    %412 = vector.broadcast %cst_222 : f32 to vector<2x32xf32>
    %413 = arith.addf %412, %411 : vector<2x32xf32>
    %414 = arith.divf %412, %413 : vector<2x32xf32>
    %c0_223 = arith.constant 0 : index
    %c0_224 = arith.constant 0 : index
    %415 = vector.load %arg11[%c0_223, %c0_224] : memref<2x32xf32, #tpu.memory_space<vmem>>, vector<2x32xf32>
    %416 = arith.mulf %406, %415 : vector<2x32xf32>
    %417 = arith.mulf %400, %408 : vector<2x32xf32>
    %418 = arith.addf %416, %417 : vector<2x32xf32>
    %419 = math.tanh %418 : vector<2x32xf32>
    %420 = arith.mulf %414, %419 : vector<2x32xf32>
    %c0_225 = arith.constant 0 : index
    %c0_226 = arith.constant 0 : index
    %421 = vector.load %arg11[%c0_225, %c0_226] : memref<2x32xf32, #tpu.memory_space<vmem>>, vector<2x32xf32>
    tpu.vector_store %arg11[%c0_225, %c0_226], %418 {strides = array<i32>} : memref<2x32xf32, #tpu.memory_space<vmem>>, vector<2x32xf32>,
    %c0_227 = arith.constant 0 : index
    %c0_228 = arith.constant 0 : index
    %422 = vector.load %arg10[%c0_227, %c0_228] : memref<2x32xf32, #tpu.memory_space<vmem>>, vector<2x32xf32>
    tpu.vector_store %arg10[%c0_227, %c0_228], %420 {strides = array<i32>} : memref<2x32xf32, #tpu.memory_space<vmem>>, vector<2x32xf32>,
    %c0_229 = arith.constant 0 : index
    %423 = arith.index_cast %388 : i32 to index
    %c0_230 = arith.constant 0 : index
    %c0_231 = arith.constant 0 : index
    %424 = vector.load %arg7[%c0_229, %423, %c0_230, %c0_231] : memref<1x8x2x32xf32, #tpu.memory_space<vmem>>, vector<1x1x2x32xf32>
    %425 = vector.shape_cast %424 : vector<1x1x2x32xf32> to vector<2x32xf32>
    %426 = vector.shape_cast %420 : vector<2x32xf32> to vector<1x1x2x32xf32>
    tpu.vector_store %arg7[%c0_229, %423, %c0_230, %c0_231], %426 {strides = array<i32>} : memref<1x8x2x32xf32, #tpu.memory_space<vmem>>, vector<1x1x2x32xf32>,
    %c7_i32_232 = arith.constant 7 : i32
    %c0_i32_233 = arith.constant 0 : i32
    %427 = arith.cmpi eq, %arg0, %c0_i32_233 : i32
    %c7_i32_234 = arith.constant 7 : i32
    %428 = arith.subi %c7_i32_234, %c7_i32_232 : i32
    %429 = arith.select %427, %c7_i32_232, %428 : i32
    %430 = arith.index_cast %429 : i32 to index
    %c0_235 = arith.constant 0 : index
    %c0_236 = arith.constant 0 : index
    %431 = vector.load %arg9[%430, %c0_235, %c0_236] : memref<8x2x128xf32, #tpu.memory_space<vmem>>, vector<1x2x128xf32>
    %432 = vector.shape_cast %431 : vector<1x2x128xf32> to vector<2x128xf32>
    %c0_237 = arith.constant 0 : index
    %c0_238 = arith.constant 0 : index
    %433 = vector.load %arg10[%c0_237, %c0_238] : memref<2x32xf32, #tpu.memory_space<vmem>>, vector<2x32xf32>
    %cst_239 = arith.constant dense<0.000000e+00> : vector<2x128xf32>
    %434 = tpu.matmul %433, %3, %cst_239 {dimension_numbers = #tpu.dot_dimension_numbers<[1], [0], [0], [1], [0, 0, 1, 1], [], []>} : vector<2x32xf32>, vector<32x128xf32>, vector<2x128xf32> -> vector<2x128xf32>
    %435 = arith.addf %432, %434 : vector<2x128xf32>
    %436 = vector.extract_strided_slice %435 {offsets = [0, 0], sizes = [2, 32], strides = [1, 1]} : vector<2x128xf32> to vector<2x32xf32>
    %437 = arith.negf %436 : vector<2x32xf32>
    %438 = math.exp %437 : vector<2x32xf32>
    %cst_240 = arith.constant 1.000000e+00 : f32
    %439 = vector.broadcast %cst_240 : f32 to vector<2x32xf32>
    %440 = arith.addf %439, %438 : vector<2x32xf32>
    %441 = arith.divf %439, %440 : vector<2x32xf32>
    %442 = vector.extract_strided_slice %435 {offsets = [0, 32], sizes = [2, 32], strides = [1, 1]} : vector<2x128xf32> to vector<2x32xf32>
    %443 = arith.negf %442 : vector<2x32xf32>
    %444 = math.exp %443 : vector<2x32xf32>
    %cst_241 = arith.constant 1.000000e+00 : f32
    %445 = vector.broadcast %cst_241 : f32 to vector<2x32xf32>
    %446 = arith.addf %445, %444 : vector<2x32xf32>
    %447 = arith.divf %445, %446 : vector<2x32xf32>
    %448 = vector.extract_strided_slice %435 {offsets = [0, 64], sizes = [2, 32], strides = [1, 1]} : vector<2x128xf32> to vector<2x32xf32>
    %449 = math.tanh %448 : vector<2x32xf32>
    %450 = vector.extract_strided_slice %435 {offsets = [0, 96], sizes = [2, 32], strides = [1, 1]} : vector<2x128xf32> to vector<2x32xf32>
    %451 = arith.negf %450 : vector<2x32xf32>
    %452 = math.exp %451 : vector<2x32xf32>
    %cst_242 = arith.constant 1.000000e+00 : f32
    %453 = vector.broadcast %cst_242 : f32 to vector<2x32xf32>
    %454 = arith.addf %453, %452 : vector<2x32xf32>
    %455 = arith.divf %453, %454 : vector<2x32xf32>
    %c0_243 = arith.constant 0 : index
    %c0_244 = arith.constant 0 : index
    %456 = vector.load %arg11[%c0_243, %c0_244] : memref<2x32xf32, #tpu.memory_space<vmem>>, vector<2x32xf32>
    %457 = arith.mulf %447, %456 : vector<2x32xf32>
    %458 = arith.mulf %441, %449 : vector<2x32xf32>
    %459 = arith.addf %457, %458 : vector<2x32xf32>
    %460 = math.tanh %459 : vector<2x32xf32>
    %461 = arith.mulf %455, %460 : vector<2x32xf32>
    %c0_245 = arith.constant 0 : index
    %c0_246 = arith.constant 0 : index
    %462 = vector.load %arg11[%c0_245, %c0_246] : memref<2x32xf32, #tpu.memory_space<vmem>>, vector<2x32xf32>
    tpu.vector_store %arg11[%c0_245, %c0_246], %459 {strides = array<i32>} : memref<2x32xf32, #tpu.memory_space<vmem>>, vector<2x32xf32>,
    %c0_247 = arith.constant 0 : index
    %c0_248 = arith.constant 0 : index
    %463 = vector.load %arg10[%c0_247, %c0_248] : memref<2x32xf32, #tpu.memory_space<vmem>>, vector<2x32xf32>
    tpu.vector_store %arg10[%c0_247, %c0_248], %461 {strides = array<i32>} : memref<2x32xf32, #tpu.memory_space<vmem>>, vector<2x32xf32>,
    %c0_249 = arith.constant 0 : index
    %464 = arith.index_cast %429 : i32 to index
    %c0_250 = arith.constant 0 : index
    %c0_251 = arith.constant 0 : index
    %465 = vector.load %arg7[%c0_249, %464, %c0_250, %c0_251] : memref<1x8x2x32xf32, #tpu.memory_space<vmem>>, vector<1x1x2x32xf32>
    %466 = vector.shape_cast %465 : vector<1x1x2x32xf32> to vector<2x32xf32>
    %467 = vector.shape_cast %461 : vector<2x32xf32> to vector<1x1x2x32xf32>
    tpu.vector_store %arg7[%c0_249, %464, %c0_250, %c0_251], %467 {strides = array<i32>} : memref<1x8x2x32xf32, #tpu.memory_space<vmem>>, vector<1x1x2x32xf32>,
    %c8_i32_252 = arith.constant 8 : i32
    %c0_253 = arith.constant 0 : index
    %c7 = arith.constant 7 : index
    %c0_254 = arith.constant 0 : index
    %c0_255 = arith.constant 0 : index
    %468 = vector.load %arg7[%c0_253, %c7, %c0_254, %c0_255] : memref<1x8x2x32xf32, #tpu.memory_space<vmem>>, vector<1x1x2x32xf32>
    %469 = vector.shape_cast %468 : vector<1x1x2x32xf32> to vector<2x32xf32>
    %c0_256 = arith.constant 0 : index
    %c0_257 = arith.constant 0 : index
    %c0_258 = arith.constant 0 : index
    %470 = vector.load %arg5[%c0_256, %c0_257, %c0_258] : memref<1x32x2xf32, #tpu.memory_space<vmem>>, vector<1x32x2xf32>
    %471 = vector.shape_cast %470 : vector<1x32x2xf32> to vector<32x2xf32>
    %cst_259 = arith.constant dense<0.000000e+00> : vector<2x2xf32>
    %472 = tpu.matmul %469, %471, %cst_259 {dimension_numbers = #tpu.dot_dimension_numbers<[1], [0], [0], [1], [0, 0, 1, 1], [], []>} : vector<2x32xf32>, vector<32x2xf32>, vector<2x2xf32> -> vector<2x2xf32>
    %c0_260 = arith.constant 0 : index
    %c0_261 = arith.constant 0 : index
    %c0_262 = arith.constant 0 : index
    %473 = vector.load %arg6[%c0_260, %c0_261, %c0_262] : memref<1x1x2xf32, #tpu.memory_space<vmem>>, vector<1x1x2xf32>
    %474 = vector.shape_cast %473 : vector<1x1x2xf32> to vector<1x2xf32>
    %475 = vector.broadcast %474 : vector<1x2xf32> to vector<2x2xf32>
    %476 = arith.addf %472, %475 : vector<2x2xf32>
    %c0_263 = arith.constant 0 : index
    %c0_264 = arith.constant 0 : index
    %c0_265 = arith.constant 0 : index
    %477 = vector.load %arg8[%c0_263, %c0_264, %c0_265] : memref<1x2x2xf32, #tpu.memory_space<vmem>>, vector<1x2x2xf32>
    %478 = vector.shape_cast %477 : vector<1x2x2xf32> to vector<2x2xf32>
    %479 = vector.shape_cast %476 : vector<2x2xf32> to vector<1x2x2xf32>
    tpu.vector_store %arg8[%c0_263, %c0_264, %c0_265], %479 {strides = array<i32>} : memref<1x2x2xf32, #tpu.memory_space<vmem>>, vector<1x2x2xf32>,
    return
  }
  func.func @transform_0(%arg0: i32) -> (i32, i32, i32, i32) {
    %c0_i32 = arith.constant 0 : i32
    %c0_i32_0 = arith.constant 0 : i32
    %c0_i32_1 = arith.constant 0 : i32
    %c0_i32_2 = arith.constant 0 : i32
    %c0_i32_3 = arith.constant 0 : i32
    return %c0_i32, %c0_i32_0, %c0_i32_1, %c0_i32_2 : i32, i32, i32, i32
  }
  func.func @transform_1(%arg0: i32) -> (i32, i32, i32) {
    %c0_i32 = arith.constant 0 : i32
    %c0_i32_0 = arith.constant 0 : i32
    %c0_i32_1 = arith.constant 0 : i32
    return %arg0, %c0_i32, %c0_i32_0 : i32, i32, i32
  }
  func.func @transform_2(%arg0: i32) -> (i32, i32, i32) {
    %c0_i32 = arith.constant 0 : i32
    %c0_i32_0 = arith.constant 0 : i32
    %c0_i32_1 = arith.constant 0 : i32
    return %arg0, %c0_i32, %c0_i32_0 : i32, i32, i32
  }
  func.func @transform_3(%arg0: i32) -> (i32, i32, i32) {
    %c0_i32 = arith.constant 0 : i32
    %c0_i32_0 = arith.constant 0 : i32
    %c0_i32_1 = arith.constant 0 : i32
    return %arg0, %c0_i32, %c0_i32_0 : i32, i32, i32
  }
  func.func @transform_4(%arg0: i32) -> (i32, i32, i32) {
    %c0_i32 = arith.constant 0 : i32
    %c0_i32_0 = arith.constant 0 : i32
    %c0_i32_1 = arith.constant 0 : i32
    return %arg0, %c0_i32, %c0_i32_0 : i32, i32, i32
  }
  func.func @transform_5(%arg0: i32) -> (i32, i32, i32) {
    %c0_i32 = arith.constant 0 : i32
    %c0_i32_0 = arith.constant 0 : i32
    %c0_i32_1 = arith.constant 0 : i32
    return %arg0, %c0_i32, %c0_i32_0 : i32, i32, i32
  }
  func.func @transform_6(%arg0: i32) -> (i32, i32, i32, i32) {
    %c0_i32 = arith.constant 0 : i32
    %c0_i32_0 = arith.constant 0 : i32
    %c0_i32_1 = arith.constant 0 : i32
    %c0_i32_2 = arith.constant 0 : i32
    return %arg0, %c0_i32, %c0_i32_0, %c0_i32_1 : i32, i32, i32, i32
  }
  func.func @transform_7(%arg0: i32) -> (i32, i32, i32) {
    %c0_i32 = arith.constant 0 : i32
    %c0_i32_0 = arith.constant 0 : i32
    %c0_i32_1 = arith.constant 0 : i32
    return %arg0, %c0_i32, %c0_i32_0 : i32, i32, i32
  }
}

</mosaic_0001>

<llo_original>
// kernel: sentiment_forward.2
$region0: #{sentiment_forward.2}
  #allocation0 [shape = 'u32[]', space=smem, size = 0x4, offset = 0x4, fixed_abs, tag = 'smem constant byte address 0x4 - core index']
  #allocation1 [shape = 'u32[144,128]{1,0:T(1,128)}', space=vmem, size = 0x12000, scoped, tag = 'internal scratch']
  #allocation2 [shape = 'f32[8,2,128]{2,1,0:T(2,128)}', space=vmem, size = 0x2000, scoped, tag = 'scratch operand']
  #allocation3 [shape = 'f32[2,32]{1,0:T(2,128)}', space=vmem, size = 0x400, scoped, tag = 'scratch operand']
  #allocation4 [shape = 'f32[2,32]{1,0:T(2,128)}', space=vmem, size = 0x400, scoped, tag = 'scratch operand']
  %s0 = inlined_call_operand.vmem [shape: f32[1,8,2,16], index: 0, kind: input, shape index: {}]
  %s1 = inlined_call_operand.vmem [shape: f32[2,16,128], index: 1, kind: input, shape index: {}]
  %s2 = inlined_call_operand.vmem [shape: f32[2,32,128], index: 2, kind: input, shape index: {}]
  %s3 = inlined_call_operand.vmem [shape: f32[2,1,128], index: 3, kind: input, shape index: {}]
  %s4 = inlined_call_operand.vmem [shape: f32[2,8,2,32], index: 4, kind: output, shape index: {}]
  %s5 = sld [smem:[#allocation0]]
  $region49: #{sentiment_forward.2} parent=0
    _
  %s7 = ssub.s32 1, %s5
  %s8 = scalar_select 0, %s7, %s5
  loop: start=0, step=1, limit=4
  $region2: #{sentiment_forward.2} parent=0 // loop_pre_header
    _
  $region3: #{sentiment_forward.2} parent=0 // loop_header
    %s10 = sphi 0, %s14
    %p11 = scmp.ge.s32.totalorder %s10, 4
    %s18 = sphi 0, %s18
    %s20 = sphi 0, %s18
    %s21 = sphi 0, %s20
    %s35 = sphi 0, %s21
    %s41 = sphi 0, %s43
    %s44 = sphi 0, %s41
    %s45 = sphi 0, %s44
    %s61 = sphi 0, %s45
    %s67 = sphi 0, %s69
    %s70 = sphi 0, %s67
    %s71 = sphi 0, %s70
    %s87 = sphi 0, %s71
    %s93 = sphi 0, %s95
    %s96 = sphi 0, %s93
    %s97 = sphi 0, %s96
    %s113 = sphi 0, %s97
    %s119 = sphi 0, %s121
    %s122 = sphi 0, %s119
    %s123 = sphi 0, %s122
    %s139 = sphi 0, %s123
  $region4: #{sentiment_forward.2} parent=0 // loop_header_branch
    %13 = sbr.rel (%p11) target = $region8
  $region5: #{sentiment_forward.2} parent=0 // loop_body
    %s15 = ssub.s32 %s10, 1
    %s16 = ssub.s32 %s10, 2
    %s17 = sadd.s32 %s10, 1
    %s19 = sadd.s32 %s18, 1
    %p22 = scmp.eq.s32.totalorder %s10, 1
    %p23 = scmp.ne.s32.totalorder %s18, %s20
    %p24 = scmp.eq.s32.totalorder %s10, 0
    %p25 = por %p23, %p24
    %p26 = scmp.ne.s32.totalorder %s18, %s20
    %p27 = scmp.eq.s32.totalorder %s15, 1
    %p28 = por %p26, %p27
    %p29 = scmp.ne.s32.totalorder %s20, %s21
    %p30 = scmp.eq.s32.totalorder %s15, 0
    %p31 = por %p29, %p30
    %p32 = scmp.ne.s32.totalorder %s20, %s21
    %p33 = scmp.eq.s32.totalorder %s16, 1
    %p34 = por %p32, %p33
    %p36 = scmp.ne.s32.totalorder %s21, %s35
    %p37 = scmp.eq.s32.totalorder %s16, 0
    %p38 = por %p36, %p37
    %s39 = ssub.s32 %s10, %s17
    %p40 = scmp.eq.s32.totalorder %s39, 0
    %s42 = sadd.s32 %s41, 1
    %s43 = scalar_select %p40, %s41, %s42
    %p46 = pneg %p40
    %p47 = scmp.eq.s32.totalorder %s10, 1
    %p48 = por %p46, %p47
    %p49 = scmp.ne.s32.totalorder %s41, %s44
    %p50 = scmp.eq.s32.totalorder %s10, 0
    %p51 = por %p49, %p50
    %p52 = scmp.ne.s32.totalorder %s41, %s44
    %p53 = scmp.eq.s32.totalorder %s15, 1
    %p54 = por %p52, %p53
    %p55 = scmp.ne.s32.totalorder %s44, %s45
    %p56 = scmp.eq.s32.totalorder %s15, 0
    %p57 = por %p55, %p56
    %p58 = scmp.ne.s32.totalorder %s44, %s45
    %p59 = scmp.eq.s32.totalorder %s16, 1
    %p60 = por %p58, %p59
    %p62 = scmp.ne.s32.totalorder %s45, %s61
    %p63 = scmp.eq.s32.totalorder %s16, 0
    %p64 = por %p62, %p63
    %s65 = ssub.s32 %s10, %s17
    %p66 = scmp.eq.s32.totalorder %s65, 0
    %s68 = sadd.s32 %s67, 1
    %s69 = scalar_select %p66, %s67, %s68
    %p72 = pneg %p66
    %p73 = scmp.eq.s32.totalorder %s10, 1
    %p74 = por %p72, %p73
    %p75 = scmp.ne.s32.totalorder %s67, %s70
    %p76 = scmp.eq.s32.totalorder %s10, 0
    %p77 = por %p75, %p76
    %p78 = scmp.ne.s32.totalorder %s67, %s70
    %p79 = scmp.eq.s32.totalorder %s15, 1
    %p80 = por %p78, %p79
    %p81 = scmp.ne.s32.totalorder %s70, %s71
    %p82 = scmp.eq.s32.totalorder %s15, 0
    %p83 = por %p81, %p82
    %p84 = scmp.ne.s32.totalorder %s70, %s71
    %p85 = scmp.eq.s32.totalorder %s16, 1
    %p86 = por %p84, %p85
    %p88 = scmp.ne.s32.totalorder %s71, %s87
    %p89 = scmp.eq.s32.totalorder %s16, 0
    %p90 = por %p88, %p89
    %s91 = ssub.s32 %s10, %s17
    %p92 = scmp.eq.s32.totalorder %s91, 0
    %s94 = sadd.s32 %s93, 1
    %s95 = scalar_select %p92, %s93, %s94
    %p98 = pneg %p92
    %p99 = scmp.eq.s32.totalorder %s10, 1
    %p100 = por %p98, %p99
    %p101 = scmp.ne.s32.totalorder %s93, %s96
    %p102 = scmp.eq.s32.totalorder %s10, 0
    %p103 = por %p101, %p102
    %p104 = scmp.ne.s32.totalorder %s93, %s96
    %p105 = scmp.eq.s32.totalorder %s15, 1
    %p106 = por %p104, %p105
    %p107 = scmp.ne.s32.totalorder %s96, %s97
    %p108 = scmp.eq.s32.totalorder %s15, 0
    %p109 = por %p107, %p108
    %p110 = scmp.ne.s32.totalorder %s96, %s97
    %p111 = scmp.eq.s32.totalorder %s16, 1
    %p112 = por %p110, %p111
    %p114 = scmp.ne.s32.totalorder %s97, %s113
    %p115 = scmp.eq.s32.totalorder %s16, 0
    %p116 = por %p114, %p115
    %s117 = ssub.s32 %s10, %s17
    %p118 = scmp.eq.s32.totalorder %s117, 0
    %s120 = sadd.s32 %s119, 1
    %s121 = scalar_select %p118, %s119, %s120
    %p124 = pneg %p118
    %p125 = scmp.eq.s32.totalorder %s10, 1
    %p126 = por %p124, %p125
    %p127 = scmp.ne.s32.totalorder %s119, %s122
    %p128 = scmp.eq.s32.totalorder %s10, 0
    %p129 = por %p127, %p128
    %p130 = scmp.ne.s32.totalorder %s119, %s122
    %p131 = scmp.eq.s32.totalorder %s15, 1
    %p132 = por %p130, %p131
    %p133 = scmp.ne.s32.totalorder %s122, %s123
    %p134 = scmp.eq.s32.totalorder %s15, 0
    %p135 = por %p133, %p134
    %p136 = scmp.ne.s32.totalorder %s122, %s123
    %p137 = scmp.eq.s32.totalorder %s16, 1
    %p138 = por %p136, %p137
    %p140 = scmp.ne.s32.totalorder %s123, %s139
    %p141 = scmp.eq.s32.totalorder %s16, 0
    %p142 = por %p140, %p141
    %p143 = scmp.le.s32.totalorder 1, %s10
    %p144 = scmp.lt.s32.totalorder %s10, 3
    %p145 = pnand %p143, %p144
    %p146 = pneg %p145
    // Predicated region
    $region9: #{sentiment_forward.2} parent=5 // pred_check
      _
    $region10: #{sentiment_forward.2} parent=5 // pred_check_branch
      %148 = sbr.rel (%p145) target = $region12
    $region11: #{sentiment_forward.2} parent=5 // pred_region
      %s149 = ssub.s32 %s10, 1
      // Predicated region
      $region13: #{sentiment_forward.2} parent=11 // pred_check
        %p150 = pneg %p31
      $region14: #{sentiment_forward.2} parent=11 // pred_check_branch
        %152 = sbr.rel (%p150) target = $region16
      $region15: #{sentiment_forward.2} parent=11 // pred_region
        _
      $region16: #{sentiment_forward.2} parent=11 // pred_fallthru
        _
    $region12: #{sentiment_forward.2} parent=5 // pred_fallthru
      _
    %p153 = scmp.lt.s32.totalorder %s10, 2
    // Predicated region
    $region17: #{sentiment_forward.2} parent=5 // pred_check
      %p154 = pneg %p153
    $region18: #{sentiment_forward.2} parent=5 // pred_check_branch
      %156 = sbr.rel (%p154) target = $region20
    $region19: #{sentiment_forward.2} parent=5 // pred_region
      // Predicated region
      $region21: #{sentiment_forward.2} parent=19 // pred_check
        %p157 = pneg %p51
      $region22: #{sentiment_forward.2} parent=19 // pred_check_branch
        %159 = sbr.rel (%p157) target = $region24
      $region23: #{sentiment_forward.2} parent=19 // pred_region
        %p160 = scmp.lt.s32.totalorder %s10, 1
        %s161 = scalar_select %p160, %s10, 1
        %s162 = smul.addr %s161, 2
        %s163 = smul.addr %s162, 8
        %s164 = scalar_lea.vmem %s1, %s163
      $region24: #{sentiment_forward.2} parent=19 // pred_fallthru
        _
      // Predicated region
      $region25: #{sentiment_forward.2} parent=19 // pred_check
        %p165 = pneg %p77
      $region26: #{sentiment_forward.2} parent=19 // pred_check_branch
        %167 = sbr.rel (%p165) target = $region28
      $region27: #{sentiment_forward.2} parent=19 // pred_region
        %p168 = scmp.lt.s32.totalorder %s10, 1
        %s169 = scalar_select %p168, %s10, 1
        %s170 = smul.addr %s169, 4
        %s171 = smul.addr %s170, 8
        %s172 = scalar_lea.vmem %s2, %s171
      $region28: #{sentiment_forward.2} parent=19 // pred_fallthru
        _
      // Predicated region
      $region29: #{sentiment_forward.2} parent=19 // pred_check
        %p173 = pneg %p103
      $region30: #{sentiment_forward.2} parent=19 // pred_check_branch
        %175 = sbr.rel (%p173) target = $region32
      $region31: #{sentiment_forward.2} parent=19 // pred_region
        %p176 = scmp.lt.s32.totalorder %s10, 1
        %s177 = scalar_select %p176, %s10, 1
        %s178 = scalar_lea.vmem %s3, %s177
      $region32: #{sentiment_forward.2} parent=19 // pred_fallthru
        _
    $region20: #{sentiment_forward.2} parent=5 // pred_fallthru
      _
    %p179 = scmp.le.s32.totalorder 1, %s10
    %p180 = scmp.lt.s32.totalorder %s10, 3
    %p181 = pnand %p179, %p180
    %p182 = pneg %p181
    // Predicated region
    $region33: #{sentiment_forward.2} parent=5 // pred_check
      _
    $region34: #{sentiment_forward.2} parent=5 // pred_check_branch
      %184 = sbr.rel (%p181) target = $region36
    $region35: #{sentiment_forward.2} parent=5 // pred_region
      %s185 = ssub.s32 %s10, 1
      %p186 = pneg %p31
      %p187 = pneg %p28
      %p188 = scmp.lt.s32.totalorder %s15, 1
      %s189 = scalar_select %p188, %s15, 1
      %s190 = smul.addr %s189, 2
      %s191 = smul.addr %s190, 8
      %s192 = scalar_lea.vmem %s1, %s191
      %p193 = pneg %p57
      %p194 = pneg %p54
      %p195 = scmp.lt.s32.totalorder %s15, 1
      %s196 = scalar_select %p195, %s15, 1
      %s197 = smul.addr %s196, 4
      %s198 = smul.addr %s197, 8
      %s199 = scalar_lea.vmem %s2, %s198
      %p200 = pneg %p83
      %p201 = pneg %p80
      %p202 = scmp.lt.s32.totalorder %s15, 1
      %s203 = scalar_select %p202, %s15, 1
      %s204 = scalar_lea.vmem %s3, %s203
      %p205 = pneg %p109
      %p206 = pneg %p106
      %p207 = pneg %p135
      %p208 = pneg %p132
      %p209 = scmp.lt.s32.totalorder %s15, 1
      %s210 = scalar_select %p209, %s15, 1
      %s211 = smul.addr %s210, 8
      %s212 = smul.addr %s211, 2
      %s213 = scalar_lea.vmem %s4, %s212
      %p214 = scmp.lt.s32.totalorder %s15, 1
      %s215 = scalar_select %p214, %s15, 1
      %s216 = smul.addr %s215, 2
      %s217 = smul.addr %s216, 8
      %s218 = scalar_lea.vmem %s1, %s217
      %p219 = scmp.lt.s32.totalorder %s15, 1
      %s220 = scalar_select %p219, %s15, 1
      %s221 = smul.addr %s220, 4
      %s222 = smul.addr %s221, 8
      %s223 = scalar_lea.vmem %s2, %s222
      %p224 = scmp.lt.s32.totalorder %s15, 1
      %s225 = scalar_select %p224, %s15, 1
      %s226 = scalar_lea.vmem %s3, %s225
      %p227 = scmp.lt.s32.totalorder %s15, 1
      %s228 = scalar_select %p227, %s15, 1
      %s229 = smul.addr %s228, 8
      %s230 = smul.addr %s229, 2
      %s231 = scalar_lea.vmem %s4, %s230
      %v232 = vld [vmem:[%s218] sm:$0xff]
      %v233 = vld [vmem:[%s218 + $0x8] sm:$0xff]
      %v234 = vld [vmem:[%s223] sm:$0xff]
      %v235 = vld [vmem:[%s223 + $0x8] sm:$0xff]
      %v236 = vld [vmem:[%s223 + $0x10] sm:$0xff]
      %v237 = vld [vmem:[%s223 + $0x18] sm:$0xff]
      %v238 = vld [vmem:[%s226] sm:$0x1]
      %v240 = vlaneseq
      %v241 = vshrl.u32 %v240, 7
      %v242 = vsub.s32 0, %v241
      %v243 = vrot.slane %v238, %v242
      %v245 = vld [vmem:[%s0] sm:$0x3]
      %vm246 = vcmask 130048
      %v248 = vsel %vm246, %v245, 0
      %250 = vmatprep.subr.mxu0 0.0
      %251 = vmatpush1.msra.mxu0 %v232
      %252 = vmatprep.subr.mxu0 0.0
      %253 = vmatpush1.msra.mxu0 %v233
      %254 = vmatprep.subr.mxu0 0.0
      %255 = vmatpush1.msra.mxu0 0.0
      %256 = vmatprep.subr.mxu0 0.0
      %257 = vmatpush1.msra.mxu0 0.0
      %258 = vmatprep.subr.mxu0 0.0
      %259 = vmatpush1.msra.mxu0 0.0
      %260 = vmatprep.subr.mxu0 0.0
      %261 = vmatpush1.msra.mxu0 0.0
      %262 = vmatprep.subr.mxu0 0.0
      %263 = vmatpush1.msra.mxu0 0.0
      %264 = vmatprep.subr.mxu0 0.0
      %265 = vmatpush1.msra.mxu0 0.0
      %266 = vmatprep.subr.mxu0 0.0
      %267 = vmatpush1.msra.mxu0 0.0
      %268 = vmatprep.subr.mxu0 0.0
      %269 = vmatpush1.msra.mxu0 0.0
      %270 = vmatprep.subr.mxu0 0.0
      %271 = vmatpush1.msra.mxu0 0.0
      %272 = vmatprep.subr.mxu0 0.0
      %273 = vmatpush1.msra.mxu0 0.0
      %274 = vmatprep.subr.mxu0 0.0
      %275 = vmatpush1.msra.mxu0 0.0
      %276 = vmatprep.subr.mxu0 0.0
      %277 = vmatpush1.msra.mxu0 0.0
      %278 = vmatprep.subr.mxu0 0.0
      %279 = vmatpush1.msra.mxu0 0.0
      %280 = vmatprep.subr.mxu0 0.0
      %281 = vmatpush1.msra.mxu0 0.0
      %282 = vmatprep.subr.mxu0 0.0
      %283 = vmatpush1.msra.mxu0 0.0
      %284 = vmatprep.subr.mxu0 0.0
      %285 = vmatpush1.msra.mxu0 0.0
      %286 = vmatprep.subr.mxu0 0.0
      %287 = vmatpush1.msra.mxu0 0.0
      %288 = vmatprep.subr.mxu0 0.0
      %289 = vmatpush1.msra.mxu0 0.0
      %290 = vmatprep.subr.mxu0 0.0
      %291 = vmatpush1.msra.mxu0 0.0
      %292 = vmatprep.subr.mxu0 0.0
      %293 = vmatpush1.msra.mxu0 0.0
      %294 = vmatprep.subr.mxu0 0.0
      %295 = vmatpush1.msra.mxu0 0.0
      %296 = vmatprep.subr.mxu0 0.0
      %297 = vmatpush1.msra.mxu0 0.0
      %298 = vmatprep.subr.mxu0 0.0
      %299 = vmatpush1.msra.mxu0 0.0
      %300 = vmatprep.subr.mxu0 0.0
      %301 = vmatpush1.msra.mxu0 0.0
      %302 = vmatprep.subr.mxu0 0.0
      %303 = vmatpush1.msra.mxu0 0.0
      %304 = vmatprep.subr.mxu0 0.0
      %305 = vmatpush1.msra.mxu0 0.0
      %306 = vmatprep.subr.mxu0 0.0
      %307 = vmatpush1.msra.mxu0 0.0
      %308 = vmatprep.subr.mxu0 0.0
      %309 = vmatpush1.msra.mxu0 0.0
      %310 = vmatprep.subr.mxu0 0.0
      %311 = vmatpush1.msra.mxu0 0.0
      %312 = vmatprep.subr.mxu0 0.0
      %313 = vmatpush1.msra.mxu0 0.0
      %314 = vmatprep.mubr.f32.mxu0 0.0
      %315 = vmatmul.mubr.f32.gmra.mrb[0].mxu0 %v248
      %v316 = vpop.f32.mrb[0].mxu0
      %v317 = vadd.f32 %v243, %v316
      %v318 = vpop.f32.mrb[0].mxu0
      %319 = vdwg.mxu0
      %320 = vst [vmem:[#allocation2] sm:$0x3] %v317
      %s321 = scalar_lea.vmem %s0, 2
      %v322 = vld [vmem:[%s321] sm:$0x3]
      %v324 = vsel %vm246, %v322, 0
      %326 = vmatprep.subr.mxu0 0.0
      %327 = vmatpush1.msra.mxu0 %v232
      %328 = vmatprep.subr.mxu0 0.0
      %329 = vmatpush1.msra.mxu0 %v233
      %330 = vmatprep.subr.mxu0 0.0
      %331 = vmatpush1.msra.mxu0 0.0
      %332 = vmatprep.subr.mxu0 0.0
      %333 = vmatpush1.msra.mxu0 0.0
      %334 = vmatprep.subr.mxu0 0.0
      %335 = vmatpush1.msra.mxu0 0.0
      %336 = vmatprep.subr.mxu0 0.0
      %337 = vmatpush1.msra.mxu0 0.0
      %338 = vmatprep.subr.mxu0 0.0
      %339 = vmatpush1.msra.mxu0 0.0
      %340 = vmatprep.subr.mxu0 0.0
      %341 = vmatpush1.msra.mxu0 0.0
      %342 = vmatprep.subr.mxu0 0.0
      %343 = vmatpush1.msra.mxu0 0.0
      %344 = vmatprep.subr.mxu0 0.0
      %345 = vmatpush1.msra.mxu0 0.0
      %346 = vmatprep.subr.mxu0 0.0
      %347 = vmatpush1.msra.mxu0 0.0
      %348 = vmatprep.subr.mxu0 0.0
      %349 = vmatpush1.msra.mxu0 0.0
      %350 = vmatprep.subr.mxu0 0.0
      %351 = vmatpush1.msra.mxu0 0.0
      %352 = vmatprep.subr.mxu0 0.0
      %353 = vmatpush1.msra.mxu0 0.0
      %354 = vmatprep.subr.mxu0 0.0
      %355 = vmatpush1.msra.mxu0 0.0
      %356 = vmatprep.subr.mxu0 0.0
      %357 = vmatpush1.msra.mxu0 0.0
      %358 = vmatprep.subr.mxu0 0.0
      %359 = vmatpush1.msra.mxu0 0.0
      %360 = vmatprep.subr.mxu0 0.0
      %361 = vmatpush1.msra.mxu0 0.0
      %362 = vmatprep.subr.mxu0 0.0
      %363 = vmatpush1.msra.mxu0 0.0
      %364 = vmatprep.subr.mxu0 0.0
      %365 = vmatpush1.msra.mxu0 0.0
      %366 = vmatprep.subr.mxu0 0.0
      %367 = vmatpush1.msra.mxu0 0.0
      %368 = vmatprep.subr.mxu0 0.0
      %369 = vmatpush1.msra.mxu0 0.0
      %370 = vmatprep.subr.mxu0 0.0
      %371 = vmatpush1.msra.mxu0 0.0
      %372 = vmatprep.subr.mxu0 0.0
      %373 = vmatpush1.msra.mxu0 0.0
      %374 = vmatprep.subr.mxu0 0.0
      %375 = vmatpush1.msra.mxu0 0.0
      %376 = vmatprep.subr.mxu0 0.0
      %377 = vmatpush1.msra.mxu0 0.0
      %378 = vmatprep.subr.mxu0 0.0
      %379 = vmatpush1.msra.mxu0 0.0
      %380 = vmatprep.subr.mxu0 0.0
      %381 = vmatpush1.msra.mxu0 0.0
      %382 = vmatprep.subr.mxu0 0.0
      %383 = vmatpush1.msra.mxu0 0.0
      %384 = vmatprep.subr.mxu0 0.0
      %385 = vmatpush1.msra.mxu0 0.0
      %386 = vmatprep.subr.mxu0 0.0
      %387 = vmatpush1.msra.mxu0 0.0
      %388 = vmatprep.subr.mxu0 0.0
      %389 = vmatpush1.msra.mxu0 0.0
      %390 = vmatprep.mubr.f32.mxu0 0.0
      %391 = vmatmul.mubr.f32.gmra.mrb[0].mxu0 %v324
      %v392 = vpop.f32.mrb[0].mxu0
      %v393 = vadd.f32 %v243, %v392
      %v394 = vpop.f32.mrb[0].mxu0
      %395 = vdwg.mxu0
      %s396 = scalar_lea.vmem [#allocation2], 2
      %397 = vst [vmem:[%s396] sm:$0x3] %v393
      %s398 = scalar_lea.vmem %s0, 4
      %v399 = vld [vmem:[%s398] sm:$0x3]
      %v401 = vsel %vm246, %v399, 0
      %403 = vmatprep.subr.mxu0 0.0
      %404 = vmatpush1.msra.mxu0 %v232
      %405 = vmatprep.subr.mxu0 0.0
      %406 = vmatpush1.msra.mxu0 %v233
      %407 = vmatprep.subr.mxu0 0.0
      %408 = vmatpush1.msra.mxu0 0.0
      %409 = vmatprep.subr.mxu0 0.0
      %410 = vmatpush1.msra.mxu0 0.0
      %411 = vmatprep.subr.mxu0 0.0
      %412 = vmatpush1.msra.mxu0 0.0
      %413 = vmatprep.subr.mxu0 0.0
      %414 = vmatpush1.msra.mxu0 0.0
      %415 = vmatprep.subr.mxu0 0.0
      %416 = vmatpush1.msra.mxu0 0.0
      %417 = vmatprep.subr.mxu0 0.0
      %418 = vmatpush1.msra.mxu0 0.0
      %419 = vmatprep.subr.mxu0 0.0
      %420 = vmatpush1.msra.mxu0 0.0
      %421 = vmatprep.subr.mxu0 0.0
      %422 = vmatpush1.msra.mxu0 0.0
      %423 = vmatprep.subr.mxu0 0.0
      %424 = vmatpush1.msra.mxu0 0.0
      %425 = vmatprep.subr.mxu0 0.0
      %426 = vmatpush1.msra.mxu0 0.0
      %427 = vmatprep.subr.mxu0 0.0
      %428 = vmatpush1.msra.mxu0 0.0
      %429 = vmatprep.subr.mxu0 0.0
      %430 = vmatpush1.msra.mxu0 0.0
      %431 = vmatprep.subr.mxu0 0.0
      %432 = vmatpush1.msra.mxu0 0.0
      %433 = vmatprep.subr.mxu0 0.0
      %434 = vmatpush1.msra.mxu0 0.0
      %435 = vmatprep.subr.mxu0 0.0
      %436 = vmatpush1.msra.mxu0 0.0
      %437 = vmatprep.subr.mxu0 0.0
      %438 = vmatpush1.msra.mxu0 0.0
      %439 = vmatprep.subr.mxu0 0.0
      %440 = vmatpush1.msra.mxu0 0.0
      %441 = vmatprep.subr.mxu0 0.0
      %442 = vmatpush1.msra.mxu0 0.0
      %443 = vmatprep.subr.mxu0 0.0
      %444 = vmatpush1.msra.mxu0 0.0
      %445 = vmatprep.subr.mxu0 0.0
      %446 = vmatpush1.msra.mxu0 0.0
      %447 = vmatprep.subr.mxu0 0.0
      %448 = vmatpush1.msra.mxu0 0.0
      %449 = vmatprep.subr.mxu0 0.0
      %450 = vmatpush1.msra.mxu0 0.0
      %451 = vmatprep.subr.mxu0 0.0
      %452 = vmatpush1.msra.mxu0 0.0
      %453 = vmatprep.subr.mxu0 0.0
      %454 = vmatpush1.msra.mxu0 0.0
      %455 = vmatprep.subr.mxu0 0.0
      %456 = vmatpush1.msra.mxu0 0.0
      %457 = vmatprep.subr.mxu0 0.0
      %458 = vmatpush1.msra.mxu0 0.0
      %459 = vmatprep.subr.mxu0 0.0
      %460 = vmatpush1.msra.mxu0 0.0
      %461 = vmatprep.subr.mxu0 0.0
      %462 = vmatpush1.msra.mxu0 0.0
      %463 = vmatprep.subr.mxu0 0.0
      %464 = vmatpush1.msra.mxu0 0.0
      %465 = vmatprep.subr.mxu0 0.0
      %466 = vmatpush1.msra.mxu0 0.0
      %467 = vmatprep.mubr.f32.mxu0 0.0
      %468 = vmatmul.mubr.f32.gmra.mrb[0].mxu0 %v401
      %v469 = vpop.f32.mrb[0].mxu0
      %v470 = vadd.f32 %v243, %v469
      %v471 = vpop.f32.mrb[0].mxu0
      %472 = vdwg.mxu0
      %s473 = scalar_lea.vmem [#allocation2], 4
      %474 = vst [vmem:[%s473] sm:$0x3] %v470
      %s475 = scalar_lea.vmem %s0, 6
      %v476 = vld [vmem:[%s475] sm:$0x3]
      %v478 = vsel %vm246, %v476, 0
      %480 = vmatprep.subr.mxu0 0.0
      %481 = vmatpush1.msra.mxu0 %v232
      %482 = vmatprep.subr.mxu0 0.0
      %483 = vmatpush1.msra.mxu0 %v233
      %484 = vmatprep.subr.mxu0 0.0
      %485 = vmatpush1.msra.mxu0 0.0
      %486 = vmatprep.subr.mxu0 0.0
      %487 = vmatpush1.msra.mxu0 0.0
      %488 = vmatprep.subr.mxu0 0.0
      %489 = vmatpush1.msra.mxu0 0.0
      %490 = vmatprep.subr.mxu0 0.0
      %491 = vmatpush1.msra.mxu0 0.0
      %492 = vmatprep.subr.mxu0 0.0
      %493 = vmatpush1.msra.mxu0 0.0
      %494 = vmatprep.subr.mxu0 0.0
      %495 = vmatpush1.msra.mxu0 0.0
      %496 = vmatprep.subr.mxu0 0.0
      %497 = vmatpush1.msra.mxu0 0.0
      %498 = vmatprep.subr.mxu0 0.0
      %499 = vmatpush1.msra.mxu0 0.0
      %500 = vmatprep.subr.mxu0 0.0
      %501 = vmatpush1.msra.mxu0 0.0
      %502 = vmatprep.subr.mxu0 0.0
      %503 = vmatpush1.msra.mxu0 0.0
      %504 = vmatprep.subr.mxu0 0.0
      %505 = vmatpush1.msra.mxu0 0.0
      %506 = vmatprep.subr.mxu0 0.0
      %507 = vmatpush1.msra.mxu0 0.0
      %508 = vmatprep.subr.mxu0 0.0
      %509 = vmatpush1.msra.mxu0 0.0
      %510 = vmatprep.subr.mxu0 0.0
      %511 = vmatpush1.msra.mxu0 0.0
      %512 = vmatprep.subr.mxu0 0.0
      %513 = vmatpush1.msra.mxu0 0.0
      %514 = vmatprep.subr.mxu0 0.0
      %515 = vmatpush1.msra.mxu0 0.0
      %516 = vmatprep.subr.mxu0 0.0
      %517 = vmatpush1.msra.mxu0 0.0
      %518 = vmatprep.subr.mxu0 0.0
      %519 = vmatpush1.msra.mxu0 0.0
      %520 = vmatprep.subr.mxu0 0.0
      %521 = vmatpush1.msra.mxu0 0.0
      %522 = vmatprep.subr.mxu0 0.0
      %523 = vmatpush1.msra.mxu0 0.0
      %524 = vmatprep.subr.mxu0 0.0
      %525 = vmatpush1.msra.mxu0 0.0
      %526 = vmatprep.subr.mxu0 0.0
      %527 = vmatpush1.msra.mxu0 0.0
      %528 = vmatprep.subr.mxu0 0.0
      %529 = vmatpush1.msra.mxu0 0.0
      %530 = vmatprep.subr.mxu0 0.0
      %531 = vmatpush1.msra.mxu0 0.0
      %532 = vmatprep.subr.mxu0 0.0
      %533 = vmatpush1.msra.mxu0 0.0
      %534 = vmatprep.subr.mxu0 0.0
      %535 = vmatpush1.msra.mxu0 0.0
      %536 = vmatprep.subr.mxu0 0.0
      %537 = vmatpush1.msra.mxu0 0.0
      %538 = vmatprep.subr.mxu0 0.0
      %539 = vmatpush1.msra.mxu0 0.0
      %540 = vmatprep.subr.mxu0 0.0
      %541 = vmatpush1.msra.mxu0 0.0
      %542 = vmatprep.subr.mxu0 0.0
      %543 = vmatpush1.msra.mxu0 0.0
      %544 = vmatprep.mubr.f32.mxu0 0.0
      %545 = vmatmul.mubr.f32.gmra.mrb[0].mxu0 %v478
      %v546 = vpop.f32.mrb[0].mxu0
      %v547 = vadd.f32 %v243, %v546
      %v548 = vpop.f32.mrb[0].mxu0
      %549 = vdwg.mxu0
      %s550 = scalar_lea.vmem [#allocation2], 6
      %551 = vst [vmem:[%s550] sm:$0x3] %v547
      %s552 = scalar_lea.vmem %s0, 8
      %v553 = vld [vmem:[%s552] sm:$0x3]
      %v555 = vsel %vm246, %v553, 0
      %557 = vmatprep.subr.mxu0 0.0
      %558 = vmatpush1.msra.mxu0 %v232
      %559 = vmatprep.subr.mxu0 0.0
      %560 = vmatpush1.msra.mxu0 %v233
      %561 = vmatprep.subr.mxu0 0.0
      %562 = vmatpush1.msra.mxu0 0.0
      %563 = vmatprep.subr.mxu0 0.0
      %564 = vmatpush1.msra.mxu0 0.0
      %565 = vmatprep.subr.mxu0 0.0
      %566 = vmatpush1.msra.mxu0 0.0
      %567 = vmatprep.subr.mxu0 0.0
      %568 = vmatpush1.msra.mxu0 0.0
      %569 = vmatprep.subr.mxu0 0.0
      %570 = vmatpush1.msra.mxu0 0.0
      %571 = vmatprep.subr.mxu0 0.0
      %572 = vmatpush1.msra.mxu0 0.0
      %573 = vmatprep.subr.mxu0 0.0
      %574 = vmatpush1.msra.mxu0 0.0
      %575 = vmatprep.subr.mxu0 0.0
      %576 = vmatpush1.msra.mxu0 0.0
      %577 = vmatprep.subr.mxu0 0.0
      %578 = vmatpush1.msra.mxu0 0.0
      %579 = vmatprep.subr.mxu0 0.0
      %580 = vmatpush1.msra.mxu0 0.0
      %581 = vmatprep.subr.mxu0 0.0
      %582 = vmatpush1.msra.mxu0 0.0
      %583 = vmatprep.subr.mxu0 0.0
      %584 = vmatpush1.msra.mxu0 0.0
      %585 = vmatprep.subr.mxu0 0.0
      %586 = vmatpush1.msra.mxu0 0.0
      %587 = vmatprep.subr.mxu0 0.0
      %588 = vmatpush1.msra.mxu0 0.0
      %589 = vmatprep.subr.mxu0 0.0
      %590 = vmatpush1.msra.mxu0 0.0
      %591 = vmatprep.subr.mxu0 0.0
      %592 = vmatpush1.msra.mxu0 0.0
      %593 = vmatprep.subr.mxu0 0.0
      %594 = vmatpush1.msra.mxu0 0.0
      %595 = vmatprep.subr.mxu0 0.0
      %596 = vmatpush1.msra.mxu0 0.0
      %597 = vmatprep.subr.mxu0 0.0
      %598 = vmatpush1.msra.mxu0 0.0
      %599 = vmatprep.subr.mxu0 0.0
      %600 = vmatpush1.msra.mxu0 0.0
      %601 = vmatprep.subr.mxu0 0.0
      %602 = vmatpush1.msra.mxu0 0.0
      %603 = vmatprep.subr.mxu0 0.0
      %604 = vmatpush1.msra.mxu0 0.0
      %605 = vmatprep.subr.mxu0 0.0
      %606 = vmatpush1.msra.mxu0 0.0
      %607 = vmatprep.subr.mxu0 0.0
      %608 = vmatpush1.msra.mxu0 0.0
      %609 = vmatprep.subr.mxu0 0.0
      %610 = vmatpush1.msra.mxu0 0.0
      %611 = vmatprep.subr.mxu0 0.0
      %612 = vmatpush1.msra.mxu0 0.0
      %613 = vmatprep.subr.mxu0 0.0
      %614 = vmatpush1.msra.mxu0 0.0
      %615 = vmatprep.subr.mxu0 0.0
      %616 = vmatpush1.msra.mxu0 0.0
      %617 = vmatprep.subr.mxu0 0.0
      %618 = vmatpush1.msra.mxu0 0.0
      %619 = vmatprep.subr.mxu0 0.0
      %620 = vmatpush1.msra.mxu0 0.0
      %621 = vmatprep.mubr.f32.mxu0 0.0
      %622 = vmatmul.mubr.f32.gmra.mrb[0].mxu0 %v555
      %v623 = vpop.f32.mrb[0].mxu0
      %v624 = vadd.f32 %v243, %v623
      %v625 = vpop.f32.mrb[0].mxu0
      %626 = vdwg.mxu0
      %s627 = scalar_lea.vmem [#allocation2], 8
      %628 = vst [vmem:[%s627] sm:$0x3] %v624
      %s629 = scalar_lea.vmem %s0, 10
      %v630 = vld [vmem:[%s629] sm:$0x3]
      %v632 = vsel %vm246, %v630, 0
      %634 = vmatprep.subr.mxu0 0.0
      %635 = vmatpush1.msra.mxu0 %v232
      %636 = vmatprep.subr.mxu0 0.0
      %637 = vmatpush1.msra.mxu0 %v233
      %638 = vmatprep.subr.mxu0 0.0
      %639 = vmatpush1.msra.mxu0 0.0
      %640 = vmatprep.subr.mxu0 0.0
      %641 = vmatpush1.msra.mxu0 0.0
      %642 = vmatprep.subr.mxu0 0.0
      %643 = vmatpush1.msra.mxu0 0.0
      %644 = vmatprep.subr.mxu0 0.0
      %645 = vmatpush1.msra.mxu0 0.0
      %646 = vmatprep.subr.mxu0 0.0
      %647 = vmatpush1.msra.mxu0 0.0
      %648 = vmatprep.subr.mxu0 0.0
      %649 = vmatpush1.msra.mxu0 0.0
      %650 = vmatprep.subr.mxu0 0.0
      %651 = vmatpush1.msra.mxu0 0.0
      %652 = vmatprep.subr.mxu0 0.0
      %653 = vmatpush1.msra.mxu0 0.0
      %654 = vmatprep.subr.mxu0 0.0
      %655 = vmatpush1.msra.mxu0 0.0
      %656 = vmatprep.subr.mxu0 0.0
      %657 = vmatpush1.msra.mxu0 0.0
      %658 = vmatprep.subr.mxu0 0.0
      %659 = vmatpush1.msra.mxu0 0.0
      %660 = vmatprep.subr.mxu0 0.0
      %661 = vmatpush1.msra.mxu0 0.0
      %662 = vmatprep.subr.mxu0 0.0
      %663 = vmatpush1.msra.mxu0 0.0
      %664 = vmatprep.subr.mxu0 0.0
      %665 = vmatpush1.msra.mxu0 0.0
      %666 = vmatprep.subr.mxu0 0.0
      %667 = vmatpush1.msra.mxu0 0.0
      %668 = vmatprep.subr.mxu0 0.0
      %669 = vmatpush1.msra.mxu0 0.0
      %670 = vmatprep.subr.mxu0 0.0
      %671 = vmatpush1.msra.mxu0 0.0
      %672 = vmatprep.subr.mxu0 0.0
      %673 = vmatpush1.msra.mxu0 0.0
      %674 = vmatprep.subr.mxu0 0.0
      %675 = vmatpush1.msra.mxu0 0.0
      %676 = vmatprep.subr.mxu0 0.0
      %677 = vmatpush1.msra.mxu0 0.0
      %678 = vmatprep.subr.mxu0 0.0
      %679 = vmatpush1.msra.mxu0 0.0
      %680 = vmatprep.subr.mxu0 0.0
      %681 = vmatpush1.msra.mxu0 0.0
      %682 = vmatprep.subr.mxu0 0.0
      %683 = vmatpush1.msra.mxu0 0.0
      %684 = vmatprep.subr.mxu0 0.0
      %685 = vmatpush1.msra.mxu0 0.0
      %686 = vmatprep.subr.mxu0 0.0
      %687 = vmatpush1.msra.mxu0 0.0
      %688 = vmatprep.subr.mxu0 0.0
      %689 = vmatpush1.msra.mxu0 0.0
      %690 = vmatprep.subr.mxu0 0.0
      %691 = vmatpush1.msra.mxu0 0.0
      %692 = vmatprep.subr.mxu0 0.0
      %693 = vmatpush1.msra.mxu0 0.0
      %694 = vmatprep.subr.mxu0 0.0
      %695 = vmatpush1.msra.mxu0 0.0
      %696 = vmatprep.subr.mxu0 0.0
      %697 = vmatpush1.msra.mxu0 0.0
      %698 = vmatprep.mubr.f32.mxu0 0.0
      %699 = vmatmul.mubr.f32.gmra.mrb[0].mxu0 %v632
      %v700 = vpop.f32.mrb[0].mxu0
      %v701 = vadd.f32 %v243, %v700
      %v702 = vpop.f32.mrb[0].mxu0
      %703 = vdwg.mxu0
      %s704 = scalar_lea.vmem [#allocation2], 10
      %705 = vst [vmem:[%s704] sm:$0x3] %v701
      %s706 = scalar_lea.vmem %s0, 12
      %v707 = vld [vmem:[%s706] sm:$0x3]
      %v709 = vsel %vm246, %v707, 0
      %711 = vmatprep.subr.mxu0 0.0
      %712 = vmatpush1.msra.mxu0 %v232
      %713 = vmatprep.subr.mxu0 0.0
      %714 = vmatpush1.msra.mxu0 %v233
      %715 = vmatprep.subr.mxu0 0.0
      %716 = vmatpush1.msra.mxu0 0.0
      %717 = vmatprep.subr.mxu0 0.0
      %718 = vmatpush1.msra.mxu0 0.0
      %719 = vmatprep.subr.mxu0 0.0
      %720 = vmatpush1.msra.mxu0 0.0
      %721 = vmatprep.subr.mxu0 0.0
      %722 = vmatpush1.msra.mxu0 0.0
      %723 = vmatprep.subr.mxu0 0.0
      %724 = vmatpush1.msra.mxu0 0.0
      %725 = vmatprep.subr.mxu0 0.0
      %726 = vmatpush1.msra.mxu0 0.0
      %727 = vmatprep.subr.mxu0 0.0
      %728 = vmatpush1.msra.mxu0 0.0
      %729 = vmatprep.subr.mxu0 0.0
      %730 = vmatpush1.msra.mxu0 0.0
      %731 = vmatprep.subr.mxu0 0.0
      %732 = vmatpush1.msra.mxu0 0.0
      %733 = vmatprep.subr.mxu0 0.0
      %734 = vmatpush1.msra.mxu0 0.0
      %735 = vmatprep.subr.mxu0 0.0
      %736 = vmatpush1.msra.mxu0 0.0
      %737 = vmatprep.subr.mxu0 0.0
      %738 = vmatpush1.msra.mxu0 0.0
      %739 = vmatprep.subr.mxu0 0.0
      %740 = vmatpush1.msra.mxu0 0.0
      %741 = vmatprep.subr.mxu0 0.0
      %742 = vmatpush1.msra.mxu0 0.0
      %743 = vmatprep.subr.mxu0 0.0
      %744 = vmatpush1.msra.mxu0 0.0
      %745 = vmatprep.subr.mxu0 0.0
      %746 = vmatpush1.msra.mxu0 0.0
      %747 = vmatprep.subr.mxu0 0.0
      %748 = vmatpush1.msra.mxu0 0.0
      %749 = vmatprep.subr.mxu0 0.0
      %750 = vmatpush1.msra.mxu0 0.0
      %751 = vmatprep.subr.mxu0 0.0
      %752 = vmatpush1.msra.mxu0 0.0
      %753 = vmatprep.subr.mxu0 0.0
      %754 = vmatpush1.msra.mxu0 0.0
      %755 = vmatprep.subr.mxu0 0.0
      %756 = vmatpush1.msra.mxu0 0.0
      %757 = vmatprep.subr.mxu0 0.0
      %758 = vmatpush1.msra.mxu0 0.0
      %759 = vmatprep.subr.mxu0 0.0
      %760 = vmatpush1.msra.mxu0 0.0
      %761 = vmatprep.subr.mxu0 0.0
      %762 = vmatpush1.msra.mxu0 0.0
      %763 = vmatprep.subr.mxu0 0.0
      %764 = vmatpush1.msra.mxu0 0.0
      %765 = vmatprep.subr.mxu0 0.0
      %766 = vmatpush1.msra.mxu0 0.0
      %767 = vmatprep.subr.mxu0 0.0
      %768 = vmatpush1.msra.mxu0 0.0
      %769 = vmatprep.subr.mxu0 0.0
      %770 = vmatpush1.msra.mxu0 0.0
      %771 = vmatprep.subr.mxu0 0.0
      %772 = vmatpush1.msra.mxu0 0.0
      %773 = vmatprep.subr.mxu0 0.0
      %774 = vmatpush1.msra.mxu0 0.0
      %775 = vmatprep.mubr.f32.mxu0 0.0
      %776 = vmatmul.mubr.f32.gmra.mrb[0].mxu0 %v709
      %v777 = vpop.f32.mrb[0].mxu0
      %v778 = vadd.f32 %v243, %v777
      %v779 = vpop.f32.mrb[0].mxu0
      %780 = vdwg.mxu0
      %s781 = scalar_lea.vmem [#allocation2], 12
      %782 = vst [vmem:[%s781] sm:$0x3] %v778
      %s783 = scalar_lea.vmem %s0, 14
      %v784 = vld [vmem:[%s783] sm:$0x3]
      %v786 = vsel %vm246, %v784, 0
      %788 = vmatprep.subr.mxu0 0.0
      %789 = vmatpush1.msra.mxu0 %v232
      %790 = vmatprep.subr.mxu0 0.0
      %791 = vmatpush1.msra.mxu0 %v233
      %792 = vmatprep.subr.mxu0 0.0
      %793 = vmatpush1.msra.mxu0 0.0
      %794 = vmatprep.subr.mxu0 0.0
      %795 = vmatpush1.msra.mxu0 0.0
      %796 = vmatprep.subr.mxu0 0.0
      %797 = vmatpush1.msra.mxu0 0.0
      %798 = vmatprep.subr.mxu0 0.0
      %799 = vmatpush1.msra.mxu0 0.0
      %800 = vmatprep.subr.mxu0 0.0
      %801 = vmatpush1.msra.mxu0 0.0
      %802 = vmatprep.subr.mxu0 0.0
      %803 = vmatpush1.msra.mxu0 0.0
      %804 = vmatprep.subr.mxu0 0.0
      %805 = vmatpush1.msra.mxu0 0.0
      %806 = vmatprep.subr.mxu0 0.0
      %807 = vmatpush1.msra.mxu0 0.0
      %808 = vmatprep.subr.mxu0 0.0
      %809 = vmatpush1.msra.mxu0 0.0
      %810 = vmatprep.subr.mxu0 0.0
      %811 = vmatpush1.msra.mxu0 0.0
      %812 = vmatprep.subr.mxu0 0.0
      %813 = vmatpush1.msra.mxu0 0.0
      %814 = vmatprep.subr.mxu0 0.0
      %815 = vmatpush1.msra.mxu0 0.0
      %816 = vmatprep.subr.mxu0 0.0
      %817 = vmatpush1.msra.mxu0 0.0
      %818 = vmatprep.subr.mxu0 0.0
      %819 = vmatpush1.msra.mxu0 0.0
      %820 = vmatprep.subr.mxu0 0.0
      %821 = vmatpush1.msra.mxu0 0.0
      %822 = vmatprep.subr.mxu0 0.0
      %823 = vmatpush1.msra.mxu0 0.0
      %824 = vmatprep.subr.mxu0 0.0
      %825 = vmatpush1.msra.mxu0 0.0
      %826 = vmatprep.subr.mxu0 0.0
      %827 = vmatpush1.msra.mxu0 0.0
      %828 = vmatprep.subr.mxu0 0.0
      %829 = vmatpush1.msra.mxu0 0.0
      %830 = vmatprep.subr.mxu0 0.0
      %831 = vmatpush1.msra.mxu0 0.0
      %832 = vmatprep.subr.mxu0 0.0
      %833 = vmatpush1.msra.mxu0 0.0
      %834 = vmatprep.subr.mxu0 0.0
      %835 = vmatpush1.msra.mxu0 0.0
      %836 = vmatprep.subr.mxu0 0.0
      %837 = vmatpush1.msra.mxu0 0.0
      %838 = vmatprep.subr.mxu0 0.0
      %839 = vmatpush1.msra.mxu0 0.0
      %840 = vmatprep.subr.mxu0 0.0
      %841 = vmatpush1.msra.mxu0 0.0
      %842 = vmatprep.subr.mxu0 0.0
      %843 = vmatpush1.msra.mxu0 0.0
      %844 = vmatprep.subr.mxu0 0.0
      %845 = vmatpush1.msra.mxu0 0.0
      %846 = vmatprep.subr.mxu0 0.0
      %847 = vmatpush1.msra.mxu0 0.0
      %848 = vmatprep.subr.mxu0 0.0
      %849 = vmatpush1.msra.mxu0 0.0
      %850 = vmatprep.subr.mxu0 0.0
      %851 = vmatpush1.msra.mxu0 0.0
      %852 = vmatprep.mubr.f32.mxu0 0.0
      %853 = vmatmul.mubr.f32.gmra.mrb[0].mxu0 %v786
      %v854 = vpop.f32.mrb[0].mxu0
      %v855 = vadd.f32 %v243, %v854
      %v856 = vpop.f32.mrb[0].mxu0
      %857 = vdwg.mxu0
      %s858 = scalar_lea.vmem [#allocation2], 14
      %859 = vst [vmem:[%s858] sm:$0x3] %v855
      %vm860 = vcmask 254976
      %861 = vst.msk [vmem:[#allocation3] sm:$0x3] %vm860, 0.0
      %862 = vst.msk [vmem:[#allocation4] sm:$0x3] %vm860, 0.0
      %p863 = scmp.eq.s32.totalorder %s15, 0
      %s864 = scalar_select %p863, 0, 7
      %s865 = smul.u32 %s864, 2
      %s866 = scalar_lea.vmem [#allocation2], %s865
      %v867 = vld [vmem:[%s866] sm:$0x3]
      %v868 = vld [vmem:[#allocation3] sm:$0x3]
      %vm869 = vcmask 261120
      %v871 = vsel %vm869, %v868, 0
      %873 = vmatprep.subr.mxu0 0.0
      %874 = vmatpush1.msra.mxu0 %v234
      %875 = vmatprep.subr.mxu0 0.0
      %876 = vmatpush1.msra.mxu0 %v235
      %877 = vmatprep.subr.mxu0 0.0
      %878 = vmatpush1.msra.mxu0 %v236
      %879 = vmatprep.subr.mxu0 0.0
      %880 = vmatpush1.msra.mxu0 %v237
      %881 = vmatprep.subr.mxu0 0.0
      %882 = vmatpush1.msra.mxu0 0.0
      %883 = vmatprep.subr.mxu0 0.0
      %884 = vmatpush1.msra.mxu0 0.0
      %885 = vmatprep.subr.mxu0 0.0
      %886 = vmatpush1.msra.mxu0 0.0
      %887 = vmatprep.subr.mxu0 0.0
      %888 = vmatpush1.msra.mxu0 0.0
      %889 = vmatprep.subr.mxu0 0.0
      %890 = vmatpush1.msra.mxu0 0.0
      %891 = vmatprep.subr.mxu0 0.0
      %892 = vmatpush1.msra.mxu0 0.0
      %893 = vmatprep.subr.mxu0 0.0
      %894 = vmatpush1.msra.mxu0 0.0
      %895 = vmatprep.subr.mxu0 0.0
      %896 = vmatpush1.msra.mxu0 0.0
      %897 = vmatprep.subr.mxu0 0.0
      %898 = vmatpush1.msra.mxu0 0.0
      %899 = vmatprep.subr.mxu0 0.0
      %900 = vmatpush1.msra.mxu0 0.0
      %901 = vmatprep.subr.mxu0 0.0
      %902 = vmatpush1.msra.mxu0 0.0
      %903 = vmatprep.subr.mxu0 0.0
      %904 = vmatpush1.msra.mxu0 0.0
      %905 = vmatprep.subr.mxu0 0.0
      %906 = vmatpush1.msra.mxu0 0.0
      %907 = vmatprep.subr.mxu0 0.0
      %908 = vmatpush1.msra.mxu0 0.0
      %909 = vmatprep.subr.mxu0 0.0
      %910 = vmatpush1.msra.mxu0 0.0
      %911 = vmatprep.subr.mxu0 0.0
      %912 = vmatpush1.msra.mxu0 0.0
      %913 = vmatprep.subr.mxu0 0.0
      %914 = vmatpush1.msra.mxu0 0.0
      %915 = vmatprep.subr.mxu0 0.0
      %916 = vmatpush1.msra.mxu0 0.0
      %917 = vmatprep.subr.mxu0 0.0
      %918 = vmatpush1.msra.mxu0 0.0
      %919 = vmatprep.subr.mxu0 0.0
      %920 = vmatpush1.msra.mxu0 0.0
      %921 = vmatprep.subr.mxu0 0.0
      %922 = vmatpush1.msra.mxu0 0.0
      %923 = vmatprep.subr.mxu0 0.0
      %924 = vmatpush1.msra.mxu0 0.0
      %925 = vmatprep.subr.mxu0 0.0
      %926 = vmatpush1.msra.mxu0 0.0
      %927 = vmatprep.subr.mxu0 0.0
      %928 = vmatpush1.msra.mxu0 0.0
      %929 = vmatprep.subr.mxu0 0.0
      %930 = vmatpush1.msra.mxu0 0.0
      %931 = vmatprep.subr.mxu0 0.0
      %932 = vmatpush1.msra.mxu0 0.0
      %933 = vmatprep.subr.mxu0 0.0
      %934 = vmatpush1.msra.mxu0 0.0
      %935 = vmatprep.subr.mxu0 0.0
      %936 = vmatpush1.msra.mxu0 0.0
      %937 = vmatprep.mubr.f32.mxu0 0.0
      %938 = vmatmul.mubr.f32.gmra.mrb[0].mxu0 %v871
      %v939 = vpop.f32.mrb[0].mxu0
      %v940 = vadd.f32 0.0, %v939
      %v941 = vpop.f32.mrb[0].mxu0
      %942 = vdwg.mxu0
      %v943 = vadd.f32 %v867, %v940
      %v944 = vxor.u32 %v943, 2147483648
      %v945 = vmul.f32 %v944, 1.442695
      %v946 = vpow.pop %v945
      %v947 = vadd.f32 %v946, 1.0
      %v948 = vrcp.pop %v947
      %v949 = vmul.f32 1.0, %v948
      %v950 = vtanh.pop %v943
      %v951 = vld [vmem:[#allocation4] sm:$0x3]
      %953 = vrot.lane.b32.xlu0 %v951, 32
      %v954 = vpop.permute.xlu0 %953
      %v956 = vmul.f32 %v949, %v954
      %958 = vrot.lane.b32.xlu0 %v950, 64
      %v959 = vpop.permute.xlu0 %958
      %v961 = vmul.f32 %v949, %v959
      %963 = vrot.lane.b32.xlu0 %v961, 32
      %v964 = vpop.permute.xlu0 %963
      %v966 = vadd.f32 %v956, %v964
      %v967 = vtanh.pop %v966
      %969 = vrot.lane.b32.xlu0 %v967, 64
      %v970 = vpop.permute.xlu0 %969
      %v972 = vmul.f32 %v949, %v970
      %974 = vrot.lane.b32.xlu0 %v966, 96
      %v975 = vpop.permute.xlu0 %974
      %977 = vst.msk [vmem:[#allocation4] sm:$0x3] %vm860, %v975
      %979 = vrot.lane.b32.xlu0 %v972, 32
      %v980 = vpop.permute.xlu0 %979
      %982 = vst.msk [vmem:[#allocation3] sm:$0x3] %vm860, %v980
      %s983 = scalar_lea.vmem %s231, %s865
      %984 = vst.msk [vmem:[%s983] sm:$0x3] %vm860, %v980
      %s985 = scalar_select %p863, 1, 6
      %s986 = smul.u32 %s985, 2
      %s987 = scalar_lea.vmem [#allocation2], %s986
      %v988 = vld [vmem:[%s987] sm:$0x3]
      %v989 = vld [vmem:[#allocation3] sm:$0x3]
      %v991 = vsel %vm869, %v989, 0
      %993 = vmatprep.subr.mxu0 0.0
      %994 = vmatpush1.msra.mxu0 %v234
      %995 = vmatprep.subr.mxu0 0.0
      %996 = vmatpush1.msra.mxu0 %v235
      %997 = vmatprep.subr.mxu0 0.0
      %998 = vmatpush1.msra.mxu0 %v236
      %999 = vmatprep.subr.mxu0 0.0
      %1000 = vmatpush1.msra.mxu0 %v237
      %1001 = vmatprep.subr.mxu0 0.0
      %1002 = vmatpush1.msra.mxu0 0.0
      %1003 = vmatprep.subr.mxu0 0.0
      %1004 = vmatpush1.msra.mxu0 0.0
      %1005 = vmatprep.subr.mxu0 0.0
      %1006 = vmatpush1.msra.mxu0 0.0
      %1007 = vmatprep.subr.mxu0 0.0
      %1008 = vmatpush1.msra.mxu0 0.0
      %1009 = vmatprep.subr.mxu0 0.0
      %1010 = vmatpush1.msra.mxu0 0.0
      %1011 = vmatprep.subr.mxu0 0.0
      %1012 = vmatpush1.msra.mxu0 0.0
      %1013 = vmatprep.subr.mxu0 0.0
      %1014 = vmatpush1.msra.mxu0 0.0
      %1015 = vmatprep.subr.mxu0 0.0
      %1016 = vmatpush1.msra.mxu0 0.0
      %1017 = vmatprep.subr.mxu0 0.0
      %1018 = vmatpush1.msra.mxu0 0.0
      %1019 = vmatprep.subr.mxu0 0.0
      %1020 = vmatpush1.msra.mxu0 0.0
      %1021 = vmatprep.subr.mxu0 0.0
      %1022 = vmatpush1.msra.mxu0 0.0
      %1023 = vmatprep.subr.mxu0 0.0
      %1024 = vmatpush1.msra.mxu0 0.0
      %1025 = vmatprep.subr.mxu0 0.0
      %1026 = vmatpush1.msra.mxu0 0.0
      %1027 = vmatprep.subr.mxu0 0.0
      %1028 = vmatpush1.msra.mxu0 0.0
      %1029 = vmatprep.subr.mxu0 0.0
      %1030 = vmatpush1.msra.mxu0 0.0
      %1031 = vmatprep.subr.mxu0 0.0
      %1032 = vmatpush1.msra.mxu0 0.0
      %1033 = vmatprep.subr.mxu0 0.0
      %1034 = vmatpush1.msra.mxu0 0.0
      %1035 = vmatprep.subr.mxu0 0.0
      %1036 = vmatpush1.msra.mxu0 0.0
      %1037 = vmatprep.subr.mxu0 0.0
      %1038 = vmatpush1.msra.mxu0 0.0
      %1039 = vmatprep.subr.mxu0 0.0
      %1040 = vmatpush1.msra.mxu0 0.0
      %1041 = vmatprep.subr.mxu0 0.0
      %1042 = vmatpush1.msra.mxu0 0.0
      %1043 = vmatprep.subr.mxu0 0.0
      %1044 = vmatpush1.msra.mxu0 0.0
      %1045 = vmatprep.subr.mxu0 0.0
      %1046 = vmatpush1.msra.mxu0 0.0
      %1047 = vmatprep.subr.mxu0 0.0
      %1048 = vmatpush1.msra.mxu0 0.0
      %1049 = vmatprep.subr.mxu0 0.0
      %1050 = vmatpush1.msra.mxu0 0.0
      %1051 = vmatprep.subr.mxu0 0.0
      %1052 = vmatpush1.msra.mxu0 0.0
      %1053 = vmatprep.subr.mxu0 0.0
      %1054 = vmatpush1.msra.mxu0 0.0
      %1055 = vmatprep.subr.mxu0 0.0
      %1056 = vmatpush1.msra.mxu0 0.0
      %1057 = vmatprep.mubr.f32.mxu0 0.0
      %1058 = vmatmul.mubr.f32.gmra.mrb[0].mxu0 %v991
      %v1059 = vpop.f32.mrb[0].mxu0
      %v1060 = vadd.f32 0.0, %v1059
      %v1061 = vpop.f32.mrb[0].mxu0
      %1062 = vdwg.mxu0
      %v1063 = vadd.f32 %v988, %v1060
      %v1064 = vxor.u32 %v1063, 2147483648
      %v1065 = vmul.f32 %v1064, 1.442695
      %v1066 = vpow.pop %v1065
      %v1067 = vadd.f32 %v1066, 1.0
      %v1068 = vrcp.pop %v1067
      %v1069 = vmul.f32 1.0, %v1068
      %v1070 = vtanh.pop %v1063
      %v1071 = vld [vmem:[#allocation4] sm:$0x3]
      %1073 = vrot.lane.b32.xlu0 %v1071, 32
      %v1074 = vpop.permute.xlu0 %1073
      %v1076 = vmul.f32 %v1069, %v1074
      %1078 = vrot.lane.b32.xlu0 %v1070, 64
      %v1079 = vpop.permute.xlu0 %1078
      %v1081 = vmul.f32 %v1069, %v1079
      %1083 = vrot.lane.b32.xlu0 %v1081, 32
      %v1084 = vpop.permute.xlu0 %1083
      %v1086 = vadd.f32 %v1076, %v1084
      %v1087 = vtanh.pop %v1086
      %1089 = vrot.lane.b32.xlu0 %v1087, 64
      %v1090 = vpop.permute.xlu0 %1089
      %v1092 = vmul.f32 %v1069, %v1090
      %1094 = vrot.lane.b32.xlu0 %v1086, 96
      %v1095 = vpop.permute.xlu0 %1094
      %1097 = vst.msk [vmem:[#allocation4] sm:$0x3] %vm860, %v1095
      %1099 = vrot.lane.b32.xlu0 %v1092, 32
      %v1100 = vpop.permute.xlu0 %1099
      %1102 = vst.msk [vmem:[#allocation3] sm:$0x3] %vm860, %v1100
      %s1103 = scalar_lea.vmem %s231, %s986
      %1104 = vst.msk [vmem:[%s1103] sm:$0x3] %vm860, %v1100
      %s1105 = scalar_select %p863, 2, 5
      %s1106 = smul.u32 %s1105, 2
      %s1107 = scalar_lea.vmem [#allocation2], %s1106
      %v1108 = vld [vmem:[%s1107] sm:$0x3]
      %v1109 = vld [vmem:[#allocation3] sm:$0x3]
      %v1111 = vsel %vm869, %v1109, 0
      %1113 = vmatprep.subr.mxu0 0.0
      %1114 = vmatpush1.msra.mxu0 %v234
      %1115 = vmatprep.subr.mxu0 0.0
      %1116 = vmatpush1.msra.mxu0 %v235
      %1117 = vmatprep.subr.mxu0 0.0
      %1118 = vmatpush1.msra.mxu0 %v236
      %1119 = vmatprep.subr.mxu0 0.0
      %1120 = vmatpush1.msra.mxu0 %v237
      %1121 = vmatprep.subr.mxu0 0.0
      %1122 = vmatpush1.msra.mxu0 0.0
      %1123 = vmatprep.subr.mxu0 0.0
      %1124 = vmatpush1.msra.mxu0 0.0
      %1125 = vmatprep.subr.mxu0 0.0
      %1126 = vmatpush1.msra.mxu0 0.0
      %1127 = vmatprep.subr.mxu0 0.0
      %1128 = vmatpush1.msra.mxu0 0.0
      %1129 = vmatprep.subr.mxu0 0.0
      %1130 = vmatpush1.msra.mxu0 0.0
      %1131 = vmatprep.subr.mxu0 0.0
      %1132 = vmatpush1.msra.mxu0 0.0
      %1133 = vmatprep.subr.mxu0 0.0
      %1134 = vmatpush1.msra.mxu0 0.0
      %1135 = vmatprep.subr.mxu0 0.0
      %1136 = vmatpush1.msra.mxu0 0.0
      %1137 = vmatprep.subr.mxu0 0.0
      %1138 = vmatpush1.msra.mxu0 0.0
      %1139 = vmatprep.subr.mxu0 0.0
      %1140 = vmatpush1.msra.mxu0 0.0
      %1141 = vmatprep.subr.mxu0 0.0
      %1142 = vmatpush1.msra.mxu0 0.0
      %1143 = vmatprep.subr.mxu0 0.0
      %1144 = vmatpush1.msra.mxu0 0.0
      %1145 = vmatprep.subr.mxu0 0.0
      %1146 = vmatpush1.msra.mxu0 0.0
      %1147 = vmatprep.subr.mxu0 0.0
      %1148 = vmatpush1.msra.mxu0 0.0
      %1149 = vmatprep.subr.mxu0 0.0
      %1150 = vmatpush1.msra.mxu0 0.0
      %1151 = vmatprep.subr.mxu0 0.0
      %1152 = vmatpush1.msra.mxu0 0.0
      %1153 = vmatprep.subr.mxu0 0.0
      %1154 = vmatpush1.msra.mxu0 0.0
      %1155 = vmatprep.subr.mxu0 0.0
      %1156 = vmatpush1.msra.mxu0 0.0
      %1157 = vmatprep.subr.mxu0 0.0
      %1158 = vmatpush1.msra.mxu0 0.0
      %1159 = vmatprep.subr.mxu0 0.0
      %1160 = vmatpush1.msra.mxu0 0.0
      %1161 = vmatprep.subr.mxu0 0.0
      %1162 = vmatpush1.msra.mxu0 0.0
      %1163 = vmatprep.subr.mxu0 0.0
      %1164 = vmatpush1.msra.mxu0 0.0
      %1165 = vmatprep.subr.mxu0 0.0
      %1166 = vmatpush1.msra.mxu0 0.0
      %1167 = vmatprep.subr.mxu0 0.0
      %1168 = vmatpush1.msra.mxu0 0.0
      %1169 = vmatprep.subr.mxu0 0.0
      %1170 = vmatpush1.msra.mxu0 0.0
      %1171 = vmatprep.subr.mxu0 0.0
      %1172 = vmatpush1.msra.mxu0 0.0
      %1173 = vmatprep.subr.mxu0 0.0
      %1174 = vmatpush1.msra.mxu0 0.0
      %1175 = vmatprep.subr.mxu0 0.0
      %1176 = vmatpush1.msra.mxu0 0.0
      %1177 = vmatprep.mubr.f32.mxu0 0.0
      %1178 = vmatmul.mubr.f32.gmra.mrb[0].mxu0 %v1111
      %v1179 = vpop.f32.mrb[0].mxu0
      %v1180 = vadd.f32 0.0, %v1179
      %v1181 = vpop.f32.mrb[0].mxu0
      %1182 = vdwg.mxu0
      %v1183 = vadd.f32 %v1108, %v1180
      %v1184 = vxor.u32 %v1183, 2147483648
      %v1185 = vmul.f32 %v1184, 1.442695
      %v1186 = vpow.pop %v1185
      %v1187 = vadd.f32 %v1186, 1.0
      %v1188 = vrcp.pop %v1187
      %v1189 = vmul.f32 1.0, %v1188
      %v1190 = vtanh.pop %v1183
      %v1191 = vld [vmem:[#allocation4] sm:$0x3]
      %1193 = vrot.lane.b32.xlu0 %v1191, 32
      %v1194 = vpop.permute.xlu0 %1193
      %v1196 = vmul.f32 %v1189, %v1194
      %1198 = vrot.lane.b32.xlu0 %v1190, 64
      %v1199 = vpop.permute.xlu0 %1198
      %v1201 = vmul.f32 %v1189, %v1199
      %1203 = vrot.lane.b32.xlu0 %v1201, 32
      %v1204 = vpop.permute.xlu0 %1203
      %v1206 = vadd.f32 %v1196, %v1204
      %v1207 = vtanh.pop %v1206
      %1209 = vrot.lane.b32.xlu0 %v1207, 64
      %v1210 = vpop.permute.xlu0 %1209
      %v1212 = vmul.f32 %v1189, %v1210
      %1214 = vrot.lane.b32.xlu0 %v1206, 96
      %v1215 = vpop.permute.xlu0 %1214
      %1217 = vst.msk [vmem:[#allocation4] sm:$0x3] %vm860, %v1215
      %1219 = vrot.lane.b32.xlu0 %v1212, 32
      %v1220 = vpop.permute.xlu0 %1219
      %1222 = vst.msk [vmem:[#allocation3] sm:$0x3] %vm860, %v1220
      %s1223 = scalar_lea.vmem %s231, %s1106
      %1224 = vst.msk [vmem:[%s1223] sm:$0x3] %vm860, %v1220
      %s1225 = scalar_select %p863, 3, 4
      %s1226 = smul.u32 %s1225, 2
      %s1227 = scalar_lea.vmem [#allocation2], %s1226
      %v1228 = vld [vmem:[%s1227] sm:$0x3]
      %v1229 = vld [vmem:[#allocation3] sm:$0x3]
      %v1231 = vsel %vm869, %v1229, 0
      %1233 = vmatprep.subr.mxu0 0.0
      %1234 = vmatpush1.msra.mxu0 %v234
      %1235 = vmatprep.subr.mxu0 0.0
      %1236 = vmatpush1.msra.mxu0 %v235
      %1237 = vmatprep.subr.mxu0 0.0
      %1238 = vmatpush1.msra.mxu0 %v236
      %1239 = vmatprep.subr.mxu0 0.0
      %1240 = vmatpush1.msra.mxu0 %v237
      %1241 = vmatprep.subr.mxu0 0.0
      %1242 = vmatpush1.msra.mxu0 0.0
      %1243 = vmatprep.subr.mxu0 0.0
      %1244 = vmatpush1.msra.mxu0 0.0
      %1245 = vmatprep.subr.mxu0 0.0
      %1246 = vmatpush1.msra.mxu0 0.0
      %1247 = vmatprep.subr.mxu0 0.0
      %1248 = vmatpush1.msra.mxu0 0.0
      %1249 = vmatprep.subr.mxu0 0.0
      %1250 = vmatpush1.msra.mxu0 0.0
      %1251 = vmatprep.subr.mxu0 0.0
      %1252 = vmatpush1.msra.mxu0 0.0
      %1253 = vmatprep.subr.mxu0 0.0
      %1254 = vmatpush1.msra.mxu0 0.0
      %1255 = vmatprep.subr.mxu0 0.0
      %1256 = vmatpush1.msra.mxu0 0.0
      %1257 = vmatprep.subr.mxu0 0.0
      %1258 = vmatpush1.msra.mxu0 0.0
      %1259 = vmatprep.subr.mxu0 0.0
      %1260 = vmatpush1.msra.mxu0 0.0
      %1261 = vmatprep.subr.mxu0 0.0
      %1262 = vmatpush1.msra.mxu0 0.0
      %1263 = vmatprep.subr.mxu0 0.0
      %1264 = vmatpush1.msra.mxu0 0.0
      %1265 = vmatprep.subr.mxu0 0.0
      %1266 = vmatpush1.msra.mxu0 0.0
      %1267 = vmatprep.subr.mxu0 0.0
      %1268 = vmatpush1.msra.mxu0 0.0
      %1269 = vmatprep.subr.mxu0 0.0
      %1270 = vmatpush1.msra.mxu0 0.0
      %1271 = vmatprep.subr.mxu0 0.0
      %1272 = vmatpush1.msra.mxu0 0.0
      %1273 = vmatprep.subr.mxu0 0.0
      %1274 = vmatpush1.msra.mxu0 0.0
      %1275 = vmatprep.subr.mxu0 0.0
      %1276 = vmatpush1.msra.mxu0 0.0
      %1277 = vmatprep.subr.mxu0 0.0
      %1278 = vmatpush1.msra.mxu0 0.0
      %1279 = vmatprep.subr.mxu0 0.0
      %1280 = vmatpush1.msra.mxu0 0.0
      %1281 = vmatprep.subr.mxu0 0.0
      %1282 = vmatpush1.msra.mxu0 0.0
      %1283 = vmatprep.subr.mxu0 0.0
      %1284 = vmatpush1.msra.mxu0 0.0
      %1285 = vmatprep.subr.mxu0 0.0
      %1286 = vmatpush1.msra.mxu0 0.0
      %1287 = vmatprep.subr.mxu0 0.0
      %1288 = vmatpush1.msra.mxu0 0.0
      %1289 = vmatprep.subr.mxu0 0.0
      %1290 = vmatpush1.msra.mxu0 0.0
      %1291 = vmatprep.subr.mxu0 0.0
      %1292 = vmatpush1.msra.mxu0 0.0
      %1293 = vmatprep.subr.mxu0 0.0
      %1294 = vmatpush1.msra.mxu0 0.0
      %1295 = vmatprep.subr.mxu0 0.0
      %1296 = vmatpush1.msra.mxu0 0.0
      %1297 = vmatprep.mubr.f32.mxu0 0.0
      %1298 = vmatmul.mubr.f32.gmra.mrb[0].mxu0 %v1231
      %v1299 = vpop.f32.mrb[0].mxu0
      %v1300 = vadd.f32 0.0, %v1299
      %v1301 = vpop.f32.mrb[0].mxu0
      %1302 = vdwg.mxu0
      %v1303 = vadd.f32 %v1228, %v1300
      %v1304 = vxor.u32 %v1303, 2147483648
      %v1305 = vmul.f32 %v1304, 1.442695
      %v1306 = vpow.pop %v1305
      %v1307 = vadd.f32 %v1306, 1.0
      %v1308 = vrcp.pop %v1307
      %v1309 = vmul.f32 1.0, %v1308
      %v1310 = vtanh.pop %v1303
      %v1311 = vld [vmem:[#allocation4] sm:$0x3]
      %1313 = vrot.lane.b32.xlu0 %v1311, 32
      %v1314 = vpop.permute.xlu0 %1313
      %v1316 = vmul.f32 %v1309, %v1314
      %1318 = vrot.lane.b32.xlu0 %v1310, 64
      %v1319 = vpop.permute.xlu0 %1318
      %v1321 = vmul.f32 %v1309, %v1319
      %1323 = vrot.lane.b32.xlu0 %v1321, 32
      %v1324 = vpop.permute.xlu0 %1323
      %v1326 = vadd.f32 %v1316, %v1324
      %v1327 = vtanh.pop %v1326
      %1329 = vrot.lane.b32.xlu0 %v1327, 64
      %v1330 = vpop.permute.xlu0 %1329
      %v1332 = vmul.f32 %v1309, %v1330
      %1334 = vrot.lane.b32.xlu0 %v1326, 96
      %v1335 = vpop.permute.xlu0 %1334
      %1337 = vst.msk [vmem:[#allocation4] sm:$0x3] %vm860, %v1335
      %1339 = vrot.lane.b32.xlu0 %v1332, 32
      %v1340 = vpop.permute.xlu0 %1339
      %1342 = vst.msk [vmem:[#allocation3] sm:$0x3] %vm860, %v1340
      %s1343 = scalar_lea.vmem %s231, %s1226
      %1344 = vst.msk [vmem:[%s1343] sm:$0x3] %vm860, %v1340
      %s1345 = scalar_select %p863, 4, 3
      %s1346 = smul.u32 %s1345, 2
      %s1347 = scalar_lea.vmem [#allocation2], %s1346
      %v1348 = vld [vmem:[%s1347] sm:$0x3]
      %v1349 = vld [vmem:[#allocation3] sm:$0x3]
      %v1351 = vsel %vm869, %v1349, 0
      %1353 = vmatprep.subr.mxu0 0.0
      %1354 = vmatpush1.msra.mxu0 %v234
      %1355 = vmatprep.subr.mxu0 0.0
      %1356 = vmatpush1.msra.mxu0 %v235
      %1357 = vmatprep.subr.mxu0 0.0
      %1358 = vmatpush1.msra.mxu0 %v236
      %1359 = vmatprep.subr.mxu0 0.0
      %1360 = vmatpush1.msra.mxu0 %v237
      %1361 = vmatprep.subr.mxu0 0.0
      %1362 = vmatpush1.msra.mxu0 0.0
      %1363 = vmatprep.subr.mxu0 0.0
      %1364 = vmatpush1.msra.mxu0 0.0
      %1365 = vmatprep.subr.mxu0 0.0
      %1366 = vmatpush1.msra.mxu0 0.0
      %1367 = vmatprep.subr.mxu0 0.0
      %1368 = vmatpush1.msra.mxu0 0.0
      %1369 = vmatprep.subr.mxu0 0.0
      %1370 = vmatpush1.msra.mxu0 0.0
      %1371 = vmatprep.subr.mxu0 0.0
      %1372 = vmatpush1.msra.mxu0 0.0
      %1373 = vmatprep.subr.mxu0 0.0
      %1374 = vmatpush1.msra.mxu0 0.0
      %1375 = vmatprep.subr.mxu0 0.0
      %1376 = vmatpush1.msra.mxu0 0.0
      %1377 = vmatprep.subr.mxu0 0.0
      %1378 = vmatpush1.msra.mxu0 0.0
      %1379 = vmatprep.subr.mxu0 0.0
      %1380 = vmatpush1.msra.mxu0 0.0
      %1381 = vmatprep.subr.mxu0 0.0
      %1382 = vmatpush1.msra.mxu0 0.0
      %1383 = vmatprep.subr.mxu0 0.0
      %1384 = vmatpush1.msra.mxu0 0.0
      %1385 = vmatprep.subr.mxu0 0.0
      %1386 = vmatpush1.msra.mxu0 0.0
      %1387 = vmatprep.subr.mxu0 0.0
      %1388 = vmatpush1.msra.mxu0 0.0
      %1389 = vmatprep.subr.mxu0 0.0
      %1390 = vmatpush1.msra.mxu0 0.0
      %1391 = vmatprep.subr.mxu0 0.0
      %1392 = vmatpush1.msra.mxu0 0.0
      %1393 = vmatprep.subr.mxu0 0.0
      %1394 = vmatpush1.msra.mxu0 0.0
      %1395 = vmatprep.subr.mxu0 0.0
      %1396 = vmatpush1.msra.mxu0 0.0
      %1397 = vmatprep.subr.mxu0 0.0
      %1398 = vmatpush1.msra.mxu0 0.0
      %1399 = vmatprep.subr.mxu0 0.0
      %1400 = vmatpush1.msra.mxu0 0.0
      %1401 = vmatprep.subr.mxu0 0.0
      %1402 = vmatpush1.msra.mxu0 0.0
      %1403 = vmatprep.subr.mxu0 0.0
      %1404 = vmatpush1.msra.mxu0 0.0
      %1405 = vmatprep.subr.mxu0 0.0
      %1406 = vmatpush1.msra.mxu0 0.0
      %1407 = vmatprep.subr.mxu0 0.0
      %1408 = vmatpush1.msra.mxu0 0.0
      %1409 = vmatprep.subr.mxu0 0.0
      %1410 = vmatpush1.msra.mxu0 0.0
      %1411 = vmatprep.subr.mxu0 0.0
      %1412 = vmatpush1.msra.mxu0 0.0
      %1413 = vmatprep.subr.mxu0 0.0
      %1414 = vmatpush1.msra.mxu0 0.0
      %1415 = vmatprep.subr.mxu0 0.0
      %1416 = vmatpush1.msra.mxu0 0.0
      %1417 = vmatprep.mubr.f32.mxu0 0.0
      %1418 = vmatmul.mubr.f32.gmra.mrb[0].mxu0 %v1351
      %v1419 = vpop.f32.mrb[0].mxu0
      %v1420 = vadd.f32 0.0, %v1419
      %v1421 = vpop.f32.mrb[0].mxu0
      %1422 = vdwg.mxu0
      %v1423 = vadd.f32 %v1348, %v1420
      %v1424 = vxor.u32 %v1423, 2147483648
      %v1425 = vmul.f32 %v1424, 1.442695
      %v1426 = vpow.pop %v1425
      %v1427 = vadd.f32 %v1426, 1.0
      %v1428 = vrcp.pop %v1427
      %v1429 = vmul.f32 1.0, %v1428
      %v1430 = vtanh.pop %v1423
      %v1431 = vld [vmem:[#allocation4] sm:$0x3]
      %1433 = vrot.lane.b32.xlu0 %v1431, 32
      %v1434 = vpop.permute.xlu0 %1433
      %v1436 = vmul.f32 %v1429, %v1434
      %1438 = vrot.lane.b32.xlu0 %v1430, 64
      %v1439 = vpop.permute.xlu0 %1438
      %v1441 = vmul.f32 %v1429, %v1439
      %1443 = vrot.lane.b32.xlu0 %v1441, 32
      %v1444 = vpop.permute.xlu0 %1443
      %v1446 = vadd.f32 %v1436, %v1444
      %v1447 = vtanh.pop %v1446
      %1449 = vrot.lane.b32.xlu0 %v1447, 64
      %v1450 = vpop.permute.xlu0 %1449
      %v1452 = vmul.f32 %v1429, %v1450
      %1454 = vrot.lane.b32.xlu0 %v1446, 96
      %v1455 = vpop.permute.xlu0 %1454
      %1457 = vst.msk [vmem:[#allocation4] sm:$0x3] %vm860, %v1455
      %1459 = vrot.lane.b32.xlu0 %v1452, 32
      %v1460 = vpop.permute.xlu0 %1459
      %1462 = vst.msk [vmem:[#allocation3] sm:$0x3] %vm860, %v1460
      %s1463 = scalar_lea.vmem %s231, %s1346
      %1464 = vst.msk [vmem:[%s1463] sm:$0x3] %vm860, %v1460
      %s1465 = scalar_select %p863, 5, 2
      %s1466 = smul.u32 %s1465, 2
      %s1467 = scalar_lea.vmem [#allocation2], %s1466
      %v1468 = vld [vmem:[%s1467] sm:$0x3]
      %v1469 = vld [vmem:[#allocation3] sm:$0x3]
      %v1471 = vsel %vm869, %v1469, 0
      %1473 = vmatprep.subr.mxu0 0.0
      %1474 = vmatpush1.msra.mxu0 %v234
      %1475 = vmatprep.subr.mxu0 0.0
      %1476 = vmatpush1.msra.mxu0 %v235
      %1477 = vmatprep.subr.mxu0 0.0
      %1478 = vmatpush1.msra.mxu0 %v236
      %1479 = vmatprep.subr.mxu0 0.0
      %1480 = vmatpush1.msra.mxu0 %v237
      %1481 = vmatprep.subr.mxu0 0.0
      %1482 = vmatpush1.msra.mxu0 0.0
      %1483 = vmatprep.subr.mxu0 0.0
      %1484 = vmatpush1.msra.mxu0 0.0
      %1485 = vmatprep.subr.mxu0 0.0
      %1486 = vmatpush1.msra.mxu0 0.0
      %1487 = vmatprep.subr.mxu0 0.0
      %1488 = vmatpush1.msra.mxu0 0.0
      %1489 = vmatprep.subr.mxu0 0.0
      %1490 = vmatpush1.msra.mxu0 0.0
      %1491 = vmatprep.subr.mxu0 0.0
      %1492 = vmatpush1.msra.mxu0 0.0
      %1493 = vmatprep.subr.mxu0 0.0
      %1494 = vmatpush1.msra.mxu0 0.0
      %1495 = vmatprep.subr.mxu0 0.0
      %1496 = vmatpush1.msra.mxu0 0.0
      %1497 = vmatprep.subr.mxu0 0.0
      %1498 = vmatpush1.msra.mxu0 0.0
      %1499 = vmatprep.subr.mxu0 0.0
      %1500 = vmatpush1.msra.mxu0 0.0
      %1501 = vmatprep.subr.mxu0 0.0
      %1502 = vmatpush1.msra.mxu0 0.0
      %1503 = vmatprep.subr.mxu0 0.0
      %1504 = vmatpush1.msra.mxu0 0.0
      %1505 = vmatprep.subr.mxu0 0.0
      %1506 = vmatpush1.msra.mxu0 0.0
      %1507 = vmatprep.subr.mxu0 0.0
      %1508 = vmatpush1.msra.mxu0 0.0
      %1509 = vmatprep.subr.mxu0 0.0
      %1510 = vmatpush1.msra.mxu0 0.0
      %1511 = vmatprep.subr.mxu0 0.0
      %1512 = vmatpush1.msra.mxu0 0.0
      %1513 = vmatprep.subr.mxu0 0.0
      %1514 = vmatpush1.msra.mxu0 0.0
      %1515 = vmatprep.subr.mxu0 0.0
      %1516 = vmatpush1.msra.mxu0 0.0
      %1517 = vmatprep.subr.mxu0 0.0
      %1518 = vmatpush1.msra.mxu0 0.0
      %1519 = vmatprep.subr.mxu0 0.0
      %1520 = vmatpush1.msra.mxu0 0.0
      %1521 = vmatprep.subr.mxu0 0.0
      %1522 = vmatpush1.msra.mxu0 0.0
      %1523 = vmatprep.subr.mxu0 0.0
      %1524 = vmatpush1.msra.mxu0 0.0
      %1525 = vmatprep.subr.mxu0 0.0
      %1526 = vmatpush1.msra.mxu0 0.0
      %1527 = vmatprep.subr.mxu0 0.0
      %1528 = vmatpush1.msra.mxu0 0.0
      %1529 = vmatprep.subr.mxu0 0.0
      %1530 = vmatpush1.msra.mxu0 0.0
      %1531 = vmatprep.subr.mxu0 0.0
      %1532 = vmatpush1.msra.mxu0 0.0
      %1533 = vmatprep.subr.mxu0 0.0
      %1534 = vmatpush1.msra.mxu0 0.0
      %1535 = vmatprep.subr.mxu0 0.0
      %1536 = vmatpush1.msra.mxu0 0.0
      %1537 = vmatprep.mubr.f32.mxu0 0.0
      %1538 = vmatmul.mubr.f32.gmra.mrb[0].mxu0 %v1471
      %v1539 = vpop.f32.mrb[0].mxu0
      %v1540 = vadd.f32 0.0, %v1539
      %v1541 = vpop.f32.mrb[0].mxu0
      %1542 = vdwg.mxu0
      %v1543 = vadd.f32 %v1468, %v1540
      %v1544 = vxor.u32 %v1543, 2147483648
      %v1545 = vmul.f32 %v1544, 1.442695
      %v1546 = vpow.pop %v1545
      %v1547 = vadd.f32 %v1546, 1.0
      %v1548 = vrcp.pop %v1547
      %v1549 = vmul.f32 1.0, %v1548
      %v1550 = vtanh.pop %v1543
      %v1551 = vld [vmem:[#allocation4] sm:$0x3]
      %1553 = vrot.lane.b32.xlu0 %v1551, 32
      %v1554 = vpop.permute.xlu0 %1553
      %v1556 = vmul.f32 %v1549, %v1554
      %1558 = vrot.lane.b32.xlu0 %v1550, 64
      %v1559 = vpop.permute.xlu0 %1558
      %v1561 = vmul.f32 %v1549, %v1559
      %1563 = vrot.lane.b32.xlu0 %v1561, 32
      %v1564 = vpop.permute.xlu0 %1563
      %v1566 = vadd.f32 %v1556, %v1564
      %v1567 = vtanh.pop %v1566
      %1569 = vrot.lane.b32.xlu0 %v1567, 64
      %v1570 = vpop.permute.xlu0 %1569
      %v1572 = vmul.f32 %v1549, %v1570
      %1574 = vrot.lane.b32.xlu0 %v1566, 96
      %v1575 = vpop.permute.xlu0 %1574
      %1577 = vst.msk [vmem:[#allocation4] sm:$0x3] %vm860, %v1575
      %1579 = vrot.lane.b32.xlu0 %v1572, 32
      %v1580 = vpop.permute.xlu0 %1579
      %1582 = vst.msk [vmem:[#allocation3] sm:$0x3] %vm860, %v1580
      %s1583 = scalar_lea.vmem %s231, %s1466
      %1584 = vst.msk [vmem:[%s1583] sm:$0x3] %vm860, %v1580
      %s1585 = scalar_select %p863, 6, 1
      %s1586 = smul.u32 %s1585, 2
      %s1587 = scalar_lea.vmem [#allocation2], %s1586
      %v1588 = vld [vmem:[%s1587] sm:$0x3]
      %v1589 = vld [vmem:[#allocation3] sm:$0x3]
      %v1591 = vsel %vm869, %v1589, 0
      %1593 = vmatprep.subr.mxu0 0.0
      %1594 = vmatpush1.msra.mxu0 %v234
      %1595 = vmatprep.subr.mxu0 0.0
      %1596 = vmatpush1.msra.mxu0 %v235
      %1597 = vmatprep.subr.mxu0 0.0
      %1598 = vmatpush1.msra.mxu0 %v236
      %1599 = vmatprep.subr.mxu0 0.0
      %1600 = vmatpush1.msra.mxu0 %v237
      %1601 = vmatprep.subr.mxu0 0.0
      %1602 = vmatpush1.msra.mxu0 0.0
      %1603 = vmatprep.subr.mxu0 0.0
      %1604 = vmatpush1.msra.mxu0 0.0
      %1605 = vmatprep.subr.mxu0 0.0
      %1606 = vmatpush1.msra.mxu0 0.0
      %1607 = vmatprep.subr.mxu0 0.0
      %1608 = vmatpush1.msra.mxu0 0.0
      %1609 = vmatprep.subr.mxu0 0.0
      %1610 = vmatpush1.msra.mxu0 0.0
      %1611 = vmatprep.subr.mxu0 0.0
      %1612 = vmatpush1.msra.mxu0 0.0
      %1613 = vmatprep.subr.mxu0 0.0
      %1614 = vmatpush1.msra.mxu0 0.0
      %1615 = vmatprep.subr.mxu0 0.0
      %1616 = vmatpush1.msra.mxu0 0.0
      %1617 = vmatprep.subr.mxu0 0.0
      %1618 = vmatpush1.msra.mxu0 0.0
      %1619 = vmatprep.subr.mxu0 0.0
      %1620 = vmatpush1.msra.mxu0 0.0
      %1621 = vmatprep.subr.mxu0 0.0
      %1622 = vmatpush1.msra.mxu0 0.0
      %1623 = vmatprep.subr.mxu0 0.0
      %1624 = vmatpush1.msra.mxu0 0.0
      %1625 = vmatprep.subr.mxu0 0.0
      %1626 = vmatpush1.msra.mxu0 0.0
      %1627 = vmatprep.subr.mxu0 0.0
      %1628 = vmatpush1.msra.mxu0 0.0
      %1629 = vmatprep.subr.mxu0 0.0
      %1630 = vmatpush1.msra.mxu0 0.0
      %1631 = vmatprep.subr.mxu0 0.0
      %1632 = vmatpush1.msra.mxu0 0.0
      %1633 = vmatprep.subr.mxu0 0.0
      %1634 = vmatpush1.msra.mxu0 0.0
      %1635 = vmatprep.subr.mxu0 0.0
      %1636 = vmatpush1.msra.mxu0 0.0
      %1637 = vmatprep.subr.mxu0 0.0
      %1638 = vmatpush1.msra.mxu0 0.0
      %1639 = vmatprep.subr.mxu0 0.0
      %1640 = vmatpush1.msra.mxu0 0.0
      %1641 = vmatprep.subr.mxu0 0.0
      %1642 = vmatpush1.msra.mxu0 0.0
      %1643 = vmatprep.subr.mxu0 0.0
      %1644 = vmatpush1.msra.mxu0 0.0
      %1645 = vmatprep.subr.mxu0 0.0
      %1646 = vmatpush1.msra.mxu0 0.0
      %1647 = vmatprep.subr.mxu0 0.0
      %1648 = vmatpush1.msra.mxu0 0.0
      %1649 = vmatprep.subr.mxu0 0.0
      %1650 = vmatpush1.msra.mxu0 0.0
      %1651 = vmatprep.subr.mxu0 0.0
      %1652 = vmatpush1.msra.mxu0 0.0
      %1653 = vmatprep.subr.mxu0 0.0
      %1654 = vmatpush1.msra.mxu0 0.0
      %1655 = vmatprep.subr.mxu0 0.0
      %1656 = vmatpush1.msra.mxu0 0.0
      %1657 = vmatprep.mubr.f32.mxu0 0.0
      %1658 = vmatmul.mubr.f32.gmra.mrb[0].mxu0 %v1591
      %v1659 = vpop.f32.mrb[0].mxu0
      %v1660 = vadd.f32 0.0, %v1659
      %v1661 = vpop.f32.mrb[0].mxu0
      %1662 = vdwg.mxu0
      %v1663 = vadd.f32 %v1588, %v1660
      %v1664 = vxor.u32 %v1663, 2147483648
      %v1665 = vmul.f32 %v1664, 1.442695
      %v1666 = vpow.pop %v1665
      %v1667 = vadd.f32 %v1666, 1.0
      %v1668 = vrcp.pop %v1667
      %v1669 = vmul.f32 1.0, %v1668
      %v1670 = vtanh.pop %v1663
      %v1671 = vld [vmem:[#allocation4] sm:$0x3]
      %1673 = vrot.lane.b32.xlu0 %v1671, 32
      %v1674 = vpop.permute.xlu0 %1673
      %v1676 = vmul.f32 %v1669, %v1674
      %1678 = vrot.lane.b32.xlu0 %v1670, 64
      %v1679 = vpop.permute.xlu0 %1678
      %v1681 = vmul.f32 %v1669, %v1679
      %1683 = vrot.lane.b32.xlu0 %v1681, 32
      %v1684 = vpop.permute.xlu0 %1683
      %v1686 = vadd.f32 %v1676, %v1684
      %v1687 = vtanh.pop %v1686
      %1689 = vrot.lane.b32.xlu0 %v1687, 64
      %v1690 = vpop.permute.xlu0 %1689
      %v1692 = vmul.f32 %v1669, %v1690
      %1694 = vrot.lane.b32.xlu0 %v1686, 96
      %v1695 = vpop.permute.xlu0 %1694
      %1697 = vst.msk [vmem:[#allocation4] sm:$0x3] %vm860, %v1695
      %1699 = vrot.lane.b32.xlu0 %v1692, 32
      %v1700 = vpop.permute.xlu0 %1699
      %1702 = vst.msk [vmem:[#allocation3] sm:$0x3] %vm860, %v1700
      %s1703 = scalar_lea.vmem %s231, %s1586
      %1704 = vst.msk [vmem:[%s1703] sm:$0x3] %vm860, %v1700
      %s1705 = scalar_select %p863, 7, 0
      %s1706 = smul.u32 %s1705, 2
      %s1707 = scalar_lea.vmem [#allocation2], %s1706
      %v1708 = vld [vmem:[%s1707] sm:$0x3]
      %v1709 = vld [vmem:[#allocation3] sm:$0x3]
      %v1711 = vsel %vm869, %v1709, 0
      %1713 = vmatprep.subr.mxu0 0.0
      %1714 = vmatpush1.msra.mxu0 %v234
      %1715 = vmatprep.subr.mxu0 0.0
      %1716 = vmatpush1.msra.mxu0 %v235
      %1717 = vmatprep.subr.mxu0 0.0
      %1718 = vmatpush1.msra.mxu0 %v236
      %1719 = vmatprep.subr.mxu0 0.0
      %1720 = vmatpush1.msra.mxu0 %v237
      %1721 = vmatprep.subr.mxu0 0.0
      %1722 = vmatpush1.msra.mxu0 0.0
      %1723 = vmatprep.subr.mxu0 0.0
      %1724 = vmatpush1.msra.mxu0 0.0
      %1725 = vmatprep.subr.mxu0 0.0
      %1726 = vmatpush1.msra.mxu0 0.0
      %1727 = vmatprep.subr.mxu0 0.0
      %1728 = vmatpush1.msra.mxu0 0.0
      %1729 = vmatprep.subr.mxu0 0.0
      %1730 = vmatpush1.msra.mxu0 0.0
      %1731 = vmatprep.subr.mxu0 0.0
      %1732 = vmatpush1.msra.mxu0 0.0
      %1733 = vmatprep.subr.mxu0 0.0
      %1734 = vmatpush1.msra.mxu0 0.0
      %1735 = vmatprep.subr.mxu0 0.0
      %1736 = vmatpush1.msra.mxu0 0.0
      %1737 = vmatprep.subr.mxu0 0.0
      %1738 = vmatpush1.msra.mxu0 0.0
      %1739 = vmatprep.subr.mxu0 0.0
      %1740 = vmatpush1.msra.mxu0 0.0
      %1741 = vmatprep.subr.mxu0 0.0
      %1742 = vmatpush1.msra.mxu0 0.0
      %1743 = vmatprep.subr.mxu0 0.0
      %1744 = vmatpush1.msra.mxu0 0.0
      %1745 = vmatprep.subr.mxu0 0.0
      %1746 = vmatpush1.msra.mxu0 0.0
      %1747 = vmatprep.subr.mxu0 0.0
      %1748 = vmatpush1.msra.mxu0 0.0
      %1749 = vmatprep.subr.mxu0 0.0
      %1750 = vmatpush1.msra.mxu0 0.0
      %1751 = vmatprep.subr.mxu0 0.0
      %1752 = vmatpush1.msra.mxu0 0.0
      %1753 = vmatprep.subr.mxu0 0.0
      %1754 = vmatpush1.msra.mxu0 0.0
      %1755 = vmatprep.subr.mxu0 0.0
      %1756 = vmatpush1.msra.mxu0 0.0
      %1757 = vmatprep.subr.mxu0 0.0
      %1758 = vmatpush1.msra.mxu0 0.0
      %1759 = vmatprep.subr.mxu0 0.0
      %1760 = vmatpush1.msra.mxu0 0.0
      %1761 = vmatprep.subr.mxu0 0.0
      %1762 = vmatpush1.msra.mxu0 0.0
      %1763 = vmatprep.subr.mxu0 0.0
      %1764 = vmatpush1.msra.mxu0 0.0
      %1765 = vmatprep.subr.mxu0 0.0
      %1766 = vmatpush1.msra.mxu0 0.0
      %1767 = vmatprep.subr.mxu0 0.0
      %1768 = vmatpush1.msra.mxu0 0.0
      %1769 = vmatprep.subr.mxu0 0.0
      %1770 = vmatpush1.msra.mxu0 0.0
      %1771 = vmatprep.subr.mxu0 0.0
      %1772 = vmatpush1.msra.mxu0 0.0
      %1773 = vmatprep.subr.mxu0 0.0
      %1774 = vmatpush1.msra.mxu0 0.0
      %1775 = vmatprep.subr.mxu0 0.0
      %1776 = vmatpush1.msra.mxu0 0.0
      %1777 = vmatprep.mubr.f32.mxu0 0.0
      %1778 = vmatmul.mubr.f32.gmra.mrb[0].mxu0 %v1711
      %v1779 = vpop.f32.mrb[0].mxu0
      %v1780 = vadd.f32 0.0, %v1779
      %v1781 = vpop.f32.mrb[0].mxu0
      %1782 = vdwg.mxu0
      %v1783 = vadd.f32 %v1708, %v1780
      %v1784 = vxor.u32 %v1783, 2147483648
      %v1785 = vmul.f32 %v1784, 1.442695
      %v1786 = vpow.pop %v1785
      %v1787 = vadd.f32 %v1786, 1.0
      %v1788 = vrcp.pop %v1787
      %v1789 = vmul.f32 1.0, %v1788
      %v1790 = vtanh.pop %v1783
      %v1791 = vld [vmem:[#allocation4] sm:$0x3]
      %1793 = vrot.lane.b32.xlu0 %v1791, 32
      %v1794 = vpop.permute.xlu0 %1793
      %v1796 = vmul.f32 %v1789, %v1794
      %1798 = vrot.lane.b32.xlu0 %v1790, 64
      %v1799 = vpop.permute.xlu0 %1798
      %v1801 = vmul.f32 %v1789, %v1799
      %1803 = vrot.lane.b32.xlu0 %v1801, 32
      %v1804 = vpop.permute.xlu0 %1803
      %v1806 = vadd.f32 %v1796, %v1804
      %v1807 = vtanh.pop %v1806
      %1809 = vrot.lane.b32.xlu0 %v1807, 64
      %v1810 = vpop.permute.xlu0 %1809
      %v1812 = vmul.f32 %v1789, %v1810
      %1814 = vrot.lane.b32.xlu0 %v1806, 96
      %v1815 = vpop.permute.xlu0 %1814
      %1817 = vst.msk [vmem:[#allocation4] sm:$0x3] %vm860, %v1815
      %1819 = vrot.lane.b32.xlu0 %v1812, 32
      %v1820 = vpop.permute.xlu0 %1819
      %1822 = vst.msk [vmem:[#allocation3] sm:$0x3] %vm860, %v1820
      %s1823 = scalar_lea.vmem %s231, %s1706
      %1824 = vst.msk [vmem:[%s1823] sm:$0x3] %vm860, %v1820
      %p1825 = scmp.lt.s32.totalorder %s15, 1
      %s1826 = scalar_select %p1825, %s15, 1
      %s1827 = smul.addr %s1826, 8
      %s1828 = smul.addr %s1827, 2
      %s1829 = scalar_lea.vmem %s4, %s1828
      // Predicated region
      $region37: #{sentiment_forward.2} parent=35 // pred_check
        %p1830 = pneg %p132
      $region38: #{sentiment_forward.2} parent=35 // pred_check_branch
        %1832 = sbr.rel (%p1830) target = $region40
      $region39: #{sentiment_forward.2} parent=35 // pred_region
        _
      $region40: #{sentiment_forward.2} parent=35 // pred_fallthru
        _
    $region36: #{sentiment_forward.2} parent=5 // pred_fallthru
      _
    %p1833 = scmp.le.s32.totalorder 2, %s10
    // Predicated region
    $region41: #{sentiment_forward.2} parent=5 // pred_check
      %p1834 = pneg %p1833
    $region42: #{sentiment_forward.2} parent=5 // pred_check_branch
      %1836 = sbr.rel (%p1834) target = $region44
    $region43: #{sentiment_forward.2} parent=5 // pred_region
      %s1837 = ssub.s32 %s10, 2
      // Predicated region
      $region45: #{sentiment_forward.2} parent=43 // pred_check
        %p1838 = pneg %p138
      $region46: #{sentiment_forward.2} parent=43 // pred_check_branch
        %1840 = sbr.rel (%p1838) target = $region48
      $region47: #{sentiment_forward.2} parent=43 // pred_region
        %p1841 = scmp.lt.s32.totalorder %s16, 1
        %s1842 = scalar_select %p1841, %s16, 1
        %s1843 = smul.addr %s1842, 8
        %s1844 = smul.addr %s1843, 2
        %s1845 = scalar_lea.vmem %s4, %s1844
      $region48: #{sentiment_forward.2} parent=43 // pred_fallthru
        _
    $region44: #{sentiment_forward.2} parent=5 // pred_fallthru
      _
  $region6: #{sentiment_forward.2} parent=0 // loop_footer
    %s14 = sadd.s32 1, %s10
  $region7: #{sentiment_forward.2} parent=0 // loop_footer_branch
    %9 = sbr.rel target = $region3
  $region8: #{sentiment_forward.2} parent=0 // loop_exit
    _

// kernel: sentiment_forward.3
$region0: #{sentiment_forward.3}
  #allocation0 [shape = 'u32[]', space=smem, size = 0x4, offset = 0x4, fixed_abs, tag = 'smem constant byte address 0x4 - core index']
  #allocation1 [shape = 'u32[144,128]{1,0:T(1,128)}', space=vmem, size = 0x12000, scoped, tag = 'internal scratch']
  #allocation2 [shape = 'f32[8,2,128]{2,1,0:T(2,128)}', space=vmem, size = 0x2000, scoped, tag = 'scratch operand']
  #allocation3 [shape = 'f32[2,32]{1,0:T(2,128)}', space=vmem, size = 0x400, scoped, tag = 'scratch operand']
  #allocation4 [shape = 'f32[2,32]{1,0:T(2,128)}', space=vmem, size = 0x400, scoped, tag = 'scratch operand']
  %s0 = inlined_call_operand.vmem [shape: f32[2,8,2,32], index: 0, kind: input, shape index: {}]
  %s1 = inlined_call_operand.vmem [shape: f32[2,64,128], index: 1, kind: input, shape index: {}]
  %s2 = inlined_call_operand.vmem [shape: f32[2,32,128], index: 2, kind: input, shape index: {}]
  %s3 = inlined_call_operand.vmem [shape: f32[2,1,128], index: 3, kind: input, shape index: {}]
  %s4 = inlined_call_operand.vmem [shape: f32[2,32,2], index: 4, kind: input, shape index: {}]
  %s5 = inlined_call_operand.vmem [shape: f32[2,1,2], index: 5, kind: input, shape index: {}]
  %s6 = inlined_call_operand.hbm [shape: f32[2,8,2,32], index: 6, kind: output, shape index: {0}]
  %s7 = inlined_call_operand.vmem [shape: f32[2,2,2], index: 7, kind: output, shape index: {1}]
  %8 = xla_tuple %s6, %s7
  %s9 = sld [smem:[#allocation0]]
  $region65: #{sentiment_forward.3} parent=0
    _
  %s11 = ssub.s32 1, %s9
  %s12 = scalar_select 0, %s11, %s9
  $region1: #{sentiment_forward.3} parent=0
    #allocation5 [shape = 'u8[16384]{0}', space=vmem, size = 0x4000, scoped, tag = 'output window, operand 0']
    #allocation6 [shape = 's32[2]{0}', space=sflag, size = 0x8, scoped, tag = 'scoped memory for sentiment_forward.3']
    %13 = vsyncpa [#allocation6], 0
    %s14 = scalar_lea.sflag [#allocation6], 1
    %15 = vsyncpa %s14, 0
    loop: start=0, step=1, limit=4
    $region2: #{sentiment_forward.3} parent=1 // loop_pre_header
      _
    $region3: #{sentiment_forward.3} parent=1 // loop_header
      %s17 = sphi 0, %s21
      %p18 = scmp.ge.s32.totalorder %s17, 4
      %s25 = sphi 0, %s25
      %s27 = sphi 0, %s25
      %s28 = sphi 0, %s27
      %s42 = sphi 0, %s28
      %s48 = sphi 0, %s50
      %s51 = sphi 0, %s48
      %s52 = sphi 0, %s51
      %s68 = sphi 0, %s52
      %s74 = sphi 0, %s76
      %s77 = sphi 0, %s74
      %s78 = sphi 0, %s77
      %s94 = sphi 0, %s78
      %s100 = sphi 0, %s102
      %s103 = sphi 0, %s100
      %s104 = sphi 0, %s103
      %s120 = sphi 0, %s104
      %s126 = sphi 0, %s128
      %s129 = sphi 0, %s126
      %s130 = sphi 0, %s129
      %s146 = sphi 0, %s130
      %s152 = sphi 0, %s154
      %s155 = sphi 0, %s152
      %s156 = sphi 0, %s155
      %s172 = sphi 0, %s156
      %s178 = sphi 0, %s180
      %s181 = sphi 0, %s178
      %s182 = sphi 0, %s181
      %s198 = sphi 0, %s182
      %s204 = sphi 0, %s206
      %s207 = sphi 0, %s204
      %s208 = sphi 0, %s207
      %s224 = sphi 0, %s208
    $region4: #{sentiment_forward.3} parent=1 // loop_header_branch
      %20 = sbr.rel (%p18) target = $region8
    $region5: #{sentiment_forward.3} parent=1 // loop_body
      %s22 = ssub.s32 %s17, 1
      %s23 = ssub.s32 %s17, 2
      %s24 = sadd.s32 %s17, 1
      %s26 = sadd.s32 %s25, 1
      %p29 = scmp.eq.s32.totalorder %s17, 1
      %p30 = scmp.ne.s32.totalorder %s25, %s27
      %p31 = scmp.eq.s32.totalorder %s17, 0
      %p32 = por %p30, %p31
      %p33 = scmp.ne.s32.totalorder %s25, %s27
      %p34 = scmp.eq.s32.totalorder %s22, 1
      %p35 = por %p33, %p34
      %p36 = scmp.ne.s32.totalorder %s27, %s28
      %p37 = scmp.eq.s32.totalorder %s22, 0
      %p38 = por %p36, %p37
      %p39 = scmp.ne.s32.totalorder %s27, %s28
      %p40 = scmp.eq.s32.totalorder %s23, 1
      %p41 = por %p39, %p40
      %p43 = scmp.ne.s32.totalorder %s28, %s42
      %p44 = scmp.eq.s32.totalorder %s23, 0
      %p45 = por %p43, %p44
      %s46 = ssub.s32 %s17, %s24
      %p47 = scmp.eq.s32.totalorder %s46, 0
      %s49 = sadd.s32 %s48, 1
      %s50 = scalar_select %p47, %s48, %s49
      %p53 = pneg %p47
      %p54 = scmp.eq.s32.totalorder %s17, 1
      %p55 = por %p53, %p54
      %p56 = scmp.ne.s32.totalorder %s48, %s51
      %p57 = scmp.eq.s32.totalorder %s17, 0
      %p58 = por %p56, %p57
      %p59 = scmp.ne.s32.totalorder %s48, %s51
      %p60 = scmp.eq.s32.totalorder %s22, 1
      %p61 = por %p59, %p60
      %p62 = scmp.ne.s32.totalorder %s51, %s52
      %p63 = scmp.eq.s32.totalorder %s22, 0
      %p64 = por %p62, %p63
      %p65 = scmp.ne.s32.totalorder %s51, %s52
      %p66 = scmp.eq.s32.totalorder %s23, 1
      %p67 = por %p65, %p66
      %p69 = scmp.ne.s32.totalorder %s52, %s68
      %p70 = scmp.eq.s32.totalorder %s23, 0
      %p71 = por %p69, %p70
      %s72 = ssub.s32 %s17, %s24
      %p73 = scmp.eq.s32.totalorder %s72, 0
      %s75 = sadd.s32 %s74, 1
      %s76 = scalar_select %p73, %s74, %s75
      %p79 = pneg %p73
      %p80 = scmp.eq.s32.totalorder %s17, 1
      %p81 = por %p79, %p80
      %p82 = scmp.ne.s32.totalorder %s74, %s77
      %p83 = scmp.eq.s32.totalorder %s17, 0
      %p84 = por %p82, %p83
      %p85 = scmp.ne.s32.totalorder %s74, %s77
      %p86 = scmp.eq.s32.totalorder %s22, 1
      %p87 = por %p85, %p86
      %p88 = scmp.ne.s32.totalorder %s77, %s78
      %p89 = scmp.eq.s32.totalorder %s22, 0
      %p90 = por %p88, %p89
      %p91 = scmp.ne.s32.totalorder %s77, %s78
      %p92 = scmp.eq.s32.totalorder %s23, 1
      %p93 = por %p91, %p92
      %p95 = scmp.ne.s32.totalorder %s78, %s94
      %p96 = scmp.eq.s32.totalorder %s23, 0
      %p97 = por %p95, %p96
      %s98 = ssub.s32 %s17, %s24
      %p99 = scmp.eq.s32.totalorder %s98, 0
      %s101 = sadd.s32 %s100, 1
      %s102 = scalar_select %p99, %s100, %s101
      %p105 = pneg %p99
      %p106 = scmp.eq.s32.totalorder %s17, 1
      %p107 = por %p105, %p106
      %p108 = scmp.ne.s32.totalorder %s100, %s103
      %p109 = scmp.eq.s32.totalorder %s17, 0
      %p110 = por %p108, %p109
      %p111 = scmp.ne.s32.totalorder %s100, %s103
      %p112 = scmp.eq.s32.totalorder %s22, 1
      %p113 = por %p111, %p112
      %p114 = scmp.ne.s32.totalorder %s103, %s104
      %p115 = scmp.eq.s32.totalorder %s22, 0
      %p116 = por %p114, %p115
      %p117 = scmp.ne.s32.totalorder %s103, %s104
      %p118 = scmp.eq.s32.totalorder %s23, 1
      %p119 = por %p117, %p118
      %p121 = scmp.ne.s32.totalorder %s104, %s120
      %p122 = scmp.eq.s32.totalorder %s23, 0
      %p123 = por %p121, %p122
      %s124 = ssub.s32 %s17, %s24
      %p125 = scmp.eq.s32.totalorder %s124, 0
      %s127 = sadd.s32 %s126, 1
      %s128 = scalar_select %p125, %s126, %s127
      %p131 = pneg %p125
      %p132 = scmp.eq.s32.totalorder %s17, 1
      %p133 = por %p131, %p132
      %p134 = scmp.ne.s32.totalorder %s126, %s129
      %p135 = scmp.eq.s32.totalorder %s17, 0
      %p136 = por %p134, %p135
      %p137 = scmp.ne.s32.totalorder %s126, %s129
      %p138 = scmp.eq.s32.totalorder %s22, 1
      %p139 = por %p137, %p138
      %p140 = scmp.ne.s32.totalorder %s129, %s130
      %p141 = scmp.eq.s32.totalorder %s22, 0
      %p142 = por %p140, %p141
      %p143 = scmp.ne.s32.totalorder %s129, %s130
      %p144 = scmp.eq.s32.totalorder %s23, 1
      %p145 = por %p143, %p144
      %p147 = scmp.ne.s32.totalorder %s130, %s146
      %p148 = scmp.eq.s32.totalorder %s23, 0
      %p149 = por %p147, %p148
      %s150 = ssub.s32 %s17, %s24
      %p151 = scmp.eq.s32.totalorder %s150, 0
      %s153 = sadd.s32 %s152, 1
      %s154 = scalar_select %p151, %s152, %s153
      %p157 = pneg %p151
      %p158 = scmp.eq.s32.totalorder %s17, 1
      %p159 = por %p157, %p158
      %p160 = scmp.ne.s32.totalorder %s152, %s155
      %p161 = scmp.eq.s32.totalorder %s17, 0
      %p162 = por %p160, %p161
      %p163 = scmp.ne.s32.totalorder %s152, %s155
      %p164 = scmp.eq.s32.totalorder %s22, 1
      %p165 = por %p163, %p164
      %p166 = scmp.ne.s32.totalorder %s155, %s156
      %p167 = scmp.eq.s32.totalorder %s22, 0
      %p168 = por %p166, %p167
      %p169 = scmp.ne.s32.totalorder %s155, %s156
      %p170 = scmp.eq.s32.totalorder %s23, 1
      %p171 = por %p169, %p170
      %p173 = scmp.ne.s32.totalorder %s156, %s172
      %p174 = scmp.eq.s32.totalorder %s23, 0
      %p175 = por %p173, %p174
      %s176 = ssub.s32 %s17, %s24
      %p177 = scmp.eq.s32.totalorder %s176, 0
      %s179 = sadd.s32 %s178, 1
      %s180 = scalar_select %p177, %s178, %s179
      %p183 = pneg %p177
      %p184 = scmp.eq.s32.totalorder %s17, 1
      %p185 = por %p183, %p184
      %p186 = scmp.ne.s32.totalorder %s178, %s181
      %p187 = scmp.eq.s32.totalorder %s17, 0
      %p188 = por %p186, %p187
      %p189 = scmp.ne.s32.totalorder %s178, %s181
      %p190 = scmp.eq.s32.totalorder %s22, 1
      %p191 = por %p189, %p190
      %p192 = scmp.ne.s32.totalorder %s181, %s182
      %p193 = scmp.eq.s32.totalorder %s22, 0
      %p194 = por %p192, %p193
      %p195 = scmp.ne.s32.totalorder %s181, %s182
      %p196 = scmp.eq.s32.totalorder %s23, 1
      %p197 = por %p195, %p196
      %p199 = scmp.ne.s32.totalorder %s182, %s198
      %p200 = scmp.eq.s32.totalorder %s23, 0
      %p201 = por %p199, %p200
      %s202 = ssub.s32 %s17, %s24
      %p203 = scmp.eq.s32.totalorder %s202, 0
      %s205 = sadd.s32 %s204, 1
      %s206 = scalar_select %p203, %s204, %s205
      %p209 = pneg %p203
      %p210 = scmp.eq.s32.totalorder %s17, 1
      %p211 = por %p209, %p210
      %p212 = scmp.ne.s32.totalorder %s204, %s207
      %p213 = scmp.eq.s32.totalorder %s17, 0
      %p214 = por %p212, %p213
      %p215 = scmp.ne.s32.totalorder %s204, %s207
      %p216 = scmp.eq.s32.totalorder %s22, 1
      %p217 = por %p215, %p216
      %p218 = scmp.ne.s32.totalorder %s207, %s208
      %p219 = scmp.eq.s32.totalorder %s22, 0
      %p220 = por %p218, %p219
      %p221 = scmp.ne.s32.totalorder %s207, %s208
      %p222 = scmp.eq.s32.totalorder %s23, 1
      %p223 = por %p221, %p222
      %p225 = scmp.ne.s32.totalorder %s208, %s224
      %p226 = scmp.eq.s32.totalorder %s23, 0
      %p227 = por %p225, %p226
      %p228 = scmp.le.s32.totalorder 1, %s17
      %p229 = scmp.lt.s32.totalorder %s17, 3
      %p230 = pnand %p228, %p229
      %p231 = pneg %p230
      // Predicated region
      $region9: #{sentiment_forward.3} parent=5 // pred_check
        _
      $region10: #{sentiment_forward.3} parent=5 // pred_check_branch
        %233 = sbr.rel (%p230) target = $region12
      $region11: #{sentiment_forward.3} parent=5 // pred_region
        %s234 = ssub.s32 %s17, 1
        // Predicated region
        $region13: #{sentiment_forward.3} parent=11 // pred_check
          %p235 = pneg %p38
        $region14: #{sentiment_forward.3} parent=11 // pred_check_branch
          %237 = sbr.rel (%p235) target = $region16
        $region15: #{sentiment_forward.3} parent=11 // pred_region
          _
        $region16: #{sentiment_forward.3} parent=11 // pred_fallthru
          _
      $region12: #{sentiment_forward.3} parent=5 // pred_fallthru
        _
      %p238 = scmp.lt.s32.totalorder %s17, 2
      // Predicated region
      $region17: #{sentiment_forward.3} parent=5 // pred_check
        %p239 = pneg %p238
      $region18: #{sentiment_forward.3} parent=5 // pred_check_branch
        %241 = sbr.rel (%p239) target = $region20
      $region19: #{sentiment_forward.3} parent=5 // pred_region
        // Predicated region
        $region21: #{sentiment_forward.3} parent=19 // pred_check
          %p242 = pneg %p58
        $region22: #{sentiment_forward.3} parent=19 // pred_check_branch
          %244 = sbr.rel (%p242) target = $region24
        $region23: #{sentiment_forward.3} parent=19 // pred_region
          %p245 = scmp.lt.s32.totalorder %s17, 1
          %s246 = scalar_select %p245, %s17, 1
          %s247 = smul.addr %s246, 8
          %s248 = smul.addr %s247, 8
          %s249 = scalar_lea.vmem %s1, %s248
        $region24: #{sentiment_forward.3} parent=19 // pred_fallthru
          _
        // Predicated region
        $region25: #{sentiment_forward.3} parent=19 // pred_check
          %p250 = pneg %p84
        $region26: #{sentiment_forward.3} parent=19 // pred_check_branch
          %252 = sbr.rel (%p250) target = $region28
        $region27: #{sentiment_forward.3} parent=19 // pred_region
          %p253 = scmp.lt.s32.totalorder %s17, 1
          %s254 = scalar_select %p253, %s17, 1
          %s255 = smul.addr %s254, 4
          %s256 = smul.addr %s255, 8
          %s257 = scalar_lea.vmem %s2, %s256
        $region28: #{sentiment_forward.3} parent=19 // pred_fallthru
          _
        // Predicated region
        $region29: #{sentiment_forward.3} parent=19 // pred_check
          %p258 = pneg %p110
        $region30: #{sentiment_forward.3} parent=19 // pred_check_branch
          %260 = sbr.rel (%p258) target = $region32
        $region31: #{sentiment_forward.3} parent=19 // pred_region
          %p261 = scmp.lt.s32.totalorder %s17, 1
          %s262 = scalar_select %p261, %s17, 1
          %s263 = scalar_lea.vmem %s3, %s262
        $region32: #{sentiment_forward.3} parent=19 // pred_fallthru
          _
        // Predicated region
        $region33: #{sentiment_forward.3} parent=19 // pred_check
          %p264 = pneg %p136
        $region34: #{sentiment_forward.3} parent=19 // pred_check_branch
          %266 = sbr.rel (%p264) target = $region36
        $region35: #{sentiment_forward.3} parent=19 // pred_region
          %p267 = scmp.lt.s32.totalorder %s17, 1
          %s268 = scalar_select %p267, %s17, 1
          %s269 = smul.addr %s268, 4
          %s270 = smul.addr %s269, 8
          %s271 = scalar_lea.vmem %s4, %s270
        $region36: #{sentiment_forward.3} parent=19 // pred_fallthru
          _
        // Predicated region
        $region37: #{sentiment_forward.3} parent=19 // pred_check
          %p272 = pneg %p162
        $region38: #{sentiment_forward.3} parent=19 // pred_check_branch
          %274 = sbr.rel (%p272) target = $region40
        $region39: #{sentiment_forward.3} parent=19 // pred_region
          %p275 = scmp.lt.s32.totalorder %s17, 1
          %s276 = scalar_select %p275, %s17, 1
          %s277 = scalar_lea.vmem %s5, %s276
        $region40: #{sentiment_forward.3} parent=19 // pred_fallthru
          _
      $region20: #{sentiment_forward.3} parent=5 // pred_fallthru
        _
      %p278 = scmp.le.s32.totalorder 1, %s17
      %p279 = scmp.lt.s32.totalorder %s17, 3
      %p280 = pnand %p278, %p279
      %p281 = pneg %p280
      // Predicated region
      $region41: #{sentiment_forward.3} parent=5 // pred_check
        _
      $region42: #{sentiment_forward.3} parent=5 // pred_check_branch
        %283 = sbr.rel (%p280) target = $region44
      $region43: #{sentiment_forward.3} parent=5 // pred_region
        %s284 = ssub.s32 %s17, 1
        %p285 = pneg %p38
        %p286 = pneg %p35
        %p287 = scmp.lt.s32.totalorder %s22, 1
        %s288 = scalar_select %p287, %s22, 1
        %s289 = smul.addr %s288, 8
        %s290 = smul.addr %s289, 8
        %s291 = scalar_lea.vmem %s1, %s290
        %p292 = pneg %p64
        %p293 = pneg %p61
        %p294 = scmp.lt.s32.totalorder %s22, 1
        %s295 = scalar_select %p294, %s22, 1
        %s296 = smul.addr %s295, 4
        %s297 = smul.addr %s296, 8
        %s298 = scalar_lea.vmem %s2, %s297
        %p299 = pneg %p90
        %p300 = pneg %p87
        %p301 = scmp.lt.s32.totalorder %s22, 1
        %s302 = scalar_select %p301, %s22, 1
        %s303 = scalar_lea.vmem %s3, %s302
        %p304 = pneg %p116
        %p305 = pneg %p113
        %p306 = scmp.lt.s32.totalorder %s22, 1
        %s307 = scalar_select %p306, %s22, 1
        %s308 = smul.addr %s307, 4
        %s309 = smul.addr %s308, 8
        %s310 = scalar_lea.vmem %s4, %s309
        %p311 = pneg %p142
        %p312 = pneg %p139
        %p313 = scmp.lt.s32.totalorder %s22, 1
        %s314 = scalar_select %p313, %s22, 1
        %s315 = scalar_lea.vmem %s5, %s314
        %p316 = pneg %p168
        %p317 = pneg %p165
        %p318 = pneg %p194
        %p319 = pneg %p191
        %s320 = sand.u32 %s181, 1
        %s321 = scalar_lea.sflag [#allocation6], %s320
        %s322 = sand.u32 %s181, 1
        %s323 = smul.addr %s322, 16
        %s324 = scalar_lea.vmem [#allocation5], %s323
        %p325 = pneg %p220
        %p326 = pneg %p217
        %p327 = scmp.lt.s32.totalorder %s22, 1
        %s328 = scalar_select %p327, %s22, 1
        %s329 = smul.addr %s328, 2
        %s330 = scalar_lea.vmem %s7, %s329
        %p331 = scmp.lt.s32.totalorder %s22, 1
        %s332 = scalar_select %p331, %s22, 1
        %s333 = smul.addr %s332, 8
        %s334 = smul.addr %s333, 8
        %s335 = scalar_lea.vmem %s1, %s334
        %p336 = scmp.lt.s32.totalorder %s22, 1
        %s337 = scalar_select %p336, %s22, 1
        %s338 = smul.addr %s337, 4
        %s339 = smul.addr %s338, 8
        %s340 = scalar_lea.vmem %s2, %s339
        %p341 = scmp.lt.s32.totalorder %s22, 1
        %s342 = scalar_select %p341, %s22, 1
        %s343 = scalar_lea.vmem %s3, %s342
        %p344 = scmp.lt.s32.totalorder %s22, 1
        %s345 = scalar_select %p344, %s22, 1
        %s346 = smul.addr %s345, 4
        %s347 = smul.addr %s346, 8
        %s348 = scalar_lea.vmem %s4, %s347
        %p349 = scmp.lt.s32.totalorder %s22, 1
        %s350 = scalar_select %p349, %s22, 1
        %s351 = scalar_lea.vmem %s5, %s350
        %p352 = scmp.lt.s32.totalorder %s22, 1
        %s353 = scalar_select %p352, %s22, 1
        %s354 = smul.addr %s353, 2
        %s355 = scalar_lea.vmem %s7, %s354
        %v356 = vld [vmem:[%s335] sm:$0xff]
        %v357 = vld [vmem:[%s335 + $0x8] sm:$0xff]
        %v358 = vld [vmem:[%s335 + $0x10] sm:$0xff]
        %v359 = vld [vmem:[%s335 + $0x18] sm:$0xff]
        %v360 = vld [vmem:[%s335 + $0x20] sm:$0xff]
        %v361 = vld [vmem:[%s335 + $0x28] sm:$0xff]
        %v362 = vld [vmem:[%s335 + $0x30] sm:$0xff]
        %v363 = vld [vmem:[%s335 + $0x38] sm:$0xff]
        %v364 = vld [vmem:[%s340] sm:$0xff]
        %v365 = vld [vmem:[%s340 + $0x8] sm:$0xff]
        %v366 = vld [vmem:[%s340 + $0x10] sm:$0xff]
        %v367 = vld [vmem:[%s340 + $0x18] sm:$0xff]
        %v368 = vld [vmem:[%s343] sm:$0x1]
        %v370 = vlaneseq
        %v371 = vshrl.u32 %v370, 7
        %v372 = vsub.s32 0, %v371
        %v373 = vrot.slane %v368, %v372
        %v375 = vld [vmem:[%s0] sm:$0x3]
        %s376 = scalar_lea.vmem %s0, 16
        %v377 = vld [vmem:[%s376] sm:$0x3]
        %vm378 = vcmask 261120
        %v380 = vsel %vm378, %v377, 0
        %382 = vmatprep.subr.mxu0 0.0
        %383 = vmatpush1.msra.mxu0 %v360
        %384 = vmatprep.subr.mxu0 0.0
        %385 = vmatpush1.msra.mxu0 %v361
        %386 = vmatprep.subr.mxu0 0.0
        %387 = vmatpush1.msra.mxu0 %v362
        %388 = vmatprep.subr.mxu0 0.0
        %389 = vmatpush1.msra.mxu0 %v363
        %390 = vmatprep.subr.mxu0 0.0
        %391 = vmatpush1.msra.mxu0 0.0
        %392 = vmatprep.subr.mxu0 0.0
        %393 = vmatpush1.msra.mxu0 0.0
        %394 = vmatprep.subr.mxu0 0.0
        %395 = vmatpush1.msra.mxu0 0.0
        %396 = vmatprep.subr.mxu0 0.0
        %397 = vmatpush1.msra.mxu0 0.0
        %398 = vmatprep.subr.mxu0 0.0
        %399 = vmatpush1.msra.mxu0 0.0
        %400 = vmatprep.subr.mxu0 0.0
        %401 = vmatpush1.msra.mxu0 0.0
        %402 = vmatprep.subr.mxu0 0.0
        %403 = vmatpush1.msra.mxu0 0.0
        %404 = vmatprep.subr.mxu0 0.0
        %405 = vmatpush1.msra.mxu0 0.0
        %406 = vmatprep.subr.mxu0 0.0
        %407 = vmatpush1.msra.mxu0 0.0
        %408 = vmatprep.subr.mxu0 0.0
        %409 = vmatpush1.msra.mxu0 0.0
        %410 = vmatprep.subr.mxu0 0.0
        %411 = vmatpush1.msra.mxu0 0.0
        %412 = vmatprep.subr.mxu0 0.0
        %413 = vmatpush1.msra.mxu0 0.0
        %414 = vmatprep.subr.mxu0 0.0
        %415 = vmatpush1.msra.mxu0 0.0
        %416 = vmatprep.subr.mxu0 0.0
        %417 = vmatpush1.msra.mxu0 0.0
        %418 = vmatprep.subr.mxu0 0.0
        %419 = vmatpush1.msra.mxu0 0.0
        %420 = vmatprep.subr.mxu0 0.0
        %421 = vmatpush1.msra.mxu0 0.0
        %422 = vmatprep.subr.mxu0 0.0
        %423 = vmatpush1.msra.mxu0 0.0
        %424 = vmatprep.subr.mxu0 0.0
        %425 = vmatpush1.msra.mxu0 0.0
        %426 = vmatprep.subr.mxu0 0.0
        %427 = vmatpush1.msra.mxu0 0.0
        %428 = vmatprep.subr.mxu0 0.0
        %429 = vmatpush1.msra.mxu0 0.0
        %430 = vmatprep.subr.mxu0 0.0
        %431 = vmatpush1.msra.mxu0 0.0
        %432 = vmatprep.subr.mxu0 0.0
        %433 = vmatpush1.msra.mxu0 0.0
        %434 = vmatprep.subr.mxu0 0.0
        %435 = vmatpush1.msra.mxu0 0.0
        %436 = vmatprep.subr.mxu0 0.0
        %437 = vmatpush1.msra.mxu0 0.0
        %438 = vmatprep.subr.mxu0 0.0
        %439 = vmatpush1.msra.mxu0 0.0
        %440 = vmatprep.subr.mxu0 0.0
        %441 = vmatpush1.msra.mxu0 0.0
        %442 = vmatprep.subr.mxu0 0.0
        %443 = vmatpush1.msra.mxu0 0.0
        %444 = vmatprep.subr.mxu0 0.0
        %445 = vmatpush1.msra.mxu0 0.0
        %446 = vmatprep.mubr.f32.mxu0 0.0
        %447 = vmatmul.mubr.f32.gmra.mrb[0].mxu0 %v380
        %v448 = vpop.f32.mrb[0].mxu0
        %v449 = vadd.f32 0.0, %v448
        %v450 = vpop.f32.mrb[0].mxu0
        %451 = vdwg.mxu0
        %v453 = vsel %vm378, %v375, 0
        %455 = vmatprep.subr.mxu0 0.0
        %456 = vmatpush1.msra.mxu0 %v356
        %457 = vmatprep.subr.mxu0 0.0
        %458 = vmatpush1.msra.mxu0 %v357
        %459 = vmatprep.subr.mxu0 0.0
        %460 = vmatpush1.msra.mxu0 %v358
        %461 = vmatprep.subr.mxu0 0.0
        %462 = vmatpush1.msra.mxu0 %v359
        %463 = vmatprep.subr.mxu0 0.0
        %464 = vmatpush1.msra.mxu0 0.0
        %465 = vmatprep.subr.mxu0 0.0
        %466 = vmatpush1.msra.mxu0 0.0
        %467 = vmatprep.subr.mxu0 0.0
        %468 = vmatpush1.msra.mxu0 0.0
        %469 = vmatprep.subr.mxu0 0.0
        %470 = vmatpush1.msra.mxu0 0.0
        %471 = vmatprep.subr.mxu0 0.0
        %472 = vmatpush1.msra.mxu0 0.0
        %473 = vmatprep.subr.mxu0 0.0
        %474 = vmatpush1.msra.mxu0 0.0
        %475 = vmatprep.subr.mxu0 0.0
        %476 = vmatpush1.msra.mxu0 0.0
        %477 = vmatprep.subr.mxu0 0.0
        %478 = vmatpush1.msra.mxu0 0.0
        %479 = vmatprep.subr.mxu0 0.0
        %480 = vmatpush1.msra.mxu0 0.0
        %481 = vmatprep.subr.mxu0 0.0
        %482 = vmatpush1.msra.mxu0 0.0
        %483 = vmatprep.subr.mxu0 0.0
        %484 = vmatpush1.msra.mxu0 0.0
        %485 = vmatprep.subr.mxu0 0.0
        %486 = vmatpush1.msra.mxu0 0.0
        %487 = vmatprep.subr.mxu0 0.0
        %488 = vmatpush1.msra.mxu0 0.0
        %489 = vmatprep.subr.mxu0 0.0
        %490 = vmatpush1.msra.mxu0 0.0
        %491 = vmatprep.subr.mxu0 0.0
        %492 = vmatpush1.msra.mxu0 0.0
        %493 = vmatprep.subr.mxu0 0.0
        %494 = vmatpush1.msra.mxu0 0.0
        %495 = vmatprep.subr.mxu0 0.0
        %496 = vmatpush1.msra.mxu0 0.0
        %497 = vmatprep.subr.mxu0 0.0
        %498 = vmatpush1.msra.mxu0 0.0
        %499 = vmatprep.subr.mxu0 0.0
        %500 = vmatpush1.msra.mxu0 0.0
        %501 = vmatprep.subr.mxu0 0.0
        %502 = vmatpush1.msra.mxu0 0.0
        %503 = vmatprep.subr.mxu0 0.0
        %504 = vmatpush1.msra.mxu0 0.0
        %505 = vmatprep.subr.mxu0 0.0
        %506 = vmatpush1.msra.mxu0 0.0
        %507 = vmatprep.subr.mxu0 0.0
        %508 = vmatpush1.msra.mxu0 0.0
        %509 = vmatprep.subr.mxu0 0.0
        %510 = vmatpush1.msra.mxu0 0.0
        %511 = vmatprep.subr.mxu0 0.0
        %512 = vmatpush1.msra.mxu0 0.0
        %513 = vmatprep.subr.mxu0 0.0
        %514 = vmatpush1.msra.mxu0 0.0
        %515 = vmatprep.subr.mxu0 0.0
        %516 = vmatpush1.msra.mxu0 0.0
        %517 = vmatprep.subr.mxu0 0.0
        %518 = vmatpush1.msra.mxu0 0.0
        %519 = vmatprep.mubr.f32.mxu0 0.0
        %520 = vmatmul.mubr.f32.gmra.mrb[0].mxu0 %v453
        %v521 = vpop.f32.mrb[0].mxu0
        %v522 = vadd.f32 %v449, %v521
        %v523 = vpop.f32.mrb[0].mxu0
        %524 = vdwg.mxu0
        %v525 = vadd.f32 %v522, %v373
        %526 = vst [vmem:[#allocation2] sm:$0x3] %v525
        %s527 = scalar_lea.vmem %s0, 2
        %v528 = vld [vmem:[%s527] sm:$0x3]
        %s529 = scalar_lea.vmem %s0, 18
        %v530 = vld [vmem:[%s529] sm:$0x3]
        %v532 = vsel %vm378, %v530, 0
        %534 = vmatprep.subr.mxu0 0.0
        %535 = vmatpush1.msra.mxu0 %v360
        %536 = vmatprep.subr.mxu0 0.0
        %537 = vmatpush1.msra.mxu0 %v361
        %538 = vmatprep.subr.mxu0 0.0
        %539 = vmatpush1.msra.mxu0 %v362
        %540 = vmatprep.subr.mxu0 0.0
        %541 = vmatpush1.msra.mxu0 %v363
        %542 = vmatprep.subr.mxu0 0.0
        %543 = vmatpush1.msra.mxu0 0.0
        %544 = vmatprep.subr.mxu0 0.0
        %545 = vmatpush1.msra.mxu0 0.0
        %546 = vmatprep.subr.mxu0 0.0
        %547 = vmatpush1.msra.mxu0 0.0
        %548 = vmatprep.subr.mxu0 0.0
        %549 = vmatpush1.msra.mxu0 0.0
        %550 = vmatprep.subr.mxu0 0.0
        %551 = vmatpush1.msra.mxu0 0.0
        %552 = vmatprep.subr.mxu0 0.0
        %553 = vmatpush1.msra.mxu0 0.0
        %554 = vmatprep.subr.mxu0 0.0
        %555 = vmatpush1.msra.mxu0 0.0
        %556 = vmatprep.subr.mxu0 0.0
        %557 = vmatpush1.msra.mxu0 0.0
        %558 = vmatprep.subr.mxu0 0.0
        %559 = vmatpush1.msra.mxu0 0.0
        %560 = vmatprep.subr.mxu0 0.0
        %561 = vmatpush1.msra.mxu0 0.0
        %562 = vmatprep.subr.mxu0 0.0
        %563 = vmatpush1.msra.mxu0 0.0
        %564 = vmatprep.subr.mxu0 0.0
        %565 = vmatpush1.msra.mxu0 0.0
        %566 = vmatprep.subr.mxu0 0.0
        %567 = vmatpush1.msra.mxu0 0.0
        %568 = vmatprep.subr.mxu0 0.0
        %569 = vmatpush1.msra.mxu0 0.0
        %570 = vmatprep.subr.mxu0 0.0
        %571 = vmatpush1.msra.mxu0 0.0
        %572 = vmatprep.subr.mxu0 0.0
        %573 = vmatpush1.msra.mxu0 0.0
        %574 = vmatprep.subr.mxu0 0.0
        %575 = vmatpush1.msra.mxu0 0.0
        %576 = vmatprep.subr.mxu0 0.0
        %577 = vmatpush1.msra.mxu0 0.0
        %578 = vmatprep.subr.mxu0 0.0
        %579 = vmatpush1.msra.mxu0 0.0
        %580 = vmatprep.subr.mxu0 0.0
        %581 = vmatpush1.msra.mxu0 0.0
        %582 = vmatprep.subr.mxu0 0.0
        %583 = vmatpush1.msra.mxu0 0.0
        %584 = vmatprep.subr.mxu0 0.0
        %585 = vmatpush1.msra.mxu0 0.0
        %586 = vmatprep.subr.mxu0 0.0
        %587 = vmatpush1.msra.mxu0 0.0
        %588 = vmatprep.subr.mxu0 0.0
        %589 = vmatpush1.msra.mxu0 0.0
        %590 = vmatprep.subr.mxu0 0.0
        %591 = vmatpush1.msra.mxu0 0.0
        %592 = vmatprep.subr.mxu0 0.0
        %593 = vmatpush1.msra.mxu0 0.0
        %594 = vmatprep.subr.mxu0 0.0
        %595 = vmatpush1.msra.mxu0 0.0
        %596 = vmatprep.subr.mxu0 0.0
        %597 = vmatpush1.msra.mxu0 0.0
        %598 = vmatprep.mubr.f32.mxu0 0.0
        %599 = vmatmul.mubr.f32.gmra.mrb[0].mxu0 %v532
        %v600 = vpop.f32.mrb[0].mxu0
        %v601 = vadd.f32 0.0, %v600
        %v602 = vpop.f32.mrb[0].mxu0
        %603 = vdwg.mxu0
        %v605 = vsel %vm378, %v528, 0
        %607 = vmatprep.subr.mxu0 0.0
        %608 = vmatpush1.msra.mxu0 %v356
        %609 = vmatprep.subr.mxu0 0.0
        %610 = vmatpush1.msra.mxu0 %v357
        %611 = vmatprep.subr.mxu0 0.0
        %612 = vmatpush1.msra.mxu0 %v358
        %613 = vmatprep.subr.mxu0 0.0
        %614 = vmatpush1.msra.mxu0 %v359
        %615 = vmatprep.subr.mxu0 0.0
        %616 = vmatpush1.msra.mxu0 0.0
        %617 = vmatprep.subr.mxu0 0.0
        %618 = vmatpush1.msra.mxu0 0.0
        %619 = vmatprep.subr.mxu0 0.0
        %620 = vmatpush1.msra.mxu0 0.0
        %621 = vmatprep.subr.mxu0 0.0
        %622 = vmatpush1.msra.mxu0 0.0
        %623 = vmatprep.subr.mxu0 0.0
        %624 = vmatpush1.msra.mxu0 0.0
        %625 = vmatprep.subr.mxu0 0.0
        %626 = vmatpush1.msra.mxu0 0.0
        %627 = vmatprep.subr.mxu0 0.0
        %628 = vmatpush1.msra.mxu0 0.0
        %629 = vmatprep.subr.mxu0 0.0
        %630 = vmatpush1.msra.mxu0 0.0
        %631 = vmatprep.subr.mxu0 0.0
        %632 = vmatpush1.msra.mxu0 0.0
        %633 = vmatprep.subr.mxu0 0.0
        %634 = vmatpush1.msra.mxu0 0.0
        %635 = vmatprep.subr.mxu0 0.0
        %636 = vmatpush1.msra.mxu0 0.0
        %637 = vmatprep.subr.mxu0 0.0
        %638 = vmatpush1.msra.mxu0 0.0
        %639 = vmatprep.subr.mxu0 0.0
        %640 = vmatpush1.msra.mxu0 0.0
        %641 = vmatprep.subr.mxu0 0.0
        %642 = vmatpush1.msra.mxu0 0.0
        %643 = vmatprep.subr.mxu0 0.0
        %644 = vmatpush1.msra.mxu0 0.0
        %645 = vmatprep.subr.mxu0 0.0
        %646 = vmatpush1.msra.mxu0 0.0
        %647 = vmatprep.subr.mxu0 0.0
        %648 = vmatpush1.msra.mxu0 0.0
        %649 = vmatprep.subr.mxu0 0.0
        %650 = vmatpush1.msra.mxu0 0.0
        %651 = vmatprep.subr.mxu0 0.0
        %652 = vmatpush1.msra.mxu0 0.0
        %653 = vmatprep.subr.mxu0 0.0
        %654 = vmatpush1.msra.mxu0 0.0
        %655 = vmatprep.subr.mxu0 0.0
        %656 = vmatpush1.msra.mxu0 0.0
        %657 = vmatprep.subr.mxu0 0.0
        %658 = vmatpush1.msra.mxu0 0.0
        %659 = vmatprep.subr.mxu0 0.0
        %660 = vmatpush1.msra.mxu0 0.0
        %661 = vmatprep.subr.mxu0 0.0
        %662 = vmatpush1.msra.mxu0 0.0
        %663 = vmatprep.subr.mxu0 0.0
        %664 = vmatpush1.msra.mxu0 0.0
        %665 = vmatprep.subr.mxu0 0.0
        %666 = vmatpush1.msra.mxu0 0.0
        %667 = vmatprep.subr.mxu0 0.0
        %668 = vmatpush1.msra.mxu0 0.0
        %669 = vmatprep.subr.mxu0 0.0
        %670 = vmatpush1.msra.mxu0 0.0
        %671 = vmatprep.mubr.f32.mxu0 0.0
        %672 = vmatmul.mubr.f32.gmra.mrb[0].mxu0 %v605
        %v673 = vpop.f32.mrb[0].mxu0
        %v674 = vadd.f32 %v601, %v673
        %v675 = vpop.f32.mrb[0].mxu0
        %676 = vdwg.mxu0
        %v677 = vadd.f32 %v674, %v373
        %s678 = scalar_lea.vmem [#allocation2], 2
        %679 = vst [vmem:[%s678] sm:$0x3] %v677
        %s680 = scalar_lea.vmem %s0, 4
        %v681 = vld [vmem:[%s680] sm:$0x3]
        %s682 = scalar_lea.vmem %s0, 20
        %v683 = vld [vmem:[%s682] sm:$0x3]
        %v685 = vsel %vm378, %v683, 0
        %687 = vmatprep.subr.mxu0 0.0
        %688 = vmatpush1.msra.mxu0 %v360
        %689 = vmatprep.subr.mxu0 0.0
        %690 = vmatpush1.msra.mxu0 %v361
        %691 = vmatprep.subr.mxu0 0.0
        %692 = vmatpush1.msra.mxu0 %v362
        %693 = vmatprep.subr.mxu0 0.0
        %694 = vmatpush1.msra.mxu0 %v363
        %695 = vmatprep.subr.mxu0 0.0
        %696 = vmatpush1.msra.mxu0 0.0
        %697 = vmatprep.subr.mxu0 0.0
        %698 = vmatpush1.msra.mxu0 0.0
        %699 = vmatprep.subr.mxu0 0.0
        %700 = vmatpush1.msra.mxu0 0.0
        %701 = vmatprep.subr.mxu0 0.0
        %702 = vmatpush1.msra.mxu0 0.0
        %703 = vmatprep.subr.mxu0 0.0
        %704 = vmatpush1.msra.mxu0 0.0
        %705 = vmatprep.subr.mxu0 0.0
        %706 = vmatpush1.msra.mxu0 0.0
        %707 = vmatprep.subr.mxu0 0.0
        %708 = vmatpush1.msra.mxu0 0.0
        %709 = vmatprep.subr.mxu0 0.0
        %710 = vmatpush1.msra.mxu0 0.0
        %711 = vmatprep.subr.mxu0 0.0
        %712 = vmatpush1.msra.mxu0 0.0
        %713 = vmatprep.subr.mxu0 0.0
        %714 = vmatpush1.msra.mxu0 0.0
        %715 = vmatprep.subr.mxu0 0.0
        %716 = vmatpush1.msra.mxu0 0.0
        %717 = vmatprep.subr.mxu0 0.0
        %718 = vmatpush1.msra.mxu0 0.0
        %719 = vmatprep.subr.mxu0 0.0
        %720 = vmatpush1.msra.mxu0 0.0
        %721 = vmatprep.subr.mxu0 0.0
        %722 = vmatpush1.msra.mxu0 0.0
        %723 = vmatprep.subr.mxu0 0.0
        %724 = vmatpush1.msra.mxu0 0.0
        %725 = vmatprep.subr.mxu0 0.0
        %726 = vmatpush1.msra.mxu0 0.0
        %727 = vmatprep.subr.mxu0 0.0
        %728 = vmatpush1.msra.mxu0 0.0
        %729 = vmatprep.subr.mxu0 0.0
        %730 = vmatpush1.msra.mxu0 0.0
        %731 = vmatprep.subr.mxu0 0.0
        %732 = vmatpush1.msra.mxu0 0.0
        %733 = vmatprep.subr.mxu0 0.0
        %734 = vmatpush1.msra.mxu0 0.0
        %735 = vmatprep.subr.mxu0 0.0
        %736 = vmatpush1.msra.mxu0 0.0
        %737 = vmatprep.subr.mxu0 0.0
        %738 = vmatpush1.msra.mxu0 0.0
        %739 = vmatprep.subr.mxu0 0.0
        %740 = vmatpush1.msra.mxu0 0.0
        %741 = vmatprep.subr.mxu0 0.0
        %742 = vmatpush1.msra.mxu0 0.0
        %743 = vmatprep.subr.mxu0 0.0
        %744 = vmatpush1.msra.mxu0 0.0
        %745 = vmatprep.subr.mxu0 0.0
        %746 = vmatpush1.msra.mxu0 0.0
        %747 = vmatprep.subr.mxu0 0.0
        %748 = vmatpush1.msra.mxu0 0.0
        %749 = vmatprep.subr.mxu0 0.0
        %750 = vmatpush1.msra.mxu0 0.0
        %751 = vmatprep.mubr.f32.mxu0 0.0
        %752 = vmatmul.mubr.f32.gmra.mrb[0].mxu0 %v685
        %v753 = vpop.f32.mrb[0].mxu0
        %v754 = vadd.f32 0.0, %v753
        %v755 = vpop.f32.mrb[0].mxu0
        %756 = vdwg.mxu0
        %v758 = vsel %vm378, %v681, 0
        %760 = vmatprep.subr.mxu0 0.0
        %761 = vmatpush1.msra.mxu0 %v356
        %762 = vmatprep.subr.mxu0 0.0
        %763 = vmatpush1.msra.mxu0 %v357
        %764 = vmatprep.subr.mxu0 0.0
        %765 = vmatpush1.msra.mxu0 %v358
        %766 = vmatprep.subr.mxu0 0.0
        %767 = vmatpush1.msra.mxu0 %v359
        %768 = vmatprep.subr.mxu0 0.0
        %769 = vmatpush1.msra.mxu0 0.0
        %770 = vmatprep.subr.mxu0 0.0
        %771 = vmatpush1.msra.mxu0 0.0
        %772 = vmatprep.subr.mxu0 0.0
        %773 = vmatpush1.msra.mxu0 0.0
        %774 = vmatprep.subr.mxu0 0.0
        %775 = vmatpush1.msra.mxu0 0.0
        %776 = vmatprep.subr.mxu0 0.0
        %777 = vmatpush1.msra.mxu0 0.0
        %778 = vmatprep.subr.mxu0 0.0
        %779 = vmatpush1.msra.mxu0 0.0
        %780 = vmatprep.subr.mxu0 0.0
        %781 = vmatpush1.msra.mxu0 0.0
        %782 = vmatprep.subr.mxu0 0.0
        %783 = vmatpush1.msra.mxu0 0.0
        %784 = vmatprep.subr.mxu0 0.0
        %785 = vmatpush1.msra.mxu0 0.0
        %786 = vmatprep.subr.mxu0 0.0
        %787 = vmatpush1.msra.mxu0 0.0
        %788 = vmatprep.subr.mxu0 0.0
        %789 = vmatpush1.msra.mxu0 0.0
        %790 = vmatprep.subr.mxu0 0.0
        %791 = vmatpush1.msra.mxu0 0.0
        %792 = vmatprep.subr.mxu0 0.0
        %793 = vmatpush1.msra.mxu0 0.0
        %794 = vmatprep.subr.mxu0 0.0
        %795 = vmatpush1.msra.mxu0 0.0
        %796 = vmatprep.subr.mxu0 0.0
        %797 = vmatpush1.msra.mxu0 0.0
        %798 = vmatprep.subr.mxu0 0.0
        %799 = vmatpush1.msra.mxu0 0.0
        %800 = vmatprep.subr.mxu0 0.0
        %801 = vmatpush1.msra.mxu0 0.0
        %802 = vmatprep.subr.mxu0 0.0
        %803 = vmatpush1.msra.mxu0 0.0
        %804 = vmatprep.subr.mxu0 0.0
        %805 = vmatpush1.msra.mxu0 0.0
        %806 = vmatprep.subr.mxu0 0.0
        %807 = vmatpush1.msra.mxu0 0.0
        %808 = vmatprep.subr.mxu0 0.0
        %809 = vmatpush1.msra.mxu0 0.0
        %810 = vmatprep.subr.mxu0 0.0
        %811 = vmatpush1.msra.mxu0 0.0
        %812 = vmatprep.subr.mxu0 0.0
        %813 = vmatpush1.msra.mxu0 0.0
        %814 = vmatprep.subr.mxu0 0.0
        %815 = vmatpush1.msra.mxu0 0.0
        %816 = vmatprep.subr.mxu0 0.0
        %817 = vmatpush1.msra.mxu0 0.0
        %818 = vmatprep.subr.mxu0 0.0
        %819 = vmatpush1.msra.mxu0 0.0
        %820 = vmatprep.subr.mxu0 0.0
        %821 = vmatpush1.msra.mxu0 0.0
        %822 = vmatprep.subr.mxu0 0.0
        %823 = vmatpush1.msra.mxu0 0.0
        %824 = vmatprep.mubr.f32.mxu0 0.0
        %825 = vmatmul.mubr.f32.gmra.mrb[0].mxu0 %v758
        %v826 = vpop.f32.mrb[0].mxu0
        %v827 = vadd.f32 %v754, %v826
        %v828 = vpop.f32.mrb[0].mxu0
        %829 = vdwg.mxu0
        %v830 = vadd.f32 %v827, %v373
        %s831 = scalar_lea.vmem [#allocation2], 4
        %832 = vst [vmem:[%s831] sm:$0x3] %v830
        %s833 = scalar_lea.vmem %s0, 6
        %v834 = vld [vmem:[%s833] sm:$0x3]
        %s835 = scalar_lea.vmem %s0, 22
        %v836 = vld [vmem:[%s835] sm:$0x3]
        %v838 = vsel %vm378, %v836, 0
        %840 = vmatprep.subr.mxu0 0.0
        %841 = vmatpush1.msra.mxu0 %v360
        %842 = vmatprep.subr.mxu0 0.0
        %843 = vmatpush1.msra.mxu0 %v361
        %844 = vmatprep.subr.mxu0 0.0
        %845 = vmatpush1.msra.mxu0 %v362
        %846 = vmatprep.subr.mxu0 0.0
        %847 = vmatpush1.msra.mxu0 %v363
        %848 = vmatprep.subr.mxu0 0.0
        %849 = vmatpush1.msra.mxu0 0.0
        %850 = vmatprep.subr.mxu0 0.0
        %851 = vmatpush1.msra.mxu0 0.0
        %852 = vmatprep.subr.mxu0 0.0
        %853 = vmatpush1.msra.mxu0 0.0
        %854 = vmatprep.subr.mxu0 0.0
        %855 = vmatpush1.msra.mxu0 0.0
        %856 = vmatprep.subr.mxu0 0.0
        %857 = vmatpush1.msra.mxu0 0.0
        %858 = vmatprep.subr.mxu0 0.0
        %859 = vmatpush1.msra.mxu0 0.0
        %860 = vmatprep.subr.mxu0 0.0
        %861 = vmatpush1.msra.mxu0 0.0
        %862 = vmatprep.subr.mxu0 0.0
        %863 = vmatpush1.msra.mxu0 0.0
        %864 = vmatprep.subr.mxu0 0.0
        %865 = vmatpush1.msra.mxu0 0.0
        %866 = vmatprep.subr.mxu0 0.0
        %867 = vmatpush1.msra.mxu0 0.0
        %868 = vmatprep.subr.mxu0 0.0
        %869 = vmatpush1.msra.mxu0 0.0
        %870 = vmatprep.subr.mxu0 0.0
        %871 = vmatpush1.msra.mxu0 0.0
        %872 = vmatprep.subr.mxu0 0.0
        %873 = vmatpush1.msra.mxu0 0.0
        %874 = vmatprep.subr.mxu0 0.0
        %875 = vmatpush1.msra.mxu0 0.0
        %876 = vmatprep.subr.mxu0 0.0
        %877 = vmatpush1.msra.mxu0 0.0
        %878 = vmatprep.subr.mxu0 0.0
        %879 = vmatpush1.msra.mxu0 0.0
        %880 = vmatprep.subr.mxu0 0.0
        %881 = vmatpush1.msra.mxu0 0.0
        %882 = vmatprep.subr.mxu0 0.0
        %883 = vmatpush1.msra.mxu0 0.0
        %884 = vmatprep.subr.mxu0 0.0
        %885 = vmatpush1.msra.mxu0 0.0
        %886 = vmatprep.subr.mxu0 0.0
        %887 = vmatpush1.msra.mxu0 0.0
        %888 = vmatprep.subr.mxu0 0.0
        %889 = vmatpush1.msra.mxu0 0.0
        %890 = vmatprep.subr.mxu0 0.0
        %891 = vmatpush1.msra.mxu0 0.0
        %892 = vmatprep.subr.mxu0 0.0
        %893 = vmatpush1.msra.mxu0 0.0
        %894 = vmatprep.subr.mxu0 0.0
        %895 = vmatpush1.msra.mxu0 0.0
        %896 = vmatprep.subr.mxu0 0.0
        %897 = vmatpush1.msra.mxu0 0.0
        %898 = vmatprep.subr.mxu0 0.0
        %899 = vmatpush1.msra.mxu0 0.0
        %900 = vmatprep.subr.mxu0 0.0
        %901 = vmatpush1.msra.mxu0 0.0
        %902 = vmatprep.subr.mxu0 0.0
        %903 = vmatpush1.msra.mxu0 0.0
        %904 = vmatprep.mubr.f32.mxu0 0.0
        %905 = vmatmul.mubr.f32.gmra.mrb[0].mxu0 %v838
        %v906 = vpop.f32.mrb[0].mxu0
        %v907 = vadd.f32 0.0, %v906
        %v908 = vpop.f32.mrb[0].mxu0
        %909 = vdwg.mxu0
        %v911 = vsel %vm378, %v834, 0
        %913 = vmatprep.subr.mxu0 0.0
        %914 = vmatpush1.msra.mxu0 %v356
        %915 = vmatprep.subr.mxu0 0.0
        %916 = vmatpush1.msra.mxu0 %v357
        %917 = vmatprep.subr.mxu0 0.0
        %918 = vmatpush1.msra.mxu0 %v358
        %919 = vmatprep.subr.mxu0 0.0
        %920 = vmatpush1.msra.mxu0 %v359
        %921 = vmatprep.subr.mxu0 0.0
        %922 = vmatpush1.msra.mxu0 0.0
        %923 = vmatprep.subr.mxu0 0.0
        %924 = vmatpush1.msra.mxu0 0.0
        %925 = vmatprep.subr.mxu0 0.0
        %926 = vmatpush1.msra.mxu0 0.0
        %927 = vmatprep.subr.mxu0 0.0
        %928 = vmatpush1.msra.mxu0 0.0
        %929 = vmatprep.subr.mxu0 0.0
        %930 = vmatpush1.msra.mxu0 0.0
        %931 = vmatprep.subr.mxu0 0.0
        %932 = vmatpush1.msra.mxu0 0.0
        %933 = vmatprep.subr.mxu0 0.0
        %934 = vmatpush1.msra.mxu0 0.0
        %935 = vmatprep.subr.mxu0 0.0
        %936 = vmatpush1.msra.mxu0 0.0
        %937 = vmatprep.subr.mxu0 0.0
        %938 = vmatpush1.msra.mxu0 0.0
        %939 = vmatprep.subr.mxu0 0.0
        %940 = vmatpush1.msra.mxu0 0.0
        %941 = vmatprep.subr.mxu0 0.0
        %942 = vmatpush1.msra.mxu0 0.0
        %943 = vmatprep.subr.mxu0 0.0
        %944 = vmatpush1.msra.mxu0 0.0
        %945 = vmatprep.subr.mxu0 0.0
        %946 = vmatpush1.msra.mxu0 0.0
        %947 = vmatprep.subr.mxu0 0.0
        %948 = vmatpush1.msra.mxu0 0.0
        %949 = vmatprep.subr.mxu0 0.0
        %950 = vmatpush1.msra.mxu0 0.0
        %951 = vmatprep.subr.mxu0 0.0
        %952 = vmatpush1.msra.mxu0 0.0
        %953 = vmatprep.subr.mxu0 0.0
        %954 = vmatpush1.msra.mxu0 0.0
        %955 = vmatprep.subr.mxu0 0.0
        %956 = vmatpush1.msra.mxu0 0.0
        %957 = vmatprep.subr.mxu0 0.0
        %958 = vmatpush1.msra.mxu0 0.0
        %959 = vmatprep.subr.mxu0 0.0
        %960 = vmatpush1.msra.mxu0 0.0
        %961 = vmatprep.subr.mxu0 0.0
        %962 = vmatpush1.msra.mxu0 0.0
        %963 = vmatprep.subr.mxu0 0.0
        %964 = vmatpush1.msra.mxu0 0.0
        %965 = vmatprep.subr.mxu0 0.0
        %966 = vmatpush1.msra.mxu0 0.0
        %967 = vmatprep.subr.mxu0 0.0
        %968 = vmatpush1.msra.mxu0 0.0
        %969 = vmatprep.subr.mxu0 0.0
        %970 = vmatpush1.msra.mxu0 0.0
        %971 = vmatprep.subr.mxu0 0.0
        %972 = vmatpush1.msra.mxu0 0.0
        %973 = vmatprep.subr.mxu0 0.0
        %974 = vmatpush1.msra.mxu0 0.0
        %975 = vmatprep.subr.mxu0 0.0
        %976 = vmatpush1.msra.mxu0 0.0
        %977 = vmatprep.mubr.f32.mxu0 0.0
        %978 = vmatmul.mubr.f32.gmra.mrb[0].mxu0 %v911
        %v979 = vpop.f32.mrb[0].mxu0
        %v980 = vadd.f32 %v907, %v979
        %v981 = vpop.f32.mrb[0].mxu0
        %982 = vdwg.mxu0
        %v983 = vadd.f32 %v980, %v373
        %s984 = scalar_lea.vmem [#allocation2], 6
        %985 = vst [vmem:[%s984] sm:$0x3] %v983
        %s986 = scalar_lea.vmem %s0, 8
        %v987 = vld [vmem:[%s986] sm:$0x3]
        %s988 = scalar_lea.vmem %s0, 24
        %v989 = vld [vmem:[%s988] sm:$0x3]
        %v991 = vsel %vm378, %v989, 0
        %993 = vmatprep.subr.mxu0 0.0
        %994 = vmatpush1.msra.mxu0 %v360
        %995 = vmatprep.subr.mxu0 0.0
        %996 = vmatpush1.msra.mxu0 %v361
        %997 = vmatprep.subr.mxu0 0.0
        %998 = vmatpush1.msra.mxu0 %v362
        %999 = vmatprep.subr.mxu0 0.0
        %1000 = vmatpush1.msra.mxu0 %v363
        %1001 = vmatprep.subr.mxu0 0.0
        %1002 = vmatpush1.msra.mxu0 0.0
        %1003 = vmatprep.subr.mxu0 0.0
        %1004 = vmatpush1.msra.mxu0 0.0
        %1005 = vmatprep.subr.mxu0 0.0
        %1006 = vmatpush1.msra.mxu0 0.0
        %1007 = vmatprep.subr.mxu0 0.0
        %1008 = vmatpush1.msra.mxu0 0.0
        %1009 = vmatprep.subr.mxu0 0.0
        %1010 = vmatpush1.msra.mxu0 0.0
        %1011 = vmatprep.subr.mxu0 0.0
        %1012 = vmatpush1.msra.mxu0 0.0
        %1013 = vmatprep.subr.mxu0 0.0
        %1014 = vmatpush1.msra.mxu0 0.0
        %1015 = vmatprep.subr.mxu0 0.0
        %1016 = vmatpush1.msra.mxu0 0.0
        %1017 = vmatprep.subr.mxu0 0.0
        %1018 = vmatpush1.msra.mxu0 0.0
        %1019 = vmatprep.subr.mxu0 0.0
        %1020 = vmatpush1.msra.mxu0 0.0
        %1021 = vmatprep.subr.mxu0 0.0
        %1022 = vmatpush1.msra.mxu0 0.0
        %1023 = vmatprep.subr.mxu0 0.0
        %1024 = vmatpush1.msra.mxu0 0.0
        %1025 = vmatprep.subr.mxu0 0.0
        %1026 = vmatpush1.msra.mxu0 0.0
        %1027 = vmatprep.subr.mxu0 0.0
        %1028 = vmatpush1.msra.mxu0 0.0
        %1029 = vmatprep.subr.mxu0 0.0
        %1030 = vmatpush1.msra.mxu0 0.0
        %1031 = vmatprep.subr.mxu0 0.0
        %1032 = vmatpush1.msra.mxu0 0.0
        %1033 = vmatprep.subr.mxu0 0.0
        %1034 = vmatpush1.msra.mxu0 0.0
        %1035 = vmatprep.subr.mxu0 0.0
        %1036 = vmatpush1.msra.mxu0 0.0
        %1037 = vmatprep.subr.mxu0 0.0
        %1038 = vmatpush1.msra.mxu0 0.0
        %1039 = vmatprep.subr.mxu0 0.0
        %1040 = vmatpush1.msra.mxu0 0.0
        %1041 = vmatprep.subr.mxu0 0.0
        %1042 = vmatpush1.msra.mxu0 0.0
        %1043 = vmatprep.subr.mxu0 0.0
        %1044 = vmatpush1.msra.mxu0 0.0
        %1045 = vmatprep.subr.mxu0 0.0
        %1046 = vmatpush1.msra.mxu0 0.0
        %1047 = vmatprep.subr.mxu0 0.0
        %1048 = vmatpush1.msra.mxu0 0.0
        %1049 = vmatprep.subr.mxu0 0.0
        %1050 = vmatpush1.msra.mxu0 0.0
        %1051 = vmatprep.subr.mxu0 0.0
        %1052 = vmatpush1.msra.mxu0 0.0
        %1053 = vmatprep.subr.mxu0 0.0
        %1054 = vmatpush1.msra.mxu0 0.0
        %1055 = vmatprep.subr.mxu0 0.0
        %1056 = vmatpush1.msra.mxu0 0.0
        %1057 = vmatprep.mubr.f32.mxu0 0.0
        %1058 = vmatmul.mubr.f32.gmra.mrb[0].mxu0 %v991
        %v1059 = vpop.f32.mrb[0].mxu0
        %v1060 = vadd.f32 0.0, %v1059
        %v1061 = vpop.f32.mrb[0].mxu0
        %1062 = vdwg.mxu0
        %v1064 = vsel %vm378, %v987, 0
        %1066 = vmatprep.subr.mxu0 0.0
        %1067 = vmatpush1.msra.mxu0 %v356
        %1068 = vmatprep.subr.mxu0 0.0
        %1069 = vmatpush1.msra.mxu0 %v357
        %1070 = vmatprep.subr.mxu0 0.0
        %1071 = vmatpush1.msra.mxu0 %v358
        %1072 = vmatprep.subr.mxu0 0.0
        %1073 = vmatpush1.msra.mxu0 %v359
        %1074 = vmatprep.subr.mxu0 0.0
        %1075 = vmatpush1.msra.mxu0 0.0
        %1076 = vmatprep.subr.mxu0 0.0
        %1077 = vmatpush1.msra.mxu0 0.0
        %1078 = vmatprep.subr.mxu0 0.0
        %1079 = vmatpush1.msra.mxu0 0.0
        %1080 = vmatprep.subr.mxu0 0.0
        %1081 = vmatpush1.msra.mxu0 0.0
        %1082 = vmatprep.subr.mxu0 0.0
        %1083 = vmatpush1.msra.mxu0 0.0
        %1084 = vmatprep.subr.mxu0 0.0
        %1085 = vmatpush1.msra.mxu0 0.0
        %1086 = vmatprep.subr.mxu0 0.0
        %1087 = vmatpush1.msra.mxu0 0.0
        %1088 = vmatprep.subr.mxu0 0.0
        %1089 = vmatpush1.msra.mxu0 0.0
        %1090 = vmatprep.subr.mxu0 0.0
        %1091 = vmatpush1.msra.mxu0 0.0
        %1092 = vmatprep.subr.mxu0 0.0
        %1093 = vmatpush1.msra.mxu0 0.0
        %1094 = vmatprep.subr.mxu0 0.0
        %1095 = vmatpush1.msra.mxu0 0.0
        %1096 = vmatprep.subr.mxu0 0.0
        %1097 = vmatpush1.msra.mxu0 0.0
        %1098 = vmatprep.subr.mxu0 0.0
        %1099 = vmatpush1.msra.mxu0 0.0
        %1100 = vmatprep.subr.mxu0 0.0
        %1101 = vmatpush1.msra.mxu0 0.0
        %1102 = vmatprep.subr.mxu0 0.0
        %1103 = vmatpush1.msra.mxu0 0.0
        %1104 = vmatprep.subr.mxu0 0.0
        %1105 = vmatpush1.msra.mxu0 0.0
        %1106 = vmatprep.subr.mxu0 0.0
        %1107 = vmatpush1.msra.mxu0 0.0
        %1108 = vmatprep.subr.mxu0 0.0
        %1109 = vmatpush1.msra.mxu0 0.0
        %1110 = vmatprep.subr.mxu0 0.0
        %1111 = vmatpush1.msra.mxu0 0.0
        %1112 = vmatprep.subr.mxu0 0.0
        %1113 = vmatpush1.msra.mxu0 0.0
        %1114 = vmatprep.subr.mxu0 0.0
        %1115 = vmatpush1.msra.mxu0 0.0
        %1116 = vmatprep.subr.mxu0 0.0
        %1117 = vmatpush1.msra.mxu0 0.0
        %1118 = vmatprep.subr.mxu0 0.0
        %1119 = vmatpush1.msra.mxu0 0.0
        %1120 = vmatprep.subr.mxu0 0.0
        %1121 = vmatpush1.msra.mxu0 0.0
        %1122 = vmatprep.subr.mxu0 0.0
        %1123 = vmatpush1.msra.mxu0 0.0
        %1124 = vmatprep.subr.mxu0 0.0
        %1125 = vmatpush1.msra.mxu0 0.0
        %1126 = vmatprep.subr.mxu0 0.0
        %1127 = vmatpush1.msra.mxu0 0.0
        %1128 = vmatprep.subr.mxu0 0.0
        %1129 = vmatpush1.msra.mxu0 0.0
        %1130 = vmatprep.mubr.f32.mxu0 0.0
        %1131 = vmatmul.mubr.f32.gmra.mrb[0].mxu0 %v1064
        %v1132 = vpop.f32.mrb[0].mxu0
        %v1133 = vadd.f32 %v1060, %v1132
        %v1134 = vpop.f32.mrb[0].mxu0
        %1135 = vdwg.mxu0
        %v1136 = vadd.f32 %v1133, %v373
        %s1137 = scalar_lea.vmem [#allocation2], 8
        %1138 = vst [vmem:[%s1137] sm:$0x3] %v1136
        %s1139 = scalar_lea.vmem %s0, 10
        %v1140 = vld [vmem:[%s1139] sm:$0x3]
        %s1141 = scalar_lea.vmem %s0, 26
        %v1142 = vld [vmem:[%s1141] sm:$0x3]
        %v1144 = vsel %vm378, %v1142, 0
        %1146 = vmatprep.subr.mxu0 0.0
        %1147 = vmatpush1.msra.mxu0 %v360
        %1148 = vmatprep.subr.mxu0 0.0
        %1149 = vmatpush1.msra.mxu0 %v361
        %1150 = vmatprep.subr.mxu0 0.0
        %1151 = vmatpush1.msra.mxu0 %v362
        %1152 = vmatprep.subr.mxu0 0.0
        %1153 = vmatpush1.msra.mxu0 %v363
        %1154 = vmatprep.subr.mxu0 0.0
        %1155 = vmatpush1.msra.mxu0 0.0
        %1156 = vmatprep.subr.mxu0 0.0
        %1157 = vmatpush1.msra.mxu0 0.0
        %1158 = vmatprep.subr.mxu0 0.0
        %1159 = vmatpush1.msra.mxu0 0.0
        %1160 = vmatprep.subr.mxu0 0.0
        %1161 = vmatpush1.msra.mxu0 0.0
        %1162 = vmatprep.subr.mxu0 0.0
        %1163 = vmatpush1.msra.mxu0 0.0
        %1164 = vmatprep.subr.mxu0 0.0
        %1165 = vmatpush1.msra.mxu0 0.0
        %1166 = vmatprep.subr.mxu0 0.0
        %1167 = vmatpush1.msra.mxu0 0.0
        %1168 = vmatprep.subr.mxu0 0.0
        %1169 = vmatpush1.msra.mxu0 0.0
        %1170 = vmatprep.subr.mxu0 0.0
        %1171 = vmatpush1.msra.mxu0 0.0
        %1172 = vmatprep.subr.mxu0 0.0
        %1173 = vmatpush1.msra.mxu0 0.0
        %1174 = vmatprep.subr.mxu0 0.0
        %1175 = vmatpush1.msra.mxu0 0.0
        %1176 = vmatprep.subr.mxu0 0.0
        %1177 = vmatpush1.msra.mxu0 0.0
        %1178 = vmatprep.subr.mxu0 0.0
        %1179 = vmatpush1.msra.mxu0 0.0
        %1180 = vmatprep.subr.mxu0 0.0
        %1181 = vmatpush1.msra.mxu0 0.0
        %1182 = vmatprep.subr.mxu0 0.0
        %1183 = vmatpush1.msra.mxu0 0.0
        %1184 = vmatprep.subr.mxu0 0.0
        %1185 = vmatpush1.msra.mxu0 0.0
        %1186 = vmatprep.subr.mxu0 0.0
        %1187 = vmatpush1.msra.mxu0 0.0
        %1188 = vmatprep.subr.mxu0 0.0
        %1189 = vmatpush1.msra.mxu0 0.0
        %1190 = vmatprep.subr.mxu0 0.0
        %1191 = vmatpush1.msra.mxu0 0.0
        %1192 = vmatprep.subr.mxu0 0.0
        %1193 = vmatpush1.msra.mxu0 0.0
        %1194 = vmatprep.subr.mxu0 0.0
        %1195 = vmatpush1.msra.mxu0 0.0
        %1196 = vmatprep.subr.mxu0 0.0
        %1197 = vmatpush1.msra.mxu0 0.0
        %1198 = vmatprep.subr.mxu0 0.0
        %1199 = vmatpush1.msra.mxu0 0.0
        %1200 = vmatprep.subr.mxu0 0.0
        %1201 = vmatpush1.msra.mxu0 0.0
        %1202 = vmatprep.subr.mxu0 0.0
        %1203 = vmatpush1.msra.mxu0 0.0
        %1204 = vmatprep.subr.mxu0 0.0
        %1205 = vmatpush1.msra.mxu0 0.0
        %1206 = vmatprep.subr.mxu0 0.0
        %1207 = vmatpush1.msra.mxu0 0.0
        %1208 = vmatprep.subr.mxu0 0.0
        %1209 = vmatpush1.msra.mxu0 0.0
        %1210 = vmatprep.mubr.f32.mxu0 0.0
        %1211 = vmatmul.mubr.f32.gmra.mrb[0].mxu0 %v1144
        %v1212 = vpop.f32.mrb[0].mxu0
        %v1213 = vadd.f32 0.0, %v1212
        %v1214 = vpop.f32.mrb[0].mxu0
        %1215 = vdwg.mxu0
        %v1217 = vsel %vm378, %v1140, 0
        %1219 = vmatprep.subr.mxu0 0.0
        %1220 = vmatpush1.msra.mxu0 %v356
        %1221 = vmatprep.subr.mxu0 0.0
        %1222 = vmatpush1.msra.mxu0 %v357
        %1223 = vmatprep.subr.mxu0 0.0
        %1224 = vmatpush1.msra.mxu0 %v358
        %1225 = vmatprep.subr.mxu0 0.0
        %1226 = vmatpush1.msra.mxu0 %v359
        %1227 = vmatprep.subr.mxu0 0.0
        %1228 = vmatpush1.msra.mxu0 0.0
        %1229 = vmatprep.subr.mxu0 0.0
        %1230 = vmatpush1.msra.mxu0 0.0
        %1231 = vmatprep.subr.mxu0 0.0
        %1232 = vmatpush1.msra.mxu0 0.0
        %1233 = vmatprep.subr.mxu0 0.0
        %1234 = vmatpush1.msra.mxu0 0.0
        %1235 = vmatprep.subr.mxu0 0.0
        %1236 = vmatpush1.msra.mxu0 0.0
        %1237 = vmatprep.subr.mxu0 0.0
        %1238 = vmatpush1.msra.mxu0 0.0
        %1239 = vmatprep.subr.mxu0 0.0
        %1240 = vmatpush1.msra.mxu0 0.0
        %1241 = vmatprep.subr.mxu0 0.0
        %1242 = vmatpush1.msra.mxu0 0.0
        %1243 = vmatprep.subr.mxu0 0.0
        %1244 = vmatpush1.msra.mxu0 0.0
        %1245 = vmatprep.subr.mxu0 0.0
        %1246 = vmatpush1.msra.mxu0 0.0
        %1247 = vmatprep.subr.mxu0 0.0
        %1248 = vmatpush1.msra.mxu0 0.0
        %1249 = vmatprep.subr.mxu0 0.0
        %1250 = vmatpush1.msra.mxu0 0.0
        %1251 = vmatprep.subr.mxu0 0.0
        %1252 = vmatpush1.msra.mxu0 0.0
        %1253 = vmatprep.subr.mxu0 0.0
        %1254 = vmatpush1.msra.mxu0 0.0
        %1255 = vmatprep.subr.mxu0 0.0
        %1256 = vmatpush1.msra.mxu0 0.0
        %1257 = vmatprep.subr.mxu0 0.0
        %1258 = vmatpush1.msra.mxu0 0.0
        %1259 = vmatprep.subr.mxu0 0.0
        %1260 = vmatpush1.msra.mxu0 0.0
        %1261 = vmatprep.subr.mxu0 0.0
        %1262 = vmatpush1.msra.mxu0 0.0
        %1263 = vmatprep.subr.mxu0 0.0
        %1264 = vmatpush1.msra.mxu0 0.0
        %1265 = vmatprep.subr.mxu0 0.0
        %1266 = vmatpush1.msra.mxu0 0.0
        %1267 = vmatprep.subr.mxu0 0.0
        %1268 = vmatpush1.msra.mxu0 0.0
        %1269 = vmatprep.subr.mxu0 0.0
        %1270 = vmatpush1.msra.mxu0 0.0
        %1271 = vmatprep.subr.mxu0 0.0
        %1272 = vmatpush1.msra.mxu0 0.0
        %1273 = vmatprep.subr.mxu0 0.0
        %1274 = vmatpush1.msra.mxu0 0.0
        %1275 = vmatprep.subr.mxu0 0.0
        %1276 = vmatpush1.msra.mxu0 0.0
        %1277 = vmatprep.subr.mxu0 0.0
        %1278 = vmatpush1.msra.mxu0 0.0
        %1279 = vmatprep.subr.mxu0 0.0
        %1280 = vmatpush1.msra.mxu0 0.0
        %1281 = vmatprep.subr.mxu0 0.0
        %1282 = vmatpush1.msra.mxu0 0.0
        %1283 = vmatprep.mubr.f32.mxu0 0.0
        %1284 = vmatmul.mubr.f32.gmra.mrb[0].mxu0 %v1217
        %v1285 = vpop.f32.mrb[0].mxu0
        %v1286 = vadd.f32 %v1213, %v1285
        %v1287 = vpop.f32.mrb[0].mxu0
        %1288 = vdwg.mxu0
        %v1289 = vadd.f32 %v1286, %v373
        %s1290 = scalar_lea.vmem [#allocation2], 10
        %1291 = vst [vmem:[%s1290] sm:$0x3] %v1289
        %s1292 = scalar_lea.vmem %s0, 12
        %v1293 = vld [vmem:[%s1292] sm:$0x3]
        %s1294 = scalar_lea.vmem %s0, 28
        %v1295 = vld [vmem:[%s1294] sm:$0x3]
        %v1297 = vsel %vm378, %v1295, 0
        %1299 = vmatprep.subr.mxu0 0.0
        %1300 = vmatpush1.msra.mxu0 %v360
        %1301 = vmatprep.subr.mxu0 0.0
        %1302 = vmatpush1.msra.mxu0 %v361
        %1303 = vmatprep.subr.mxu0 0.0
        %1304 = vmatpush1.msra.mxu0 %v362
        %1305 = vmatprep.subr.mxu0 0.0
        %1306 = vmatpush1.msra.mxu0 %v363
        %1307 = vmatprep.subr.mxu0 0.0
        %1308 = vmatpush1.msra.mxu0 0.0
        %1309 = vmatprep.subr.mxu0 0.0
        %1310 = vmatpush1.msra.mxu0 0.0
        %1311 = vmatprep.subr.mxu0 0.0
        %1312 = vmatpush1.msra.mxu0 0.0
        %1313 = vmatprep.subr.mxu0 0.0
        %1314 = vmatpush1.msra.mxu0 0.0
        %1315 = vmatprep.subr.mxu0 0.0
        %1316 = vmatpush1.msra.mxu0 0.0
        %1317 = vmatprep.subr.mxu0 0.0
        %1318 = vmatpush1.msra.mxu0 0.0
        %1319 = vmatprep.subr.mxu0 0.0
        %1320 = vmatpush1.msra.mxu0 0.0
        %1321 = vmatprep.subr.mxu0 0.0
        %1322 = vmatpush1.msra.mxu0 0.0
        %1323 = vmatprep.subr.mxu0 0.0
        %1324 = vmatpush1.msra.mxu0 0.0
        %1325 = vmatprep.subr.mxu0 0.0
        %1326 = vmatpush1.msra.mxu0 0.0
        %1327 = vmatprep.subr.mxu0 0.0
        %1328 = vmatpush1.msra.mxu0 0.0
        %1329 = vmatprep.subr.mxu0 0.0
        %1330 = vmatpush1.msra.mxu0 0.0
        %1331 = vmatprep.subr.mxu0 0.0
        %1332 = vmatpush1.msra.mxu0 0.0
        %1333 = vmatprep.subr.mxu0 0.0
        %1334 = vmatpush1.msra.mxu0 0.0
        %1335 = vmatprep.subr.mxu0 0.0
        %1336 = vmatpush1.msra.mxu0 0.0
        %1337 = vmatprep.subr.mxu0 0.0
        %1338 = vmatpush1.msra.mxu0 0.0
        %1339 = vmatprep.subr.mxu0 0.0
        %1340 = vmatpush1.msra.mxu0 0.0
        %1341 = vmatprep.subr.mxu0 0.0
        %1342 = vmatpush1.msra.mxu0 0.0
        %1343 = vmatprep.subr.mxu0 0.0
        %1344 = vmatpush1.msra.mxu0 0.0
        %1345 = vmatprep.subr.mxu0 0.0
        %1346 = vmatpush1.msra.mxu0 0.0
        %1347 = vmatprep.subr.mxu0 0.0
        %1348 = vmatpush1.msra.mxu0 0.0
        %1349 = vmatprep.subr.mxu0 0.0
        %1350 = vmatpush1.msra.mxu0 0.0
        %1351 = vmatprep.subr.mxu0 0.0
        %1352 = vmatpush1.msra.mxu0 0.0
        %1353 = vmatprep.subr.mxu0 0.0
        %1354 = vmatpush1.msra.mxu0 0.0
        %1355 = vmatprep.subr.mxu0 0.0
        %1356 = vmatpush1.msra.mxu0 0.0
        %1357 = vmatprep.subr.mxu0 0.0
        %1358 = vmatpush1.msra.mxu0 0.0
        %1359 = vmatprep.subr.mxu0 0.0
        %1360 = vmatpush1.msra.mxu0 0.0
        %1361 = vmatprep.subr.mxu0 0.0
        %1362 = vmatpush1.msra.mxu0 0.0
        %1363 = vmatprep.mubr.f32.mxu0 0.0
        %1364 = vmatmul.mubr.f32.gmra.mrb[0].mxu0 %v1297
        %v1365 = vpop.f32.mrb[0].mxu0
        %v1366 = vadd.f32 0.0, %v1365
        %v1367 = vpop.f32.mrb[0].mxu0
        %1368 = vdwg.mxu0
        %v1370 = vsel %vm378, %v1293, 0
        %1372 = vmatprep.subr.mxu0 0.0
        %1373 = vmatpush1.msra.mxu0 %v356
        %1374 = vmatprep.subr.mxu0 0.0
        %1375 = vmatpush1.msra.mxu0 %v357
        %1376 = vmatprep.subr.mxu0 0.0
        %1377 = vmatpush1.msra.mxu0 %v358
        %1378 = vmatprep.subr.mxu0 0.0
        %1379 = vmatpush1.msra.mxu0 %v359
        %1380 = vmatprep.subr.mxu0 0.0
        %1381 = vmatpush1.msra.mxu0 0.0
        %1382 = vmatprep.subr.mxu0 0.0
        %1383 = vmatpush1.msra.mxu0 0.0
        %1384 = vmatprep.subr.mxu0 0.0
        %1385 = vmatpush1.msra.mxu0 0.0
        %1386 = vmatprep.subr.mxu0 0.0
        %1387 = vmatpush1.msra.mxu0 0.0
        %1388 = vmatprep.subr.mxu0 0.0
        %1389 = vmatpush1.msra.mxu0 0.0
        %1390 = vmatprep.subr.mxu0 0.0
        %1391 = vmatpush1.msra.mxu0 0.0
        %1392 = vmatprep.subr.mxu0 0.0
        %1393 = vmatpush1.msra.mxu0 0.0
        %1394 = vmatprep.subr.mxu0 0.0
        %1395 = vmatpush1.msra.mxu0 0.0
        %1396 = vmatprep.subr.mxu0 0.0
        %1397 = vmatpush1.msra.mxu0 0.0
        %1398 = vmatprep.subr.mxu0 0.0
        %1399 = vmatpush1.msra.mxu0 0.0
        %1400 = vmatprep.subr.mxu0 0.0
        %1401 = vmatpush1.msra.mxu0 0.0
        %1402 = vmatprep.subr.mxu0 0.0
        %1403 = vmatpush1.msra.mxu0 0.0
        %1404 = vmatprep.subr.mxu0 0.0
        %1405 = vmatpush1.msra.mxu0 0.0
        %1406 = vmatprep.subr.mxu0 0.0
        %1407 = vmatpush1.msra.mxu0 0.0
        %1408 = vmatprep.subr.mxu0 0.0
        %1409 = vmatpush1.msra.mxu0 0.0
        %1410 = vmatprep.subr.mxu0 0.0
        %1411 = vmatpush1.msra.mxu0 0.0
        %1412 = vmatprep.subr.mxu0 0.0
        %1413 = vmatpush1.msra.mxu0 0.0
        %1414 = vmatprep.subr.mxu0 0.0
        %1415 = vmatpush1.msra.mxu0 0.0
        %1416 = vmatprep.subr.mxu0 0.0
        %1417 = vmatpush1.msra.mxu0 0.0
        %1418 = vmatprep.subr.mxu0 0.0
        %1419 = vmatpush1.msra.mxu0 0.0
        %1420 = vmatprep.subr.mxu0 0.0
        %1421 = vmatpush1.msra.mxu0 0.0
        %1422 = vmatprep.subr.mxu0 0.0
        %1423 = vmatpush1.msra.mxu0 0.0
        %1424 = vmatprep.subr.mxu0 0.0
        %1425 = vmatpush1.msra.mxu0 0.0
        %1426 = vmatprep.subr.mxu0 0.0
        %1427 = vmatpush1.msra.mxu0 0.0
        %1428 = vmatprep.subr.mxu0 0.0
        %1429 = vmatpush1.msra.mxu0 0.0
        %1430 = vmatprep.subr.mxu0 0.0
        %1431 = vmatpush1.msra.mxu0 0.0
        %1432 = vmatprep.subr.mxu0 0.0
        %1433 = vmatpush1.msra.mxu0 0.0
        %1434 = vmatprep.subr.mxu0 0.0
        %1435 = vmatpush1.msra.mxu0 0.0
        %1436 = vmatprep.mubr.f32.mxu0 0.0
        %1437 = vmatmul.mubr.f32.gmra.mrb[0].mxu0 %v1370
        %v1438 = vpop.f32.mrb[0].mxu0
        %v1439 = vadd.f32 %v1366, %v1438
        %v1440 = vpop.f32.mrb[0].mxu0
        %1441 = vdwg.mxu0
        %v1442 = vadd.f32 %v1439, %v373
        %s1443 = scalar_lea.vmem [#allocation2], 12
        %1444 = vst [vmem:[%s1443] sm:$0x3] %v1442
        %s1445 = scalar_lea.vmem %s0, 14
        %v1446 = vld [vmem:[%s1445] sm:$0x3]
        %s1447 = scalar_lea.vmem %s0, 30
        %v1448 = vld [vmem:[%s1447] sm:$0x3]
        %v1450 = vsel %vm378, %v1448, 0
        %1452 = vmatprep.subr.mxu0 0.0
        %1453 = vmatpush1.msra.mxu0 %v360
        %1454 = vmatprep.subr.mxu0 0.0
        %1455 = vmatpush1.msra.mxu0 %v361
        %1456 = vmatprep.subr.mxu0 0.0
        %1457 = vmatpush1.msra.mxu0 %v362
        %1458 = vmatprep.subr.mxu0 0.0
        %1459 = vmatpush1.msra.mxu0 %v363
        %1460 = vmatprep.subr.mxu0 0.0
        %1461 = vmatpush1.msra.mxu0 0.0
        %1462 = vmatprep.subr.mxu0 0.0
        %1463 = vmatpush1.msra.mxu0 0.0
        %1464 = vmatprep.subr.mxu0 0.0
        %1465 = vmatpush1.msra.mxu0 0.0
        %1466 = vmatprep.subr.mxu0 0.0
        %1467 = vmatpush1.msra.mxu0 0.0
        %1468 = vmatprep.subr.mxu0 0.0
        %1469 = vmatpush1.msra.mxu0 0.0
        %1470 = vmatprep.subr.mxu0 0.0
        %1471 = vmatpush1.msra.mxu0 0.0
        %1472 = vmatprep.subr.mxu0 0.0
        %1473 = vmatpush1.msra.mxu0 0.0
        %1474 = vmatprep.subr.mxu0 0.0
        %1475 = vmatpush1.msra.mxu0 0.0
        %1476 = vmatprep.subr.mxu0 0.0
        %1477 = vmatpush1.msra.mxu0 0.0
        %1478 = vmatprep.subr.mxu0 0.0
        %1479 = vmatpush1.msra.mxu0 0.0
        %1480 = vmatprep.subr.mxu0 0.0
        %1481 = vmatpush1.msra.mxu0 0.0
        %1482 = vmatprep.subr.mxu0 0.0
        %1483 = vmatpush1.msra.mxu0 0.0
        %1484 = vmatprep.subr.mxu0 0.0
        %1485 = vmatpush1.msra.mxu0 0.0
        %1486 = vmatprep.subr.mxu0 0.0
        %1487 = vmatpush1.msra.mxu0 0.0
        %1488 = vmatprep.subr.mxu0 0.0
        %1489 = vmatpush1.msra.mxu0 0.0
        %1490 = vmatprep.subr.mxu0 0.0
        %1491 = vmatpush1.msra.mxu0 0.0
        %1492 = vmatprep.subr.mxu0 0.0
        %1493 = vmatpush1.msra.mxu0 0.0
        %1494 = vmatprep.subr.mxu0 0.0
        %1495 = vmatpush1.msra.mxu0 0.0
        %1496 = vmatprep.subr.mxu0 0.0
        %1497 = vmatpush1.msra.mxu0 0.0
        %1498 = vmatprep.subr.mxu0 0.0
        %1499 = vmatpush1.msra.mxu0 0.0
        %1500 = vmatprep.subr.mxu0 0.0
        %1501 = vmatpush1.msra.mxu0 0.0
        %1502 = vmatprep.subr.mxu0 0.0
        %1503 = vmatpush1.msra.mxu0 0.0
        %1504 = vmatprep.subr.mxu0 0.0
        %1505 = vmatpush1.msra.mxu0 0.0
        %1506 = vmatprep.subr.mxu0 0.0
        %1507 = vmatpush1.msra.mxu0 0.0
        %1508 = vmatprep.subr.mxu0 0.0
        %1509 = vmatpush1.msra.mxu0 0.0
        %1510 = vmatprep.subr.mxu0 0.0
        %1511 = vmatpush1.msra.mxu0 0.0
        %1512 = vmatprep.subr.mxu0 0.0
        %1513 = vmatpush1.msra.mxu0 0.0
        %1514 = vmatprep.subr.mxu0 0.0
        %1515 = vmatpush1.msra.mxu0 0.0
        %1516 = vmatprep.mubr.f32.mxu0 0.0
        %1517 = vmatmul.mubr.f32.gmra.mrb[0].mxu0 %v1450
        %v1518 = vpop.f32.mrb[0].mxu0
        %v1519 = vadd.f32 0.0, %v1518
        %v1520 = vpop.f32.mrb[0].mxu0
        %1521 = vdwg.mxu0
        %v1523 = vsel %vm378, %v1446, 0
        %1525 = vmatprep.subr.mxu0 0.0
        %1526 = vmatpush1.msra.mxu0 %v356
        %1527 = vmatprep.subr.mxu0 0.0
        %1528 = vmatpush1.msra.mxu0 %v357
        %1529 = vmatprep.subr.mxu0 0.0
        %1530 = vmatpush1.msra.mxu0 %v358
        %1531 = vmatprep.subr.mxu0 0.0
        %1532 = vmatpush1.msra.mxu0 %v359
        %1533 = vmatprep.subr.mxu0 0.0
        %1534 = vmatpush1.msra.mxu0 0.0
        %1535 = vmatprep.subr.mxu0 0.0
        %1536 = vmatpush1.msra.mxu0 0.0
        %1537 = vmatprep.subr.mxu0 0.0
        %1538 = vmatpush1.msra.mxu0 0.0
        %1539 = vmatprep.subr.mxu0 0.0
        %1540 = vmatpush1.msra.mxu0 0.0
        %1541 = vmatprep.subr.mxu0 0.0
        %1542 = vmatpush1.msra.mxu0 0.0
        %1543 = vmatprep.subr.mxu0 0.0
        %1544 = vmatpush1.msra.mxu0 0.0
        %1545 = vmatprep.subr.mxu0 0.0
        %1546 = vmatpush1.msra.mxu0 0.0
        %1547 = vmatprep.subr.mxu0 0.0
        %1548 = vmatpush1.msra.mxu0 0.0
        %1549 = vmatprep.subr.mxu0 0.0
        %1550 = vmatpush1.msra.mxu0 0.0
        %1551 = vmatprep.subr.mxu0 0.0
        %1552 = vmatpush1.msra.mxu0 0.0
        %1553 = vmatprep.subr.mxu0 0.0
        %1554 = vmatpush1.msra.mxu0 0.0
        %1555 = vmatprep.subr.mxu0 0.0
        %1556 = vmatpush1.msra.mxu0 0.0
        %1557 = vmatprep.subr.mxu0 0.0
        %1558 = vmatpush1.msra.mxu0 0.0
        %1559 = vmatprep.subr.mxu0 0.0
        %1560 = vmatpush1.msra.mxu0 0.0
        %1561 = vmatprep.subr.mxu0 0.0
        %1562 = vmatpush1.msra.mxu0 0.0
        %1563 = vmatprep.subr.mxu0 0.0
        %1564 = vmatpush1.msra.mxu0 0.0
        %1565 = vmatprep.subr.mxu0 0.0
        %1566 = vmatpush1.msra.mxu0 0.0
        %1567 = vmatprep.subr.mxu0 0.0
        %1568 = vmatpush1.msra.mxu0 0.0
        %1569 = vmatprep.subr.mxu0 0.0
        %1570 = vmatpush1.msra.mxu0 0.0
        %1571 = vmatprep.subr.mxu0 0.0
        %1572 = vmatpush1.msra.mxu0 0.0
        %1573 = vmatprep.subr.mxu0 0.0
        %1574 = vmatpush1.msra.mxu0 0.0
        %1575 = vmatprep.subr.mxu0 0.0
        %1576 = vmatpush1.msra.mxu0 0.0
        %1577 = vmatprep.subr.mxu0 0.0
        %1578 = vmatpush1.msra.mxu0 0.0
        %1579 = vmatprep.subr.mxu0 0.0
        %1580 = vmatpush1.msra.mxu0 0.0
        %1581 = vmatprep.subr.mxu0 0.0
        %1582 = vmatpush1.msra.mxu0 0.0
        %1583 = vmatprep.subr.mxu0 0.0
        %1584 = vmatpush1.msra.mxu0 0.0
        %1585 = vmatprep.subr.mxu0 0.0
        %1586 = vmatpush1.msra.mxu0 0.0
        %1587 = vmatprep.subr.mxu0 0.0
        %1588 = vmatpush1.msra.mxu0 0.0
        %1589 = vmatprep.mubr.f32.mxu0 0.0
        %1590 = vmatmul.mubr.f32.gmra.mrb[0].mxu0 %v1523
        %v1591 = vpop.f32.mrb[0].mxu0
        %v1592 = vadd.f32 %v1519, %v1591
        %v1593 = vpop.f32.mrb[0].mxu0
        %1594 = vdwg.mxu0
        %v1595 = vadd.f32 %v1592, %v373
        %s1596 = scalar_lea.vmem [#allocation2], 14
        %1597 = vst [vmem:[%s1596] sm:$0x3] %v1595
        %vm1598 = vcmask 254976
        %1599 = vst.msk [vmem:[#allocation3] sm:$0x3] %vm1598, 0.0
        %1600 = vst.msk [vmem:[#allocation4] sm:$0x3] %vm1598, 0.0
        %p1601 = scmp.eq.s32.totalorder %s22, 0
        %s1602 = scalar_select %p1601, 0, 7
        %s1603 = smul.u32 %s1602, 2
        %s1604 = scalar_lea.vmem [#allocation2], %s1603
        %v1605 = vld [vmem:[%s1604] sm:$0x3]
        %v1606 = vld [vmem:[#allocation3] sm:$0x3]
        %v1608 = vsel %vm378, %v1606, 0
        %1610 = vmatprep.subr.mxu0 0.0
        %1611 = vmatpush1.msra.mxu0 %v364
        %1612 = vmatprep.subr.mxu0 0.0
        %1613 = vmatpush1.msra.mxu0 %v365
        %1614 = vmatprep.subr.mxu0 0.0
        %1615 = vmatpush1.msra.mxu0 %v366
        %1616 = vmatprep.subr.mxu0 0.0
        %1617 = vmatpush1.msra.mxu0 %v367
        %1618 = vmatprep.subr.mxu0 0.0
        %1619 = vmatpush1.msra.mxu0 0.0
        %1620 = vmatprep.subr.mxu0 0.0
        %1621 = vmatpush1.msra.mxu0 0.0
        %1622 = vmatprep.subr.mxu0 0.0
        %1623 = vmatpush1.msra.mxu0 0.0
        %1624 = vmatprep.subr.mxu0 0.0
        %1625 = vmatpush1.msra.mxu0 0.0
        %1626 = vmatprep.subr.mxu0 0.0
        %1627 = vmatpush1.msra.mxu0 0.0
        %1628 = vmatprep.subr.mxu0 0.0
        %1629 = vmatpush1.msra.mxu0 0.0
        %1630 = vmatprep.subr.mxu0 0.0
        %1631 = vmatpush1.msra.mxu0 0.0
        %1632 = vmatprep.subr.mxu0 0.0
        %1633 = vmatpush1.msra.mxu0 0.0
        %1634 = vmatprep.subr.mxu0 0.0
        %1635 = vmatpush1.msra.mxu0 0.0
        %1636 = vmatprep.subr.mxu0 0.0
        %1637 = vmatpush1.msra.mxu0 0.0
        %1638 = vmatprep.subr.mxu0 0.0
        %1639 = vmatpush1.msra.mxu0 0.0
        %1640 = vmatprep.subr.mxu0 0.0
        %1641 = vmatpush1.msra.mxu0 0.0
        %1642 = vmatprep.subr.mxu0 0.0
        %1643 = vmatpush1.msra.mxu0 0.0
        %1644 = vmatprep.subr.mxu0 0.0
        %1645 = vmatpush1.msra.mxu0 0.0
        %1646 = vmatprep.subr.mxu0 0.0
        %1647 = vmatpush1.msra.mxu0 0.0
        %1648 = vmatprep.subr.mxu0 0.0
        %1649 = vmatpush1.msra.mxu0 0.0
        %1650 = vmatprep.subr.mxu0 0.0
        %1651 = vmatpush1.msra.mxu0 0.0
        %1652 = vmatprep.subr.mxu0 0.0
        %1653 = vmatpush1.msra.mxu0 0.0
        %1654 = vmatprep.subr.mxu0 0.0
        %1655 = vmatpush1.msra.mxu0 0.0
        %1656 = vmatprep.subr.mxu0 0.0
        %1657 = vmatpush1.msra.mxu0 0.0
        %1658 = vmatprep.subr.mxu0 0.0
        %1659 = vmatpush1.msra.mxu0 0.0
        %1660 = vmatprep.subr.mxu0 0.0
        %1661 = vmatpush1.msra.mxu0 0.0
        %1662 = vmatprep.subr.mxu0 0.0
        %1663 = vmatpush1.msra.mxu0 0.0
        %1664 = vmatprep.subr.mxu0 0.0
        %1665 = vmatpush1.msra.mxu0 0.0
        %1666 = vmatprep.subr.mxu0 0.0
        %1667 = vmatpush1.msra.mxu0 0.0
        %1668 = vmatprep.subr.mxu0 0.0
        %1669 = vmatpush1.msra.mxu0 0.0
        %1670 = vmatprep.subr.mxu0 0.0
        %1671 = vmatpush1.msra.mxu0 0.0
        %1672 = vmatprep.subr.mxu0 0.0
        %1673 = vmatpush1.msra.mxu0 0.0
        %1674 = vmatprep.mubr.f32.mxu0 0.0
        %1675 = vmatmul.mubr.f32.gmra.mrb[0].mxu0 %v1608
        %v1676 = vpop.f32.mrb[0].mxu0
        %v1677 = vadd.f32 0.0, %v1676
        %v1678 = vpop.f32.mrb[0].mxu0
        %1679 = vdwg.mxu0
        %v1680 = vadd.f32 %v1605, %v1677
        %v1681 = vxor.u32 %v1680, 2147483648
        %v1682 = vmul.f32 %v1681, 1.442695
        %v1683 = vpow.pop %v1682
        %v1684 = vadd.f32 %v1683, 1.0
        %v1685 = vrcp.pop %v1684
        %v1686 = vmul.f32 1.0, %v1685
        %v1687 = vtanh.pop %v1680
        %v1688 = vld [vmem:[#allocation4] sm:$0x3]
        %1690 = vrot.lane.b32.xlu0 %v1688, 32
        %v1691 = vpop.permute.xlu0 %1690
        %v1693 = vmul.f32 %v1686, %v1691
        %1695 = vrot.lane.b32.xlu0 %v1687, 64
        %v1696 = vpop.permute.xlu0 %1695
        %v1698 = vmul.f32 %v1686, %v1696
        %1700 = vrot.lane.b32.xlu0 %v1698, 32
        %v1701 = vpop.permute.xlu0 %1700
        %v1703 = vadd.f32 %v1693, %v1701
        %v1704 = vtanh.pop %v1703
        %1706 = vrot.lane.b32.xlu0 %v1704, 64
        %v1707 = vpop.permute.xlu0 %1706
        %v1709 = vmul.f32 %v1686, %v1707
        %1711 = vrot.lane.b32.xlu0 %v1703, 96
        %v1712 = vpop.permute.xlu0 %1711
        %1714 = vst.msk [vmem:[#allocation4] sm:$0x3] %vm1598, %v1712
        %1716 = vrot.lane.b32.xlu0 %v1709, 32
        %v1717 = vpop.permute.xlu0 %1716
        %1719 = vst.msk [vmem:[#allocation3] sm:$0x3] %vm1598, %v1717
        %s1720 = scalar_lea.vmem %s324, %s1603 [#allocation5]
        %1721 = vst.msk [vmem:[%s1720] sm:$0x3] %vm1598, %v1717
        %s1722 = scalar_select %p1601, 1, 6
        %s1723 = smul.u32 %s1722, 2
        %s1724 = scalar_lea.vmem [#allocation2], %s1723
        %v1725 = vld [vmem:[%s1724] sm:$0x3]
        %v1726 = vld [vmem:[#allocation3] sm:$0x3]
        %v1728 = vsel %vm378, %v1726, 0
        %1730 = vmatprep.subr.mxu0 0.0
        %1731 = vmatpush1.msra.mxu0 %v364
        %1732 = vmatprep.subr.mxu0 0.0
        %1733 = vmatpush1.msra.mxu0 %v365
        %1734 = vmatprep.subr.mxu0 0.0
        %1735 = vmatpush1.msra.mxu0 %v366
        %1736 = vmatprep.subr.mxu0 0.0
        %1737 = vmatpush1.msra.mxu0 %v367
        %1738 = vmatprep.subr.mxu0 0.0
        %1739 = vmatpush1.msra.mxu0 0.0
        %1740 = vmatprep.subr.mxu0 0.0
        %1741 = vmatpush1.msra.mxu0 0.0
        %1742 = vmatprep.subr.mxu0 0.0
        %1743 = vmatpush1.msra.mxu0 0.0
        %1744 = vmatprep.subr.mxu0 0.0
        %1745 = vmatpush1.msra.mxu0 0.0
        %1746 = vmatprep.subr.mxu0 0.0
        %1747 = vmatpush1.msra.mxu0 0.0
        %1748 = vmatprep.subr.mxu0 0.0
        %1749 = vmatpush1.msra.mxu0 0.0
        %1750 = vmatprep.subr.mxu0 0.0
        %1751 = vmatpush1.msra.mxu0 0.0
        %1752 = vmatprep.subr.mxu0 0.0
        %1753 = vmatpush1.msra.mxu0 0.0
        %1754 = vmatprep.subr.mxu0 0.0
        %1755 = vmatpush1.msra.mxu0 0.0
        %1756 = vmatprep.subr.mxu0 0.0
        %1757 = vmatpush1.msra.mxu0 0.0
        %1758 = vmatprep.subr.mxu0 0.0
        %1759 = vmatpush1.msra.mxu0 0.0
        %1760 = vmatprep.subr.mxu0 0.0
        %1761 = vmatpush1.msra.mxu0 0.0
        %1762 = vmatprep.subr.mxu0 0.0
        %1763 = vmatpush1.msra.mxu0 0.0
        %1764 = vmatprep.subr.mxu0 0.0
        %1765 = vmatpush1.msra.mxu0 0.0
        %1766 = vmatprep.subr.mxu0 0.0
        %1767 = vmatpush1.msra.mxu0 0.0
        %1768 = vmatprep.subr.mxu0 0.0
        %1769 = vmatpush1.msra.mxu0 0.0
        %1770 = vmatprep.subr.mxu0 0.0
        %1771 = vmatpush1.msra.mxu0 0.0
        %1772 = vmatprep.subr.mxu0 0.0
        %1773 = vmatpush1.msra.mxu0 0.0
        %1774 = vmatprep.subr.mxu0 0.0
        %1775 = vmatpush1.msra.mxu0 0.0
        %1776 = vmatprep.subr.mxu0 0.0
        %1777 = vmatpush1.msra.mxu0 0.0
        %1778 = vmatprep.subr.mxu0 0.0
        %1779 = vmatpush1.msra.mxu0 0.0
        %1780 = vmatprep.subr.mxu0 0.0
        %1781 = vmatpush1.msra.mxu0 0.0
        %1782 = vmatprep.subr.mxu0 0.0
        %1783 = vmatpush1.msra.mxu0 0.0
        %1784 = vmatprep.subr.mxu0 0.0
        %1785 = vmatpush1.msra.mxu0 0.0
        %1786 = vmatprep.subr.mxu0 0.0
        %1787 = vmatpush1.msra.mxu0 0.0
        %1788 = vmatprep.subr.mxu0 0.0
        %1789 = vmatpush1.msra.mxu0 0.0
        %1790 = vmatprep.subr.mxu0 0.0
        %1791 = vmatpush1.msra.mxu0 0.0
        %1792 = vmatprep.subr.mxu0 0.0
        %1793 = vmatpush1.msra.mxu0 0.0
        %1794 = vmatprep.mubr.f32.mxu0 0.0
        %1795 = vmatmul.mubr.f32.gmra.mrb[0].mxu0 %v1728
        %v1796 = vpop.f32.mrb[0].mxu0
        %v1797 = vadd.f32 0.0, %v1796
        %v1798 = vpop.f32.mrb[0].mxu0
        %1799 = vdwg.mxu0
        %v1800 = vadd.f32 %v1725, %v1797
        %v1801 = vxor.u32 %v1800, 2147483648
        %v1802 = vmul.f32 %v1801, 1.442695
        %v1803 = vpow.pop %v1802
        %v1804 = vadd.f32 %v1803, 1.0
        %v1805 = vrcp.pop %v1804
        %v1806 = vmul.f32 1.0, %v1805
        %v1807 = vtanh.pop %v1800
        %v1808 = vld [vmem:[#allocation4] sm:$0x3]
        %1810 = vrot.lane.b32.xlu0 %v1808, 32
        %v1811 = vpop.permute.xlu0 %1810
        %v1813 = vmul.f32 %v1806, %v1811
        %1815 = vrot.lane.b32.xlu0 %v1807, 64
        %v1816 = vpop.permute.xlu0 %1815
        %v1818 = vmul.f32 %v1806, %v1816
        %1820 = vrot.lane.b32.xlu0 %v1818, 32
        %v1821 = vpop.permute.xlu0 %1820
        %v1823 = vadd.f32 %v1813, %v1821
        %v1824 = vtanh.pop %v1823
        %1826 = vrot.lane.b32.xlu0 %v1824, 64
        %v1827 = vpop.permute.xlu0 %1826
        %v1829 = vmul.f32 %v1806, %v1827
        %1831 = vrot.lane.b32.xlu0 %v1823, 96
        %v1832 = vpop.permute.xlu0 %1831
        %1834 = vst.msk [vmem:[#allocation4] sm:$0x3] %vm1598, %v1832
        %1836 = vrot.lane.b32.xlu0 %v1829, 32
        %v1837 = vpop.permute.xlu0 %1836
        %1839 = vst.msk [vmem:[#allocation3] sm:$0x3] %vm1598, %v1837
        %s1840 = scalar_lea.vmem %s324, %s1723 [#allocation5]
        %1841 = vst.msk [vmem:[%s1840] sm:$0x3] %vm1598, %v1837
        %s1842 = scalar_select %p1601, 2, 5
        %s1843 = smul.u32 %s1842, 2
        %s1844 = scalar_lea.vmem [#allocation2], %s1843
        %v1845 = vld [vmem:[%s1844] sm:$0x3]
        %v1846 = vld [vmem:[#allocation3] sm:$0x3]
        %v1848 = vsel %vm378, %v1846, 0
        %1850 = vmatprep.subr.mxu0 0.0
        %1851 = vmatpush1.msra.mxu0 %v364
        %1852 = vmatprep.subr.mxu0 0.0
        %1853 = vmatpush1.msra.mxu0 %v365
        %1854 = vmatprep.subr.mxu0 0.0
        %1855 = vmatpush1.msra.mxu0 %v366
        %1856 = vmatprep.subr.mxu0 0.0
        %1857 = vmatpush1.msra.mxu0 %v367
        %1858 = vmatprep.subr.mxu0 0.0
        %1859 = vmatpush1.msra.mxu0 0.0
        %1860 = vmatprep.subr.mxu0 0.0
        %1861 = vmatpush1.msra.mxu0 0.0
        %1862 = vmatprep.subr.mxu0 0.0
        %1863 = vmatpush1.msra.mxu0 0.0
        %1864 = vmatprep.subr.mxu0 0.0
        %1865 = vmatpush1.msra.mxu0 0.0
        %1866 = vmatprep.subr.mxu0 0.0
        %1867 = vmatpush1.msra.mxu0 0.0
        %1868 = vmatprep.subr.mxu0 0.0
        %1869 = vmatpush1.msra.mxu0 0.0
        %1870 = vmatprep.subr.mxu0 0.0
        %1871 = vmatpush1.msra.mxu0 0.0
        %1872 = vmatprep.subr.mxu0 0.0
        %1873 = vmatpush1.msra.mxu0 0.0
        %1874 = vmatprep.subr.mxu0 0.0
        %1875 = vmatpush1.msra.mxu0 0.0
        %1876 = vmatprep.subr.mxu0 0.0
        %1877 = vmatpush1.msra.mxu0 0.0
        %1878 = vmatprep.subr.mxu0 0.0
        %1879 = vmatpush1.msra.mxu0 0.0
        %1880 = vmatprep.subr.mxu0 0.0
        %1881 = vmatpush1.msra.mxu0 0.0
        %1882 = vmatprep.subr.mxu0 0.0
        %1883 = vmatpush1.msra.mxu0 0.0
        %1884 = vmatprep.subr.mxu0 0.0
        %1885 = vmatpush1.msra.mxu0 0.0
        %1886 = vmatprep.subr.mxu0 0.0
        %1887 = vmatpush1.msra.mxu0 0.0
        %1888 = vmatprep.subr.mxu0 0.0
        %1889 = vmatpush1.msra.mxu0 0.0
        %1890 = vmatprep.subr.mxu0 0.0
        %1891 = vmatpush1.msra.mxu0 0.0
        %1892 = vmatprep.subr.mxu0 0.0
        %1893 = vmatpush1.msra.mxu0 0.0
        %1894 = vmatprep.subr.mxu0 0.0
        %1895 = vmatpush1.msra.mxu0 0.0
        %1896 = vmatprep.subr.mxu0 0.0
        %1897 = vmatpush1.msra.mxu0 0.0
        %1898 = vmatprep.subr.mxu0 0.0
        %1899 = vmatpush1.msra.mxu0 0.0
        %1900 = vmatprep.subr.mxu0 0.0
        %1901 = vmatpush1.msra.mxu0 0.0
        %1902 = vmatprep.subr.mxu0 0.0
        %1903 = vmatpush1.msra.mxu0 0.0
        %1904 = vmatprep.subr.mxu0 0.0
        %1905 = vmatpush1.msra.mxu0 0.0
        %1906 = vmatprep.subr.mxu0 0.0
        %1907 = vmatpush1.msra.mxu0 0.0
        %1908 = vmatprep.subr.mxu0 0.0
        %1909 = vmatpush1.msra.mxu0 0.0
        %1910 = vmatprep.subr.mxu0 0.0
        %1911 = vmatpush1.msra.mxu0 0.0
        %1912 = vmatprep.subr.mxu0 0.0
        %1913 = vmatpush1.msra.mxu0 0.0
        %1914 = vmatprep.mubr.f32.mxu0 0.0
        %1915 = vmatmul.mubr.f32.gmra.mrb[0].mxu0 %v1848
        %v1916 = vpop.f32.mrb[0].mxu0
        %v1917 = vadd.f32 0.0, %v1916
        %v1918 = vpop.f32.mrb[0].mxu0
        %1919 = vdwg.mxu0
        %v1920 = vadd.f32 %v1845, %v1917
        %v1921 = vxor.u32 %v1920, 2147483648
        %v1922 = vmul.f32 %v1921, 1.442695
        %v1923 = vpow.pop %v1922
        %v1924 = vadd.f32 %v1923, 1.0
        %v1925 = vrcp.pop %v1924
        %v1926 = vmul.f32 1.0, %v1925
        %v1927 = vtanh.pop %v1920
        %v1928 = vld [vmem:[#allocation4] sm:$0x3]
        %1930 = vrot.lane.b32.xlu0 %v1928, 32
        %v1931 = vpop.permute.xlu0 %1930
        %v1933 = vmul.f32 %v1926, %v1931
        %1935 = vrot.lane.b32.xlu0 %v1927, 64
        %v1936 = vpop.permute.xlu0 %1935
        %v1938 = vmul.f32 %v1926, %v1936
        %1940 = vrot.lane.b32.xlu0 %v1938, 32
        %v1941 = vpop.permute.xlu0 %1940
        %v1943 = vadd.f32 %v1933, %v1941
        %v1944 = vtanh.pop %v1943
        %1946 = vrot.lane.b32.xlu0 %v1944, 64
        %v1947 = vpop.permute.xlu0 %1946
        %v1949 = vmul.f32 %v1926, %v1947
        %1951 = vrot.lane.b32.xlu0 %v1943, 96
        %v1952 = vpop.permute.xlu0 %1951
        %1954 = vst.msk [vmem:[#allocation4] sm:$0x3] %vm1598, %v1952
        %1956 = vrot.lane.b32.xlu0 %v1949, 32
        %v1957 = vpop.permute.xlu0 %1956
        %1959 = vst.msk [vmem:[#allocation3] sm:$0x3] %vm1598, %v1957
        %s1960 = scalar_lea.vmem %s324, %s1843 [#allocation5]
        %1961 = vst.msk [vmem:[%s1960] sm:$0x3] %vm1598, %v1957
        %s1962 = scalar_select %p1601, 3, 4
        %s1963 = smul.u32 %s1962, 2
        %s1964 = scalar_lea.vmem [#allocation2], %s1963
        %v1965 = vld [vmem:[%s1964] sm:$0x3]
        %v1966 = vld [vmem:[#allocation3] sm:$0x3]
        %v1968 = vsel %vm378, %v1966, 0
        %1970 = vmatprep.subr.mxu0 0.0
        %1971 = vmatpush1.msra.mxu0 %v364
        %1972 = vmatprep.subr.mxu0 0.0
        %1973 = vmatpush1.msra.mxu0 %v365
        %1974 = vmatprep.subr.mxu0 0.0
        %1975 = vmatpush1.msra.mxu0 %v366
        %1976 = vmatprep.subr.mxu0 0.0
        %1977 = vmatpush1.msra.mxu0 %v367
        %1978 = vmatprep.subr.mxu0 0.0
        %1979 = vmatpush1.msra.mxu0 0.0
        %1980 = vmatprep.subr.mxu0 0.0
        %1981 = vmatpush1.msra.mxu0 0.0
        %1982 = vmatprep.subr.mxu0 0.0
        %1983 = vmatpush1.msra.mxu0 0.0
        %1984 = vmatprep.subr.mxu0 0.0
        %1985 = vmatpush1.msra.mxu0 0.0
        %1986 = vmatprep.subr.mxu0 0.0
        %1987 = vmatpush1.msra.mxu0 0.0
        %1988 = vmatprep.subr.mxu0 0.0
        %1989 = vmatpush1.msra.mxu0 0.0
        %1990 = vmatprep.subr.mxu0 0.0
        %1991 = vmatpush1.msra.mxu0 0.0
        %1992 = vmatprep.subr.mxu0 0.0
        %1993 = vmatpush1.msra.mxu0 0.0
        %1994 = vmatprep.subr.mxu0 0.0
        %1995 = vmatpush1.msra.mxu0 0.0
        %1996 = vmatprep.subr.mxu0 0.0
        %1997 = vmatpush1.msra.mxu0 0.0
        %1998 = vmatprep.subr.mxu0 0.0
        %1999 = vmatpush1.msra.mxu0 0.0
        %2000 = vmatprep.subr.mxu0 0.0
        %2001 = vmatpush1.msra.mxu0 0.0
        %2002 = vmatprep.subr.mxu0 0.0
        %2003 = vmatpush1.msra.mxu0 0.0
        %2004 = vmatprep.subr.mxu0 0.0
        %2005 = vmatpush1.msra.mxu0 0.0
        %2006 = vmatprep.subr.mxu0 0.0
        %2007 = vmatpush1.msra.mxu0 0.0
        %2008 = vmatprep.subr.mxu0 0.0
        %2009 = vmatpush1.msra.mxu0 0.0
        %2010 = vmatprep.subr.mxu0 0.0
        %2011 = vmatpush1.msra.mxu0 0.0
        %2012 = vmatprep.subr.mxu0 0.0
        %2013 = vmatpush1.msra.mxu0 0.0
        %2014 = vmatprep.subr.mxu0 0.0
        %2015 = vmatpush1.msra.mxu0 0.0
        %2016 = vmatprep.subr.mxu0 0.0
        %2017 = vmatpush1.msra.mxu0 0.0
        %2018 = vmatprep.subr.mxu0 0.0
        %2019 = vmatpush1.msra.mxu0 0.0
        %2020 = vmatprep.subr.mxu0 0.0
        %2021 = vmatpush1.msra.mxu0 0.0
        %2022 = vmatprep.subr.mxu0 0.0
        %2023 = vmatpush1.msra.mxu0 0.0
        %2024 = vmatprep.subr.mxu0 0.0
        %2025 = vmatpush1.msra.mxu0 0.0
        %2026 = vmatprep.subr.mxu0 0.0
        %2027 = vmatpush1.msra.mxu0 0.0
        %2028 = vmatprep.subr.mxu0 0.0
        %2029 = vmatpush1.msra.mxu0 0.0
        %2030 = vmatprep.subr.mxu0 0.0
        %2031 = vmatpush1.msra.mxu0 0.0
        %2032 = vmatprep.subr.mxu0 0.0
        %2033 = vmatpush1.msra.mxu0 0.0
        %2034 = vmatprep.mubr.f32.mxu0 0.0
        %2035 = vmatmul.mubr.f32.gmra.mrb[0].mxu0 %v1968
        %v2036 = vpop.f32.mrb[0].mxu0
        %v2037 = vadd.f32 0.0, %v2036
        %v2038 = vpop.f32.mrb[0].mxu0
        %2039 = vdwg.mxu0
        %v2040 = vadd.f32 %v1965, %v2037
        %v2041 = vxor.u32 %v2040, 2147483648
        %v2042 = vmul.f32 %v2041, 1.442695
        %v2043 = vpow.pop %v2042
        %v2044 = vadd.f32 %v2043, 1.0
        %v2045 = vrcp.pop %v2044
        %v2046 = vmul.f32 1.0, %v2045
        %v2047 = vtanh.pop %v2040
        %v2048 = vld [vmem:[#allocation4] sm:$0x3]
        %2050 = vrot.lane.b32.xlu0 %v2048, 32
        %v2051 = vpop.permute.xlu0 %2050
        %v2053 = vmul.f32 %v2046, %v2051
        %2055 = vrot.lane.b32.xlu0 %v2047, 64
        %v2056 = vpop.permute.xlu0 %2055
        %v2058 = vmul.f32 %v2046, %v2056
        %2060 = vrot.lane.b32.xlu0 %v2058, 32
        %v2061 = vpop.permute.xlu0 %2060
        %v2063 = vadd.f32 %v2053, %v2061
        %v2064 = vtanh.pop %v2063
        %2066 = vrot.lane.b32.xlu0 %v2064, 64
        %v2067 = vpop.permute.xlu0 %2066
        %v2069 = vmul.f32 %v2046, %v2067
        %2071 = vrot.lane.b32.xlu0 %v2063, 96
        %v2072 = vpop.permute.xlu0 %2071
        %2074 = vst.msk [vmem:[#allocation4] sm:$0x3] %vm1598, %v2072
        %2076 = vrot.lane.b32.xlu0 %v2069, 32
        %v2077 = vpop.permute.xlu0 %2076
        %2079 = vst.msk [vmem:[#allocation3] sm:$0x3] %vm1598, %v2077
        %s2080 = scalar_lea.vmem %s324, %s1963 [#allocation5]
        %2081 = vst.msk [vmem:[%s2080] sm:$0x3] %vm1598, %v2077
        %s2082 = scalar_select %p1601, 4, 3
        %s2083 = smul.u32 %s2082, 2
        %s2084 = scalar_lea.vmem [#allocation2], %s2083
        %v2085 = vld [vmem:[%s2084] sm:$0x3]
        %v2086 = vld [vmem:[#allocation3] sm:$0x3]
        %v2088 = vsel %vm378, %v2086, 0
        %2090 = vmatprep.subr.mxu0 0.0
        %2091 = vmatpush1.msra.mxu0 %v364
        %2092 = vmatprep.subr.mxu0 0.0
        %2093 = vmatpush1.msra.mxu0 %v365
        %2094 = vmatprep.subr.mxu0 0.0
        %2095 = vmatpush1.msra.mxu0 %v366
        %2096 = vmatprep.subr.mxu0 0.0
        %2097 = vmatpush1.msra.mxu0 %v367
        %2098 = vmatprep.subr.mxu0 0.0
        %2099 = vmatpush1.msra.mxu0 0.0
        %2100 = vmatprep.subr.mxu0 0.0
        %2101 = vmatpush1.msra.mxu0 0.0
        %2102 = vmatprep.subr.mxu0 0.0
        %2103 = vmatpush1.msra.mxu0 0.0
        %2104 = vmatprep.subr.mxu0 0.0
        %2105 = vmatpush1.msra.mxu0 0.0
        %2106 = vmatprep.subr.mxu0 0.0
        %2107 = vmatpush1.msra.mxu0 0.0
        %2108 = vmatprep.subr.mxu0 0.0
        %2109 = vmatpush1.msra.mxu0 0.0
        %2110 = vmatprep.subr.mxu0 0.0
        %2111 = vmatpush1.msra.mxu0 0.0
        %2112 = vmatprep.subr.mxu0 0.0
        %2113 = vmatpush1.msra.mxu0 0.0
        %2114 = vmatprep.subr.mxu0 0.0
        %2115 = vmatpush1.msra.mxu0 0.0
        %2116 = vmatprep.subr.mxu0 0.0
        %2117 = vmatpush1.msra.mxu0 0.0
        %2118 = vmatprep.subr.mxu0 0.0
        %2119 = vmatpush1.msra.mxu0 0.0
        %2120 = vmatprep.subr.mxu0 0.0
        %2121 = vmatpush1.msra.mxu0 0.0
        %2122 = vmatprep.subr.mxu0 0.0
        %2123 = vmatpush1.msra.mxu0 0.0
        %2124 = vmatprep.subr.mxu0 0.0
        %2125 = vmatpush1.msra.mxu0 0.0
        %2126 = vmatprep.subr.mxu0 0.0
        %2127 = vmatpush1.msra.mxu0 0.0
        %2128 = vmatprep.subr.mxu0 0.0
        %2129 = vmatpush1.msra.mxu0 0.0
        %2130 = vmatprep.subr.mxu0 0.0
        %2131 = vmatpush1.msra.mxu0 0.0
        %2132 = vmatprep.subr.mxu0 0.0
        %2133 = vmatpush1.msra.mxu0 0.0
        %2134 = vmatprep.subr.mxu0 0.0
        %2135 = vmatpush1.msra.mxu0 0.0
        %2136 = vmatprep.subr.mxu0 0.0
        %2137 = vmatpush1.msra.mxu0 0.0
        %2138 = vmatprep.subr.mxu0 0.0
        %2139 = vmatpush1.msra.mxu0 0.0
        %2140 = vmatprep.subr.mxu0 0.0
        %2141 = vmatpush1.msra.mxu0 0.0
        %2142 = vmatprep.subr.mxu0 0.0
        %2143 = vmatpush1.msra.mxu0 0.0
        %2144 = vmatprep.subr.mxu0 0.0
        %2145 = vmatpush1.msra.mxu0 0.0
        %2146 = vmatprep.subr.mxu0 0.0
        %2147 = vmatpush1.msra.mxu0 0.0
        %2148 = vmatprep.subr.mxu0 0.0
        %2149 = vmatpush1.msra.mxu0 0.0
        %2150 = vmatprep.subr.mxu0 0.0
        %2151 = vmatpush1.msra.mxu0 0.0
        %2152 = vmatprep.subr.mxu0 0.0
        %2153 = vmatpush1.msra.mxu0 0.0
        %2154 = vmatprep.mubr.f32.mxu0 0.0
        %2155 = vmatmul.mubr.f32.gmra.mrb[0].mxu0 %v2088
        %v2156 = vpop.f32.mrb[0].mxu0
        %v2157 = vadd.f32 0.0, %v2156
        %v2158 = vpop.f32.mrb[0].mxu0
        %2159 = vdwg.mxu0
        %v2160 = vadd.f32 %v2085, %v2157
        %v2161 = vxor.u32 %v2160, 2147483648
        %v2162 = vmul.f32 %v2161, 1.442695
        %v2163 = vpow.pop %v2162
        %v2164 = vadd.f32 %v2163, 1.0
        %v2165 = vrcp.pop %v2164
        %v2166 = vmul.f32 1.0, %v2165
        %v2167 = vtanh.pop %v2160
        %v2168 = vld [vmem:[#allocation4] sm:$0x3]
        %2170 = vrot.lane.b32.xlu0 %v2168, 32
        %v2171 = vpop.permute.xlu0 %2170
        %v2173 = vmul.f32 %v2166, %v2171
        %2175 = vrot.lane.b32.xlu0 %v2167, 64
        %v2176 = vpop.permute.xlu0 %2175
        %v2178 = vmul.f32 %v2166, %v2176
        %2180 = vrot.lane.b32.xlu0 %v2178, 32
        %v2181 = vpop.permute.xlu0 %2180
        %v2183 = vadd.f32 %v2173, %v2181
        %v2184 = vtanh.pop %v2183
        %2186 = vrot.lane.b32.xlu0 %v2184, 64
        %v2187 = vpop.permute.xlu0 %2186
        %v2189 = vmul.f32 %v2166, %v2187
        %2191 = vrot.lane.b32.xlu0 %v2183, 96
        %v2192 = vpop.permute.xlu0 %2191
        %2194 = vst.msk [vmem:[#allocation4] sm:$0x3] %vm1598, %v2192
        %2196 = vrot.lane.b32.xlu0 %v2189, 32
        %v2197 = vpop.permute.xlu0 %2196
        %2199 = vst.msk [vmem:[#allocation3] sm:$0x3] %vm1598, %v2197
        %s2200 = scalar_lea.vmem %s324, %s2083 [#allocation5]
        %2201 = vst.msk [vmem:[%s2200] sm:$0x3] %vm1598, %v2197
        %s2202 = scalar_select %p1601, 5, 2
        %s2203 = smul.u32 %s2202, 2
        %s2204 = scalar_lea.vmem [#allocation2], %s2203
        %v2205 = vld [vmem:[%s2204] sm:$0x3]
        %v2206 = vld [vmem:[#allocation3] sm:$0x3]
        %v2208 = vsel %vm378, %v2206, 0
        %2210 = vmatprep.subr.mxu0 0.0
        %2211 = vmatpush1.msra.mxu0 %v364
        %2212 = vmatprep.subr.mxu0 0.0
        %2213 = vmatpush1.msra.mxu0 %v365
        %2214 = vmatprep.subr.mxu0 0.0
        %2215 = vmatpush1.msra.mxu0 %v366
        %2216 = vmatprep.subr.mxu0 0.0
        %2217 = vmatpush1.msra.mxu0 %v367
        %2218 = vmatprep.subr.mxu0 0.0
        %2219 = vmatpush1.msra.mxu0 0.0
        %2220 = vmatprep.subr.mxu0 0.0
        %2221 = vmatpush1.msra.mxu0 0.0
        %2222 = vmatprep.subr.mxu0 0.0
        %2223 = vmatpush1.msra.mxu0 0.0
        %2224 = vmatprep.subr.mxu0 0.0
        %2225 = vmatpush1.msra.mxu0 0.0
        %2226 = vmatprep.subr.mxu0 0.0
        %2227 = vmatpush1.msra.mxu0 0.0
        %2228 = vmatprep.subr.mxu0 0.0
        %2229 = vmatpush1.msra.mxu0 0.0
        %2230 = vmatprep.subr.mxu0 0.0
        %2231 = vmatpush1.msra.mxu0 0.0
        %2232 = vmatprep.subr.mxu0 0.0
        %2233 = vmatpush1.msra.mxu0 0.0
        %2234 = vmatprep.subr.mxu0 0.0
        %2235 = vmatpush1.msra.mxu0 0.0
        %2236 = vmatprep.subr.mxu0 0.0
        %2237 = vmatpush1.msra.mxu0 0.0
        %2238 = vmatprep.subr.mxu0 0.0
        %2239 = vmatpush1.msra.mxu0 0.0
        %2240 = vmatprep.subr.mxu0 0.0
        %2241 = vmatpush1.msra.mxu0 0.0
        %2242 = vmatprep.subr.mxu0 0.0
        %2243 = vmatpush1.msra.mxu0 0.0
        %2244 = vmatprep.subr.mxu0 0.0
        %2245 = vmatpush1.msra.mxu0 0.0
        %2246 = vmatprep.subr.mxu0 0.0
        %2247 = vmatpush1.msra.mxu0 0.0
        %2248 = vmatprep.subr.mxu0 0.0
        %2249 = vmatpush1.msra.mxu0 0.0
        %2250 = vmatprep.subr.mxu0 0.0
        %2251 = vmatpush1.msra.mxu0 0.0
        %2252 = vmatprep.subr.mxu0 0.0
        %2253 = vmatpush1.msra.mxu0 0.0
        %2254 = vmatprep.subr.mxu0 0.0
        %2255 = vmatpush1.msra.mxu0 0.0
        %2256 = vmatprep.subr.mxu0 0.0
        %2257 = vmatpush1.msra.mxu0 0.0
        %2258 = vmatprep.subr.mxu0 0.0
        %2259 = vmatpush1.msra.mxu0 0.0
        %2260 = vmatprep.subr.mxu0 0.0
        %2261 = vmatpush1.msra.mxu0 0.0
        %2262 = vmatprep.subr.mxu0 0.0
        %2263 = vmatpush1.msra.mxu0 0.0
        %2264 = vmatprep.subr.mxu0 0.0
        %2265 = vmatpush1.msra.mxu0 0.0
        %2266 = vmatprep.subr.mxu0 0.0
        %2267 = vmatpush1.msra.mxu0 0.0
        %2268 = vmatprep.subr.mxu0 0.0
        %2269 = vmatpush1.msra.mxu0 0.0
        %2270 = vmatprep.subr.mxu0 0.0
        %2271 = vmatpush1.msra.mxu0 0.0
        %2272 = vmatprep.subr.mxu0 0.0
        %2273 = vmatpush1.msra.mxu0 0.0
        %2274 = vmatprep.mubr.f32.mxu0 0.0
        %2275 = vmatmul.mubr.f32.gmra.mrb[0].mxu0 %v2208
        %v2276 = vpop.f32.mrb[0].mxu0
        %v2277 = vadd.f32 0.0, %v2276
        %v2278 = vpop.f32.mrb[0].mxu0
        %2279 = vdwg.mxu0
        %v2280 = vadd.f32 %v2205, %v2277
        %v2281 = vxor.u32 %v2280, 2147483648
        %v2282 = vmul.f32 %v2281, 1.442695
        %v2283 = vpow.pop %v2282
        %v2284 = vadd.f32 %v2283, 1.0
        %v2285 = vrcp.pop %v2284
        %v2286 = vmul.f32 1.0, %v2285
        %v2287 = vtanh.pop %v2280
        %v2288 = vld [vmem:[#allocation4] sm:$0x3]
        %2290 = vrot.lane.b32.xlu0 %v2288, 32
        %v2291 = vpop.permute.xlu0 %2290
        %v2293 = vmul.f32 %v2286, %v2291
        %2295 = vrot.lane.b32.xlu0 %v2287, 64
        %v2296 = vpop.permute.xlu0 %2295
        %v2298 = vmul.f32 %v2286, %v2296
        %2300 = vrot.lane.b32.xlu0 %v2298, 32
        %v2301 = vpop.permute.xlu0 %2300
        %v2303 = vadd.f32 %v2293, %v2301
        %v2304 = vtanh.pop %v2303
        %2306 = vrot.lane.b32.xlu0 %v2304, 64
        %v2307 = vpop.permute.xlu0 %2306
        %v2309 = vmul.f32 %v2286, %v2307
        %2311 = vrot.lane.b32.xlu0 %v2303, 96
        %v2312 = vpop.permute.xlu0 %2311
        %2314 = vst.msk [vmem:[#allocation4] sm:$0x3] %vm1598, %v2312
        %2316 = vrot.lane.b32.xlu0 %v2309, 32
        %v2317 = vpop.permute.xlu0 %2316
        %2319 = vst.msk [vmem:[#allocation3] sm:$0x3] %vm1598, %v2317
        %s2320 = scalar_lea.vmem %s324, %s2203 [#allocation5]
        %2321 = vst.msk [vmem:[%s2320] sm:$0x3] %vm1598, %v2317
        %s2322 = scalar_select %p1601, 6, 1
        %s2323 = smul.u32 %s2322, 2
        %s2324 = scalar_lea.vmem [#allocation2], %s2323
        %v2325 = vld [vmem:[%s2324] sm:$0x3]
        %v2326 = vld [vmem:[#allocation3] sm:$0x3]
        %v2328 = vsel %vm378, %v2326, 0
        %2330 = vmatprep.subr.mxu0 0.0
        %2331 = vmatpush1.msra.mxu0 %v364
        %2332 = vmatprep.subr.mxu0 0.0
        %2333 = vmatpush1.msra.mxu0 %v365
        %2334 = vmatprep.subr.mxu0 0.0
        %2335 = vmatpush1.msra.mxu0 %v366
        %2336 = vmatprep.subr.mxu0 0.0
        %2337 = vmatpush1.msra.mxu0 %v367
        %2338 = vmatprep.subr.mxu0 0.0
        %2339 = vmatpush1.msra.mxu0 0.0
        %2340 = vmatprep.subr.mxu0 0.0
        %2341 = vmatpush1.msra.mxu0 0.0
        %2342 = vmatprep.subr.mxu0 0.0
        %2343 = vmatpush1.msra.mxu0 0.0
        %2344 = vmatprep.subr.mxu0 0.0
        %2345 = vmatpush1.msra.mxu0 0.0
        %2346 = vmatprep.subr.mxu0 0.0
        %2347 = vmatpush1.msra.mxu0 0.0
        %2348 = vmatprep.subr.mxu0 0.0
        %2349 = vmatpush1.msra.mxu0 0.0
        %2350 = vmatprep.subr.mxu0 0.0
        %2351 = vmatpush1.msra.mxu0 0.0
        %2352 = vmatprep.subr.mxu0 0.0
        %2353 = vmatpush1.msra.mxu0 0.0
        %2354 = vmatprep.subr.mxu0 0.0
        %2355 = vmatpush1.msra.mxu0 0.0
        %2356 = vmatprep.subr.mxu0 0.0
        %2357 = vmatpush1.msra.mxu0 0.0
        %2358 = vmatprep.subr.mxu0 0.0
        %2359 = vmatpush1.msra.mxu0 0.0
        %2360 = vmatprep.subr.mxu0 0.0
        %2361 = vmatpush1.msra.mxu0 0.0
        %2362 = vmatprep.subr.mxu0 0.0
        %2363 = vmatpush1.msra.mxu0 0.0
        %2364 = vmatprep.subr.mxu0 0.0
        %2365 = vmatpush1.msra.mxu0 0.0
        %2366 = vmatprep.subr.mxu0 0.0
        %2367 = vmatpush1.msra.mxu0 0.0
        %2368 = vmatprep.subr.mxu0 0.0
        %2369 = vmatpush1.msra.mxu0 0.0
        %2370 = vmatprep.subr.mxu0 0.0
        %2371 = vmatpush1.msra.mxu0 0.0
        %2372 = vmatprep.subr.mxu0 0.0
        %2373 = vmatpush1.msra.mxu0 0.0
        %2374 = vmatprep.subr.mxu0 0.0
        %2375 = vmatpush1.msra.mxu0 0.0
        %2376 = vmatprep.subr.mxu0 0.0
        %2377 = vmatpush1.msra.mxu0 0.0
        %2378 = vmatprep.subr.mxu0 0.0
        %2379 = vmatpush1.msra.mxu0 0.0
        %2380 = vmatprep.subr.mxu0 0.0
        %2381 = vmatpush1.msra.mxu0 0.0
        %2382 = vmatprep.subr.mxu0 0.0
        %2383 = vmatpush1.msra.mxu0 0.0
        %2384 = vmatprep.subr.mxu0 0.0
        %2385 = vmatpush1.msra.mxu0 0.0
        %2386 = vmatprep.subr.mxu0 0.0
        %2387 = vmatpush1.msra.mxu0 0.0
        %2388 = vmatprep.subr.mxu0 0.0
        %2389 = vmatpush1.msra.mxu0 0.0
        %2390 = vmatprep.subr.mxu0 0.0
        %2391 = vmatpush1.msra.mxu0 0.0
        %2392 = vmatprep.subr.mxu0 0.0
        %2393 = vmatpush1.msra.mxu0 0.0
        %2394 = vmatprep.mubr.f32.mxu0 0.0
        %2395 = vmatmul.mubr.f32.gmra.mrb[0].mxu0 %v2328
        %v2396 = vpop.f32.mrb[0].mxu0
        %v2397 = vadd.f32 0.0, %v2396
        %v2398 = vpop.f32.mrb[0].mxu0
        %2399 = vdwg.mxu0
        %v2400 = vadd.f32 %v2325, %v2397
        %v2401 = vxor.u32 %v2400, 2147483648
        %v2402 = vmul.f32 %v2401, 1.442695
        %v2403 = vpow.pop %v2402
        %v2404 = vadd.f32 %v2403, 1.0
        %v2405 = vrcp.pop %v2404
        %v2406 = vmul.f32 1.0, %v2405
        %v2407 = vtanh.pop %v2400
        %v2408 = vld [vmem:[#allocation4] sm:$0x3]
        %2410 = vrot.lane.b32.xlu0 %v2408, 32
        %v2411 = vpop.permute.xlu0 %2410
        %v2413 = vmul.f32 %v2406, %v2411
        %2415 = vrot.lane.b32.xlu0 %v2407, 64
        %v2416 = vpop.permute.xlu0 %2415
        %v2418 = vmul.f32 %v2406, %v2416
        %2420 = vrot.lane.b32.xlu0 %v2418, 32
        %v2421 = vpop.permute.xlu0 %2420
        %v2423 = vadd.f32 %v2413, %v2421
        %v2424 = vtanh.pop %v2423
        %2426 = vrot.lane.b32.xlu0 %v2424, 64
        %v2427 = vpop.permute.xlu0 %2426
        %v2429 = vmul.f32 %v2406, %v2427
        %2431 = vrot.lane.b32.xlu0 %v2423, 96
        %v2432 = vpop.permute.xlu0 %2431
        %2434 = vst.msk [vmem:[#allocation4] sm:$0x3] %vm1598, %v2432
        %2436 = vrot.lane.b32.xlu0 %v2429, 32
        %v2437 = vpop.permute.xlu0 %2436
        %2439 = vst.msk [vmem:[#allocation3] sm:$0x3] %vm1598, %v2437
        %s2440 = scalar_lea.vmem %s324, %s2323 [#allocation5]
        %2441 = vst.msk [vmem:[%s2440] sm:$0x3] %vm1598, %v2437
        %s2442 = scalar_select %p1601, 7, 0
        %s2443 = smul.u32 %s2442, 2
        %s2444 = scalar_lea.vmem [#allocation2], %s2443
        %v2445 = vld [vmem:[%s2444] sm:$0x3]
        %v2446 = vld [vmem:[#allocation3] sm:$0x3]
        %v2448 = vsel %vm378, %v2446, 0
        %2450 = vmatprep.subr.mxu0 0.0
        %2451 = vmatpush1.msra.mxu0 %v364
        %2452 = vmatprep.subr.mxu0 0.0
        %2453 = vmatpush1.msra.mxu0 %v365
        %2454 = vmatprep.subr.mxu0 0.0
        %2455 = vmatpush1.msra.mxu0 %v366
        %2456 = vmatprep.subr.mxu0 0.0
        %2457 = vmatpush1.msra.mxu0 %v367
        %2458 = vmatprep.subr.mxu0 0.0
        %2459 = vmatpush1.msra.mxu0 0.0
        %2460 = vmatprep.subr.mxu0 0.0
        %2461 = vmatpush1.msra.mxu0 0.0
        %2462 = vmatprep.subr.mxu0 0.0
        %2463 = vmatpush1.msra.mxu0 0.0
        %2464 = vmatprep.subr.mxu0 0.0
        %2465 = vmatpush1.msra.mxu0 0.0
        %2466 = vmatprep.subr.mxu0 0.0
        %2467 = vmatpush1.msra.mxu0 0.0
        %2468 = vmatprep.subr.mxu0 0.0
        %2469 = vmatpush1.msra.mxu0 0.0
        %2470 = vmatprep.subr.mxu0 0.0
        %2471 = vmatpush1.msra.mxu0 0.0
        %2472 = vmatprep.subr.mxu0 0.0
        %2473 = vmatpush1.msra.mxu0 0.0
        %2474 = vmatprep.subr.mxu0 0.0
        %2475 = vmatpush1.msra.mxu0 0.0
        %2476 = vmatprep.subr.mxu0 0.0
        %2477 = vmatpush1.msra.mxu0 0.0
        %2478 = vmatprep.subr.mxu0 0.0
        %2479 = vmatpush1.msra.mxu0 0.0
        %2480 = vmatprep.subr.mxu0 0.0
        %2481 = vmatpush1.msra.mxu0 0.0
        %2482 = vmatprep.subr.mxu0 0.0
        %2483 = vmatpush1.msra.mxu0 0.0
        %2484 = vmatprep.subr.mxu0 0.0
        %2485 = vmatpush1.msra.mxu0 0.0
        %2486 = vmatprep.subr.mxu0 0.0
        %2487 = vmatpush1.msra.mxu0 0.0
        %2488 = vmatprep.subr.mxu0 0.0
        %2489 = vmatpush1.msra.mxu0 0.0
        %2490 = vmatprep.subr.mxu0 0.0
        %2491 = vmatpush1.msra.mxu0 0.0
        %2492 = vmatprep.subr.mxu0 0.0
        %2493 = vmatpush1.msra.mxu0 0.0
        %2494 = vmatprep.subr.mxu0 0.0
        %2495 = vmatpush1.msra.mxu0 0.0
        %2496 = vmatprep.subr.mxu0 0.0
        %2497 = vmatpush1.msra.mxu0 0.0
        %2498 = vmatprep.subr.mxu0 0.0
        %2499 = vmatpush1.msra.mxu0 0.0
        %2500 = vmatprep.subr.mxu0 0.0
        %2501 = vmatpush1.msra.mxu0 0.0
        %2502 = vmatprep.subr.mxu0 0.0
        %2503 = vmatpush1.msra.mxu0 0.0
        %2504 = vmatprep.subr.mxu0 0.0
        %2505 = vmatpush1.msra.mxu0 0.0
        %2506 = vmatprep.subr.mxu0 0.0
        %2507 = vmatpush1.msra.mxu0 0.0
        %2508 = vmatprep.subr.mxu0 0.0
        %2509 = vmatpush1.msra.mxu0 0.0
        %2510 = vmatprep.subr.mxu0 0.0
        %2511 = vmatpush1.msra.mxu0 0.0
        %2512 = vmatprep.subr.mxu0 0.0
        %2513 = vmatpush1.msra.mxu0 0.0
        %2514 = vmatprep.mubr.f32.mxu0 0.0
        %2515 = vmatmul.mubr.f32.gmra.mrb[0].mxu0 %v2448
        %v2516 = vpop.f32.mrb[0].mxu0
        %v2517 = vadd.f32 0.0, %v2516
        %v2518 = vpop.f32.mrb[0].mxu0
        %2519 = vdwg.mxu0
        %v2520 = vadd.f32 %v2445, %v2517
        %v2521 = vxor.u32 %v2520, 2147483648
        %v2522 = vmul.f32 %v2521, 1.442695
        %v2523 = vpow.pop %v2522
        %v2524 = vadd.f32 %v2523, 1.0
        %v2525 = vrcp.pop %v2524
        %v2526 = vmul.f32 1.0, %v2525
        %v2527 = vtanh.pop %v2520
        %v2528 = vld [vmem:[#allocation4] sm:$0x3]
        %2530 = vrot.lane.b32.xlu0 %v2528, 32
        %v2531 = vpop.permute.xlu0 %2530
        %v2533 = vmul.f32 %v2526, %v2531
        %2535 = vrot.lane.b32.xlu0 %v2527, 64
        %v2536 = vpop.permute.xlu0 %2535
        %v2538 = vmul.f32 %v2526, %v2536
        %2540 = vrot.lane.b32.xlu0 %v2538, 32
        %v2541 = vpop.permute.xlu0 %2540
        %v2543 = vadd.f32 %v2533, %v2541
        %v2544 = vtanh.pop %v2543
        %2546 = vrot.lane.b32.xlu0 %v2544, 64
        %v2547 = vpop.permute.xlu0 %2546
        %v2549 = vmul.f32 %v2526, %v2547
        %2551 = vrot.lane.b32.xlu0 %v2543, 96
        %v2552 = vpop.permute.xlu0 %2551
        %2554 = vst.msk [vmem:[#allocation4] sm:$0x3] %vm1598, %v2552
        %2556 = vrot.lane.b32.xlu0 %v2549, 32
        %v2557 = vpop.permute.xlu0 %2556
        %2559 = vst.msk [vmem:[#allocation3] sm:$0x3] %vm1598, %v2557
        %s2560 = scalar_lea.vmem %s324, %s2443 [#allocation5]
        %2561 = vst.msk [vmem:[%s2560] sm:$0x3] %vm1598, %v2557
        %s2562 = scalar_lea.vmem %s324, 14 [#allocation5]
        %v2563 = vld [vmem:[%s2562] sm:$0x3]
        %v2564 = vld [vmem:[%s348] sm:$0xff]
        %v2565 = vld [vmem:[%s348 + $0x8] sm:$0xff]
        %v2566 = vld [vmem:[%s348 + $0x10] sm:$0xff]
        %v2567 = vld [vmem:[%s348 + $0x18] sm:$0xff]
        %v2568 = vld [vmem:[%s351] sm:$0x1]
        %v2570 = vlaneseq
        %v2571 = vshrl.u32 %v2570, 7
        %v2572 = vsub.s32 0, %v2571
        %v2573 = vrot.slane %v2568, %v2572
        %v2576 = vsel %vm378, %v2563, 0
        %2578 = vmatprep.subr.mxu0 0.0
        %2579 = vmatpush1.msra.mxu0 %v2564
        %2580 = vmatprep.subr.mxu0 0.0
        %2581 = vmatpush1.msra.mxu0 %v2565
        %2582 = vmatprep.subr.mxu0 0.0
        %2583 = vmatpush1.msra.mxu0 %v2566
        %2584 = vmatprep.subr.mxu0 0.0
        %2585 = vmatpush1.msra.mxu0 %v2567
        %2586 = vmatprep.subr.mxu0 0.0
        %2587 = vmatpush1.msra.mxu0 0.0
        %2588 = vmatprep.subr.mxu0 0.0
        %2589 = vmatpush1.msra.mxu0 0.0
        %2590 = vmatprep.subr.mxu0 0.0
        %2591 = vmatpush1.msra.mxu0 0.0
        %2592 = vmatprep.subr.mxu0 0.0
        %2593 = vmatpush1.msra.mxu0 0.0
        %2594 = vmatprep.subr.mxu0 0.0
        %2595 = vmatpush1.msra.mxu0 0.0
        %2596 = vmatprep.subr.mxu0 0.0
        %2597 = vmatpush1.msra.mxu0 0.0
        %2598 = vmatprep.subr.mxu0 0.0
        %2599 = vmatpush1.msra.mxu0 0.0
        %2600 = vmatprep.subr.mxu0 0.0
        %2601 = vmatpush1.msra.mxu0 0.0
        %2602 = vmatprep.subr.mxu0 0.0
        %2603 = vmatpush1.msra.mxu0 0.0
        %2604 = vmatprep.subr.mxu0 0.0
        %2605 = vmatpush1.msra.mxu0 0.0
        %2606 = vmatprep.subr.mxu0 0.0
        %2607 = vmatpush1.msra.mxu0 0.0
        %2608 = vmatprep.subr.mxu0 0.0
        %2609 = vmatpush1.msra.mxu0 0.0
        %2610 = vmatprep.subr.mxu0 0.0
        %2611 = vmatpush1.msra.mxu0 0.0
        %2612 = vmatprep.subr.mxu0 0.0
        %2613 = vmatpush1.msra.mxu0 0.0
        %2614 = vmatprep.subr.mxu0 0.0
        %2615 = vmatpush1.msra.mxu0 0.0
        %2616 = vmatprep.subr.mxu0 0.0
        %2617 = vmatpush1.msra.mxu0 0.0
        %2618 = vmatprep.subr.mxu0 0.0
        %2619 = vmatpush1.msra.mxu0 0.0
        %2620 = vmatprep.subr.mxu0 0.0
        %2621 = vmatpush1.msra.mxu0 0.0
        %2622 = vmatprep.subr.mxu0 0.0
        %2623 = vmatpush1.msra.mxu0 0.0
        %2624 = vmatprep.subr.mxu0 0.0
        %2625 = vmatpush1.msra.mxu0 0.0
        %2626 = vmatprep.subr.mxu0 0.0
        %2627 = vmatpush1.msra.mxu0 0.0
        %2628 = vmatprep.subr.mxu0 0.0
        %2629 = vmatpush1.msra.mxu0 0.0
        %2630 = vmatprep.subr.mxu0 0.0
        %2631 = vmatpush1.msra.mxu0 0.0
        %2632 = vmatprep.subr.mxu0 0.0
        %2633 = vmatpush1.msra.mxu0 0.0
        %2634 = vmatprep.subr.mxu0 0.0
        %2635 = vmatpush1.msra.mxu0 0.0
        %2636 = vmatprep.subr.mxu0 0.0
        %2637 = vmatpush1.msra.mxu0 0.0
        %2638 = vmatprep.subr.mxu0 0.0
        %2639 = vmatpush1.msra.mxu0 0.0
        %2640 = vmatprep.subr.mxu0 0.0
        %2641 = vmatpush1.msra.mxu0 0.0
        %2642 = vmatprep.mubr.f32.mxu0 0.0
        %2643 = vmatmul.mubr.f32.gmra.mrb[0].mxu0 %v2576
        %v2644 = vpop.f32.mrb[0].mxu0
        %v2645 = vadd.f32 %v2573, %v2644
        %v2646 = vpop.f32.mrb[0].mxu0
        %2647 = vdwg.mxu0
        %vm2648 = vcmask 9216
        %2649 = vst.msk [vmem:[%s355] sm:$0x3] %vm2648, %v2645
        %s2650 = sand.u32 %s181, 1
        %s2651 = scalar_lea.sflag [#allocation6], %s2650
        %s2652 = sand.u32 %s181, 1
        %s2653 = smul.addr %s2652, 16
        %s2654 = scalar_lea.vmem [#allocation5], %s2653
        %p2655 = scmp.lt.s32.totalorder %s22, 1
        %s2656 = scalar_select %p2655, %s22, 1
        %s2657 = smul.addr %s2656, 2
        %s2658 = scalar_lea.vmem %s7, %s2657
        // Predicated region
        $region45: #{sentiment_forward.3} parent=43 // pred_check
          %p2659 = pneg %p191
        $region46: #{sentiment_forward.3} parent=43 // pred_check_branch
          %2661 = sbr.rel (%p2659) target = $region48
        $region47: #{sentiment_forward.3} parent=43 // pred_region
          %s2663 = ssub.s32 256, 256
          %2664 = vsyncadd %s2651, %s2663
          %s2665 = smul.addr %s22, 8
          %s2666 = smul.addr %s2665, 32
          %s2667 = scalar_lea.hbm %s6, %s2666
          %s2668 = sshll.u32 %s2654, 4
          %s2669 = int_to_ptr.vmem [resolvable:$true] %s2668
          %2674 = dma.vmem_to_hbm [thread:$0]  %s2669, 256, %s2667, %s2651, 32, 32, 2
        $region48: #{sentiment_forward.3} parent=43 // pred_fallthru
          _
        // Predicated region
        $region49: #{sentiment_forward.3} parent=43 // pred_check
          %p2675 = pneg %p217
        $region50: #{sentiment_forward.3} parent=43 // pred_check_branch
          %2677 = sbr.rel (%p2675) target = $region52
        $region51: #{sentiment_forward.3} parent=43 // pred_region
          _
        $region52: #{sentiment_forward.3} parent=43 // pred_fallthru
          _
      $region44: #{sentiment_forward.3} parent=5 // pred_fallthru
        _
      %p2678 = scmp.le.s32.totalorder 2, %s17
      // Predicated region
      $region53: #{sentiment_forward.3} parent=5 // pred_check
        %p2679 = pneg %p2678
      $region54: #{sentiment_forward.3} parent=5 // pred_check_branch
        %2681 = sbr.rel (%p2679) target = $region56
      $region55: #{sentiment_forward.3} parent=5 // pred_region
        %s2682 = ssub.s32 %s17, 2
        // Predicated region
        $region57: #{sentiment_forward.3} parent=55 // pred_check
          %p2683 = pneg %p197
        $region58: #{sentiment_forward.3} parent=55 // pred_check_branch
          %2685 = sbr.rel (%p2683) target = $region60
        $region59: #{sentiment_forward.3} parent=55 // pred_region
          %s2686 = sand.u32 %s182, 1
          %s2687 = scalar_lea.sflag [#allocation6], %s2686
          %s2688 = sand.u32 %s182, 1
          %s2689 = smul.addr %s2688, 16
          %s2690 = scalar_lea.vmem [#allocation5], %s2689
          %2691 = dma.done %s2687, 256
        $region60: #{sentiment_forward.3} parent=55 // pred_fallthru
          _
        // Predicated region
        $region61: #{sentiment_forward.3} parent=55 // pred_check
          %p2692 = pneg %p223
        $region62: #{sentiment_forward.3} parent=55 // pred_check_branch
          %2694 = sbr.rel (%p2692) target = $region64
        $region63: #{sentiment_forward.3} parent=55 // pred_region
          %p2695 = scmp.lt.s32.totalorder %s23, 1
          %s2696 = scalar_select %p2695, %s23, 1
          %s2697 = smul.addr %s2696, 2
          %s2698 = scalar_lea.vmem %s7, %s2697
        $region64: #{sentiment_forward.3} parent=55 // pred_fallthru
          _
      $region56: #{sentiment_forward.3} parent=5 // pred_fallthru
        _
    $region6: #{sentiment_forward.3} parent=1 // loop_footer
      %s21 = sadd.s32 1, %s17
    $region7: #{sentiment_forward.3} parent=1 // loop_footer_branch
      %16 = sbr.rel target = $region3
    $region8: #{sentiment_forward.3} parent=1 // loop_exit
      _
    %2699 = vsyncpa [#allocation6], 1
    %s2700 = scalar_lea.sflag [#allocation6], 1
    %2701 = vsyncpa %s2700, 1

</llo_original>
